<compile_context>
chip_gen: v7x
topology: tpu7x:2x2x1
jax: 0.10.0
libtpu: 0.0.40
codegen_flags: <defaults>
</compile_context>

<pallas_src>
import functools

import jax
import jax.numpy as jnp
from jax.experimental import pallas as pl
from jax.experimental.pallas import tpu as pltpu

LANE = 128
VMEM_LIMIT_BYTES = 32 * 1024 * 1024  # safe on v5e/v6e (128 MiB) and v7x (64 MiB)


# ----------------------------------------------------------------------------
# padding helpers
# ----------------------------------------------------------------------------

def _round_up(n, m):
    return ((n + m - 1) // m) * m


def _pick_tile(n, candidates=(512, 256, 128)):
    for t in candidates:
        if n % t == 0:
            return t
    return n  # n is always a multiple of 128 here


def _pad2d(x, rows, cols):
    return jnp.pad(x, ((0, rows - x.shape[0]), (0, cols - x.shape[1])))


def _pad1d(x, n):
    return jnp.pad(x, (0, n - x.shape[0]))


# ----------------------------------------------------------------------------
# Generic tiled matmul:  out = act(A @ B + bias)
# grid = (M//TM, K//TK); f32 accumulator scratch; bf16 MXU operands.
# ----------------------------------------------------------------------------

def _matmul_kernel(a_ref, b_ref, bias_ref, o_ref, acc_ref, *, relu, bf16):
    @pl.when(pl.program_id(1) == 0)
    def _():
        acc_ref[...] = jnp.zeros_like(acc_ref)

    a = a_ref[...]
    b = b_ref[...]
    if bf16:
        a = a.astype(jnp.bfloat16)
        b = b.astype(jnp.bfloat16)
    acc_ref[...] += jnp.dot(a, b, preferred_element_type=jnp.float32)

    @pl.when(pl.program_id(1) == pl.num_programs(1) - 1)
    def _():
        out = acc_ref[...] + bias_ref[...]        # f32 elementwise (v5e-safe)
        if relu:
            out = jnp.maximum(out, 0.0)
        o_ref[...] = out


def matmul_bias_act(a, b, bias2d, *, relu=False, bf16=True):
    """a: (M, K), b: (K, N), bias2d: (1, N). M, K, N multiples of 128."""
    m, k = a.shape
    k2, n = b.shape
    assert k == k2 and bias2d.shape == (1, n)
    tm = _pick_tile(m)
    tk = _pick_tile(k)
    grid = (m // tm, k // tk)

    cost = pl.CostEstimate(
        flops=2 * m * k * n,
        transcendentals=0,
        bytes_accessed=int(m * k * a.dtype.itemsize + k * n * 4 + m * n * 4 + n * 4),
    )
    return pl.pallas_call(
        functools.partial(_matmul_kernel, relu=relu, bf16=bf16),
        out_shape=jax.ShapeDtypeStruct((m, n), jnp.float32),
        grid_spec=pltpu.PrefetchScalarGridSpec(
            num_scalar_prefetch=0,
            grid=grid,
            in_specs=[
                pl.BlockSpec((tm, tk), lambda i, kk: (i, kk)),
                pl.BlockSpec((tk, n), lambda i, kk: (kk, 0)),
                pl.BlockSpec((1, n), lambda i, kk: (0, 0)),
            ],
            out_specs=pl.BlockSpec((tm, n), lambda i, kk: (i, 0)),
            scratch_shapes=[pltpu.VMEM((tm, n), jnp.float32)],
        ),
        compiler_params=pltpu.CompilerParams(
            dimension_semantics=("parallel", "arbitrary"),
            vmem_limit_bytes=VMEM_LIMIT_BYTES,
        ),
        cost_estimate=cost,
    )(a, b, bias2d)


# ----------------------------------------------------------------------------
# Fused cos2weight + MLP kernel, row-tiled over cells.
#   w  = softmax(cos_sim(cemb, gemb), axis=1)   (pad gene columns masked out)
#   xw = w * x
#   z  = relu(xw @ W1 + b1) @ W2 + b2
# ----------------------------------------------------------------------------

def _cosweight_mlp_kernel(c_ref, g_ref, x_ref, w1_ref, b1_ref, w2_ref, b2_ref,
                          xw_ref, z_ref, *, n_genes, ng_pad):
    c = c_ref[...]
    g = g_ref[...]

    # L2-normalize rows BEFORE the similarity matmul (cheap: O((TM+Ng)*pc));
    # rsqrt routes to the EUP slot.
    c_hat = c * jax.lax.rsqrt(jnp.sum(c * c, axis=1, keepdims=True) + 1e-12)
    g_hat = g * jax.lax.rsqrt(jnp.sum(g * g, axis=1, keepdims=True) + 1e-12)

    # Contract the last dims directly — no in-kernel g.T.
    sim = jax.lax.dot_general(
        c_hat, g_hat, (((1,), (1,)), ((), ())),
        preferred_element_type=jnp.float32)                       # (TM, Ng_pad)

    if n_genes < ng_pad:  # mask zero-padded gene columns out of the softmax
        col = jax.lax.broadcasted_iota(jnp.int32, sim.shape, 1)
        sim = jnp.where(col < n_genes, sim, -jnp.inf)

    m = jnp.max(sim, axis=1, keepdims=True)
    e = jnp.exp(sim - m)
    denom = jnp.sum(e, axis=1, keepdims=True)
    w = e * pl.reciprocal(denom, approx=True)

    xw = w * x_ref[...]
    xw_ref[...] = xw

    # fused MLP on the resident row tile (saves an HBM round-trip of xw)
    h = jnp.dot(xw, w1_ref[...], preferred_element_type=jnp.float32) + b1_ref[...]
    h = jnp.maximum(h, 0.0)
    z_ref[...] = jnp.dot(h, w2_ref[...], preferred_element_type=jnp.float32) + b2_ref[...]


def cosweight_mlp(cemb, gemb, x, w1, b1_2d, w2, b2_2d, *, n_genes):
    nc_pad, pc_pad = cemb.shape
    ng_pad = gemb.shape[0]
    in_pad = x.shape[1]
    mid_pad = w1.shape[1]
    out_pad = w2.shape[1]
    assert in_pad == ng_pad, "x feature dim must equal gene count (padded)"

    tm = _pick_tile(nc_pad, (256, 128))
    grid = (nc_pad // tm,)

    cost = pl.CostEstimate(
        flops=int(2 * nc_pad * pc_pad * ng_pad + 2 * nc_pad * in_pad * mid_pad
                  + 2 * nc_pad * mid_pad * out_pad + 6 * nc_pad * ng_pad),
        transcendentals=int(nc_pad * ng_pad + nc_pad + ng_pad),
        bytes_accessed=int(4 * (nc_pad * pc_pad + ng_pad * pc_pad
                                + 2 * nc_pad * in_pad + in_pad * mid_pad
                                + mid_pad * out_pad + nc_pad * out_pad)),
    )
    return pl.pallas_call(
        functools.partial(_cosweight_mlp_kernel, n_genes=n_genes, ng_pad=ng_pad),
        out_shape=(jax.ShapeDtypeStruct((nc_pad, in_pad), jnp.float32),
                   jax.ShapeDtypeStruct((nc_pad, out_pad), jnp.float32)),
        grid_spec=pltpu.PrefetchScalarGridSpec(
            num_scalar_prefetch=0,
            grid=grid,
            in_specs=[
                pl.BlockSpec((tm, pc_pad), lambda i: (i, 0)),
                pl.BlockSpec((ng_pad, pc_pad), lambda i: (0, 0)),
                pl.BlockSpec((tm, in_pad), lambda i: (i, 0)),
                pl.BlockSpec((in_pad, mid_pad), lambda i: (0, 0)),
                pl.BlockSpec((1, mid_pad), lambda i: (0, 0)),
                pl.BlockSpec((mid_pad, out_pad), lambda i: (0, 0)),
                pl.BlockSpec((1, out_pad), lambda i: (0, 0)),
            ],
            out_specs=[
                pl.BlockSpec((tm, in_pad), lambda i: (i, 0)),
                pl.BlockSpec((tm, out_pad), lambda i: (i, 0)),
            ],
        ),
        compiler_params=pltpu.CompilerParams(
            dimension_semantics=("parallel",),
            vmem_limit_bytes=VMEM_LIMIT_BYTES,
        ),
        cost_estimate=cost,
    )(cemb, gemb, x, w1, b1_2d, w2, b2_2d)


# ----------------------------------------------------------------------------
# Plain-JAX glue: symmetric-normalized dense adjacency (bf16, zero-padded)
# ----------------------------------------------------------------------------

def build_gcn_adj(edge_index, num_nodes, n_pad):
    """A_hat = D^{-1/2} (A + I) D^{-1/2}, zero-padded to (n_pad, n_pad), bf16."""
    src, dst = edge_index[0], edge_index[1]
    a = jnp.zeros((num_nodes, num_nodes), jnp.float32)
    a = a.at[dst, src].add(1.0)                      # messages flow src -> dst
    a = a + jnp.eye(num_nodes, dtype=jnp.float32)
    deg = jnp.sum(a, axis=1)
    d_inv_sqrt = jax.lax.rsqrt(jnp.maximum(deg, 1e-12))
    a_hat = a * d_inv_sqrt[:, None] * d_inv_sqrt[None, :]
    a_hat = _pad2d(a_hat, n_pad, n_pad)
    return a_hat.astype(jnp.bfloat16)                # halves HBM bytes of the N x N sweep


# ----------------------------------------------------------------------------
# Parameter init (deterministic, synthetic — no checkpoint loading)
# ----------------------------------------------------------------------------

def _glorot(key, shape):
    fan_in, fan_out = shape
    s = jnp.sqrt(6.0 / (fan_in + fan_out))
    return jax.random.uniform(key, shape, jnp.float32, -s, s)


def init_params(key, in_channels, out_channels, pc_channels):
    mid_cell = min((in_channels + pc_channels) // 2, 2 * pc_channels)
    mid_gene = min((2 * pc_channels + pc_channels) // 2, 2 * pc_channels)
    mid_fc = min((in_channels + out_channels) // 2, 2 * out_channels)

    ks = jax.random.split(key, 8)
    return {
        "cell": {
            "w1": _glorot(ks[0], (in_channels, mid_cell)),
            "b1": jnp.zeros((mid_cell,), jnp.float32),
            "w_mu": _glorot(ks[1], (mid_cell, pc_channels)),
            "b_mu": jnp.zeros((pc_channels,), jnp.float32),
        },
        "gene": {
            "w1": _glorot(ks[2], (2 * pc_channels, mid_gene)),
            "b1": jnp.zeros((mid_gene,), jnp.float32),
            "w_mu": _glorot(ks[3], (mid_gene, pc_channels)),
            "b_mu": jnp.zeros((pc_channels,), jnp.float32),
        },
        "fc1_w": _glorot(ks[4], (in_channels, mid_fc)),
        "fc1_b": jax.random.uniform(ks[5], (mid_fc,), jnp.float32, -0.05, 0.05),
        "fc2_w": _glorot(ks[6], (mid_fc, out_channels)),
        "fc2_b": jax.random.uniform(ks[7], (out_channels,), jnp.float32, -0.05, 0.05),
    }


def _pad_linear(w, b):
    ci, co = w.shape
    ci_p, co_p = _round_up(ci, LANE), _round_up(co, LANE)
    return _pad2d(w, ci_p, co_p), _pad1d(b, co_p).reshape(1, co_p)


# ----------------------------------------------------------------------------
# Forward pass
# ----------------------------------------------------------------------------

def vgae_encode(a_hat_pad, x_pad, w1, b1, w_mu, b_mu):
    """VGAE.encode eval path: z = mu (dropout = identity, no reparam noise)."""
    z1 = jnp.zeros((1, w1.shape[1]), jnp.float32)
    zmu = jnp.zeros((1, w_mu.shape[1]), jnp.float32)
    # GCNConv1: support = X @ W1 (hoisted), then A_hat sweep (+bias, relu)
    support1 = matmul_bias_act(x_pad, w1, z1, relu=False)
    h = matmul_bias_act(a_hat_pad, support1, b1, relu=True)
    # GCNConv_mu
    support2 = matmul_bias_act(h, w_mu, zmu, relu=False)
    mu = matmul_bias_act(a_hat_pad, support2, b_mu, relu=False)
    return mu


def sgae_forward(params, x, edge_index, x_pca, edge_index_pca):
    n_cells, in_ch = x.shape
    n_genes, pca_ch = x_pca.shape
    assert in_ch == n_genes, "x must be a cells x genes matrix (In_channels == #genes)"
    pc = params["cell"]["w_mu"].shape[1]
    out_ch = params["fc2_w"].shape[1]

    # padded (lane-aligned) dims
    nc_pad = _round_up(n_cells, LANE)
    ng_pad = _round_up(n_genes, LANE)
    in_pad = _round_up(in_ch, LANE)
    pca_pad = _round_up(pca_ch, LANE)

    # pad inputs / weights with zeros (pad rows/cols never leak into real rows)
    x_pad = _pad2d(x, nc_pad, in_pad)
    x_pca_pad = _pad2d(x_pca, ng_pad, pca_pad)
    cw1, cb1 = _pad_linear(params["cell"]["w1"], params["cell"]["b1"])
    cwm, cbm = _pad_linear(params["cell"]["w_mu"], params["cell"]["b_mu"])
    gw1, gb1 = _pad_linear(params["gene"]["w1"], params["gene"]["b1"])
    gwm, gbm = _pad_linear(params["gene"]["w_mu"], params["gene"]["b_mu"])
    f1w, f1b = _pad_linear(params["fc1_w"], params["fc1_b"])
    f2w, f2b = _pad_linear(params["fc2_w"], params["fc2_b"])

    a_cell = build_gcn_adj(edge_index, n_cells, nc_pad)
    a_gene = build_gcn_adj(edge_index_pca, n_genes, ng_pad)

    gemb_p = vgae_encode(a_gene, x_pca_pad, gw1, gb1, gwm, gbm)   # (Ng_pad, pc_pad)
    cemb_p = vgae_encode(a_cell, x_pad, cw1, cb1, cwm, cbm)       # (Nc_pad, pc_pad)

    xw_p, z_p = cosweight_mlp(cemb_p, gemb_p, x_pad, f1w, f1b, f2w, f2b,
                              n_genes=n_genes)

    # slice padded results back to true shapes
    x_weighted = xw_p[:n_cells, :in_ch]
    z_exp = z_p[:n_cells, :out_ch]
    gemb = gemb_p[:n_genes, :pc]
    cemb = cemb_p[:n_cells, :pc]
    return x_weighted, z_exp, gemb, cemb


# ----------------------------------------------------------------------------
# Demo
# ----------------------------------------------------------------------------

if __name__ == "__main__":
    N_CELLS = 160
    N_GENES = 272             # == In_channels (x is a cells x genes matrix)
    IN_CHANNELS = N_GENES
    PC_CHANNELS = 4
    OUT_CHANNELS = 8

    key = jax.random.PRNGKey(0)
    k_x, k_pca = jax.random.split(key, 2)
    x = jax.random.normal(k_x, (N_CELLS, IN_CHANNELS), jnp.float32)
    x_pca = jax.random.normal(k_pca, (N_GENES, 2 * PC_CHANNELS), jnp.float32)

    def ring_edges(n):
        src = jnp.arange(n, dtype=jnp.int32)
        dst = (src + 1) % n
        return jnp.stack([jnp.concatenate([src, dst]),
                          jnp.concatenate([dst, src])], axis=0)

    edge_index = ring_edges(N_CELLS)
    edge_index_pca = ring_edges(N_GENES)

    params = init_params(jax.random.PRNGKey(42), IN_CHANNELS, OUT_CHANNELS, PC_CHANNELS)

    fwd = jax.jit(sgae_forward)
    outs = fwd(params, x, edge_index, x_pca, edge_index_pca)
    outs = jax.block_until_ready(outs)

    x_w, z_exp, gemb, cemb = outs
    assert x_w.shape == (N_CELLS, IN_CHANNELS)
    assert z_exp.shape == (N_CELLS, OUT_CHANNELS)
    assert gemb.shape == (N_GENES, PC_CHANNELS)
    assert cemb.shape == (N_CELLS, PC_CHANNELS)
    for t in (x_w, z_exp, gemb, cemb):
        assert bool(jnp.all(jnp.isfinite(t)))
    print("KERNEL_OK")
</pallas_src>

<mosaic_0001>
module attributes {stable_mosaic.version = 11 : i64} {
  func.func private @main(%arg0: i32) attributes {dimension_semantics = [#tpu.dimension_semantics<core_parallel>], iteration_bounds = array<i64: 2>, tpu.core_type = #tpu.core_type<sc_scalar_subcore>, window_params = []} {
    return
  }
}

module attributes {stable_mosaic.version = 11 : i64} {
  func.func private @main(%arg0: i32) attributes {dimension_semantics = [#tpu.dimension_semantics<core_parallel>], iteration_bounds = array<i64: 2>, tpu.core_type = #tpu.core_type<sc_scalar_subcore>, window_params = []} {
    return
  }
}

module attributes {stable_mosaic.version = 11 : i64} {
  func.func @_matmul_kernel(%arg0: i32, %arg1: i32, %arg2: memref<256x128xf32, #tpu.memory_space<vmem>>, %arg3: memref<128x128xf32, #tpu.memory_space<vmem>>, %arg4: memref<1x128xf32, #tpu.memory_space<vmem>>, %arg5: memref<256x128xf32, #tpu.memory_space<vmem>>, %arg6: memref<256x128xf32, #tpu.memory_space<vmem>>) attributes {dimension_semantics = [#tpu.dimension_semantics<parallel>, #tpu.dimension_semantics<arbitrary>], iteration_bounds = array<i64: 1, 3>, scalar_prefetch = 0 : i64, scratch_operands = 1 : i64, tpu.core_type = #tpu.core_type<tc>, window_params = [{transform_indices = @transform_0, window_bounds = array<i64: 256, 128>}, {transform_indices = @transform_1, window_bounds = array<i64: 128, 128>}, {pipeline_mode = #tpu.pipeline_mode<synchronous>, transform_indices = @transform_2, window_bounds = array<i64: 1, 128>}, {transform_indices = @transform_3, window_bounds = array<i64: 256, 128>}]} {
    %c0_i32 = arith.constant 0 : i32
    %0 = arith.cmpi eq, %arg1, %c0_i32 : i32
    %1 = arith.extui %0 : i1 to i32
    %c0_i32_0 = arith.constant 0 : i32
    %2 = arith.cmpi ne, %1, %c0_i32_0 : i32
    scf.if %2 {
      %cst_9 = arith.constant 0.000000e+00 : f32
      %14 = vector.broadcast %cst_9 : f32 to vector<256x128xf32>
      %c0_10 = arith.constant 0 : index
      %c0_11 = arith.constant 0 : index
      %15 = vector.load %arg6[%c0_10, %c0_11] : memref<256x128xf32, #tpu.memory_space<vmem>>, vector<256x128xf32>
      tpu.vector_store %arg6[%c0_10, %c0_11], %14 {strides = array<i32>} : memref<256x128xf32, #tpu.memory_space<vmem>>, vector<256x128xf32>,
    } else {
    }
    %c0 = arith.constant 0 : index
    %c0_1 = arith.constant 0 : index
    %3 = vector.load %arg2[%c0, %c0_1] : memref<256x128xf32, #tpu.memory_space<vmem>>, vector<256x128xf32>
    %c0_2 = arith.constant 0 : index
    %c0_3 = arith.constant 0 : index
    %4 = vector.load %arg3[%c0_2, %c0_3] : memref<128x128xf32, #tpu.memory_space<vmem>>, vector<128x128xf32>
    %5 = arith.truncf %3 : vector<256x128xf32> to vector<256x128xbf16>
    %6 = arith.truncf %4 : vector<128x128xf32> to vector<128x128xbf16>
    %c0_4 = arith.constant 0 : index
    %c0_5 = arith.constant 0 : index
    %7 = vector.load %arg6[%c0_4, %c0_5] : memref<256x128xf32, #tpu.memory_space<vmem>>, vector<256x128xf32>
    %cst = arith.constant dense<0.000000e+00> : vector<256x128xf32>
    %8 = tpu.matmul %5, %6, %cst {dimension_numbers = #tpu.dot_dimension_numbers<[1], [0], [0], [1], [0, 0, 1, 1], [], []>} : vector<256x128xbf16>, vector<128x128xbf16>, vector<256x128xf32> -> vector<256x128xf32>
    %9 = arith.addf %7, %8 : vector<256x128xf32>
    %c0_6 = arith.constant 0 : index
    %c0_7 = arith.constant 0 : index
    %10 = vector.load %arg6[%c0_6, %c0_7] : memref<256x128xf32, #tpu.memory_space<vmem>>, vector<256x128xf32>
    tpu.vector_store %arg6[%c0_6, %c0_7], %9 {strides = array<i32>} : memref<256x128xf32, #tpu.memory_space<vmem>>, vector<256x128xf32>,
    %c2_i32 = arith.constant 2 : i32
    %11 = arith.cmpi eq, %arg1, %c2_i32 : i32
    %12 = arith.extui %11 : i1 to i32
    %c0_i32_8 = arith.constant 0 : i32
    %13 = arith.cmpi ne, %12, %c0_i32_8 : i32
    scf.if %13 {
      %c0_9 = arith.constant 0 : index
      %c0_10 = arith.constant 0 : index
      %14 = vector.load %arg6[%c0_9, %c0_10] : memref<256x128xf32, #tpu.memory_space<vmem>>, vector<256x128xf32>
      %c0_11 = arith.constant 0 : index
      %c0_12 = arith.constant 0 : index
      %15 = vector.load %arg4[%c0_11, %c0_12] : memref<1x128xf32, #tpu.memory_space<vmem>>, vector<1x128xf32>
      %16 = vector.broadcast %15 : vector<1x128xf32> to vector<256x128xf32>
      %17 = arith.addf %14, %16 : vector<256x128xf32>
      %c0_13 = arith.constant 0 : index
      %c0_14 = arith.constant 0 : index
      %18 = vector.load %arg5[%c0_13, %c0_14] : memref<256x128xf32, #tpu.memory_space<vmem>>, vector<256x128xf32>
      tpu.vector_store %arg5[%c0_13, %c0_14], %17 {strides = array<i32>} : memref<256x128xf32, #tpu.memory_space<vmem>>, vector<256x128xf32>,
    } else {
    }
    return
  }
  func.func @transform_0(%arg0: i32, %arg1: i32) -> (i32, i32) {
    %c0_i32 = arith.constant 0 : i32
    return %arg0, %arg1 : i32, i32
  }
  func.func @transform_1(%arg0: i32, %arg1: i32) -> (i32, i32) {
    %c0_i32 = arith.constant 0 : i32
    %c0_i32_0 = arith.constant 0 : i32
    return %arg1, %c0_i32 : i32, i32
  }
  func.func @transform_2(%arg0: i32, %arg1: i32) -> (i32, i32) {
    %c0_i32 = arith.constant 0 : i32
    %c0_i32_0 = arith.constant 0 : i32
    %c0_i32_1 = arith.constant 0 : i32
    return %c0_i32, %c0_i32_0 : i32, i32
  }
  func.func @transform_3(%arg0: i32, %arg1: i32) -> (i32, i32) {
    %c0_i32 = arith.constant 0 : i32
    %c0_i32_0 = arith.constant 0 : i32
    return %arg0, %c0_i32 : i32, i32
  }
}

module attributes {stable_mosaic.version = 11 : i64} {
  func.func @_matmul_kernel(%arg0: i32, %arg1: i32, %arg2: memref<128x128xf32, #tpu.memory_space<vmem>>, %arg3: memref<128x128xf32, #tpu.memory_space<vmem>>, %arg4: memref<1x128xf32, #tpu.memory_space<vmem>>, %arg5: memref<128x128xf32, #tpu.memory_space<vmem>>, %arg6: memref<128x128xf32, #tpu.memory_space<vmem>>) attributes {dimension_semantics = [#tpu.dimension_semantics<parallel>, #tpu.dimension_semantics<arbitrary>], iteration_bounds = array<i64: 3, 1>, scalar_prefetch = 0 : i64, scratch_operands = 1 : i64, tpu.core_type = #tpu.core_type<tc>, window_params = [{transform_indices = @transform_0, window_bounds = array<i64: 128, 128>}, {transform_indices = @transform_1, window_bounds = array<i64: 128, 128>}, {pipeline_mode = #tpu.pipeline_mode<synchronous>, transform_indices = @transform_2, window_bounds = array<i64: 1, 128>}, {transform_indices = @transform_3, window_bounds = array<i64: 128, 128>}]} {
    %c0_i32 = arith.constant 0 : i32
    %0 = arith.cmpi eq, %arg1, %c0_i32 : i32
    %1 = arith.extui %0 : i1 to i32
    %c0_i32_0 = arith.constant 0 : i32
    %2 = arith.cmpi ne, %1, %c0_i32_0 : i32
    scf.if %2 {
      %cst_10 = arith.constant 0.000000e+00 : f32
      %14 = vector.broadcast %cst_10 : f32 to vector<128x128xf32>
      %c0_11 = arith.constant 0 : index
      %c0_12 = arith.constant 0 : index
      %15 = vector.load %arg6[%c0_11, %c0_12] : memref<128x128xf32, #tpu.memory_space<vmem>>, vector<128x128xf32>
      tpu.vector_store %arg6[%c0_11, %c0_12], %14 {strides = array<i32>} : memref<128x128xf32, #tpu.memory_space<vmem>>, vector<128x128xf32>,
    } else {
    }
    %c0 = arith.constant 0 : index
    %c0_1 = arith.constant 0 : index
    %3 = vector.load %arg2[%c0, %c0_1] : memref<128x128xf32, #tpu.memory_space<vmem>>, vector<128x128xf32>
    %c0_2 = arith.constant 0 : index
    %c0_3 = arith.constant 0 : index
    %4 = vector.load %arg3[%c0_2, %c0_3] : memref<128x128xf32, #tpu.memory_space<vmem>>, vector<128x128xf32>
    %5 = arith.truncf %3 : vector<128x128xf32> to vector<128x128xbf16>
    %6 = arith.truncf %4 : vector<128x128xf32> to vector<128x128xbf16>
    %c0_4 = arith.constant 0 : index
    %c0_5 = arith.constant 0 : index
    %7 = vector.load %arg6[%c0_4, %c0_5] : memref<128x128xf32, #tpu.memory_space<vmem>>, vector<128x128xf32>
    %cst = arith.constant dense<0.000000e+00> : vector<128x128xf32>
    %8 = tpu.matmul %5, %6, %cst {dimension_numbers = #tpu.dot_dimension_numbers<[1], [0], [0], [1], [0, 0, 1, 1], [], []>} : vector<128x128xbf16>, vector<128x128xbf16>, vector<128x128xf32> -> vector<128x128xf32>
    %9 = arith.addf %7, %8 : vector<128x128xf32>
    %c0_6 = arith.constant 0 : index
    %c0_7 = arith.constant 0 : index
    %10 = vector.load %arg6[%c0_6, %c0_7] : memref<128x128xf32, #tpu.memory_space<vmem>>, vector<128x128xf32>
    tpu.vector_store %arg6[%c0_6, %c0_7], %9 {strides = array<i32>} : memref<128x128xf32, #tpu.memory_space<vmem>>, vector<128x128xf32>,
    %c0_i32_8 = arith.constant 0 : i32
    %11 = arith.cmpi eq, %arg1, %c0_i32_8 : i32
    %12 = arith.extui %11 : i1 to i32
    %c0_i32_9 = arith.constant 0 : i32
    %13 = arith.cmpi ne, %12, %c0_i32_9 : i32
    scf.if %13 {
      %c0_10 = arith.constant 0 : index
      %c0_11 = arith.constant 0 : index
      %14 = vector.load %arg6[%c0_10, %c0_11] : memref<128x128xf32, #tpu.memory_space<vmem>>, vector<128x128xf32>
      %c0_12 = arith.constant 0 : index
      %c0_13 = arith.constant 0 : index
      %15 = vector.load %arg4[%c0_12, %c0_13] : memref<1x128xf32, #tpu.memory_space<vmem>>, vector<1x128xf32>
      %16 = vector.broadcast %15 : vector<1x128xf32> to vector<128x128xf32>
      %17 = arith.addf %14, %16 : vector<128x128xf32>
      %c0_14 = arith.constant 0 : index
      %c0_15 = arith.constant 0 : index
      %18 = vector.load %arg5[%c0_14, %c0_15] : memref<128x128xf32, #tpu.memory_space<vmem>>, vector<128x128xf32>
      tpu.vector_store %arg5[%c0_14, %c0_15], %17 {strides = array<i32>} : memref<128x128xf32, #tpu.memory_space<vmem>>, vector<128x128xf32>,
    } else {
    }
    return
  }
  func.func @transform_0(%arg0: i32, %arg1: i32) -> (i32, i32) {
    %c0_i32 = arith.constant 0 : i32
    return %arg0, %arg1 : i32, i32
  }
  func.func @transform_1(%arg0: i32, %arg1: i32) -> (i32, i32) {
    %c0_i32 = arith.constant 0 : i32
    %c0_i32_0 = arith.constant 0 : i32
    return %arg1, %c0_i32 : i32, i32
  }
  func.func @transform_2(%arg0: i32, %arg1: i32) -> (i32, i32) {
    %c0_i32 = arith.constant 0 : i32
    %c0_i32_0 = arith.constant 0 : i32
    %c0_i32_1 = arith.constant 0 : i32
    return %c0_i32, %c0_i32_0 : i32, i32
  }
  func.func @transform_3(%arg0: i32, %arg1: i32) -> (i32, i32) {
    %c0_i32 = arith.constant 0 : i32
    %c0_i32_0 = arith.constant 0 : i32
    return %arg0, %c0_i32 : i32, i32
  }
}

module attributes {stable_mosaic.version = 11 : i64} {
  func.func @_matmul_kernel(%arg0: i32, %arg1: i32, %arg2: memref<256x128xf32, #tpu.memory_space<vmem>>, %arg3: memref<128x128xf32, #tpu.memory_space<vmem>>, %arg4: memref<1x128xf32, #tpu.memory_space<vmem>>, %arg5: memref<256x128xf32, #tpu.memory_space<vmem>>, %arg6: memref<256x128xf32, #tpu.memory_space<vmem>>) attributes {dimension_semantics = [#tpu.dimension_semantics<parallel>, #tpu.dimension_semantics<arbitrary>], iteration_bounds = array<i64: 1, 1>, scalar_prefetch = 0 : i64, scratch_operands = 1 : i64, tpu.core_type = #tpu.core_type<tc>, window_params = [{transform_indices = @transform_0, window_bounds = array<i64: 256, 128>}, {transform_indices = @transform_1, window_bounds = array<i64: 128, 128>}, {pipeline_mode = #tpu.pipeline_mode<synchronous>, transform_indices = @transform_2, window_bounds = array<i64: 1, 128>}, {transform_indices = @transform_3, window_bounds = array<i64: 256, 128>}]} {
    %c0_i32 = arith.constant 0 : i32
    %0 = arith.cmpi eq, %arg1, %c0_i32 : i32
    %1 = arith.extui %0 : i1 to i32
    %c0_i32_0 = arith.constant 0 : i32
    %2 = arith.cmpi ne, %1, %c0_i32_0 : i32
    scf.if %2 {
      %cst_10 = arith.constant 0.000000e+00 : f32
      %14 = vector.broadcast %cst_10 : f32 to vector<256x128xf32>
      %c0_11 = arith.constant 0 : index
      %c0_12 = arith.constant 0 : index
      %15 = vector.load %arg6[%c0_11, %c0_12] : memref<256x128xf32, #tpu.memory_space<vmem>>, vector<256x128xf32>
      tpu.vector_store %arg6[%c0_11, %c0_12], %14 {strides = array<i32>} : memref<256x128xf32, #tpu.memory_space<vmem>>, vector<256x128xf32>,
    } else {
    }
    %c0 = arith.constant 0 : index
    %c0_1 = arith.constant 0 : index
    %3 = vector.load %arg2[%c0, %c0_1] : memref<256x128xf32, #tpu.memory_space<vmem>>, vector<256x128xf32>
    %c0_2 = arith.constant 0 : index
    %c0_3 = arith.constant 0 : index
    %4 = vector.load %arg3[%c0_2, %c0_3] : memref<128x128xf32, #tpu.memory_space<vmem>>, vector<128x128xf32>
    %5 = arith.truncf %3 : vector<256x128xf32> to vector<256x128xbf16>
    %6 = arith.truncf %4 : vector<128x128xf32> to vector<128x128xbf16>
    %c0_4 = arith.constant 0 : index
    %c0_5 = arith.constant 0 : index
    %7 = vector.load %arg6[%c0_4, %c0_5] : memref<256x128xf32, #tpu.memory_space<vmem>>, vector<256x128xf32>
    %cst = arith.constant dense<0.000000e+00> : vector<256x128xf32>
    %8 = tpu.matmul %5, %6, %cst {dimension_numbers = #tpu.dot_dimension_numbers<[1], [0], [0], [1], [0, 0, 1, 1], [], []>} : vector<256x128xbf16>, vector<128x128xbf16>, vector<256x128xf32> -> vector<256x128xf32>
    %9 = arith.addf %7, %8 : vector<256x128xf32>
    %c0_6 = arith.constant 0 : index
    %c0_7 = arith.constant 0 : index
    %10 = vector.load %arg6[%c0_6, %c0_7] : memref<256x128xf32, #tpu.memory_space<vmem>>, vector<256x128xf32>
    tpu.vector_store %arg6[%c0_6, %c0_7], %9 {strides = array<i32>} : memref<256x128xf32, #tpu.memory_space<vmem>>, vector<256x128xf32>,
    %c0_i32_8 = arith.constant 0 : i32
    %11 = arith.cmpi eq, %arg1, %c0_i32_8 : i32
    %12 = arith.extui %11 : i1 to i32
    %c0_i32_9 = arith.constant 0 : i32
    %13 = arith.cmpi ne, %12, %c0_i32_9 : i32
    scf.if %13 {
      %c0_10 = arith.constant 0 : index
      %c0_11 = arith.constant 0 : index
      %14 = vector.load %arg6[%c0_10, %c0_11] : memref<256x128xf32, #tpu.memory_space<vmem>>, vector<256x128xf32>
      %c0_12 = arith.constant 0 : index
      %c0_13 = arith.constant 0 : index
      %15 = vector.load %arg4[%c0_12, %c0_13] : memref<1x128xf32, #tpu.memory_space<vmem>>, vector<1x128xf32>
      %16 = vector.broadcast %15 : vector<1x128xf32> to vector<256x128xf32>
      %17 = arith.addf %14, %16 : vector<256x128xf32>
      %c0_14 = arith.constant 0 : index
      %c0_15 = arith.constant 0 : index
      %18 = vector.load %arg5[%c0_14, %c0_15] : memref<256x128xf32, #tpu.memory_space<vmem>>, vector<256x128xf32>
      tpu.vector_store %arg5[%c0_14, %c0_15], %17 {strides = array<i32>} : memref<256x128xf32, #tpu.memory_space<vmem>>, vector<256x128xf32>,
    } else {
    }
    return
  }
  func.func @transform_0(%arg0: i32, %arg1: i32) -> (i32, i32) {
    %c0_i32 = arith.constant 0 : i32
    return %arg0, %arg1 : i32, i32
  }
  func.func @transform_1(%arg0: i32, %arg1: i32) -> (i32, i32) {
    %c0_i32 = arith.constant 0 : i32
    %c0_i32_0 = arith.constant 0 : i32
    return %arg1, %c0_i32 : i32, i32
  }
  func.func @transform_2(%arg0: i32, %arg1: i32) -> (i32, i32) {
    %c0_i32 = arith.constant 0 : i32
    %c0_i32_0 = arith.constant 0 : i32
    %c0_i32_1 = arith.constant 0 : i32
    return %c0_i32, %c0_i32_0 : i32, i32
  }
  func.func @transform_3(%arg0: i32, %arg1: i32) -> (i32, i32) {
    %c0_i32 = arith.constant 0 : i32
    %c0_i32_0 = arith.constant 0 : i32
    return %arg0, %c0_i32 : i32, i32
  }
}

module attributes {stable_mosaic.version = 11 : i64} {
  func.func @_matmul_kernel(%arg0: i32, %arg1: i32, %arg2: memref<256x256xbf16, #tpu.memory_space<vmem>>, %arg3: memref<256x128xf32, #tpu.memory_space<vmem>>, %arg4: memref<1x128xf32, #tpu.memory_space<vmem>>, %arg5: memref<256x128xf32, #tpu.memory_space<vmem>>, %arg6: memref<256x128xf32, #tpu.memory_space<vmem>>) attributes {dimension_semantics = [#tpu.dimension_semantics<parallel>, #tpu.dimension_semantics<arbitrary>], iteration_bounds = array<i64: 1, 1>, scalar_prefetch = 0 : i64, scratch_operands = 1 : i64, tpu.core_type = #tpu.core_type<tc>, window_params = [{transform_indices = @transform_0, window_bounds = array<i64: 256, 256>}, {transform_indices = @transform_1, window_bounds = array<i64: 256, 128>}, {pipeline_mode = #tpu.pipeline_mode<synchronous>, transform_indices = @transform_2, window_bounds = array<i64: 1, 128>}, {transform_indices = @transform_3, window_bounds = array<i64: 256, 128>}]} {
    %c0_i32 = arith.constant 0 : i32
    %0 = arith.cmpi eq, %arg1, %c0_i32 : i32
    %1 = arith.extui %0 : i1 to i32
    %c0_i32_0 = arith.constant 0 : i32
    %2 = arith.cmpi ne, %1, %c0_i32_0 : i32
    scf.if %2 {
      %cst_10 = arith.constant 0.000000e+00 : f32
      %13 = vector.broadcast %cst_10 : f32 to vector<256x128xf32>
      %c0_11 = arith.constant 0 : index
      %c0_12 = arith.constant 0 : index
      %14 = vector.load %arg6[%c0_11, %c0_12] : memref<256x128xf32, #tpu.memory_space<vmem>>, vector<256x128xf32>
      tpu.vector_store %arg6[%c0_11, %c0_12], %13 {strides = array<i32>} : memref<256x128xf32, #tpu.memory_space<vmem>>, vector<256x128xf32>,
    } else {
    }
    %c0 = arith.constant 0 : index
    %c0_1 = arith.constant 0 : index
    %3 = vector.load %arg2[%c0, %c0_1] : memref<256x256xbf16, #tpu.memory_space<vmem>>, vector<256x256xbf16>
    %c0_2 = arith.constant 0 : index
    %c0_3 = arith.constant 0 : index
    %4 = vector.load %arg3[%c0_2, %c0_3] : memref<256x128xf32, #tpu.memory_space<vmem>>, vector<256x128xf32>
    %5 = arith.truncf %4 : vector<256x128xf32> to vector<256x128xbf16>
    %c0_4 = arith.constant 0 : index
    %c0_5 = arith.constant 0 : index
    %6 = vector.load %arg6[%c0_4, %c0_5] : memref<256x128xf32, #tpu.memory_space<vmem>>, vector<256x128xf32>
    %cst = arith.constant dense<0.000000e+00> : vector<256x128xf32>
    %7 = tpu.matmul %3, %5, %cst {dimension_numbers = #tpu.dot_dimension_numbers<[1], [0], [0], [1], [0, 0, 1, 1], [], []>} : vector<256x256xbf16>, vector<256x128xbf16>, vector<256x128xf32> -> vector<256x128xf32>
    %8 = arith.addf %6, %7 : vector<256x128xf32>
    %c0_6 = arith.constant 0 : index
    %c0_7 = arith.constant 0 : index
    %9 = vector.load %arg6[%c0_6, %c0_7] : memref<256x128xf32, #tpu.memory_space<vmem>>, vector<256x128xf32>
    tpu.vector_store %arg6[%c0_6, %c0_7], %8 {strides = array<i32>} : memref<256x128xf32, #tpu.memory_space<vmem>>, vector<256x128xf32>,
    %c0_i32_8 = arith.constant 0 : i32
    %10 = arith.cmpi eq, %arg1, %c0_i32_8 : i32
    %11 = arith.extui %10 : i1 to i32
    %c0_i32_9 = arith.constant 0 : i32
    %12 = arith.cmpi ne, %11, %c0_i32_9 : i32
    scf.if %12 {
      %c0_10 = arith.constant 0 : index
      %c0_11 = arith.constant 0 : index
      %13 = vector.load %arg6[%c0_10, %c0_11] : memref<256x128xf32, #tpu.memory_space<vmem>>, vector<256x128xf32>
      %c0_12 = arith.constant 0 : index
      %c0_13 = arith.constant 0 : index
      %14 = vector.load %arg4[%c0_12, %c0_13] : memref<1x128xf32, #tpu.memory_space<vmem>>, vector<1x128xf32>
      %15 = vector.broadcast %14 : vector<1x128xf32> to vector<256x128xf32>
      %16 = arith.addf %13, %15 : vector<256x128xf32>
      %c0_14 = arith.constant 0 : index
      %c0_15 = arith.constant 0 : index
      %17 = vector.load %arg5[%c0_14, %c0_15] : memref<256x128xf32, #tpu.memory_space<vmem>>, vector<256x128xf32>
      tpu.vector_store %arg5[%c0_14, %c0_15], %16 {strides = array<i32>} : memref<256x128xf32, #tpu.memory_space<vmem>>, vector<256x128xf32>,
    } else {
    }
    return
  }
  func.func @transform_0(%arg0: i32, %arg1: i32) -> (i32, i32) {
    %c0_i32 = arith.constant 0 : i32
    return %arg0, %arg1 : i32, i32
  }
  func.func @transform_1(%arg0: i32, %arg1: i32) -> (i32, i32) {
    %c0_i32 = arith.constant 0 : i32
    %c0_i32_0 = arith.constant 0 : i32
    return %arg1, %c0_i32 : i32, i32
  }
  func.func @transform_2(%arg0: i32, %arg1: i32) -> (i32, i32) {
    %c0_i32 = arith.constant 0 : i32
    %c0_i32_0 = arith.constant 0 : i32
    %c0_i32_1 = arith.constant 0 : i32
    return %c0_i32, %c0_i32_0 : i32, i32
  }
  func.func @transform_3(%arg0: i32, %arg1: i32) -> (i32, i32) {
    %c0_i32 = arith.constant 0 : i32
    %c0_i32_0 = arith.constant 0 : i32
    return %arg0, %c0_i32 : i32, i32
  }
}

module attributes {stable_mosaic.version = 11 : i64} {
  func.func @_matmul_kernel(%arg0: i32, %arg1: i32, %arg2: memref<256x256xbf16, #tpu.memory_space<vmem>>, %arg3: memref<256x128xf32, #tpu.memory_space<vmem>>, %arg4: memref<1x128xf32, #tpu.memory_space<vmem>>, %arg5: memref<256x128xf32, #tpu.memory_space<vmem>>, %arg6: memref<256x128xf32, #tpu.memory_space<vmem>>) attributes {dimension_semantics = [#tpu.dimension_semantics<parallel>, #tpu.dimension_semantics<arbitrary>], iteration_bounds = array<i64: 1, 1>, scalar_prefetch = 0 : i64, scratch_operands = 1 : i64, tpu.core_type = #tpu.core_type<tc>, window_params = [{transform_indices = @transform_0, window_bounds = array<i64: 256, 256>}, {transform_indices = @transform_1, window_bounds = array<i64: 256, 128>}, {pipeline_mode = #tpu.pipeline_mode<synchronous>, transform_indices = @transform_2, window_bounds = array<i64: 1, 128>}, {transform_indices = @transform_3, window_bounds = array<i64: 256, 128>}]} {
    %c0_i32 = arith.constant 0 : i32
    %0 = arith.cmpi eq, %arg1, %c0_i32 : i32
    %1 = arith.extui %0 : i1 to i32
    %c0_i32_0 = arith.constant 0 : i32
    %2 = arith.cmpi ne, %1, %c0_i32_0 : i32
    scf.if %2 {
      %cst_10 = arith.constant 0.000000e+00 : f32
      %13 = vector.broadcast %cst_10 : f32 to vector<256x128xf32>
      %c0_11 = arith.constant 0 : index
      %c0_12 = arith.constant 0 : index
      %14 = vector.load %arg6[%c0_11, %c0_12] : memref<256x128xf32, #tpu.memory_space<vmem>>, vector<256x128xf32>
      tpu.vector_store %arg6[%c0_11, %c0_12], %13 {strides = array<i32>} : memref<256x128xf32, #tpu.memory_space<vmem>>, vector<256x128xf32>,
    } else {
    }
    %c0 = arith.constant 0 : index
    %c0_1 = arith.constant 0 : index
    %3 = vector.load %arg2[%c0, %c0_1] : memref<256x256xbf16, #tpu.memory_space<vmem>>, vector<256x256xbf16>
    %c0_2 = arith.constant 0 : index
    %c0_3 = arith.constant 0 : index
    %4 = vector.load %arg3[%c0_2, %c0_3] : memref<256x128xf32, #tpu.memory_space<vmem>>, vector<256x128xf32>
    %5 = arith.truncf %4 : vector<256x128xf32> to vector<256x128xbf16>
    %c0_4 = arith.constant 0 : index
    %c0_5 = arith.constant 0 : index
    %6 = vector.load %arg6[%c0_4, %c0_5] : memref<256x128xf32, #tpu.memory_space<vmem>>, vector<256x128xf32>
    %cst = arith.constant dense<0.000000e+00> : vector<256x128xf32>
    %7 = tpu.matmul %3, %5, %cst {dimension_numbers = #tpu.dot_dimension_numbers<[1], [0], [0], [1], [0, 0, 1, 1], [], []>} : vector<256x256xbf16>, vector<256x128xbf16>, vector<256x128xf32> -> vector<256x128xf32>
    %8 = arith.addf %6, %7 : vector<256x128xf32>
    %c0_6 = arith.constant 0 : index
    %c0_7 = arith.constant 0 : index
    %9 = vector.load %arg6[%c0_6, %c0_7] : memref<256x128xf32, #tpu.memory_space<vmem>>, vector<256x128xf32>
    tpu.vector_store %arg6[%c0_6, %c0_7], %8 {strides = array<i32>} : memref<256x128xf32, #tpu.memory_space<vmem>>, vector<256x128xf32>,
    %c0_i32_8 = arith.constant 0 : i32
    %10 = arith.cmpi eq, %arg1, %c0_i32_8 : i32
    %11 = arith.extui %10 : i1 to i32
    %c0_i32_9 = arith.constant 0 : i32
    %12 = arith.cmpi ne, %11, %c0_i32_9 : i32
    scf.if %12 {
      %c0_10 = arith.constant 0 : index
      %c0_11 = arith.constant 0 : index
      %13 = vector.load %arg6[%c0_10, %c0_11] : memref<256x128xf32, #tpu.memory_space<vmem>>, vector<256x128xf32>
      %c0_12 = arith.constant 0 : index
      %c0_13 = arith.constant 0 : index
      %14 = vector.load %arg4[%c0_12, %c0_13] : memref<1x128xf32, #tpu.memory_space<vmem>>, vector<1x128xf32>
      %15 = vector.broadcast %14 : vector<1x128xf32> to vector<256x128xf32>
      %16 = arith.addf %13, %15 : vector<256x128xf32>
      %cst_14 = arith.constant 0.000000e+00 : f32
      %17 = vector.broadcast %cst_14 : f32 to vector<256x128xf32>
      %18 = arith.maximumf %16, %17 : vector<256x128xf32>
      %c0_15 = arith.constant 0 : index
      %c0_16 = arith.constant 0 : index
      %19 = vector.load %arg5[%c0_15, %c0_16] : memref<256x128xf32, #tpu.memory_space<vmem>>, vector<256x128xf32>
      tpu.vector_store %arg5[%c0_15, %c0_16], %18 {strides = array<i32>} : memref<256x128xf32, #tpu.memory_space<vmem>>, vector<256x128xf32>,
    } else {
    }
    return
  }
  func.func @transform_0(%arg0: i32, %arg1: i32) -> (i32, i32) {
    %c0_i32 = arith.constant 0 : i32
    return %arg0, %arg1 : i32, i32
  }
  func.func @transform_1(%arg0: i32, %arg1: i32) -> (i32, i32) {
    %c0_i32 = arith.constant 0 : i32
    %c0_i32_0 = arith.constant 0 : i32
    return %arg1, %c0_i32 : i32, i32
  }
  func.func @transform_2(%arg0: i32, %arg1: i32) -> (i32, i32) {
    %c0_i32 = arith.constant 0 : i32
    %c0_i32_0 = arith.constant 0 : i32
    %c0_i32_1 = arith.constant 0 : i32
    return %c0_i32, %c0_i32_0 : i32, i32
  }
  func.func @transform_3(%arg0: i32, %arg1: i32) -> (i32, i32) {
    %c0_i32 = arith.constant 0 : i32
    %c0_i32_0 = arith.constant 0 : i32
    return %arg0, %c0_i32 : i32, i32
  }
}

module attributes {stable_mosaic.version = 11 : i64} {
  func.func @_matmul_kernel(%arg0: i32, %arg1: i32, %arg2: memref<128x128xbf16, #tpu.memory_space<vmem>>, %arg3: memref<128x128xf32, #tpu.memory_space<vmem>>, %arg4: memref<1x128xf32, #tpu.memory_space<vmem>>, %arg5: memref<128x128xf32, #tpu.memory_space<vmem>>, %arg6: memref<128x128xf32, #tpu.memory_space<vmem>>) attributes {dimension_semantics = [#tpu.dimension_semantics<parallel>, #tpu.dimension_semantics<arbitrary>], iteration_bounds = array<i64: 3, 3>, scalar_prefetch = 0 : i64, scratch_operands = 1 : i64, tpu.core_type = #tpu.core_type<tc>, window_params = [{transform_indices = @transform_0, window_bounds = array<i64: 128, 128>}, {transform_indices = @transform_1, window_bounds = array<i64: 128, 128>}, {pipeline_mode = #tpu.pipeline_mode<synchronous>, transform_indices = @transform_2, window_bounds = array<i64: 1, 128>}, {transform_indices = @transform_3, window_bounds = array<i64: 128, 128>}]} {
    %c0_i32 = arith.constant 0 : i32
    %0 = arith.cmpi eq, %arg1, %c0_i32 : i32
    %1 = arith.extui %0 : i1 to i32
    %c0_i32_0 = arith.constant 0 : i32
    %2 = arith.cmpi ne, %1, %c0_i32_0 : i32
    scf.if %2 {
      %cst_9 = arith.constant 0.000000e+00 : f32
      %13 = vector.broadcast %cst_9 : f32 to vector<128x128xf32>
      %c0_10 = arith.constant 0 : index
      %c0_11 = arith.constant 0 : index
      %14 = vector.load %arg6[%c0_10, %c0_11] : memref<128x128xf32, #tpu.memory_space<vmem>>, vector<128x128xf32>
      tpu.vector_store %arg6[%c0_10, %c0_11], %13 {strides = array<i32>} : memref<128x128xf32, #tpu.memory_space<vmem>>, vector<128x128xf32>,
    } else {
    }
    %c0 = arith.constant 0 : index
    %c0_1 = arith.constant 0 : index
    %3 = vector.load %arg2[%c0, %c0_1] : memref<128x128xbf16, #tpu.memory_space<vmem>>, vector<128x128xbf16>
    %c0_2 = arith.constant 0 : index
    %c0_3 = arith.constant 0 : index
    %4 = vector.load %arg3[%c0_2, %c0_3] : memref<128x128xf32, #tpu.memory_space<vmem>>, vector<128x128xf32>
    %5 = arith.truncf %4 : vector<128x128xf32> to vector<128x128xbf16>
    %c0_4 = arith.constant 0 : index
    %c0_5 = arith.constant 0 : index
    %6 = vector.load %arg6[%c0_4, %c0_5] : memref<128x128xf32, #tpu.memory_space<vmem>>, vector<128x128xf32>
    %cst = arith.constant dense<0.000000e+00> : vector<128x128xf32>
    %7 = tpu.matmul %3, %5, %cst {dimension_numbers = #tpu.dot_dimension_numbers<[1], [0], [0], [1], [0, 0, 1, 1], [], []>} : vector<128x128xbf16>, vector<128x128xbf16>, vector<128x128xf32> -> vector<128x128xf32>
    %8 = arith.addf %6, %7 : vector<128x128xf32>
    %c0_6 = arith.constant 0 : index
    %c0_7 = arith.constant 0 : index
    %9 = vector.load %arg6[%c0_6, %c0_7] : memref<128x128xf32, #tpu.memory_space<vmem>>, vector<128x128xf32>
    tpu.vector_store %arg6[%c0_6, %c0_7], %8 {strides = array<i32>} : memref<128x128xf32, #tpu.memory_space<vmem>>, vector<128x128xf32>,
    %c2_i32 = arith.constant 2 : i32
    %10 = arith.cmpi eq, %arg1, %c2_i32 : i32
    %11 = arith.extui %10 : i1 to i32
    %c0_i32_8 = arith.constant 0 : i32
    %12 = arith.cmpi ne, %11, %c0_i32_8 : i32
    scf.if %12 {
      %c0_9 = arith.constant 0 : index
      %c0_10 = arith.constant 0 : index
      %13 = vector.load %arg6[%c0_9, %c0_10] : memref<128x128xf32, #tpu.memory_space<vmem>>, vector<128x128xf32>
      %c0_11 = arith.constant 0 : index
      %c0_12 = arith.constant 0 : index
      %14 = vector.load %arg4[%c0_11, %c0_12] : memref<1x128xf32, #tpu.memory_space<vmem>>, vector<1x128xf32>
      %15 = vector.broadcast %14 : vector<1x128xf32> to vector<128x128xf32>
      %16 = arith.addf %13, %15 : vector<128x128xf32>
      %cst_13 = arith.constant 0.000000e+00 : f32
      %17 = vector.broadcast %cst_13 : f32 to vector<128x128xf32>
      %18 = arith.maximumf %16, %17 : vector<128x128xf32>
      %c0_14 = arith.constant 0 : index
      %c0_15 = arith.constant 0 : index
      %19 = vector.load %arg5[%c0_14, %c0_15] : memref<128x128xf32, #tpu.memory_space<vmem>>, vector<128x128xf32>
      tpu.vector_store %arg5[%c0_14, %c0_15], %18 {strides = array<i32>} : memref<128x128xf32, #tpu.memory_space<vmem>>, vector<128x128xf32>,
    } else {
    }
    return
  }
  func.func @transform_0(%arg0: i32, %arg1: i32) -> (i32, i32) {
    %c0_i32 = arith.constant 0 : i32
    return %arg0, %arg1 : i32, i32
  }
  func.func @transform_1(%arg0: i32, %arg1: i32) -> (i32, i32) {
    %c0_i32 = arith.constant 0 : i32
    %c0_i32_0 = arith.constant 0 : i32
    return %arg1, %c0_i32 : i32, i32
  }
  func.func @transform_2(%arg0: i32, %arg1: i32) -> (i32, i32) {
    %c0_i32 = arith.constant 0 : i32
    %c0_i32_0 = arith.constant 0 : i32
    %c0_i32_1 = arith.constant 0 : i32
    return %c0_i32, %c0_i32_0 : i32, i32
  }
  func.func @transform_3(%arg0: i32, %arg1: i32) -> (i32, i32) {
    %c0_i32 = arith.constant 0 : i32
    %c0_i32_0 = arith.constant 0 : i32
    return %arg0, %c0_i32 : i32, i32
  }
}

module attributes {stable_mosaic.version = 11 : i64} {
  func.func @_matmul_kernel(%arg0: i32, %arg1: i32, %arg2: memref<128x128xbf16, #tpu.memory_space<vmem>>, %arg3: memref<128x128xf32, #tpu.memory_space<vmem>>, %arg4: memref<1x128xf32, #tpu.memory_space<vmem>>, %arg5: memref<128x128xf32, #tpu.memory_space<vmem>>, %arg6: memref<128x128xf32, #tpu.memory_space<vmem>>) attributes {dimension_semantics = [#tpu.dimension_semantics<parallel>, #tpu.dimension_semantics<arbitrary>], iteration_bounds = array<i64: 3, 3>, scalar_prefetch = 0 : i64, scratch_operands = 1 : i64, tpu.core_type = #tpu.core_type<tc>, window_params = [{transform_indices = @transform_0, window_bounds = array<i64: 128, 128>}, {transform_indices = @transform_1, window_bounds = array<i64: 128, 128>}, {pipeline_mode = #tpu.pipeline_mode<synchronous>, transform_indices = @transform_2, window_bounds = array<i64: 1, 128>}, {transform_indices = @transform_3, window_bounds = array<i64: 128, 128>}]} {
    %c0_i32 = arith.constant 0 : i32
    %0 = arith.cmpi eq, %arg1, %c0_i32 : i32
    %1 = arith.extui %0 : i1 to i32
    %c0_i32_0 = arith.constant 0 : i32
    %2 = arith.cmpi ne, %1, %c0_i32_0 : i32
    scf.if %2 {
      %cst_9 = arith.constant 0.000000e+00 : f32
      %13 = vector.broadcast %cst_9 : f32 to vector<128x128xf32>
      %c0_10 = arith.constant 0 : index
      %c0_11 = arith.constant 0 : index
      %14 = vector.load %arg6[%c0_10, %c0_11] : memref<128x128xf32, #tpu.memory_space<vmem>>, vector<128x128xf32>
      tpu.vector_store %arg6[%c0_10, %c0_11], %13 {strides = array<i32>} : memref<128x128xf32, #tpu.memory_space<vmem>>, vector<128x128xf32>,
    } else {
    }
    %c0 = arith.constant 0 : index
    %c0_1 = arith.constant 0 : index
    %3 = vector.load %arg2[%c0, %c0_1] : memref<128x128xbf16, #tpu.memory_space<vmem>>, vector<128x128xbf16>
    %c0_2 = arith.constant 0 : index
    %c0_3 = arith.constant 0 : index
    %4 = vector.load %arg3[%c0_2, %c0_3] : memref<128x128xf32, #tpu.memory_space<vmem>>, vector<128x128xf32>
    %5 = arith.truncf %4 : vector<128x128xf32> to vector<128x128xbf16>
    %c0_4 = arith.constant 0 : index
    %c0_5 = arith.constant 0 : index
    %6 = vector.load %arg6[%c0_4, %c0_5] : memref<128x128xf32, #tpu.memory_space<vmem>>, vector<128x128xf32>
    %cst = arith.constant dense<0.000000e+00> : vector<128x128xf32>
    %7 = tpu.matmul %3, %5, %cst {dimension_numbers = #tpu.dot_dimension_numbers<[1], [0], [0], [1], [0, 0, 1, 1], [], []>} : vector<128x128xbf16>, vector<128x128xbf16>, vector<128x128xf32> -> vector<128x128xf32>
    %8 = arith.addf %6, %7 : vector<128x128xf32>
    %c0_6 = arith.constant 0 : index
    %c0_7 = arith.constant 0 : index
    %9 = vector.load %arg6[%c0_6, %c0_7] : memref<128x128xf32, #tpu.memory_space<vmem>>, vector<128x128xf32>
    tpu.vector_store %arg6[%c0_6, %c0_7], %8 {strides = array<i32>} : memref<128x128xf32, #tpu.memory_space<vmem>>, vector<128x128xf32>,
    %c2_i32 = arith.constant 2 : i32
    %10 = arith.cmpi eq, %arg1, %c2_i32 : i32
    %11 = arith.extui %10 : i1 to i32
    %c0_i32_8 = arith.constant 0 : i32
    %12 = arith.cmpi ne, %11, %c0_i32_8 : i32
    scf.if %12 {
      %c0_9 = arith.constant 0 : index
      %c0_10 = arith.constant 0 : index
      %13 = vector.load %arg6[%c0_9, %c0_10] : memref<128x128xf32, #tpu.memory_space<vmem>>, vector<128x128xf32>
      %c0_11 = arith.constant 0 : index
      %c0_12 = arith.constant 0 : index
      %14 = vector.load %arg4[%c0_11, %c0_12] : memref<1x128xf32, #tpu.memory_space<vmem>>, vector<1x128xf32>
      %15 = vector.broadcast %14 : vector<1x128xf32> to vector<128x128xf32>
      %16 = arith.addf %13, %15 : vector<128x128xf32>
      %c0_13 = arith.constant 0 : index
      %c0_14 = arith.constant 0 : index
      %17 = vector.load %arg5[%c0_13, %c0_14] : memref<128x128xf32, #tpu.memory_space<vmem>>, vector<128x128xf32>
      tpu.vector_store %arg5[%c0_13, %c0_14], %16 {strides = array<i32>} : memref<128x128xf32, #tpu.memory_space<vmem>>, vector<128x128xf32>,
    } else {
    }
    return
  }
  func.func @transform_0(%arg0: i32, %arg1: i32) -> (i32, i32) {
    %c0_i32 = arith.constant 0 : i32
    return %arg0, %arg1 : i32, i32
  }
  func.func @transform_1(%arg0: i32, %arg1: i32) -> (i32, i32) {
    %c0_i32 = arith.constant 0 : i32
    %c0_i32_0 = arith.constant 0 : i32
    return %arg1, %c0_i32 : i32, i32
  }
  func.func @transform_2(%arg0: i32, %arg1: i32) -> (i32, i32) {
    %c0_i32 = arith.constant 0 : i32
    %c0_i32_0 = arith.constant 0 : i32
    %c0_i32_1 = arith.constant 0 : i32
    return %c0_i32, %c0_i32_0 : i32, i32
  }
  func.func @transform_3(%arg0: i32, %arg1: i32) -> (i32, i32) {
    %c0_i32 = arith.constant 0 : i32
    %c0_i32_0 = arith.constant 0 : i32
    return %arg0, %c0_i32 : i32, i32
  }
}

module attributes {stable_mosaic.version = 11 : i64} {
  func.func @_cosweight_mlp_kernel(%arg0: i32, %arg1: memref<256x128xf32, #tpu.memory_space<vmem>>, %arg2: memref<384x128xf32, #tpu.memory_space<vmem>>, %arg3: memref<256x384xf32, #tpu.memory_space<vmem>>, %arg4: memref<384x128xf32, #tpu.memory_space<vmem>>, %arg5: memref<1x128xf32, #tpu.memory_space<vmem>>, %arg6: memref<128x128xf32, #tpu.memory_space<vmem>>, %arg7: memref<1x128xf32, #tpu.memory_space<vmem>>, %arg8: memref<256x384xf32, #tpu.memory_space<vmem>>, %arg9: memref<256x128xf32, #tpu.memory_space<vmem>>) attributes {dimension_semantics = [#tpu.dimension_semantics<parallel>], iteration_bounds = array<i64: 1>, scalar_prefetch = 0 : i64, scratch_operands = 0 : i64, tpu.core_type = #tpu.core_type<tc>, window_params = [{transform_indices = @transform_0, window_bounds = array<i64: 256, 128>}, {pipeline_mode = #tpu.pipeline_mode<synchronous>, transform_indices = @transform_1, window_bounds = array<i64: 384, 128>}, {transform_indices = @transform_2, window_bounds = array<i64: 256, 384>}, {pipeline_mode = #tpu.pipeline_mode<synchronous>, transform_indices = @transform_3, window_bounds = array<i64: 384, 128>}, {pipeline_mode = #tpu.pipeline_mode<synchronous>, transform_indices = @transform_4, window_bounds = array<i64: 1, 128>}, {pipeline_mode = #tpu.pipeline_mode<synchronous>, transform_indices = @transform_5, window_bounds = array<i64: 128, 128>}, {pipeline_mode = #tpu.pipeline_mode<synchronous>, transform_indices = @transform_6, window_bounds = array<i64: 1, 128>}, {transform_indices = @transform_7, window_bounds = array<i64: 256, 384>}, {transform_indices = @transform_8, window_bounds = array<i64: 256, 128>}]} {
    %c0 = arith.constant 0 : index
    %c0_0 = arith.constant 0 : index
    %0 = vector.load %arg1[%c0, %c0_0] : memref<256x128xf32, #tpu.memory_space<vmem>>, vector<256x128xf32>
    %c0_1 = arith.constant 0 : index
    %c0_2 = arith.constant 0 : index
    %1 = vector.load %arg2[%c0_1, %c0_2] : memref<384x128xf32, #tpu.memory_space<vmem>>, vector<384x128xf32>
    %2 = arith.mulf %0, %0 : vector<256x128xf32>
    %cst = arith.constant dense<0.000000e+00> : vector<256xf32>
    %3 = vector.multi_reduction <add>, %2, %cst [1] : vector<256x128xf32> to vector<256xf32>
    %4 = vector.shape_cast %3 : vector<256xf32> to vector<256x1xf32>
    %cst_3 = arith.constant 9.99999996E-13 : f32
    %5 = vector.broadcast %cst_3 : f32 to vector<256x1xf32>
    %6 = arith.addf %4, %5 : vector<256x1xf32>
    %7 = math.rsqrt %6 : vector<256x1xf32>
    %8 = vector.broadcast %7 : vector<256x1xf32> to vector<256x128xf32>
    %9 = arith.mulf %0, %8 : vector<256x128xf32>
    %10 = arith.mulf %1, %1 : vector<384x128xf32>
    %cst_4 = arith.constant dense<0.000000e+00> : vector<384xf32>
    %11 = vector.multi_reduction <add>, %10, %cst_4 [1] : vector<384x128xf32> to vector<384xf32>
    %12 = vector.shape_cast %11 : vector<384xf32> to vector<384x1xf32>
    %cst_5 = arith.constant 9.99999996E-13 : f32
    %13 = vector.broadcast %cst_5 : f32 to vector<384x1xf32>
    %14 = arith.addf %12, %13 : vector<384x1xf32>
    %15 = math.rsqrt %14 : vector<384x1xf32>
    %16 = vector.broadcast %15 : vector<384x1xf32> to vector<384x128xf32>
    %17 = arith.mulf %1, %16 : vector<384x128xf32>
    %cst_6 = arith.constant dense<0.000000e+00> : vector<256x384xf32>
    %18 = tpu.matmul %9, %17, %cst_6 {dimension_numbers = #tpu.dot_dimension_numbers<[1], [1], [0], [0], [0, 0, 1, 0], [], []>} : vector<256x128xf32>, vector<384x128xf32>, vector<256x384xf32> -> vector<256x384xf32>
    %19 = tpu.iota {dimensions = array<i32: 1>} : vector<256x384xi32>
    %c272_i32 = arith.constant 272 : i32
    %20 = vector.broadcast %c272_i32 : i32 to vector<256x384xi32>
    %21 = arith.cmpi slt, %19, %20 : vector<256x384xi32>
    %cst_7 = arith.constant 0xFF800000 : f32
    %22 = vector.broadcast %cst_7 : f32 to vector<256x384xf32>
    %23 = arith.select %21, %18, %22 : vector<256x384xi1>, vector<256x384xf32>
    %cst_8 = arith.constant dense<0xFF800000> : vector<256xf32>
    %24 = vector.multi_reduction <maximumf>, %23, %cst_8 [1] : vector<256x384xf32> to vector<256xf32>
    %25 = vector.shape_cast %24 : vector<256xf32> to vector<256x1xf32>
    %26 = vector.broadcast %25 : vector<256x1xf32> to vector<256x384xf32>
    %27 = arith.subf %23, %26 : vector<256x384xf32>
    %28 = math.exp %27 : vector<256x384xf32>
    %cst_9 = arith.constant dense<0.000000e+00> : vector<256xf32>
    %29 = vector.multi_reduction <add>, %28, %cst_9 [1] : vector<256x384xf32> to vector<256xf32>
    %30 = vector.shape_cast %29 : vector<256xf32> to vector<256x1xf32>
    %31 = tpu.reciprocal %30 {approx = true} : vector<256x1xf32> -> vector<256x1xf32>
    %32 = vector.broadcast %31 : vector<256x1xf32> to vector<256x384xf32>
    %33 = arith.mulf %28, %32 : vector<256x384xf32>
    %c0_10 = arith.constant 0 : index
    %c0_11 = arith.constant 0 : index
    %34 = vector.load %arg3[%c0_10, %c0_11] : memref<256x384xf32, #tpu.memory_space<vmem>>, vector<256x384xf32>
    %35 = arith.mulf %33, %34 : vector<256x384xf32>
    %c0_12 = arith.constant 0 : index
    %c0_13 = arith.constant 0 : index
    %36 = vector.load %arg8[%c0_12, %c0_13] : memref<256x384xf32, #tpu.memory_space<vmem>>, vector<256x384xf32>
    tpu.vector_store %arg8[%c0_12, %c0_13], %35 {strides = array<i32>} : memref<256x384xf32, #tpu.memory_space<vmem>>, vector<256x384xf32>,
    %c0_14 = arith.constant 0 : index
    %c0_15 = arith.constant 0 : index
    %37 = vector.load %arg4[%c0_14, %c0_15] : memref<384x128xf32, #tpu.memory_space<vmem>>, vector<384x128xf32>
    %cst_16 = arith.constant dense<0.000000e+00> : vector<256x128xf32>
    %38 = tpu.matmul %35, %37, %cst_16 {dimension_numbers = #tpu.dot_dimension_numbers<[1], [0], [0], [1], [0, 0, 1, 1], [], []>} : vector<256x384xf32>, vector<384x128xf32>, vector<256x128xf32> -> vector<256x128xf32>
    %c0_17 = arith.constant 0 : index
    %c0_18 = arith.constant 0 : index
    %39 = vector.load %arg5[%c0_17, %c0_18] : memref<1x128xf32, #tpu.memory_space<vmem>>, vector<1x128xf32>
    %40 = vector.broadcast %39 : vector<1x128xf32> to vector<256x128xf32>
    %41 = arith.addf %38, %40 : vector<256x128xf32>
    %cst_19 = arith.constant 0.000000e+00 : f32
    %42 = vector.broadcast %cst_19 : f32 to vector<256x128xf32>
    %43 = arith.maximumf %41, %42 : vector<256x128xf32>
    %c0_20 = arith.constant 0 : index
    %c0_21 = arith.constant 0 : index
    %44 = vector.load %arg6[%c0_20, %c0_21] : memref<128x128xf32, #tpu.memory_space<vmem>>, vector<128x128xf32>
    %cst_22 = arith.constant dense<0.000000e+00> : vector<256x128xf32>
    %45 = tpu.matmul %43, %44, %cst_22 {dimension_numbers = #tpu.dot_dimension_numbers<[1], [0], [0], [1], [0, 0, 1, 1], [], []>} : vector<256x128xf32>, vector<128x128xf32>, vector<256x128xf32> -> vector<256x128xf32>
    %c0_23 = arith.constant 0 : index
    %c0_24 = arith.constant 0 : index
    %46 = vector.load %arg7[%c0_23, %c0_24] : memref<1x128xf32, #tpu.memory_space<vmem>>, vector<1x128xf32>
    %47 = vector.broadcast %46 : vector<1x128xf32> to vector<256x128xf32>
    %48 = arith.addf %45, %47 : vector<256x128xf32>
    %c0_25 = arith.constant 0 : index
    %c0_26 = arith.constant 0 : index
    %49 = vector.load %arg9[%c0_25, %c0_26] : memref<256x128xf32, #tpu.memory_space<vmem>>, vector<256x128xf32>
    tpu.vector_store %arg9[%c0_25, %c0_26], %48 {strides = array<i32>} : memref<256x128xf32, #tpu.memory_space<vmem>>, vector<256x128xf32>,
    return
  }
  func.func @transform_0(%arg0: i32) -> (i32, i32) {
    %c0_i32 = arith.constant 0 : i32
    %c0_i32_0 = arith.constant 0 : i32
    return %arg0, %c0_i32 : i32, i32
  }
  func.func @transform_1(%arg0: i32) -> (i32, i32) {
    %c0_i32 = arith.constant 0 : i32
    %c0_i32_0 = arith.constant 0 : i32
    %c0_i32_1 = arith.constant 0 : i32
    return %c0_i32, %c0_i32_0 : i32, i32
  }
  func.func @transform_2(%arg0: i32) -> (i32, i32) {
    %c0_i32 = arith.constant 0 : i32
    %c0_i32_0 = arith.constant 0 : i32
    return %arg0, %c0_i32 : i32, i32
  }
  func.func @transform_3(%arg0: i32) -> (i32, i32) {
    %c0_i32 = arith.constant 0 : i32
    %c0_i32_0 = arith.constant 0 : i32
    %c0_i32_1 = arith.constant 0 : i32
    return %c0_i32, %c0_i32_0 : i32, i32
  }
  func.func @transform_4(%arg0: i32) -> (i32, i32) {
    %c0_i32 = arith.constant 0 : i32
    %c0_i32_0 = arith.constant 0 : i32
    %c0_i32_1 = arith.constant 0 : i32
    return %c0_i32, %c0_i32_0 : i32, i32
  }
  func.func @transform_5(%arg0: i32) -> (i32, i32) {
    %c0_i32 = arith.constant 0 : i32
    %c0_i32_0 = arith.constant 0 : i32
    %c0_i32_1 = arith.constant 0 : i32
    return %c0_i32, %c0_i32_0 : i32, i32
  }
  func.func @transform_6(%arg0: i32) -> (i32, i32) {
    %c0_i32 = arith.constant 0 : i32
    %c0_i32_0 = arith.constant 0 : i32
    %c0_i32_1 = arith.constant 0 : i32
    return %c0_i32, %c0_i32_0 : i32, i32
  }
  func.func @transform_7(%arg0: i32) -> (i32, i32) {
    %c0_i32 = arith.constant 0 : i32
    %c0_i32_0 = arith.constant 0 : i32
    return %arg0, %c0_i32 : i32, i32
  }
  func.func @transform_8(%arg0: i32) -> (i32, i32) {
    %c0_i32 = arith.constant 0 : i32
    %c0_i32_0 = arith.constant 0 : i32
    return %arg0, %c0_i32 : i32, i32
  }
}

</mosaic_0001>

<llo_original>
// kernel: sgae_forward.9
$region0: #{sgae_forward.9}
  #allocation0 [shape = 'u32[]', space=smem, size = 0x4, offset = 0x4, fixed_abs, tag = 'smem constant byte address 0x4 - core index']
  #allocation1 [shape = 'u32[144,128]{1,0:T(1,128)}', space=vmem, size = 0x12000, scoped, tag = 'internal scratch']
  #allocation2 [shape = 'f32[128,128]{1,0:T(8,128)}', space=vmem, size = 0x10000, scoped, tag = 'scratch operand']
  %s0 = inlined_call_operand.vmem [shape: f32[384,128], index: 0, kind: input, shape index: {}]
  %s1 = inlined_call_operand.vmem [shape: f32[128,128], index: 1, kind: input, shape index: {}]
  %s2 = inlined_call_operand.vmem [shape: f32[1,128], index: 2, kind: input, shape index: {}]
  %s3 = inlined_call_operand.vmem [shape: f32[384,128], index: 3, kind: output, shape index: {}]
  %s4 = sld [smem:[#allocation0]]
  $region53: #{sgae_forward.9} parent=0
    _
  %s6 = ssub.s32 1, %s4
  %s7 = scalar_select 0, %s6, %s4
  loop: start=0, step=1, limit=5
  $region2: #{sgae_forward.9} parent=0 // loop_pre_header
    _
  $region3: #{sgae_forward.9} parent=0 // loop_header
    %s9 = sphi 0, %s13
    %p10 = scmp.ge.s32.totalorder %s9, 5
    %s16 = sphi 0, %s28
    %s17 = sphi 0, %s24
    %s18 = sphi 0, %s16
    %s19 = sphi 0, %s17
    %s20 = sphi 0, %s18
    %s21 = sphi 0, %s19
    %s33 = sphi 0, %s35
    %s36 = sphi 0, %s33
    %s37 = sphi 0, %s36
    %s53 = sphi 0, %s37
    %s59 = sphi 0, %s61
    %s62 = sphi 0, %s59
    %s63 = sphi 0, %s62
    %s79 = sphi 0, %s63
    %s83 = sphi 0, %s83
    %s85 = sphi 0, %s83
    %s86 = sphi 0, %s85
    %s100 = sphi 0, %s86
    %s106 = sphi 0, %s108
    %s109 = sphi 0, %s106
    %s110 = sphi 0, %s109
    %s126 = sphi 0, %s110
  $region4: #{sgae_forward.9} parent=0 // loop_header_branch
    %12 = sbr.rel (%p10) target = $region8
  $region5: #{sgae_forward.9} parent=0 // loop_body
    %s14 = ssub.s32 %s9, 1
    %s15 = ssub.s32 %s9, 2
    %s22 = sadd.s32 1, %s17
    %p23 = scmp.ge.s32.totalorder %s22, 1
    %s24 = scalar_select %p23, 0, %s22
    %s25 = sadd.s32 1, %s16
    %s26 = scalar_select %p23, %s25, %s16
    %p27 = scmp.ge.s32.totalorder %s26, 3
    %s28 = scalar_select %p27, 0, %s26
    %s29 = ssub.s32 %s16, %s28
    %s30 = ssub.s32 %s17, %s24
    %s31 = sor.u32 %s29, %s30
    %p32 = scmp.eq.s32.totalorder %s31, 0
    %s34 = sadd.s32 %s33, 1
    %s35 = scalar_select %p32, %s33, %s34
    %p38 = pneg %p32
    %p39 = scmp.eq.s32.totalorder %s9, 2
    %p40 = por %p38, %p39
    %p41 = scmp.ne.s32.totalorder %s33, %s36
    %p42 = scmp.eq.s32.totalorder %s9, 0
    %p43 = por %p41, %p42
    %p44 = scmp.ne.s32.totalorder %s33, %s36
    %p45 = scmp.eq.s32.totalorder %s14, 2
    %p46 = por %p44, %p45
    %p47 = scmp.ne.s32.totalorder %s36, %s37
    %p48 = scmp.eq.s32.totalorder %s14, 0
    %p49 = por %p47, %p48
    %p50 = scmp.ne.s32.totalorder %s36, %s37
    %p51 = scmp.eq.s32.totalorder %s15, 2
    %p52 = por %p50, %p51
    %p54 = scmp.ne.s32.totalorder %s37, %s53
    %p55 = scmp.eq.s32.totalorder %s15, 0
    %p56 = por %p54, %p55
    %s57 = ssub.s32 %s17, %s24
    %p58 = scmp.eq.s32.totalorder %s57, 0
    %s60 = sadd.s32 %s59, 1
    %s61 = scalar_select %p58, %s59, %s60
    %p64 = pneg %p58
    %p65 = scmp.eq.s32.totalorder %s9, 2
    %p66 = por %p64, %p65
    %p67 = scmp.ne.s32.totalorder %s59, %s62
    %p68 = scmp.eq.s32.totalorder %s9, 0
    %p69 = por %p67, %p68
    %p70 = scmp.ne.s32.totalorder %s59, %s62
    %p71 = scmp.eq.s32.totalorder %s14, 2
    %p72 = por %p70, %p71
    %p73 = scmp.ne.s32.totalorder %s62, %s63
    %p74 = scmp.eq.s32.totalorder %s14, 0
    %p75 = por %p73, %p74
    %p76 = scmp.ne.s32.totalorder %s62, %s63
    %p77 = scmp.eq.s32.totalorder %s15, 2
    %p78 = por %p76, %p77
    %p80 = scmp.ne.s32.totalorder %s63, %s79
    %p81 = scmp.eq.s32.totalorder %s15, 0
    %p82 = por %p80, %p81
    %s84 = sadd.s32 %s83, 1
    %p87 = scmp.eq.s32.totalorder %s9, 2
    %p88 = scmp.ne.s32.totalorder %s83, %s85
    %p89 = scmp.eq.s32.totalorder %s9, 0
    %p90 = por %p88, %p89
    %p91 = scmp.ne.s32.totalorder %s83, %s85
    %p92 = scmp.eq.s32.totalorder %s14, 2
    %p93 = por %p91, %p92
    %p94 = scmp.ne.s32.totalorder %s85, %s86
    %p95 = scmp.eq.s32.totalorder %s14, 0
    %p96 = por %p94, %p95
    %p97 = scmp.ne.s32.totalorder %s85, %s86
    %p98 = scmp.eq.s32.totalorder %s15, 2
    %p99 = por %p97, %p98
    %p101 = scmp.ne.s32.totalorder %s86, %s100
    %p102 = scmp.eq.s32.totalorder %s15, 0
    %p103 = por %p101, %p102
    %s104 = ssub.s32 %s16, %s28
    %p105 = scmp.eq.s32.totalorder %s104, 0
    %s107 = sadd.s32 %s106, 1
    %s108 = scalar_select %p105, %s106, %s107
    %p111 = pneg %p105
    %p112 = scmp.eq.s32.totalorder %s9, 2
    %p113 = por %p111, %p112
    %p114 = scmp.ne.s32.totalorder %s106, %s109
    %p115 = scmp.eq.s32.totalorder %s9, 0
    %p116 = por %p114, %p115
    %p117 = scmp.ne.s32.totalorder %s106, %s109
    %p118 = scmp.eq.s32.totalorder %s14, 2
    %p119 = por %p117, %p118
    %p120 = scmp.ne.s32.totalorder %s109, %s110
    %p121 = scmp.eq.s32.totalorder %s14, 0
    %p122 = por %p120, %p121
    %p123 = scmp.ne.s32.totalorder %s109, %s110
    %p124 = scmp.eq.s32.totalorder %s15, 2
    %p125 = por %p123, %p124
    %p127 = scmp.ne.s32.totalorder %s110, %s126
    %p128 = scmp.eq.s32.totalorder %s15, 0
    %p129 = por %p127, %p128
    %p130 = scmp.le.s32.totalorder 1, %s9
    %p131 = scmp.lt.s32.totalorder %s9, 4
    %p132 = pnand %p130, %p131
    %p133 = pneg %p132
    // Predicated region
    $region9: #{sgae_forward.9} parent=5 // pred_check
      _
    $region10: #{sgae_forward.9} parent=5 // pred_check_branch
      %135 = sbr.rel (%p132) target = $region12
    $region11: #{sgae_forward.9} parent=5 // pred_region
      %s136 = ssub.s32 %s9, 1
      // Predicated region
      $region13: #{sgae_forward.9} parent=11 // pred_check
        %p137 = pneg %p75
      $region14: #{sgae_forward.9} parent=11 // pred_check_branch
        %139 = sbr.rel (%p137) target = $region16
      $region15: #{sgae_forward.9} parent=11 // pred_region
        %s140 = smul.u32 16, %s19
        %p141 = scmp.lt.s32.totalorder %s140, 15
        %s142 = scalar_select %p141, %s140, 15
        %s143 = smul.addr %s142, 8
        %s144 = scalar_lea.vmem %s1, %s143
        %s145 = smul.u32 16, %s19
      $region16: #{sgae_forward.9} parent=11 // pred_fallthru
        _
      // Predicated region
      $region17: #{sgae_forward.9} parent=11 // pred_check
        %p146 = pneg %p96
      $region18: #{sgae_forward.9} parent=11 // pred_check_branch
        %148 = sbr.rel (%p146) target = $region20
      $region19: #{sgae_forward.9} parent=11 // pred_region
        _
      $region20: #{sgae_forward.9} parent=11 // pred_fallthru
        _
    $region12: #{sgae_forward.9} parent=5 // pred_fallthru
      _
    %p149 = scmp.lt.s32.totalorder %s9, 3
    // Predicated region
    $region21: #{sgae_forward.9} parent=5 // pred_check
      %p150 = pneg %p149
    $region22: #{sgae_forward.9} parent=5 // pred_check_branch
      %152 = sbr.rel (%p150) target = $region24
    $region23: #{sgae_forward.9} parent=5 // pred_region
      // Predicated region
      $region25: #{sgae_forward.9} parent=23 // pred_check
        %p153 = pneg %p43
      $region26: #{sgae_forward.9} parent=23 // pred_check_branch
        %155 = sbr.rel (%p153) target = $region28
      $region27: #{sgae_forward.9} parent=23 // pred_region
        %s156 = smul.u32 16, %s16
        %p157 = scmp.lt.s32.totalorder %s156, 47
        %s158 = scalar_select %p157, %s156, 47
        %p159 = scmp.lt.s32.totalorder %s17, 0
        %s160 = scalar_select %p159, %s17, 0
        %s161 = sadd.s32 %s160, %s158
        %s162 = smul.addr %s161, 8
        %s163 = scalar_lea.vmem %s0, %s162
        %s164 = smul.u32 16, %s16
      $region28: #{sgae_forward.9} parent=23 // pred_fallthru
        _
    $region24: #{sgae_forward.9} parent=5 // pred_fallthru
      _
    %p165 = scmp.le.s32.totalorder 1, %s9
    %p166 = scmp.lt.s32.totalorder %s9, 4
    %p167 = pnand %p165, %p166
    %p168 = pneg %p167
    // Predicated region
    $region29: #{sgae_forward.9} parent=5 // pred_check
      _
    $region30: #{sgae_forward.9} parent=5 // pred_check_branch
      %170 = sbr.rel (%p167) target = $region32
    $region31: #{sgae_forward.9} parent=5 // pred_region
      %s171 = ssub.s32 %s9, 1
      %s172 = smul.u32 16, %s18
      %p173 = scmp.lt.s32.totalorder %s172, 47
      %s174 = scalar_select %p173, %s172, 47
      %p175 = scmp.lt.s32.totalorder %s19, 0
      %s176 = scalar_select %p175, %s19, 0
      %s177 = sadd.s32 %s176, %s174
      %s178 = smul.addr %s177, 8
      %s179 = scalar_lea.vmem %s0, %s178
      %p180 = pneg %p49
      %p181 = pneg %p46
      %s182 = smul.u32 16, %s19
      %p183 = scmp.lt.s32.totalorder %s182, 15
      %s184 = scalar_select %p183, %s182, 15
      %s185 = smul.addr %s184, 8
      %s186 = scalar_lea.vmem %s1, %s185
      %p187 = pneg %p75
      %p188 = pneg %p72
      %p189 = pneg %p96
      %p190 = pneg %p93
      %p191 = pneg %p122
      %p192 = pneg %p119
      %s193 = smul.u32 16, %s18
      %p194 = scmp.lt.s32.totalorder %s193, 47
      %s195 = scalar_select %p194, %s193, 47
      %s196 = smul.addr %s195, 8
      %s197 = scalar_lea.vmem %s3, %s196
      %s198 = smul.u32 16, %s18
      %p199 = scmp.lt.s32.totalorder %s198, 47
      %s200 = scalar_select %p199, %s198, 47
      %p201 = scmp.lt.s32.totalorder %s19, 0
      %s202 = scalar_select %p201, %s19, 0
      %s203 = sadd.s32 %s202, %s200
      %s204 = smul.addr %s203, 8
      %s205 = scalar_lea.vmem %s0, %s204
      %s206 = smul.u32 16, %s18
      %s207 = smul.u32 16, %s19
      %p208 = scmp.lt.s32.totalorder %s207, 15
      %s209 = scalar_select %p208, %s207, 15
      %s210 = smul.addr %s209, 8
      %s211 = scalar_lea.vmem %s1, %s210
      %s212 = smul.u32 16, %s19
      %s213 = smul.u32 16, %s18
      %p214 = scmp.lt.s32.totalorder %s213, 47
      %s215 = scalar_select %p214, %s213, 47
      %s216 = smul.addr %s215, 8
      %s217 = scalar_lea.vmem %s3, %s216
      %s218 = smul.u32 16, %s18
      %p220 = scmp.eq.s32.totalorder %s19, 0
      // Predicated region
      $region33: #{sgae_forward.9} parent=31 // pred_check
        %p221 = pneg %p220
      $region34: #{sgae_forward.9} parent=31 // pred_check_branch
        %223 = sbr.rel (%p221) target = $region36
      $region35: #{sgae_forward.9} parent=31 // pred_region
        %224 = vst [vmem:[#allocation2] sm:$0xff] 0.0
        %225 = vst [vmem:[#allocation2 + $0x8] sm:$0xff] 0.0
        %226 = vst [vmem:[#allocation2 + $0x10] sm:$0xff] 0.0
        %227 = vst [vmem:[#allocation2 + $0x18] sm:$0xff] 0.0
        %228 = vst [vmem:[#allocation2 + $0x20] sm:$0xff] 0.0
        %229 = vst [vmem:[#allocation2 + $0x28] sm:$0xff] 0.0
        %230 = vst [vmem:[#allocation2 + $0x30] sm:$0xff] 0.0
        %231 = vst [vmem:[#allocation2 + $0x38] sm:$0xff] 0.0
        %232 = vst [vmem:[#allocation2 + $0x40] sm:$0xff] 0.0
        %233 = vst [vmem:[#allocation2 + $0x48] sm:$0xff] 0.0
        %234 = vst [vmem:[#allocation2 + $0x50] sm:$0xff] 0.0
        %235 = vst [vmem:[#allocation2 + $0x58] sm:$0xff] 0.0
        %236 = vst [vmem:[#allocation2 + $0x60] sm:$0xff] 0.0
        %237 = vst [vmem:[#allocation2 + $0x68] sm:$0xff] 0.0
        %238 = vst [vmem:[#allocation2 + $0x70] sm:$0xff] 0.0
        %239 = vst [vmem:[#allocation2 + $0x78] sm:$0xff] 0.0
      $region36: #{sgae_forward.9} parent=31 // pred_fallthru
        _
      %v240 = vld [vmem:[%s205] sm:$0xff]
      %v241 = vld [vmem:[%s205 + $0x8] sm:$0xff]
      %v242 = vld [vmem:[%s205 + $0x10] sm:$0xff]
      %v243 = vld [vmem:[%s205 + $0x18] sm:$0xff]
      %v244 = vld [vmem:[%s205 + $0x20] sm:$0xff]
      %v245 = vld [vmem:[%s205 + $0x28] sm:$0xff]
      %v246 = vld [vmem:[%s205 + $0x30] sm:$0xff]
      %v247 = vld [vmem:[%s205 + $0x38] sm:$0xff]
      %v248 = vld [vmem:[%s205 + $0x40] sm:$0xff]
      %v249 = vld [vmem:[%s205 + $0x48] sm:$0xff]
      %v250 = vld [vmem:[%s205 + $0x50] sm:$0xff]
      %v251 = vld [vmem:[%s205 + $0x58] sm:$0xff]
      %v252 = vld [vmem:[%s205 + $0x60] sm:$0xff]
      %v253 = vld [vmem:[%s205 + $0x68] sm:$0xff]
      %v254 = vld [vmem:[%s205 + $0x70] sm:$0xff]
      %v255 = vld [vmem:[%s205 + $0x78] sm:$0xff]
      %v256 = vld [vmem:[%s211] sm:$0xff]
      %v257 = vld [vmem:[%s211 + $0x8] sm:$0xff]
      %v258 = vld [vmem:[%s211 + $0x10] sm:$0xff]
      %v259 = vld [vmem:[%s211 + $0x18] sm:$0xff]
      %v260 = vld [vmem:[%s211 + $0x20] sm:$0xff]
      %v261 = vld [vmem:[%s211 + $0x28] sm:$0xff]
      %v262 = vld [vmem:[%s211 + $0x30] sm:$0xff]
      %v263 = vld [vmem:[%s211 + $0x38] sm:$0xff]
      %v264 = vld [vmem:[%s211 + $0x40] sm:$0xff]
      %v265 = vld [vmem:[%s211 + $0x48] sm:$0xff]
      %v266 = vld [vmem:[%s211 + $0x50] sm:$0xff]
      %v267 = vld [vmem:[%s211 + $0x58] sm:$0xff]
      %v268 = vld [vmem:[%s211 + $0x60] sm:$0xff]
      %v269 = vld [vmem:[%s211 + $0x68] sm:$0xff]
      %v270 = vld [vmem:[%s211 + $0x70] sm:$0xff]
      %v271 = vld [vmem:[%s211 + $0x78] sm:$0xff]
      %v272 = vpack.c.bf16 %v241, %v240
      %v273 = vpack.c.bf16 %v243, %v242
      %v274 = vpack.c.bf16 %v245, %v244
      %v275 = vpack.c.bf16 %v247, %v246
      %v276 = vpack.c.bf16 %v249, %v248
      %v277 = vpack.c.bf16 %v251, %v250
      %v278 = vpack.c.bf16 %v253, %v252
      %v279 = vpack.c.bf16 %v255, %v254
      %v280 = vpack.c.bf16 %v257, %v256
      %v281 = vpack.c.bf16 %v259, %v258
      %v282 = vpack.c.bf16 %v261, %v260
      %v283 = vpack.c.bf16 %v263, %v262
      %v284 = vpack.c.bf16 %v265, %v264
      %v285 = vpack.c.bf16 %v267, %v266
      %v286 = vpack.c.bf16 %v269, %v268
      %v287 = vpack.c.bf16 %v271, %v270
      %v288 = vld [vmem:[#allocation2] sm:$0xff]
      %v289 = vld [vmem:[#allocation2 + $0x8] sm:$0xff]
      %v290 = vld [vmem:[#allocation2 + $0x10] sm:$0xff]
      %v291 = vld [vmem:[#allocation2 + $0x18] sm:$0xff]
      %v292 = vld [vmem:[#allocation2 + $0x20] sm:$0xff]
      %v293 = vld [vmem:[#allocation2 + $0x28] sm:$0xff]
      %v294 = vld [vmem:[#allocation2 + $0x30] sm:$0xff]
      %v295 = vld [vmem:[#allocation2 + $0x38] sm:$0xff]
      %v296 = vld [vmem:[#allocation2 + $0x40] sm:$0xff]
      %v297 = vld [vmem:[#allocation2 + $0x48] sm:$0xff]
      %v298 = vld [vmem:[#allocation2 + $0x50] sm:$0xff]
      %v299 = vld [vmem:[#allocation2 + $0x58] sm:$0xff]
      %v300 = vld [vmem:[#allocation2 + $0x60] sm:$0xff]
      %v301 = vld [vmem:[#allocation2 + $0x68] sm:$0xff]
      %v302 = vld [vmem:[#allocation2 + $0x70] sm:$0xff]
      %v303 = vld [vmem:[#allocation2 + $0x78] sm:$0xff]
      %304 = vmatprep.subr.bf16.mxu0 0
      %305 = vmatpush1.bf16.msra.mxu0 %v280
      %306 = vmatprep.subr.bf16.mxu0 0
      %307 = vmatpush1.bf16.msra.mxu0 %v281
      %308 = vmatprep.subr.bf16.mxu0 0
      %309 = vmatpush1.bf16.msra.mxu0 %v282
      %310 = vmatprep.subr.bf16.mxu0 0
      %311 = vmatpush1.bf16.msra.mxu0 %v283
      %312 = vmatprep.subr.bf16.mxu0 0
      %313 = vmatpush1.bf16.msra.mxu0 %v284
      %314 = vmatprep.subr.bf16.mxu0 0
      %315 = vmatpush1.bf16.msra.mxu0 %v285
      %316 = vmatprep.subr.bf16.mxu0 0
      %317 = vmatpush1.bf16.msra.mxu0 %v286
      %318 = vmatprep.subr.bf16.mxu0 0
      %319 = vmatpush1.bf16.msra.mxu0 %v287
      %320 = vmatprep.subr.bf16.mxu0 0
      %321 = vmatpush1.bf16.msra.mxu0 0
      %322 = vmatprep.subr.bf16.mxu0 0
      %323 = vmatpush1.bf16.msra.mxu0 0
      %324 = vmatprep.subr.bf16.mxu0 0
      %325 = vmatpush1.bf16.msra.mxu0 0
      %326 = vmatprep.subr.bf16.mxu0 0
      %327 = vmatpush1.bf16.msra.mxu0 0
      %328 = vmatprep.subr.bf16.mxu0 0
      %329 = vmatpush1.bf16.msra.mxu0 0
      %330 = vmatprep.subr.bf16.mxu0 0
      %331 = vmatpush1.bf16.msra.mxu0 0
      %332 = vmatprep.subr.bf16.mxu0 0
      %333 = vmatpush1.bf16.msra.mxu0 0
      %334 = vmatprep.subr.bf16.mxu0 0
      %335 = vmatpush1.bf16.msra.mxu0 0
      %336 = vmatprep.mubr.bf16.mxu0 0
      %337 = vmatmul.mubr.bf16.gmra.mrb[0].mxu0 %v272
      %v338 = vpop.f32.mrb[0].mxu0
      %v339 = vadd.f32 0.0, %v338
      %v340 = vpop.f32.mrb[0].mxu0
      %v341 = vpop.f32.mrb[0].mxu0
      %v342 = vadd.f32 0.0, %v341
      %v343 = vpop.f32.mrb[0].mxu0
      %344 = vmatprep.mubr.bf16.mxu0 0
      %345 = vmatmul.mubr.bf16.gmra.mrb[0].mxu0 %v273
      %v346 = vpop.f32.mrb[0].mxu0
      %v347 = vadd.f32 0.0, %v346
      %v348 = vpop.f32.mrb[0].mxu0
      %v349 = vpop.f32.mrb[0].mxu0
      %v350 = vadd.f32 0.0, %v349
      %v351 = vpop.f32.mrb[0].mxu0
      %352 = vmatprep.mubr.bf16.mxu0 0
      %353 = vmatmul.mubr.bf16.gmra.mrb[0].mxu0 %v274
      %v354 = vpop.f32.mrb[0].mxu0
      %v355 = vadd.f32 0.0, %v354
      %v356 = vpop.f32.mrb[0].mxu0
      %v357 = vpop.f32.mrb[0].mxu0
      %v358 = vadd.f32 0.0, %v357
      %v359 = vpop.f32.mrb[0].mxu0
      %360 = vmatprep.mubr.bf16.mxu0 0
      %361 = vmatmul.mubr.bf16.gmra.mrb[0].mxu0 %v275
      %v362 = vpop.f32.mrb[0].mxu0
      %v363 = vadd.f32 0.0, %v362
      %v364 = vpop.f32.mrb[0].mxu0
      %v365 = vpop.f32.mrb[0].mxu0
      %v366 = vadd.f32 0.0, %v365
      %v367 = vpop.f32.mrb[0].mxu0
      %368 = vmatprep.mubr.bf16.mxu0 0
      %369 = vmatmul.mubr.bf16.gmra.mrb[0].mxu0 %v276
      %v370 = vpop.f32.mrb[0].mxu0
      %v371 = vadd.f32 0.0, %v370
      %v372 = vpop.f32.mrb[0].mxu0
      %v373 = vpop.f32.mrb[0].mxu0
      %v374 = vadd.f32 0.0, %v373
      %v375 = vpop.f32.mrb[0].mxu0
      %376 = vmatprep.mubr.bf16.mxu0 0
      %377 = vmatmul.mubr.bf16.gmra.mrb[0].mxu0 %v277
      %v378 = vpop.f32.mrb[0].mxu0
      %v379 = vadd.f32 0.0, %v378
      %v380 = vpop.f32.mrb[0].mxu0
      %v381 = vpop.f32.mrb[0].mxu0
      %v382 = vadd.f32 0.0, %v381
      %v383 = vpop.f32.mrb[0].mxu0
      %384 = vmatprep.mubr.bf16.mxu0 0
      %385 = vmatmul.mubr.bf16.gmra.mrb[0].mxu0 %v278
      %v386 = vpop.f32.mrb[0].mxu0
      %v387 = vadd.f32 0.0, %v386
      %v388 = vpop.f32.mrb[0].mxu0
      %v389 = vpop.f32.mrb[0].mxu0
      %v390 = vadd.f32 0.0, %v389
      %v391 = vpop.f32.mrb[0].mxu0
      %392 = vmatprep.mubr.bf16.mxu0 0
      %393 = vmatmul.mubr.bf16.gmra.mrb[0].mxu0 %v279
      %v394 = vpop.f32.mrb[0].mxu0
      %v395 = vadd.f32 0.0, %v394
      %v396 = vpop.f32.mrb[0].mxu0
      %v397 = vpop.f32.mrb[0].mxu0
      %v398 = vadd.f32 0.0, %v397
      %v399 = vpop.f32.mrb[0].mxu0
      %400 = vdwg.mxu0
      %v401 = vadd.f32 %v288, %v339
      %v402 = vadd.f32 %v289, %v342
      %v403 = vadd.f32 %v290, %v347
      %v404 = vadd.f32 %v291, %v350
      %v405 = vadd.f32 %v292, %v355
      %v406 = vadd.f32 %v293, %v358
      %v407 = vadd.f32 %v294, %v363
      %v408 = vadd.f32 %v295, %v366
      %v409 = vadd.f32 %v296, %v371
      %v410 = vadd.f32 %v297, %v374
      %v411 = vadd.f32 %v298, %v379
      %v412 = vadd.f32 %v299, %v382
      %v413 = vadd.f32 %v300, %v387
      %v414 = vadd.f32 %v301, %v390
      %v415 = vadd.f32 %v302, %v395
      %v416 = vadd.f32 %v303, %v398
      %417 = vst [vmem:[#allocation2] sm:$0xff] %v401
      %418 = vst [vmem:[#allocation2 + $0x8] sm:$0xff] %v402
      %419 = vst [vmem:[#allocation2 + $0x10] sm:$0xff] %v403
      %420 = vst [vmem:[#allocation2 + $0x18] sm:$0xff] %v404
      %421 = vst [vmem:[#allocation2 + $0x20] sm:$0xff] %v405
      %422 = vst [vmem:[#allocation2 + $0x28] sm:$0xff] %v406
      %423 = vst [vmem:[#allocation2 + $0x30] sm:$0xff] %v407
      %424 = vst [vmem:[#allocation2 + $0x38] sm:$0xff] %v408
      %425 = vst [vmem:[#allocation2 + $0x40] sm:$0xff] %v409
      %426 = vst [vmem:[#allocation2 + $0x48] sm:$0xff] %v410
      %427 = vst [vmem:[#allocation2 + $0x50] sm:$0xff] %v411
      %428 = vst [vmem:[#allocation2 + $0x58] sm:$0xff] %v412
      %429 = vst [vmem:[#allocation2 + $0x60] sm:$0xff] %v413
      %430 = vst [vmem:[#allocation2 + $0x68] sm:$0xff] %v414
      %431 = vst [vmem:[#allocation2 + $0x70] sm:$0xff] %v415
      %432 = vst [vmem:[#allocation2 + $0x78] sm:$0xff] %v416
      // Predicated region
      $region37: #{sgae_forward.9} parent=31 // pred_check
        %p433 = pneg %p220
      $region38: #{sgae_forward.9} parent=31 // pred_check_branch
        %435 = sbr.rel (%p433) target = $region40
      $region39: #{sgae_forward.9} parent=31 // pred_region
        %v436 = vld [vmem:[#allocation2] sm:$0xff]
        %v437 = vld [vmem:[#allocation2 + $0x8] sm:$0xff]
        %v438 = vld [vmem:[#allocation2 + $0x10] sm:$0xff]
        %v439 = vld [vmem:[#allocation2 + $0x18] sm:$0xff]
        %v440 = vld [vmem:[#allocation2 + $0x20] sm:$0xff]
        %v441 = vld [vmem:[#allocation2 + $0x28] sm:$0xff]
        %v442 = vld [vmem:[#allocation2 + $0x30] sm:$0xff]
        %v443 = vld [vmem:[#allocation2 + $0x38] sm:$0xff]
        %v444 = vld [vmem:[#allocation2 + $0x40] sm:$0xff]
        %v445 = vld [vmem:[#allocation2 + $0x48] sm:$0xff]
        %v446 = vld [vmem:[#allocation2 + $0x50] sm:$0xff]
        %v447 = vld [vmem:[#allocation2 + $0x58] sm:$0xff]
        %v448 = vld [vmem:[#allocation2 + $0x60] sm:$0xff]
        %v449 = vld [vmem:[#allocation2 + $0x68] sm:$0xff]
        %v450 = vld [vmem:[#allocation2 + $0x70] sm:$0xff]
        %v451 = vld [vmem:[#allocation2 + $0x78] sm:$0xff]
        %v452 = vld [vmem:[%s2] sm:$0x1]
        %v454 = vlaneseq
        %v455 = vshrl.u32 %v454, 7
        %v456 = vsub.s32 0, %v455
        %v457 = vrot.slane %v452, %v456
        %v459 = vadd.f32 %v436, %v457
        %v460 = vadd.f32 %v437, %v457
        %v461 = vadd.f32 %v438, %v457
        %v462 = vadd.f32 %v439, %v457
        %v463 = vadd.f32 %v440, %v457
        %v464 = vadd.f32 %v441, %v457
        %v465 = vadd.f32 %v442, %v457
        %v466 = vadd.f32 %v443, %v457
        %v467 = vadd.f32 %v444, %v457
        %v468 = vadd.f32 %v445, %v457
        %v469 = vadd.f32 %v446, %v457
        %v470 = vadd.f32 %v447, %v457
        %v471 = vadd.f32 %v448, %v457
        %v472 = vadd.f32 %v449, %v457
        %v473 = vadd.f32 %v450, %v457
        %v474 = vadd.f32 %v451, %v457
        %475 = vst [vmem:[%s217] sm:$0xff] %v459
        %476 = vst [vmem:[%s217 + $0x8] sm:$0xff] %v460
        %477 = vst [vmem:[%s217 + $0x10] sm:$0xff] %v461
        %478 = vst [vmem:[%s217 + $0x18] sm:$0xff] %v462
        %479 = vst [vmem:[%s217 + $0x20] sm:$0xff] %v463
        %480 = vst [vmem:[%s217 + $0x28] sm:$0xff] %v464
        %481 = vst [vmem:[%s217 + $0x30] sm:$0xff] %v465
        %482 = vst [vmem:[%s217 + $0x38] sm:$0xff] %v466
        %483 = vst [vmem:[%s217 + $0x40] sm:$0xff] %v467
        %484 = vst [vmem:[%s217 + $0x48] sm:$0xff] %v468
        %485 = vst [vmem:[%s217 + $0x50] sm:$0xff] %v469
        %486 = vst [vmem:[%s217 + $0x58] sm:$0xff] %v470
        %487 = vst [vmem:[%s217 + $0x60] sm:$0xff] %v471
        %488 = vst [vmem:[%s217 + $0x68] sm:$0xff] %v472
        %489 = vst [vmem:[%s217 + $0x70] sm:$0xff] %v473
        %490 = vst [vmem:[%s217 + $0x78] sm:$0xff] %v474
      $region40: #{sgae_forward.9} parent=31 // pred_fallthru
        _
      %s491 = smul.u32 16, %s18
      %p492 = scmp.lt.s32.totalorder %s491, 47
      %s493 = scalar_select %p492, %s491, 47
      %s494 = smul.addr %s493, 8
      %s495 = scalar_lea.vmem %s3, %s494
      // Predicated region
      $region41: #{sgae_forward.9} parent=31 // pred_check
        %p496 = pneg %p119
      $region42: #{sgae_forward.9} parent=31 // pred_check_branch
        %498 = sbr.rel (%p496) target = $region44
      $region43: #{sgae_forward.9} parent=31 // pred_region
        %s499 = smul.u32 16, %s18
      $region44: #{sgae_forward.9} parent=31 // pred_fallthru
        _
    $region32: #{sgae_forward.9} parent=5 // pred_fallthru
      _
    %p500 = scmp.le.s32.totalorder 2, %s9
    // Predicated region
    $region45: #{sgae_forward.9} parent=5 // pred_check
      %p501 = pneg %p500
    $region46: #{sgae_forward.9} parent=5 // pred_check_branch
      %503 = sbr.rel (%p501) target = $region48
    $region47: #{sgae_forward.9} parent=5 // pred_region
      %s504 = ssub.s32 %s9, 2
      // Predicated region
      $region49: #{sgae_forward.9} parent=47 // pred_check
        %p505 = pneg %p125
      $region50: #{sgae_forward.9} parent=47 // pred_check_branch
        %507 = sbr.rel (%p505) target = $region52
      $region51: #{sgae_forward.9} parent=47 // pred_region
        %s508 = smul.u32 16, %s20
        %p509 = scmp.lt.s32.totalorder %s508, 47
        %s510 = scalar_select %p509, %s508, 47
        %s511 = smul.addr %s510, 8
        %s512 = scalar_lea.vmem %s3, %s511
      $region52: #{sgae_forward.9} parent=47 // pred_fallthru
        _
    $region48: #{sgae_forward.9} parent=5 // pred_fallthru
      _
  $region6: #{sgae_forward.9} parent=0 // loop_footer
    %s13 = sadd.s32 1, %s9
  $region7: #{sgae_forward.9} parent=0 // loop_footer_branch
    %8 = sbr.rel target = $region3
  $region8: #{sgae_forward.9} parent=0 // loop_exit
    _

// kernel: sgae_forward.13
$region0: #{sgae_forward.13}
  #allocation0 [shape = 'u32[]', space=smem, size = 0x4, offset = 0x4, fixed_abs, tag = 'smem constant byte address 0x4 - core index']
  #allocation1 [shape = 'u32[144,128]{1,0:T(1,128)}', space=vmem, size = 0x12000, scoped, tag = 'internal scratch']
  #allocation2 [shape = 'f32[256,128]{1,0:T(8,128)}', space=vmem, size = 0x20000, scoped, tag = 'scratch operand']
  %s0 = inlined_call_operand.vmem [shape: f32[256,384], index: 0, kind: input, shape index: {}]
  %s1 = inlined_call_operand.vmem [shape: f32[384,128], index: 1, kind: input, shape index: {}]
  %s2 = inlined_call_operand.vmem [shape: f32[1,128], index: 2, kind: input, shape index: {}]
  %s3 = inlined_call_operand.vmem [shape: f32[256,128], index: 3, kind: output, shape index: {}]
  %s4 = sld [smem:[#allocation0]]
  $region91: #{sgae_forward.13} parent=0
    _
  %s6 = ssub.s32 1, %s4
  %s7 = scalar_select 0, %s6, %s4
  $region1: #{sgae_forward.13} parent=0
    #allocation3 [shape = 'u8[262144]{0}', space=vmem, size = 0x40000, scoped, tag = 'input window, operand 0']
    loop: start=0, step=1, limit=5
    $region2: #{sgae_forward.13} parent=1 // loop_pre_header
      _
    $region3: #{sgae_forward.13} parent=1 // loop_header
      %s9 = sphi 0, %s13
      %p10 = scmp.ge.s32.totalorder %s9, 5
      %s16 = sphi 0, %s28
      %s17 = sphi 0, %s24
      %s18 = sphi 0, %s16
      %s19 = sphi 0, %s17
      %s20 = sphi 0, %s18
      %s21 = sphi 0, %s19
      %s33 = sphi 0, %s35
      %s36 = sphi 0, %s33
      %s37 = sphi 0, %s36
      %s53 = sphi 0, %s37
      %s59 = sphi 0, %s61
      %s62 = sphi 0, %s59
      %s63 = sphi 0, %s62
      %s79 = sphi 0, %s63
      %s83 = sphi 0, %s83
      %s85 = sphi 0, %s83
      %s86 = sphi 0, %s85
      %s100 = sphi 0, %s86
      %s106 = sphi 0, %s108
      %s109 = sphi 0, %s106
      %s110 = sphi 0, %s109
      %s126 = sphi 0, %s110
    $region4: #{sgae_forward.13} parent=1 // loop_header_branch
      %12 = sbr.rel (%p10) target = $region8
    $region5: #{sgae_forward.13} parent=1 // loop_body
      %s14 = ssub.s32 %s9, 1
      %s15 = ssub.s32 %s9, 2
      %s22 = sadd.s32 1, %s17
      %p23 = scmp.ge.s32.totalorder %s22, 3
      %s24 = scalar_select %p23, 0, %s22
      %s25 = sadd.s32 1, %s16
      %s26 = scalar_select %p23, %s25, %s16
      %p27 = scmp.ge.s32.totalorder %s26, 1
      %s28 = scalar_select %p27, 0, %s26
      %s29 = ssub.s32 %s16, %s28
      %s30 = ssub.s32 %s17, %s24
      %s31 = sor.u32 %s29, %s30
      %p32 = scmp.eq.s32.totalorder %s31, 0
      %s34 = sadd.s32 %s33, 1
      %s35 = scalar_select %p32, %s33, %s34
      %p38 = pneg %p32
      %p39 = scmp.eq.s32.totalorder %s9, 2
      %p40 = por %p38, %p39
      %p41 = scmp.ne.s32.totalorder %s33, %s36
      %p42 = scmp.eq.s32.totalorder %s9, 0
      %p43 = por %p41, %p42
      %p44 = scmp.ne.s32.totalorder %s33, %s36
      %p45 = scmp.eq.s32.totalorder %s14, 2
      %p46 = por %p44, %p45
      %p47 = scmp.ne.s32.totalorder %s36, %s37
      %p48 = scmp.eq.s32.totalorder %s14, 0
      %p49 = por %p47, %p48
      %p50 = scmp.ne.s32.totalorder %s36, %s37
      %p51 = scmp.eq.s32.totalorder %s15, 2
      %p52 = por %p50, %p51
      %p54 = scmp.ne.s32.totalorder %s37, %s53
      %p55 = scmp.eq.s32.totalorder %s15, 0
      %p56 = por %p54, %p55
      %s57 = ssub.s32 %s17, %s24
      %p58 = scmp.eq.s32.totalorder %s57, 0
      %s60 = sadd.s32 %s59, 1
      %s61 = scalar_select %p58, %s59, %s60
      %p64 = pneg %p58
      %p65 = scmp.eq.s32.totalorder %s9, 2
      %p66 = por %p64, %p65
      %p67 = scmp.ne.s32.totalorder %s59, %s62
      %p68 = scmp.eq.s32.totalorder %s9, 0
      %p69 = por %p67, %p68
      %p70 = scmp.ne.s32.totalorder %s59, %s62
      %p71 = scmp.eq.s32.totalorder %s14, 2
      %p72 = por %p70, %p71
      %p73 = scmp.ne.s32.totalorder %s62, %s63
      %p74 = scmp.eq.s32.totalorder %s14, 0
      %p75 = por %p73, %p74
      %p76 = scmp.ne.s32.totalorder %s62, %s63
      %p77 = scmp.eq.s32.totalorder %s15, 2
      %p78 = por %p76, %p77
      %p80 = scmp.ne.s32.totalorder %s63, %s79
      %p81 = scmp.eq.s32.totalorder %s15, 0
      %p82 = por %p80, %p81
      %s84 = sadd.s32 %s83, 1
      %p87 = scmp.eq.s32.totalorder %s9, 2
      %p88 = scmp.ne.s32.totalorder %s83, %s85
      %p89 = scmp.eq.s32.totalorder %s9, 0
      %p90 = por %p88, %p89
      %p91 = scmp.ne.s32.totalorder %s83, %s85
      %p92 = scmp.eq.s32.totalorder %s14, 2
      %p93 = por %p91, %p92
      %p94 = scmp.ne.s32.totalorder %s85, %s86
      %p95 = scmp.eq.s32.totalorder %s14, 0
      %p96 = por %p94, %p95
      %p97 = scmp.ne.s32.totalorder %s85, %s86
      %p98 = scmp.eq.s32.totalorder %s15, 2
      %p99 = por %p97, %p98
      %p101 = scmp.ne.s32.totalorder %s86, %s100
      %p102 = scmp.eq.s32.totalorder %s15, 0
      %p103 = por %p101, %p102
      %s104 = ssub.s32 %s16, %s28
      %p105 = scmp.eq.s32.totalorder %s104, 0
      %s107 = sadd.s32 %s106, 1
      %s108 = scalar_select %p105, %s106, %s107
      %p111 = pneg %p105
      %p112 = scmp.eq.s32.totalorder %s9, 2
      %p113 = por %p111, %p112
      %p114 = scmp.ne.s32.totalorder %s106, %s109
      %p115 = scmp.eq.s32.totalorder %s9, 0
      %p116 = por %p114, %p115
      %p117 = scmp.ne.s32.totalorder %s106, %s109
      %p118 = scmp.eq.s32.totalorder %s14, 2
      %p119 = por %p117, %p118
      %p120 = scmp.ne.s32.totalorder %s109, %s110
      %p121 = scmp.eq.s32.totalorder %s14, 0
      %p122 = por %p120, %p121
      %p123 = scmp.ne.s32.totalorder %s109, %s110
      %p124 = scmp.eq.s32.totalorder %s15, 2
      %p125 = por %p123, %p124
      %p127 = scmp.ne.s32.totalorder %s110, %s126
      %p128 = scmp.eq.s32.totalorder %s15, 0
      %p129 = por %p127, %p128
      %p130 = scmp.le.s32.totalorder 1, %s9
      %p131 = scmp.lt.s32.totalorder %s9, 4
      %p132 = pnand %p130, %p131
      %p133 = pneg %p132
      // Predicated region
      $region9: #{sgae_forward.13} parent=5 // pred_check
        _
      $region10: #{sgae_forward.13} parent=5 // pred_check_branch
        %135 = sbr.rel (%p132) target = $region12
      $region11: #{sgae_forward.13} parent=5 // pred_region
        %s136 = ssub.s32 %s9, 1
        // Predicated region
        $region13: #{sgae_forward.13} parent=11 // pred_check
          %p137 = pneg %p96
        $region14: #{sgae_forward.13} parent=11 // pred_check_branch
          %139 = sbr.rel (%p137) target = $region16
        $region15: #{sgae_forward.13} parent=11 // pred_region
          _
        $region16: #{sgae_forward.13} parent=11 // pred_fallthru
          _
      $region12: #{sgae_forward.13} parent=5 // pred_fallthru
        _
      %p140 = scmp.lt.s32.totalorder %s9, 3
      // Predicated region
      $region17: #{sgae_forward.13} parent=5 // pred_check
        %p141 = pneg %p140
      $region18: #{sgae_forward.13} parent=5 // pred_check_branch
        %143 = sbr.rel (%p141) target = $region20
      $region19: #{sgae_forward.13} parent=5 // pred_region
        // Predicated region
        $region21: #{sgae_forward.13} parent=19 // pred_check
          %p144 = pneg %p43
        $region22: #{sgae_forward.13} parent=19 // pred_check_branch
          %146 = sbr.rel (%p144) target = $region24
        $region23: #{sgae_forward.13} parent=19 // pred_region
          %s147 = sand.u32 %s33, 1
          %s148 = sand.u32 %s33, 1
          %s149 = smul.addr %s148, 256
          %s150 = scalar_lea.vmem [#allocation3], %s149
          %s151 = smul.u32 32, %s16
          %s152 = smul.addr %s151, 3
          %s153 = sadd.s32 %s17, %s152
          %s154 = smul.addr %s153, 8
          %s155 = scalar_lea.vmem %s0, %s154
          // Predicated region
          $region25: #{sgae_forward.13} parent=23 // pred_check
            _
          $region26: #{sgae_forward.13} parent=23 // pred_check_branch
            %157 = sbr.rel (0) target = $region28
          $region27: #{sgae_forward.13} parent=23 // pred_region
            // Predicated region
            $region29: #{sgae_forward.13} parent=27 // pred_check
              _
            $region30: #{sgae_forward.13} parent=27 // pred_check_branch
              %159 = sbr.rel (0) target = $region32
            $region31: #{sgae_forward.13} parent=27 // pred_region
              // Predicated region
              $region44: #{sgae_forward.13} parent=31 // pred_check
                _
              $region45: #{sgae_forward.13} parent=31 // pred_check_branch
                %236 = sbr.rel (0) target = $region47
              $region46: #{sgae_forward.13} parent=31 // pred_region
                loop: start=0, step=1, limit=1
                $region48: #{sgae_forward.13} parent=46 // loop_pre_header
                  _
                $region49: #{sgae_forward.13} parent=46 // loop_header
                  %s238 = sphi 0, %s242
                  %p239 = scmp.ge.s32.totalorder %s238, 1
                  %s243 = sphi %s155, %s155
                  %s244 = sphi %s150, %s150
                $region50: #{sgae_forward.13} parent=46 // loop_header_branch
                  %241 = sbr.rel (%p239) target = $region54
                $region51: #{sgae_forward.13} parent=46 // loop_body
                  %v245 = vld [vmem:[%s243] sm:$0xff]
                  %246 = vst [vmem:[%s244] sm:$0xff] %v245
                  %v247 = vld [vmem:[%s243 + $0x18] sm:$0xff]
                  %248 = vst [vmem:[%s244 + $0x8] sm:$0xff] %v247
                  %v249 = vld [vmem:[%s243 + $0x30] sm:$0xff]
                  %250 = vst [vmem:[%s244 + $0x10] sm:$0xff] %v249
                  %v251 = vld [vmem:[%s243 + $0x48] sm:$0xff]
                  %252 = vst [vmem:[%s244 + $0x18] sm:$0xff] %v251
                  %v253 = vld [vmem:[%s243 + $0x60] sm:$0xff]
                  %254 = vst [vmem:[%s244 + $0x20] sm:$0xff] %v253
                  %v255 = vld [vmem:[%s243 + $0x78] sm:$0xff]
                  %256 = vst [vmem:[%s244 + $0x28] sm:$0xff] %v255
                  %v257 = vld [vmem:[%s243 + $0x90] sm:$0xff]
                  %258 = vst [vmem:[%s244 + $0x30] sm:$0xff] %v257
                  %v259 = vld [vmem:[%s243 + $0xa8] sm:$0xff]
                  %260 = vst [vmem:[%s244 + $0x38] sm:$0xff] %v259
                  %v261 = vld [vmem:[%s243 + $0xc0] sm:$0xff]
                  %262 = vst [vmem:[%s244 + $0x40] sm:$0xff] %v261
                  %v263 = vld [vmem:[%s243 + $0xd8] sm:$0xff]
                  %264 = vst [vmem:[%s244 + $0x48] sm:$0xff] %v263
                  %v265 = vld [vmem:[%s243 + $0xf0] sm:$0xff]
                  %266 = vst [vmem:[%s244 + $0x50] sm:$0xff] %v265
                  %v267 = vld [vmem:[%s243 + $0x108] sm:$0xff]
                  %268 = vst [vmem:[%s244 + $0x58] sm:$0xff] %v267
                  %v269 = vld [vmem:[%s243 + $0x120] sm:$0xff]
                  %270 = vst [vmem:[%s244 + $0x60] sm:$0xff] %v269
                  %v271 = vld [vmem:[%s243 + $0x138] sm:$0xff]
                  %272 = vst [vmem:[%s244 + $0x68] sm:$0xff] %v271
                  %v273 = vld [vmem:[%s243 + $0x150] sm:$0xff]
                  %274 = vst [vmem:[%s244 + $0x70] sm:$0xff] %v273
                  %v275 = vld [vmem:[%s243 + $0x168] sm:$0xff]
                  %276 = vst [vmem:[%s244 + $0x78] sm:$0xff] %v275
                  %v277 = vld [vmem:[%s243 + $0x180] sm:$0xff]
                  %278 = vst [vmem:[%s244 + $0x80] sm:$0xff] %v277
                  %v279 = vld [vmem:[%s243 + $0x198] sm:$0xff]
                  %280 = vst [vmem:[%s244 + $0x88] sm:$0xff] %v279
                  %v281 = vld [vmem:[%s243 + $0x1b0] sm:$0xff]
                  %282 = vst [vmem:[%s244 + $0x90] sm:$0xff] %v281
                  %v283 = vld [vmem:[%s243 + $0x1c8] sm:$0xff]
                  %284 = vst [vmem:[%s244 + $0x98] sm:$0xff] %v283
                  %v285 = vld [vmem:[%s243 + $0x1e0] sm:$0xff]
                  %286 = vst [vmem:[%s244 + $0xa0] sm:$0xff] %v285
                  %v287 = vld [vmem:[%s243 + $0x1f8] sm:$0xff]
                  %288 = vst [vmem:[%s244 + $0xa8] sm:$0xff] %v287
                  %v289 = vld [vmem:[%s243 + $0x210] sm:$0xff]
                  %290 = vst [vmem:[%s244 + $0xb0] sm:$0xff] %v289
                  %v291 = vld [vmem:[%s243 + $0x228] sm:$0xff]
                  %292 = vst [vmem:[%s244 + $0xb8] sm:$0xff] %v291
                  %v293 = vld [vmem:[%s243 + $0x240] sm:$0xff]
                  %294 = vst [vmem:[%s244 + $0xc0] sm:$0xff] %v293
                  %v295 = vld [vmem:[%s243 + $0x258] sm:$0xff]
                  %296 = vst [vmem:[%s244 + $0xc8] sm:$0xff] %v295
                  %v297 = vld [vmem:[%s243 + $0x270] sm:$0xff]
                  %298 = vst [vmem:[%s244 + $0xd0] sm:$0xff] %v297
                  %v299 = vld [vmem:[%s243 + $0x288] sm:$0xff]
                  %300 = vst [vmem:[%s244 + $0xd8] sm:$0xff] %v299
                  %v301 = vld [vmem:[%s243 + $0x2a0] sm:$0xff]
                  %302 = vst [vmem:[%s244 + $0xe0] sm:$0xff] %v301
                  %v303 = vld [vmem:[%s243 + $0x2b8] sm:$0xff]
                  %304 = vst [vmem:[%s244 + $0xe8] sm:$0xff] %v303
                  %v305 = vld [vmem:[%s243 + $0x2d0] sm:$0xff]
                  %306 = vst [vmem:[%s244 + $0xf0] sm:$0xff] %v305
                  %v307 = vld [vmem:[%s243 + $0x2e8] sm:$0xff]
                  %308 = vst [vmem:[%s244 + $0xf8] sm:$0xff] %v307
                $region52: #{sgae_forward.13} parent=46 // loop_footer
                  %s242 = sadd.s32 1, %s238
                $region53: #{sgae_forward.13} parent=46 // loop_footer_branch
                  %237 = sbr.rel target = $region49
                $region54: #{sgae_forward.13} parent=46 // loop_exit
                  _
              $region47: #{sgae_forward.13} parent=31 // pred_fallthru
                _
              // Predicated region
              $region55: #{sgae_forward.13} parent=31 // pred_check
                _
              $region56: #{sgae_forward.13} parent=31 // pred_check_branch
                %310 = sbr.rel target = $region58
              $region57: #{sgae_forward.13} parent=31 // pred_region
                _
              $region58: #{sgae_forward.13} parent=31 // pred_fallthru
                _
            $region32: #{sgae_forward.13} parent=27 // pred_fallthru
              _
            // Predicated region
            $region33: #{sgae_forward.13} parent=27 // pred_check
              _
            $region34: #{sgae_forward.13} parent=27 // pred_check_branch
              %161 = sbr.rel target = $region36
            $region35: #{sgae_forward.13} parent=27 // pred_region
              loop: start=0, step=1, limit=1
              $region37: #{sgae_forward.13} parent=35 // loop_pre_header
                _
              $region38: #{sgae_forward.13} parent=35 // loop_header
                %s164 = sphi 0, %s168
                %p165 = scmp.ge.s32.totalorder %s164, 1
                %s169 = sphi %s155, %s155
                %s170 = sphi %s150, %s150
              $region39: #{sgae_forward.13} parent=35 // loop_header_branch
                %167 = sbr.rel (%p165) target = $region43
              $region40: #{sgae_forward.13} parent=35 // loop_body
                %v171 = vld [vmem:[%s169] sm:$0xff]
                %172 = vst [vmem:[%s170] sm:$0xff] %v171
                %v173 = vld [vmem:[%s169 + $0x18] sm:$0xff]
                %174 = vst [vmem:[%s170 + $0x8] sm:$0xff] %v173
                %v175 = vld [vmem:[%s169 + $0x30] sm:$0xff]
                %176 = vst [vmem:[%s170 + $0x10] sm:$0xff] %v175
                %v177 = vld [vmem:[%s169 + $0x48] sm:$0xff]
                %178 = vst [vmem:[%s170 + $0x18] sm:$0xff] %v177
                %v179 = vld [vmem:[%s169 + $0x60] sm:$0xff]
                %180 = vst [vmem:[%s170 + $0x20] sm:$0xff] %v179
                %v181 = vld [vmem:[%s169 + $0x78] sm:$0xff]
                %182 = vst [vmem:[%s170 + $0x28] sm:$0xff] %v181
                %v183 = vld [vmem:[%s169 + $0x90] sm:$0xff]
                %184 = vst [vmem:[%s170 + $0x30] sm:$0xff] %v183
                %v185 = vld [vmem:[%s169 + $0xa8] sm:$0xff]
                %186 = vst [vmem:[%s170 + $0x38] sm:$0xff] %v185
                %v187 = vld [vmem:[%s169 + $0xc0] sm:$0xff]
                %188 = vst [vmem:[%s170 + $0x40] sm:$0xff] %v187
                %v189 = vld [vmem:[%s169 + $0xd8] sm:$0xff]
                %190 = vst [vmem:[%s170 + $0x48] sm:$0xff] %v189
                %v191 = vld [vmem:[%s169 + $0xf0] sm:$0xff]
                %192 = vst [vmem:[%s170 + $0x50] sm:$0xff] %v191
                %v193 = vld [vmem:[%s169 + $0x108] sm:$0xff]
                %194 = vst [vmem:[%s170 + $0x58] sm:$0xff] %v193
                %v195 = vld [vmem:[%s169 + $0x120] sm:$0xff]
                %196 = vst [vmem:[%s170 + $0x60] sm:$0xff] %v195
                %v197 = vld [vmem:[%s169 + $0x138] sm:$0xff]
                %198 = vst [vmem:[%s170 + $0x68] sm:$0xff] %v197
                %v199 = vld [vmem:[%s169 + $0x150] sm:$0xff]
                %200 = vst [vmem:[%s170 + $0x70] sm:$0xff] %v199
                %v201 = vld [vmem:[%s169 + $0x168] sm:$0xff]
                %202 = vst [vmem:[%s170 + $0x78] sm:$0xff] %v201
                %v203 = vld [vmem:[%s169 + $0x180] sm:$0xff]
                %204 = vst [vmem:[%s170 + $0x80] sm:$0xff] %v203
                %v205 = vld [vmem:[%s169 + $0x198] sm:$0xff]
                %206 = vst [vmem:[%s170 + $0x88] sm:$0xff] %v205
                %v207 = vld [vmem:[%s169 + $0x1b0] sm:$0xff]
                %208 = vst [vmem:[%s170 + $0x90] sm:$0xff] %v207
                %v209 = vld [vmem:[%s169 + $0x1c8] sm:$0xff]
                %210 = vst [vmem:[%s170 + $0x98] sm:$0xff] %v209
                %v211 = vld [vmem:[%s169 + $0x1e0] sm:$0xff]
                %212 = vst [vmem:[%s170 + $0xa0] sm:$0xff] %v211
                %v213 = vld [vmem:[%s169 + $0x1f8] sm:$0xff]
                %214 = vst [vmem:[%s170 + $0xa8] sm:$0xff] %v213
                %v215 = vld [vmem:[%s169 + $0x210] sm:$0xff]
                %216 = vst [vmem:[%s170 + $0xb0] sm:$0xff] %v215
                %v217 = vld [vmem:[%s169 + $0x228] sm:$0xff]
                %218 = vst [vmem:[%s170 + $0xb8] sm:$0xff] %v217
                %v219 = vld [vmem:[%s169 + $0x240] sm:$0xff]
                %220 = vst [vmem:[%s170 + $0xc0] sm:$0xff] %v219
                %v221 = vld [vmem:[%s169 + $0x258] sm:$0xff]
                %222 = vst [vmem:[%s170 + $0xc8] sm:$0xff] %v221
                %v223 = vld [vmem:[%s169 + $0x270] sm:$0xff]
                %224 = vst [vmem:[%s170 + $0xd0] sm:$0xff] %v223
                %v225 = vld [vmem:[%s169 + $0x288] sm:$0xff]
                %226 = vst [vmem:[%s170 + $0xd8] sm:$0xff] %v225
                %v227 = vld [vmem:[%s169 + $0x2a0] sm:$0xff]
                %228 = vst [vmem:[%s170 + $0xe0] sm:$0xff] %v227
                %v229 = vld [vmem:[%s169 + $0x2b8] sm:$0xff]
                %230 = vst [vmem:[%s170 + $0xe8] sm:$0xff] %v229
                %v231 = vld [vmem:[%s169 + $0x2d0] sm:$0xff]
                %232 = vst [vmem:[%s170 + $0xf0] sm:$0xff] %v231
                %v233 = vld [vmem:[%s169 + $0x2e8] sm:$0xff]
                %234 = vst [vmem:[%s170 + $0xf8] sm:$0xff] %v233
              $region41: #{sgae_forward.13} parent=35 // loop_footer
                %s168 = sadd.s32 1, %s164
              $region42: #{sgae_forward.13} parent=35 // loop_footer_branch
                %163 = sbr.rel target = $region38
              $region43: #{sgae_forward.13} parent=35 // loop_exit
                _
            $region36: #{sgae_forward.13} parent=27 // pred_fallthru
              _
          $region28: #{sgae_forward.13} parent=23 // pred_fallthru
            _
          %311 = vnop
        $region24: #{sgae_forward.13} parent=19 // pred_fallthru
          _
        // Predicated region
        $region59: #{sgae_forward.13} parent=19 // pred_check
          %p312 = pneg %p69
        $region60: #{sgae_forward.13} parent=19 // pred_check_branch
          %314 = sbr.rel (%p312) target = $region62
        $region61: #{sgae_forward.13} parent=19 // pred_region
          %s315 = smul.u32 16, %s17
          %p316 = scmp.lt.s32.totalorder %s315, 47
          %s317 = scalar_select %p316, %s315, 47
          %s318 = smul.addr %s317, 8
          %s319 = scalar_lea.vmem %s1, %s318
          %s320 = smul.u32 16, %s17
        $region62: #{sgae_forward.13} parent=19 // pred_fallthru
          _
      $region20: #{sgae_forward.13} parent=5 // pred_fallthru
        _
      %p321 = scmp.le.s32.totalorder 1, %s9
      %p322 = scmp.lt.s32.totalorder %s9, 4
      %p323 = pnand %p321, %p322
      %p324 = pneg %p323
      // Predicated region
      $region63: #{sgae_forward.13} parent=5 // pred_check
        _
      $region64: #{sgae_forward.13} parent=5 // pred_check_branch
        %326 = sbr.rel (%p323) target = $region66
      $region65: #{sgae_forward.13} parent=5 // pred_region
        %s327 = ssub.s32 %s9, 1
        %s328 = sand.u32 %s36, 1
        %s329 = sand.u32 %s36, 1
        %s330 = smul.addr %s329, 256
        %s331 = scalar_lea.vmem [#allocation3], %s330
        // Predicated region
        $region67: #{sgae_forward.13} parent=65 // pred_check
          %p332 = pneg %p49
        $region68: #{sgae_forward.13} parent=65 // pred_check_branch
          %334 = sbr.rel (%p332) target = $region70
        $region69: #{sgae_forward.13} parent=65 // pred_region
          _
        $region70: #{sgae_forward.13} parent=65 // pred_fallthru
          _
        %s335 = sand.u32 %s36, 1
        %s336 = sand.u32 %s36, 1
        %s337 = smul.addr %s336, 256
        %s338 = scalar_lea.vmem [#allocation3], %s337
        %p339 = pneg %p49
        %p340 = pneg %p46
        %s341 = smul.u32 16, %s19
        %p342 = scmp.lt.s32.totalorder %s341, 47
        %s343 = scalar_select %p342, %s341, 47
        %s344 = smul.addr %s343, 8
        %s345 = scalar_lea.vmem %s1, %s344
        %p346 = pneg %p75
        %p347 = pneg %p72
        %p348 = pneg %p96
        %p349 = pneg %p93
        %p350 = pneg %p122
        %p351 = pneg %p119
        %s352 = smul.u32 32, %s18
        %p353 = scmp.lt.s32.totalorder %s352, 31
        %s354 = scalar_select %p353, %s352, 31
        %s355 = smul.addr %s354, 8
        %s356 = scalar_lea.vmem %s3, %s355
        %s357 = smul.u32 32, %s18
        %s358 = smul.u32 16, %s19
        %p359 = scmp.lt.s32.totalorder %s358, 47
        %s360 = scalar_select %p359, %s358, 47
        %s361 = smul.addr %s360, 8
        %s362 = scalar_lea.vmem %s1, %s361
        %s363 = smul.u32 16, %s19
        %s364 = smul.u32 32, %s18
        %p365 = scmp.lt.s32.totalorder %s364, 31
        %s366 = scalar_select %p365, %s364, 31
        %s367 = smul.addr %s366, 8
        %s368 = scalar_lea.vmem %s3, %s367
        %s369 = smul.u32 32, %s18
        %p371 = scmp.eq.s32.totalorder %s19, 0
        // Predicated region
        $region71: #{sgae_forward.13} parent=65 // pred_check
          %p372 = pneg %p371
        $region72: #{sgae_forward.13} parent=65 // pred_check_branch
          %374 = sbr.rel (%p372) target = $region74
        $region73: #{sgae_forward.13} parent=65 // pred_region
          %375 = vst [vmem:[#allocation2] sm:$0xff] 0.0
          %376 = vst [vmem:[#allocation2 + $0x8] sm:$0xff] 0.0
          %377 = vst [vmem:[#allocation2 + $0x10] sm:$0xff] 0.0
          %378 = vst [vmem:[#allocation2 + $0x18] sm:$0xff] 0.0
          %379 = vst [vmem:[#allocation2 + $0x20] sm:$0xff] 0.0
          %380 = vst [vmem:[#allocation2 + $0x28] sm:$0xff] 0.0
          %381 = vst [vmem:[#allocation2 + $0x30] sm:$0xff] 0.0
          %382 = vst [vmem:[#allocation2 + $0x38] sm:$0xff] 0.0
          %383 = vst [vmem:[#allocation2 + $0x40] sm:$0xff] 0.0
          %384 = vst [vmem:[#allocation2 + $0x48] sm:$0xff] 0.0
          %385 = vst [vmem:[#allocation2 + $0x50] sm:$0xff] 0.0
          %386 = vst [vmem:[#allocation2 + $0x58] sm:$0xff] 0.0
          %387 = vst [vmem:[#allocation2 + $0x60] sm:$0xff] 0.0
          %388 = vst [vmem:[#allocation2 + $0x68] sm:$0xff] 0.0
          %389 = vst [vmem:[#allocation2 + $0x70] sm:$0xff] 0.0
          %390 = vst [vmem:[#allocation2 + $0x78] sm:$0xff] 0.0
          %391 = vst [vmem:[#allocation2 + $0x80] sm:$0xff] 0.0
          %392 = vst [vmem:[#allocation2 + $0x88] sm:$0xff] 0.0
          %393 = vst [vmem:[#allocation2 + $0x90] sm:$0xff] 0.0
          %394 = vst [vmem:[#allocation2 + $0x98] sm:$0xff] 0.0
          %395 = vst [vmem:[#allocation2 + $0xa0] sm:$0xff] 0.0
          %396 = vst [vmem:[#allocation2 + $0xa8] sm:$0xff] 0.0
          %397 = vst [vmem:[#allocation2 + $0xb0] sm:$0xff] 0.0
          %398 = vst [vmem:[#allocation2 + $0xb8] sm:$0xff] 0.0
          %399 = vst [vmem:[#allocation2 + $0xc0] sm:$0xff] 0.0
          %400 = vst [vmem:[#allocation2 + $0xc8] sm:$0xff] 0.0
          %401 = vst [vmem:[#allocation2 + $0xd0] sm:$0xff] 0.0
          %402 = vst [vmem:[#allocation2 + $0xd8] sm:$0xff] 0.0
          %403 = vst [vmem:[#allocation2 + $0xe0] sm:$0xff] 0.0
          %404 = vst [vmem:[#allocation2 + $0xe8] sm:$0xff] 0.0
          %405 = vst [vmem:[#allocation2 + $0xf0] sm:$0xff] 0.0
          %406 = vst [vmem:[#allocation2 + $0xf8] sm:$0xff] 0.0
        $region74: #{sgae_forward.13} parent=65 // pred_fallthru
          _
        %v407 = vld [vmem:[%s331] sm:$0xff]
        %v408 = vld [vmem:[%s331 + $0x8] sm:$0xff]
        %v409 = vld [vmem:[%s331 + $0x10] sm:$0xff]
        %v410 = vld [vmem:[%s331 + $0x18] sm:$0xff]
        %v411 = vld [vmem:[%s331 + $0x20] sm:$0xff]
        %v412 = vld [vmem:[%s331 + $0x28] sm:$0xff]
        %v413 = vld [vmem:[%s331 + $0x30] sm:$0xff]
        %v414 = vld [vmem:[%s331 + $0x38] sm:$0xff]
        %v415 = vld [vmem:[%s331 + $0x40] sm:$0xff]
        %v416 = vld [vmem:[%s331 + $0x48] sm:$0xff]
        %v417 = vld [vmem:[%s331 + $0x50] sm:$0xff]
        %v418 = vld [vmem:[%s331 + $0x58] sm:$0xff]
        %v419 = vld [vmem:[%s331 + $0x60] sm:$0xff]
        %v420 = vld [vmem:[%s331 + $0x68] sm:$0xff]
        %v421 = vld [vmem:[%s331 + $0x70] sm:$0xff]
        %v422 = vld [vmem:[%s331 + $0x78] sm:$0xff]
        %v423 = vld [vmem:[%s331 + $0x80] sm:$0xff]
        %v424 = vld [vmem:[%s331 + $0x88] sm:$0xff]
        %v425 = vld [vmem:[%s331 + $0x90] sm:$0xff]
        %v426 = vld [vmem:[%s331 + $0x98] sm:$0xff]
        %v427 = vld [vmem:[%s331 + $0xa0] sm:$0xff]
        %v428 = vld [vmem:[%s331 + $0xa8] sm:$0xff]
        %v429 = vld [vmem:[%s331 + $0xb0] sm:$0xff]
        %v430 = vld [vmem:[%s331 + $0xb8] sm:$0xff]
        %v431 = vld [vmem:[%s331 + $0xc0] sm:$0xff]
        %v432 = vld [vmem:[%s331 + $0xc8] sm:$0xff]
        %v433 = vld [vmem:[%s331 + $0xd0] sm:$0xff]
        %v434 = vld [vmem:[%s331 + $0xd8] sm:$0xff]
        %v435 = vld [vmem:[%s331 + $0xe0] sm:$0xff]
        %v436 = vld [vmem:[%s331 + $0xe8] sm:$0xff]
        %v437 = vld [vmem:[%s331 + $0xf0] sm:$0xff]
        %v438 = vld [vmem:[%s331 + $0xf8] sm:$0xff]
        %v439 = vld [vmem:[%s362] sm:$0xff]
        %v440 = vld [vmem:[%s362 + $0x8] sm:$0xff]
        %v441 = vld [vmem:[%s362 + $0x10] sm:$0xff]
        %v442 = vld [vmem:[%s362 + $0x18] sm:$0xff]
        %v443 = vld [vmem:[%s362 + $0x20] sm:$0xff]
        %v444 = vld [vmem:[%s362 + $0x28] sm:$0xff]
        %v445 = vld [vmem:[%s362 + $0x30] sm:$0xff]
        %v446 = vld [vmem:[%s362 + $0x38] sm:$0xff]
        %v447 = vld [vmem:[%s362 + $0x40] sm:$0xff]
        %v448 = vld [vmem:[%s362 + $0x48] sm:$0xff]
        %v449 = vld [vmem:[%s362 + $0x50] sm:$0xff]
        %v450 = vld [vmem:[%s362 + $0x58] sm:$0xff]
        %v451 = vld [vmem:[%s362 + $0x60] sm:$0xff]
        %v452 = vld [vmem:[%s362 + $0x68] sm:$0xff]
        %v453 = vld [vmem:[%s362 + $0x70] sm:$0xff]
        %v454 = vld [vmem:[%s362 + $0x78] sm:$0xff]
        %v455 = vpack.c.bf16 %v408, %v407
        %v456 = vpack.c.bf16 %v410, %v409
        %v457 = vpack.c.bf16 %v412, %v411
        %v458 = vpack.c.bf16 %v414, %v413
        %v459 = vpack.c.bf16 %v416, %v415
        %v460 = vpack.c.bf16 %v418, %v417
        %v461 = vpack.c.bf16 %v420, %v419
        %v462 = vpack.c.bf16 %v422, %v421
        %v463 = vpack.c.bf16 %v424, %v423
        %v464 = vpack.c.bf16 %v426, %v425
        %v465 = vpack.c.bf16 %v428, %v427
        %v466 = vpack.c.bf16 %v430, %v429
        %v467 = vpack.c.bf16 %v432, %v431
        %v468 = vpack.c.bf16 %v434, %v433
        %v469 = vpack.c.bf16 %v436, %v435
        %v470 = vpack.c.bf16 %v438, %v437
        %v471 = vpack.c.bf16 %v440, %v439
        %v472 = vpack.c.bf16 %v442, %v441
        %v473 = vpack.c.bf16 %v444, %v443
        %v474 = vpack.c.bf16 %v446, %v445
        %v475 = vpack.c.bf16 %v448, %v447
        %v476 = vpack.c.bf16 %v450, %v449
        %v477 = vpack.c.bf16 %v452, %v451
        %v478 = vpack.c.bf16 %v454, %v453
        %v479 = vld [vmem:[#allocation2] sm:$0xff]
        %v480 = vld [vmem:[#allocation2 + $0x8] sm:$0xff]
        %v481 = vld [vmem:[#allocation2 + $0x10] sm:$0xff]
        %v482 = vld [vmem:[#allocation2 + $0x18] sm:$0xff]
        %v483 = vld [vmem:[#allocation2 + $0x20] sm:$0xff]
        %v484 = vld [vmem:[#allocation2 + $0x28] sm:$0xff]
        %v485 = vld [vmem:[#allocation2 + $0x30] sm:$0xff]
        %v486 = vld [vmem:[#allocation2 + $0x38] sm:$0xff]
        %v487 = vld [vmem:[#allocation2 + $0x40] sm:$0xff]
        %v488 = vld [vmem:[#allocation2 + $0x48] sm:$0xff]
        %v489 = vld [vmem:[#allocation2 + $0x50] sm:$0xff]
        %v490 = vld [vmem:[#allocation2 + $0x58] sm:$0xff]
        %v491 = vld [vmem:[#allocation2 + $0x60] sm:$0xff]
        %v492 = vld [vmem:[#allocation2 + $0x68] sm:$0xff]
        %v493 = vld [vmem:[#allocation2 + $0x70] sm:$0xff]
        %v494 = vld [vmem:[#allocation2 + $0x78] sm:$0xff]
        %v495 = vld [vmem:[#allocation2 + $0x80] sm:$0xff]
        %v496 = vld [vmem:[#allocation2 + $0x88] sm:$0xff]
        %v497 = vld [vmem:[#allocation2 + $0x90] sm:$0xff]
        %v498 = vld [vmem:[#allocation2 + $0x98] sm:$0xff]
        %v499 = vld [vmem:[#allocation2 + $0xa0] sm:$0xff]
        %v500 = vld [vmem:[#allocation2 + $0xa8] sm:$0xff]
        %v501 = vld [vmem:[#allocation2 + $0xb0] sm:$0xff]
        %v502 = vld [vmem:[#allocation2 + $0xb8] sm:$0xff]
        %v503 = vld [vmem:[#allocation2 + $0xc0] sm:$0xff]
        %v504 = vld [vmem:[#allocation2 + $0xc8] sm:$0xff]
        %v505 = vld [vmem:[#allocation2 + $0xd0] sm:$0xff]
        %v506 = vld [vmem:[#allocation2 + $0xd8] sm:$0xff]
        %v507 = vld [vmem:[#allocation2 + $0xe0] sm:$0xff]
        %v508 = vld [vmem:[#allocation2 + $0xe8] sm:$0xff]
        %v509 = vld [vmem:[#allocation2 + $0xf0] sm:$0xff]
        %v510 = vld [vmem:[#allocation2 + $0xf8] sm:$0xff]
        %511 = vmatprep.subr.bf16.mxu0 0
        %512 = vmatpush1.bf16.msra.mxu0 %v471
        %513 = vmatprep.subr.bf16.mxu0 0
        %514 = vmatpush1.bf16.msra.mxu0 %v472
        %515 = vmatprep.subr.bf16.mxu0 0
        %516 = vmatpush1.bf16.msra.mxu0 %v473
        %517 = vmatprep.subr.bf16.mxu0 0
        %518 = vmatpush1.bf16.msra.mxu0 %v474
        %519 = vmatprep.subr.bf16.mxu0 0
        %520 = vmatpush1.bf16.msra.mxu0 %v475
        %521 = vmatprep.subr.bf16.mxu0 0
        %522 = vmatpush1.bf16.msra.mxu0 %v476
        %523 = vmatprep.subr.bf16.mxu0 0
        %524 = vmatpush1.bf16.msra.mxu0 %v477
        %525 = vmatprep.subr.bf16.mxu0 0
        %526 = vmatpush1.bf16.msra.mxu0 %v478
        %527 = vmatprep.subr.bf16.mxu0 0
        %528 = vmatpush1.bf16.msra.mxu0 0
        %529 = vmatprep.subr.bf16.mxu0 0
        %530 = vmatpush1.bf16.msra.mxu0 0
        %531 = vmatprep.subr.bf16.mxu0 0
        %532 = vmatpush1.bf16.msra.mxu0 0
        %533 = vmatprep.subr.bf16.mxu0 0
        %534 = vmatpush1.bf16.msra.mxu0 0
        %535 = vmatprep.subr.bf16.mxu0 0
        %536 = vmatpush1.bf16.msra.mxu0 0
        %537 = vmatprep.subr.bf16.mxu0 0
        %538 = vmatpush1.bf16.msra.mxu0 0
        %539 = vmatprep.subr.bf16.mxu0 0
        %540 = vmatpush1.bf16.msra.mxu0 0
        %541 = vmatprep.subr.bf16.mxu0 0
        %542 = vmatpush1.bf16.msra.mxu0 0
        %543 = vmatprep.mubr.bf16.mxu0 0
        %544 = vmatmul.mubr.bf16.gmra.mrb[0].mxu0 %v455
        %v545 = vpop.f32.mrb[0].mxu0
        %v546 = vadd.f32 0.0, %v545
        %v547 = vpop.f32.mrb[0].mxu0
        %v548 = vpop.f32.mrb[0].mxu0
        %v549 = vadd.f32 0.0, %v548
        %v550 = vpop.f32.mrb[0].mxu0
        %551 = vmatprep.mubr.bf16.mxu0 0
        %552 = vmatmul.mubr.bf16.gmra.mrb[0].mxu0 %v456
        %v553 = vpop.f32.mrb[0].mxu0
        %v554 = vadd.f32 0.0, %v553
        %v555 = vpop.f32.mrb[0].mxu0
        %v556 = vpop.f32.mrb[0].mxu0
        %v557 = vadd.f32 0.0, %v556
        %v558 = vpop.f32.mrb[0].mxu0
        %559 = vmatprep.mubr.bf16.mxu0 0
        %560 = vmatmul.mubr.bf16.gmra.mrb[0].mxu0 %v457
        %v561 = vpop.f32.mrb[0].mxu0
        %v562 = vadd.f32 0.0, %v561
        %v563 = vpop.f32.mrb[0].mxu0
        %v564 = vpop.f32.mrb[0].mxu0
        %v565 = vadd.f32 0.0, %v564
        %v566 = vpop.f32.mrb[0].mxu0
        %567 = vmatprep.mubr.bf16.mxu0 0
        %568 = vmatmul.mubr.bf16.gmra.mrb[0].mxu0 %v458
        %v569 = vpop.f32.mrb[0].mxu0
        %v570 = vadd.f32 0.0, %v569
        %v571 = vpop.f32.mrb[0].mxu0
        %v572 = vpop.f32.mrb[0].mxu0
        %v573 = vadd.f32 0.0, %v572
        %v574 = vpop.f32.mrb[0].mxu0
        %575 = vmatprep.mubr.bf16.mxu0 0
        %576 = vmatmul.mubr.bf16.gmra.mrb[0].mxu0 %v459
        %v577 = vpop.f32.mrb[0].mxu0
        %v578 = vadd.f32 0.0, %v577
        %v579 = vpop.f32.mrb[0].mxu0
        %v580 = vpop.f32.mrb[0].mxu0
        %v581 = vadd.f32 0.0, %v580
        %v582 = vpop.f32.mrb[0].mxu0
        %583 = vmatprep.mubr.bf16.mxu0 0
        %584 = vmatmul.mubr.bf16.gmra.mrb[0].mxu0 %v460
        %v585 = vpop.f32.mrb[0].mxu0
        %v586 = vadd.f32 0.0, %v585
        %v587 = vpop.f32.mrb[0].mxu0
        %v588 = vpop.f32.mrb[0].mxu0
        %v589 = vadd.f32 0.0, %v588
        %v590 = vpop.f32.mrb[0].mxu0
        %591 = vmatprep.mubr.bf16.mxu0 0
        %592 = vmatmul.mubr.bf16.gmra.mrb[0].mxu0 %v461
        %v593 = vpop.f32.mrb[0].mxu0
        %v594 = vadd.f32 0.0, %v593
        %v595 = vpop.f32.mrb[0].mxu0
        %v596 = vpop.f32.mrb[0].mxu0
        %v597 = vadd.f32 0.0, %v596
        %v598 = vpop.f32.mrb[0].mxu0
        %599 = vmatprep.mubr.bf16.mxu0 0
        %600 = vmatmul.mubr.bf16.gmra.mrb[0].mxu0 %v462
        %v601 = vpop.f32.mrb[0].mxu0
        %v602 = vadd.f32 0.0, %v601
        %v603 = vpop.f32.mrb[0].mxu0
        %v604 = vpop.f32.mrb[0].mxu0
        %v605 = vadd.f32 0.0, %v604
        %v606 = vpop.f32.mrb[0].mxu0
        %607 = vmatprep.mubr.bf16.mxu0 0
        %608 = vmatmul.mubr.bf16.gmra.mrb[0].mxu0 %v463
        %v609 = vpop.f32.mrb[0].mxu0
        %v610 = vadd.f32 0.0, %v609
        %v611 = vpop.f32.mrb[0].mxu0
        %v612 = vpop.f32.mrb[0].mxu0
        %v613 = vadd.f32 0.0, %v612
        %v614 = vpop.f32.mrb[0].mxu0
        %615 = vmatprep.mubr.bf16.mxu0 0
        %616 = vmatmul.mubr.bf16.gmra.mrb[0].mxu0 %v464
        %v617 = vpop.f32.mrb[0].mxu0
        %v618 = vadd.f32 0.0, %v617
        %v619 = vpop.f32.mrb[0].mxu0
        %v620 = vpop.f32.mrb[0].mxu0
        %v621 = vadd.f32 0.0, %v620
        %v622 = vpop.f32.mrb[0].mxu0
        %623 = vmatprep.mubr.bf16.mxu0 0
        %624 = vmatmul.mubr.bf16.gmra.mrb[0].mxu0 %v465
        %v625 = vpop.f32.mrb[0].mxu0
        %v626 = vadd.f32 0.0, %v625
        %v627 = vpop.f32.mrb[0].mxu0
        %v628 = vpop.f32.mrb[0].mxu0
        %v629 = vadd.f32 0.0, %v628
        %v630 = vpop.f32.mrb[0].mxu0
        %631 = vmatprep.mubr.bf16.mxu0 0
        %632 = vmatmul.mubr.bf16.gmra.mrb[0].mxu0 %v466
        %v633 = vpop.f32.mrb[0].mxu0
        %v634 = vadd.f32 0.0, %v633
        %v635 = vpop.f32.mrb[0].mxu0
        %v636 = vpop.f32.mrb[0].mxu0
        %v637 = vadd.f32 0.0, %v636
        %v638 = vpop.f32.mrb[0].mxu0
        %639 = vmatprep.mubr.bf16.mxu0 0
        %640 = vmatmul.mubr.bf16.gmra.mrb[0].mxu0 %v467
        %v641 = vpop.f32.mrb[0].mxu0
        %v642 = vadd.f32 0.0, %v641
        %v643 = vpop.f32.mrb[0].mxu0
        %v644 = vpop.f32.mrb[0].mxu0
        %v645 = vadd.f32 0.0, %v644
        %v646 = vpop.f32.mrb[0].mxu0
        %647 = vmatprep.mubr.bf16.mxu0 0
        %648 = vmatmul.mubr.bf16.gmra.mrb[0].mxu0 %v468
        %v649 = vpop.f32.mrb[0].mxu0
        %v650 = vadd.f32 0.0, %v649
        %v651 = vpop.f32.mrb[0].mxu0
        %v652 = vpop.f32.mrb[0].mxu0
        %v653 = vadd.f32 0.0, %v652
        %v654 = vpop.f32.mrb[0].mxu0
        %655 = vmatprep.mubr.bf16.mxu0 0
        %656 = vmatmul.mubr.bf16.gmra.mrb[0].mxu0 %v469
        %v657 = vpop.f32.mrb[0].mxu0
        %v658 = vadd.f32 0.0, %v657
        %v659 = vpop.f32.mrb[0].mxu0
        %v660 = vpop.f32.mrb[0].mxu0
        %v661 = vadd.f32 0.0, %v660
        %v662 = vpop.f32.mrb[0].mxu0
        %663 = vmatprep.mubr.bf16.mxu0 0
        %664 = vmatmul.mubr.bf16.gmra.mrb[0].mxu0 %v470
        %v665 = vpop.f32.mrb[0].mxu0
        %v666 = vadd.f32 0.0, %v665
        %v667 = vpop.f32.mrb[0].mxu0
        %v668 = vpop.f32.mrb[0].mxu0
        %v669 = vadd.f32 0.0, %v668
        %v670 = vpop.f32.mrb[0].mxu0
        %671 = vdwg.mxu0
        %v672 = vadd.f32 %v479, %v546
        %v673 = vadd.f32 %v480, %v549
        %v674 = vadd.f32 %v481, %v554
        %v675 = vadd.f32 %v482, %v557
        %v676 = vadd.f32 %v483, %v562
        %v677 = vadd.f32 %v484, %v565
        %v678 = vadd.f32 %v485, %v570
        %v679 = vadd.f32 %v486, %v573
        %v680 = vadd.f32 %v487, %v578
        %v681 = vadd.f32 %v488, %v581
        %v682 = vadd.f32 %v489, %v586
        %v683 = vadd.f32 %v490, %v589
        %v684 = vadd.f32 %v491, %v594
        %v685 = vadd.f32 %v492, %v597
        %v686 = vadd.f32 %v493, %v602
        %v687 = vadd.f32 %v494, %v605
        %v688 = vadd.f32 %v495, %v610
        %v689 = vadd.f32 %v496, %v613
        %v690 = vadd.f32 %v497, %v618
        %v691 = vadd.f32 %v498, %v621
        %v692 = vadd.f32 %v499, %v626
        %v693 = vadd.f32 %v500, %v629
        %v694 = vadd.f32 %v501, %v634
        %v695 = vadd.f32 %v502, %v637
        %v696 = vadd.f32 %v503, %v642
        %v697 = vadd.f32 %v504, %v645
        %v698 = vadd.f32 %v505, %v650
        %v699 = vadd.f32 %v506, %v653
        %v700 = vadd.f32 %v507, %v658
        %v701 = vadd.f32 %v508, %v661
        %v702 = vadd.f32 %v509, %v666
        %v703 = vadd.f32 %v510, %v669
        %704 = vst [vmem:[#allocation2] sm:$0xff] %v672
        %705 = vst [vmem:[#allocation2 + $0x8] sm:$0xff] %v673
        %706 = vst [vmem:[#allocation2 + $0x10] sm:$0xff] %v674
        %707 = vst [vmem:[#allocation2 + $0x18] sm:$0xff] %v675
        %708 = vst [vmem:[#allocation2 + $0x20] sm:$0xff] %v676
        %709 = vst [vmem:[#allocation2 + $0x28] sm:$0xff] %v677
        %710 = vst [vmem:[#allocation2 + $0x30] sm:$0xff] %v678
        %711 = vst [vmem:[#allocation2 + $0x38] sm:$0xff] %v679
        %712 = vst [vmem:[#allocation2 + $0x40] sm:$0xff] %v680
        %713 = vst [vmem:[#allocation2 + $0x48] sm:$0xff] %v681
        %714 = vst [vmem:[#allocation2 + $0x50] sm:$0xff] %v682
        %715 = vst [vmem:[#allocation2 + $0x58] sm:$0xff] %v683
        %716 = vst [vmem:[#allocation2 + $0x60] sm:$0xff] %v684
        %717 = vst [vmem:[#allocation2 + $0x68] sm:$0xff] %v685
        %718 = vst [vmem:[#allocation2 + $0x70] sm:$0xff] %v686
        %719 = vst [vmem:[#allocation2 + $0x78] sm:$0xff] %v687
        %720 = vst [vmem:[#allocation2 + $0x80] sm:$0xff] %v688
        %721 = vst [vmem:[#allocation2 + $0x88] sm:$0xff] %v689
        %722 = vst [vmem:[#allocation2 + $0x90] sm:$0xff] %v690
        %723 = vst [vmem:[#allocation2 + $0x98] sm:$0xff] %v691
        %724 = vst [vmem:[#allocation2 + $0xa0] sm:$0xff] %v692
        %725 = vst [vmem:[#allocation2 + $0xa8] sm:$0xff] %v693
        %726 = vst [vmem:[#allocation2 + $0xb0] sm:$0xff] %v694
        %727 = vst [vmem:[#allocation2 + $0xb8] sm:$0xff] %v695
        %728 = vst [vmem:[#allocation2 + $0xc0] sm:$0xff] %v696
        %729 = vst [vmem:[#allocation2 + $0xc8] sm:$0xff] %v697
        %730 = vst [vmem:[#allocation2 + $0xd0] sm:$0xff] %v698
        %731 = vst [vmem:[#allocation2 + $0xd8] sm:$0xff] %v699
        %732 = vst [vmem:[#allocation2 + $0xe0] sm:$0xff] %v700
        %733 = vst [vmem:[#allocation2 + $0xe8] sm:$0xff] %v701
        %734 = vst [vmem:[#allocation2 + $0xf0] sm:$0xff] %v702
        %735 = vst [vmem:[#allocation2 + $0xf8] sm:$0xff] %v703
        %p736 = scmp.eq.s32.totalorder %s19, 2
        // Predicated region
        $region75: #{sgae_forward.13} parent=65 // pred_check
          %p737 = pneg %p736
        $region76: #{sgae_forward.13} parent=65 // pred_check_branch
          %739 = sbr.rel (%p737) target = $region78
        $region77: #{sgae_forward.13} parent=65 // pred_region
          %v740 = vld [vmem:[#allocation2] sm:$0xff]
          %v741 = vld [vmem:[#allocation2 + $0x8] sm:$0xff]
          %v742 = vld [vmem:[#allocation2 + $0x10] sm:$0xff]
          %v743 = vld [vmem:[#allocation2 + $0x18] sm:$0xff]
          %v744 = vld [vmem:[#allocation2 + $0x20] sm:$0xff]
          %v745 = vld [vmem:[#allocation2 + $0x28] sm:$0xff]
          %v746 = vld [vmem:[#allocation2 + $0x30] sm:$0xff]
          %v747 = vld [vmem:[#allocation2 + $0x38] sm:$0xff]
          %v748 = vld [vmem:[#allocation2 + $0x40] sm:$0xff]
          %v749 = vld [vmem:[#allocation2 + $0x48] sm:$0xff]
          %v750 = vld [vmem:[#allocation2 + $0x50] sm:$0xff]
          %v751 = vld [vmem:[#allocation2 + $0x58] sm:$0xff]
          %v752 = vld [vmem:[#allocation2 + $0x60] sm:$0xff]
          %v753 = vld [vmem:[#allocation2 + $0x68] sm:$0xff]
          %v754 = vld [vmem:[#allocation2 + $0x70] sm:$0xff]
          %v755 = vld [vmem:[#allocation2 + $0x78] sm:$0xff]
          %v756 = vld [vmem:[#allocation2 + $0x80] sm:$0xff]
          %v757 = vld [vmem:[#allocation2 + $0x88] sm:$0xff]
          %v758 = vld [vmem:[#allocation2 + $0x90] sm:$0xff]
          %v759 = vld [vmem:[#allocation2 + $0x98] sm:$0xff]
          %v760 = vld [vmem:[#allocation2 + $0xa0] sm:$0xff]
          %v761 = vld [vmem:[#allocation2 + $0xa8] sm:$0xff]
          %v762 = vld [vmem:[#allocation2 + $0xb0] sm:$0xff]
          %v763 = vld [vmem:[#allocation2 + $0xb8] sm:$0xff]
          %v764 = vld [vmem:[#allocation2 + $0xc0] sm:$0xff]
          %v765 = vld [vmem:[#allocation2 + $0xc8] sm:$0xff]
          %v766 = vld [vmem:[#allocation2 + $0xd0] sm:$0xff]
          %v767 = vld [vmem:[#allocation2 + $0xd8] sm:$0xff]
          %v768 = vld [vmem:[#allocation2 + $0xe0] sm:$0xff]
          %v769 = vld [vmem:[#allocation2 + $0xe8] sm:$0xff]
          %v770 = vld [vmem:[#allocation2 + $0xf0] sm:$0xff]
          %v771 = vld [vmem:[#allocation2 + $0xf8] sm:$0xff]
          %v772 = vld [vmem:[%s2] sm:$0x1]
          %v774 = vlaneseq
          %v775 = vshrl.u32 %v774, 7
          %v776 = vsub.s32 0, %v775
          %v777 = vrot.slane %v772, %v776
          %v779 = vadd.f32 %v740, %v777
          %v780 = vadd.f32 %v741, %v777
          %v781 = vadd.f32 %v742, %v777
          %v782 = vadd.f32 %v743, %v777
          %v783 = vadd.f32 %v744, %v777
          %v784 = vadd.f32 %v745, %v777
          %v785 = vadd.f32 %v746, %v777
          %v786 = vadd.f32 %v747, %v777
          %v787 = vadd.f32 %v748, %v777
          %v788 = vadd.f32 %v749, %v777
          %v789 = vadd.f32 %v750, %v777
          %v790 = vadd.f32 %v751, %v777
          %v791 = vadd.f32 %v752, %v777
          %v792 = vadd.f32 %v753, %v777
          %v793 = vadd.f32 %v754, %v777
          %v794 = vadd.f32 %v755, %v777
          %v795 = vadd.f32 %v756, %v777
          %v796 = vadd.f32 %v757, %v777
          %v797 = vadd.f32 %v758, %v777
          %v798 = vadd.f32 %v759, %v777
          %v799 = vadd.f32 %v760, %v777
          %v800 = vadd.f32 %v761, %v777
          %v801 = vadd.f32 %v762, %v777
          %v802 = vadd.f32 %v763, %v777
          %v803 = vadd.f32 %v764, %v777
          %v804 = vadd.f32 %v765, %v777
          %v805 = vadd.f32 %v766, %v777
          %v806 = vadd.f32 %v767, %v777
          %v807 = vadd.f32 %v768, %v777
          %v808 = vadd.f32 %v769, %v777
          %v809 = vadd.f32 %v770, %v777
          %v810 = vadd.f32 %v771, %v777
          %811 = vst [vmem:[%s368] sm:$0xff] %v779
          %812 = vst [vmem:[%s368 + $0x8] sm:$0xff] %v780
          %813 = vst [vmem:[%s368 + $0x10] sm:$0xff] %v781
          %814 = vst [vmem:[%s368 + $0x18] sm:$0xff] %v782
          %815 = vst [vmem:[%s368 + $0x20] sm:$0xff] %v783
          %816 = vst [vmem:[%s368 + $0x28] sm:$0xff] %v784
          %817 = vst [vmem:[%s368 + $0x30] sm:$0xff] %v785
          %818 = vst [vmem:[%s368 + $0x38] sm:$0xff] %v786
          %819 = vst [vmem:[%s368 + $0x40] sm:$0xff] %v787
          %820 = vst [vmem:[%s368 + $0x48] sm:$0xff] %v788
          %821 = vst [vmem:[%s368 + $0x50] sm:$0xff] %v789
          %822 = vst [vmem:[%s368 + $0x58] sm:$0xff] %v790
          %823 = vst [vmem:[%s368 + $0x60] sm:$0xff] %v791
          %824 = vst [vmem:[%s368 + $0x68] sm:$0xff] %v792
          %825 = vst [vmem:[%s368 + $0x70] sm:$0xff] %v793
          %826 = vst [vmem:[%s368 + $0x78] sm:$0xff] %v794
          %827 = vst [vmem:[%s368 + $0x80] sm:$0xff] %v795
          %828 = vst [vmem:[%s368 + $0x88] sm:$0xff] %v796
          %829 = vst [vmem:[%s368 + $0x90] sm:$0xff] %v797
          %830 = vst [vmem:[%s368 + $0x98] sm:$0xff] %v798
          %831 = vst [vmem:[%s368 + $0xa0] sm:$0xff] %v799
          %832 = vst [vmem:[%s368 + $0xa8] sm:$0xff] %v800
          %833 = vst [vmem:[%s368 + $0xb0] sm:$0xff] %v801
          %834 = vst [vmem:[%s368 + $0xb8] sm:$0xff] %v802
          %835 = vst [vmem:[%s368 + $0xc0] sm:$0xff] %v803
          %836 = vst [vmem:[%s368 + $0xc8] sm:$0xff] %v804
          %837 = vst [vmem:[%s368 + $0xd0] sm:$0xff] %v805
          %838 = vst [vmem:[%s368 + $0xd8] sm:$0xff] %v806
          %839 = vst [vmem:[%s368 + $0xe0] sm:$0xff] %v807
          %840 = vst [vmem:[%s368 + $0xe8] sm:$0xff] %v808
          %841 = vst [vmem:[%s368 + $0xf0] sm:$0xff] %v809
          %842 = vst [vmem:[%s368 + $0xf8] sm:$0xff] %v810
        $region78: #{sgae_forward.13} parent=65 // pred_fallthru
          _
        %s843 = smul.u32 32, %s18
        %p844 = scmp.lt.s32.totalorder %s843, 31
        %s845 = scalar_select %p844, %s843, 31
        %s846 = smul.addr %s845, 8
        %s847 = scalar_lea.vmem %s3, %s846
        // Predicated region
        $region79: #{sgae_forward.13} parent=65 // pred_check
          %p848 = pneg %p119
        $region80: #{sgae_forward.13} parent=65 // pred_check_branch
          %850 = sbr.rel (%p848) target = $region82
        $region81: #{sgae_forward.13} parent=65 // pred_region
          %s851 = smul.u32 32, %s18
        $region82: #{sgae_forward.13} parent=65 // pred_fallthru
          _
        // Predicated region
        $region83: #{sgae_forward.13} parent=65 // pred_check
          %p852 = pneg %p119
        $region84: #{sgae_forward.13} parent=65 // pred_check_branch
          %854 = sbr.rel (%p852) target = $region86
        $region85: #{sgae_forward.13} parent=65 // pred_region
          %s855 = smul.u32 32, %s18
          %p856 = scmp.lt.s32.totalorder %s855, 31
          %s857 = scalar_select %p856, %s855, 31
          %s858 = smul.addr %s857, 8
          %s859 = scalar_lea.vmem %s3, %s858
        $region86: #{sgae_forward.13} parent=65 // pred_fallthru
          _
      $region66: #{sgae_forward.13} parent=5 // pred_fallthru
        _
      %p860 = scmp.le.s32.totalorder 2, %s9
      // Predicated region
      $region87: #{sgae_forward.13} parent=5 // pred_check
        %p861 = pneg %p860
      $region88: #{sgae_forward.13} parent=5 // pred_check_branch
        %863 = sbr.rel (%p861) target = $region90
      $region89: #{sgae_forward.13} parent=5 // pred_region
        %s864 = ssub.s32 %s9, 2
      $region90: #{sgae_forward.13} parent=5 // pred_fallthru
        _
    $region6: #{sgae_forward.13} parent=1 // loop_footer
      %s13 = sadd.s32 1, %s9
    $region7: #{sgae_forward.13} parent=1 // loop_footer_branch
      %8 = sbr.rel target = $region3
    $region8: #{sgae_forward.13} parent=1 // loop_exit
      _

// kernel: sgae_forward.15
$region0: #{sgae_forward.15}
  #allocation0 [shape = 'u32[]', space=smem, size = 0x4, offset = 0x4, fixed_abs, tag = 'smem constant byte address 0x4 - core index']
  #allocation1 [shape = 'u32[144,128]{1,0:T(1,128)}', space=vmem, size = 0x12000, scoped, tag = 'internal scratch']
  #allocation2 [shape = 'f32[256,128]{1,0:T(8,128)}', space=vmem, size = 0x20000, scoped, tag = 'scratch operand']
  %s0 = inlined_call_operand.vmem [shape: f32[256,128], index: 0, kind: input, shape index: {}]
  %s1 = inlined_call_operand.vmem [shape: f32[128,128], index: 1, kind: input, shape index: {}]
  %s2 = inlined_call_operand.vmem [shape: f32[1,128], index: 2, kind: input, shape index: {}]
  %s3 = inlined_call_operand.vmem [shape: f32[256,128], index: 3, kind: output, shape index: {}]
  %s4 = sld [smem:[#allocation0]]
  $region30: #{sgae_forward.15} parent=0
    _
  %s6 = ssub.s32 1, %s4
  %s7 = scalar_select 0, %s6, %s4
  // Predicated region
  $region2: #{sgae_forward.15} parent=0 // pred_check
    _
  $region3: #{sgae_forward.15} parent=0 // pred_check_branch
    %9 = sbr.rel (0) target = $region5
  $region4: #{sgae_forward.15} parent=0 // pred_region
    _
  $region5: #{sgae_forward.15} parent=0 // pred_fallthru
    _
  // Predicated region
  $region6: #{sgae_forward.15} parent=0 // pred_check
    _
  $region7: #{sgae_forward.15} parent=0 // pred_check_branch
    %11 = sbr.rel (0) target = $region9
  $region8: #{sgae_forward.15} parent=0 // pred_region
    _
  $region9: #{sgae_forward.15} parent=0 // pred_fallthru
    _
  // Predicated region
  $region10: #{sgae_forward.15} parent=0 // pred_check
    _
  $region11: #{sgae_forward.15} parent=0 // pred_check_branch
    %13 = sbr.rel (0) target = $region13
  $region12: #{sgae_forward.15} parent=0 // pred_region
    _
  $region13: #{sgae_forward.15} parent=0 // pred_fallthru
    _
  %p15 = scmp.eq.s32.totalorder 0, 0
  // Predicated region
  $region14: #{sgae_forward.15} parent=0 // pred_check
    %p16 = pneg %p15
  $region15: #{sgae_forward.15} parent=0 // pred_check_branch
    %18 = sbr.rel (%p16) target = $region17
  $region16: #{sgae_forward.15} parent=0 // pred_region
    %19 = vst [vmem:[#allocation2] sm:$0xff] 0.0
    %20 = vst [vmem:[#allocation2 + $0x8] sm:$0xff] 0.0
    %21 = vst [vmem:[#allocation2 + $0x10] sm:$0xff] 0.0
    %22 = vst [vmem:[#allocation2 + $0x18] sm:$0xff] 0.0
    %23 = vst [vmem:[#allocation2 + $0x20] sm:$0xff] 0.0
    %24 = vst [vmem:[#allocation2 + $0x28] sm:$0xff] 0.0
    %25 = vst [vmem:[#allocation2 + $0x30] sm:$0xff] 0.0
    %26 = vst [vmem:[#allocation2 + $0x38] sm:$0xff] 0.0
    %27 = vst [vmem:[#allocation2 + $0x40] sm:$0xff] 0.0
    %28 = vst [vmem:[#allocation2 + $0x48] sm:$0xff] 0.0
    %29 = vst [vmem:[#allocation2 + $0x50] sm:$0xff] 0.0
    %30 = vst [vmem:[#allocation2 + $0x58] sm:$0xff] 0.0
    %31 = vst [vmem:[#allocation2 + $0x60] sm:$0xff] 0.0
    %32 = vst [vmem:[#allocation2 + $0x68] sm:$0xff] 0.0
    %33 = vst [vmem:[#allocation2 + $0x70] sm:$0xff] 0.0
    %34 = vst [vmem:[#allocation2 + $0x78] sm:$0xff] 0.0
    %35 = vst [vmem:[#allocation2 + $0x80] sm:$0xff] 0.0
    %36 = vst [vmem:[#allocation2 + $0x88] sm:$0xff] 0.0
    %37 = vst [vmem:[#allocation2 + $0x90] sm:$0xff] 0.0
    %38 = vst [vmem:[#allocation2 + $0x98] sm:$0xff] 0.0
    %39 = vst [vmem:[#allocation2 + $0xa0] sm:$0xff] 0.0
    %40 = vst [vmem:[#allocation2 + $0xa8] sm:$0xff] 0.0
    %41 = vst [vmem:[#allocation2 + $0xb0] sm:$0xff] 0.0
    %42 = vst [vmem:[#allocation2 + $0xb8] sm:$0xff] 0.0
    %43 = vst [vmem:[#allocation2 + $0xc0] sm:$0xff] 0.0
    %44 = vst [vmem:[#allocation2 + $0xc8] sm:$0xff] 0.0
    %45 = vst [vmem:[#allocation2 + $0xd0] sm:$0xff] 0.0
    %46 = vst [vmem:[#allocation2 + $0xd8] sm:$0xff] 0.0
    %47 = vst [vmem:[#allocation2 + $0xe0] sm:$0xff] 0.0
    %48 = vst [vmem:[#allocation2 + $0xe8] sm:$0xff] 0.0
    %49 = vst [vmem:[#allocation2 + $0xf0] sm:$0xff] 0.0
    %50 = vst [vmem:[#allocation2 + $0xf8] sm:$0xff] 0.0
  $region17: #{sgae_forward.15} parent=0 // pred_fallthru
    _
  %v51 = vld [vmem:[%s0] sm:$0xff]
  %v52 = vld [vmem:[%s0 + $0x8] sm:$0xff]
  %v53 = vld [vmem:[%s0 + $0x10] sm:$0xff]
  %v54 = vld [vmem:[%s0 + $0x18] sm:$0xff]
  %v55 = vld [vmem:[%s0 + $0x20] sm:$0xff]
  %v56 = vld [vmem:[%s0 + $0x28] sm:$0xff]
  %v57 = vld [vmem:[%s0 + $0x30] sm:$0xff]
  %v58 = vld [vmem:[%s0 + $0x38] sm:$0xff]
  %v59 = vld [vmem:[%s0 + $0x40] sm:$0xff]
  %v60 = vld [vmem:[%s0 + $0x48] sm:$0xff]
  %v61 = vld [vmem:[%s0 + $0x50] sm:$0xff]
  %v62 = vld [vmem:[%s0 + $0x58] sm:$0xff]
  %v63 = vld [vmem:[%s0 + $0x60] sm:$0xff]
  %v64 = vld [vmem:[%s0 + $0x68] sm:$0xff]
  %v65 = vld [vmem:[%s0 + $0x70] sm:$0xff]
  %v66 = vld [vmem:[%s0 + $0x78] sm:$0xff]
  %v67 = vld [vmem:[%s0 + $0x80] sm:$0xff]
  %v68 = vld [vmem:[%s0 + $0x88] sm:$0xff]
  %v69 = vld [vmem:[%s0 + $0x90] sm:$0xff]
  %v70 = vld [vmem:[%s0 + $0x98] sm:$0xff]
  %v71 = vld [vmem:[%s0 + $0xa0] sm:$0xff]
  %v72 = vld [vmem:[%s0 + $0xa8] sm:$0xff]
  %v73 = vld [vmem:[%s0 + $0xb0] sm:$0xff]
  %v74 = vld [vmem:[%s0 + $0xb8] sm:$0xff]
  %v75 = vld [vmem:[%s0 + $0xc0] sm:$0xff]
  %v76 = vld [vmem:[%s0 + $0xc8] sm:$0xff]
  %v77 = vld [vmem:[%s0 + $0xd0] sm:$0xff]
  %v78 = vld [vmem:[%s0 + $0xd8] sm:$0xff]
  %v79 = vld [vmem:[%s0 + $0xe0] sm:$0xff]
  %v80 = vld [vmem:[%s0 + $0xe8] sm:$0xff]
  %v81 = vld [vmem:[%s0 + $0xf0] sm:$0xff]
  %v82 = vld [vmem:[%s0 + $0xf8] sm:$0xff]
  %v83 = vld [vmem:[%s1] sm:$0xff]
  %v84 = vld [vmem:[%s1 + $0x8] sm:$0xff]
  %v85 = vld [vmem:[%s1 + $0x10] sm:$0xff]
  %v86 = vld [vmem:[%s1 + $0x18] sm:$0xff]
  %v87 = vld [vmem:[%s1 + $0x20] sm:$0xff]
  %v88 = vld [vmem:[%s1 + $0x28] sm:$0xff]
  %v89 = vld [vmem:[%s1 + $0x30] sm:$0xff]
  %v90 = vld [vmem:[%s1 + $0x38] sm:$0xff]
  %v91 = vld [vmem:[%s1 + $0x40] sm:$0xff]
  %v92 = vld [vmem:[%s1 + $0x48] sm:$0xff]
  %v93 = vld [vmem:[%s1 + $0x50] sm:$0xff]
  %v94 = vld [vmem:[%s1 + $0x58] sm:$0xff]
  %v95 = vld [vmem:[%s1 + $0x60] sm:$0xff]
  %v96 = vld [vmem:[%s1 + $0x68] sm:$0xff]
  %v97 = vld [vmem:[%s1 + $0x70] sm:$0xff]
  %v98 = vld [vmem:[%s1 + $0x78] sm:$0xff]
  %v99 = vpack.c.bf16 %v52, %v51
  %v100 = vpack.c.bf16 %v54, %v53
  %v101 = vpack.c.bf16 %v56, %v55
  %v102 = vpack.c.bf16 %v58, %v57
  %v103 = vpack.c.bf16 %v60, %v59
  %v104 = vpack.c.bf16 %v62, %v61
  %v105 = vpack.c.bf16 %v64, %v63
  %v106 = vpack.c.bf16 %v66, %v65
  %v107 = vpack.c.bf16 %v68, %v67
  %v108 = vpack.c.bf16 %v70, %v69
  %v109 = vpack.c.bf16 %v72, %v71
  %v110 = vpack.c.bf16 %v74, %v73
  %v111 = vpack.c.bf16 %v76, %v75
  %v112 = vpack.c.bf16 %v78, %v77
  %v113 = vpack.c.bf16 %v80, %v79
  %v114 = vpack.c.bf16 %v82, %v81
  %v115 = vpack.c.bf16 %v84, %v83
  %v116 = vpack.c.bf16 %v86, %v85
  %v117 = vpack.c.bf16 %v88, %v87
  %v118 = vpack.c.bf16 %v90, %v89
  %v119 = vpack.c.bf16 %v92, %v91
  %v120 = vpack.c.bf16 %v94, %v93
  %v121 = vpack.c.bf16 %v96, %v95
  %v122 = vpack.c.bf16 %v98, %v97
  %v123 = vld [vmem:[#allocation2] sm:$0xff]
  %v124 = vld [vmem:[#allocation2 + $0x8] sm:$0xff]
  %v125 = vld [vmem:[#allocation2 + $0x10] sm:$0xff]
  %v126 = vld [vmem:[#allocation2 + $0x18] sm:$0xff]
  %v127 = vld [vmem:[#allocation2 + $0x20] sm:$0xff]
  %v128 = vld [vmem:[#allocation2 + $0x28] sm:$0xff]
  %v129 = vld [vmem:[#allocation2 + $0x30] sm:$0xff]
  %v130 = vld [vmem:[#allocation2 + $0x38] sm:$0xff]
  %v131 = vld [vmem:[#allocation2 + $0x40] sm:$0xff]
  %v132 = vld [vmem:[#allocation2 + $0x48] sm:$0xff]
  %v133 = vld [vmem:[#allocation2 + $0x50] sm:$0xff]
  %v134 = vld [vmem:[#allocation2 + $0x58] sm:$0xff]
  %v135 = vld [vmem:[#allocation2 + $0x60] sm:$0xff]
  %v136 = vld [vmem:[#allocation2 + $0x68] sm:$0xff]
  %v137 = vld [vmem:[#allocation2 + $0x70] sm:$0xff]
  %v138 = vld [vmem:[#allocation2 + $0x78] sm:$0xff]
  %v139 = vld [vmem:[#allocation2 + $0x80] sm:$0xff]
  %v140 = vld [vmem:[#allocation2 + $0x88] sm:$0xff]
  %v141 = vld [vmem:[#allocation2 + $0x90] sm:$0xff]
  %v142 = vld [vmem:[#allocation2 + $0x98] sm:$0xff]
  %v143 = vld [vmem:[#allocation2 + $0xa0] sm:$0xff]
  %v144 = vld [vmem:[#allocation2 + $0xa8] sm:$0xff]
  %v145 = vld [vmem:[#allocation2 + $0xb0] sm:$0xff]
  %v146 = vld [vmem:[#allocation2 + $0xb8] sm:$0xff]
  %v147 = vld [vmem:[#allocation2 + $0xc0] sm:$0xff]
  %v148 = vld [vmem:[#allocation2 + $0xc8] sm:$0xff]
  %v149 = vld [vmem:[#allocation2 + $0xd0] sm:$0xff]
  %v150 = vld [vmem:[#allocation2 + $0xd8] sm:$0xff]
  %v151 = vld [vmem:[#allocation2 + $0xe0] sm:$0xff]
  %v152 = vld [vmem:[#allocation2 + $0xe8] sm:$0xff]
  %v153 = vld [vmem:[#allocation2 + $0xf0] sm:$0xff]
  %v154 = vld [vmem:[#allocation2 + $0xf8] sm:$0xff]
  %155 = vmatprep.subr.bf16.mxu0 0
  %156 = vmatpush1.bf16.msra.mxu0 %v115
  %157 = vmatprep.subr.bf16.mxu0 0
  %158 = vmatpush1.bf16.msra.mxu0 %v116
  %159 = vmatprep.subr.bf16.mxu0 0
  %160 = vmatpush1.bf16.msra.mxu0 %v117
  %161 = vmatprep.subr.bf16.mxu0 0
  %162 = vmatpush1.bf16.msra.mxu0 %v118
  %163 = vmatprep.subr.bf16.mxu0 0
  %164 = vmatpush1.bf16.msra.mxu0 %v119
  %165 = vmatprep.subr.bf16.mxu0 0
  %166 = vmatpush1.bf16.msra.mxu0 %v120
  %167 = vmatprep.subr.bf16.mxu0 0
  %168 = vmatpush1.bf16.msra.mxu0 %v121
  %169 = vmatprep.subr.bf16.mxu0 0
  %170 = vmatpush1.bf16.msra.mxu0 %v122
  %171 = vmatprep.subr.bf16.mxu0 0
  %172 = vmatpush1.bf16.msra.mxu0 0
  %173 = vmatprep.subr.bf16.mxu0 0
  %174 = vmatpush1.bf16.msra.mxu0 0
  %175 = vmatprep.subr.bf16.mxu0 0
  %176 = vmatpush1.bf16.msra.mxu0 0
  %177 = vmatprep.subr.bf16.mxu0 0
  %178 = vmatpush1.bf16.msra.mxu0 0
  %179 = vmatprep.subr.bf16.mxu0 0
  %180 = vmatpush1.bf16.msra.mxu0 0
  %181 = vmatprep.subr.bf16.mxu0 0
  %182 = vmatpush1.bf16.msra.mxu0 0
  %183 = vmatprep.subr.bf16.mxu0 0
  %184 = vmatpush1.bf16.msra.mxu0 0
  %185 = vmatprep.subr.bf16.mxu0 0
  %186 = vmatpush1.bf16.msra.mxu0 0
  %187 = vmatprep.mubr.bf16.mxu0 0
  %188 = vmatmul.mubr.bf16.gmra.mrb[0].mxu0 %v99
  %v189 = vpop.f32.mrb[0].mxu0
  %v190 = vadd.f32 0.0, %v189
  %v191 = vpop.f32.mrb[0].mxu0
  %v192 = vpop.f32.mrb[0].mxu0
  %v193 = vadd.f32 0.0, %v192
  %v194 = vpop.f32.mrb[0].mxu0
  %195 = vmatprep.mubr.bf16.mxu0 0
  %196 = vmatmul.mubr.bf16.gmra.mrb[0].mxu0 %v100
  %v197 = vpop.f32.mrb[0].mxu0
  %v198 = vadd.f32 0.0, %v197
  %v199 = vpop.f32.mrb[0].mxu0
  %v200 = vpop.f32.mrb[0].mxu0
  %v201 = vadd.f32 0.0, %v200
  %v202 = vpop.f32.mrb[0].mxu0
  %203 = vmatprep.mubr.bf16.mxu0 0
  %204 = vmatmul.mubr.bf16.gmra.mrb[0].mxu0 %v101
  %v205 = vpop.f32.mrb[0].mxu0
  %v206 = vadd.f32 0.0, %v205
  %v207 = vpop.f32.mrb[0].mxu0
  %v208 = vpop.f32.mrb[0].mxu0
  %v209 = vadd.f32 0.0, %v208
  %v210 = vpop.f32.mrb[0].mxu0
  %211 = vmatprep.mubr.bf16.mxu0 0
  %212 = vmatmul.mubr.bf16.gmra.mrb[0].mxu0 %v102
  %v213 = vpop.f32.mrb[0].mxu0
  %v214 = vadd.f32 0.0, %v213
  %v215 = vpop.f32.mrb[0].mxu0
  %v216 = vpop.f32.mrb[0].mxu0
  %v217 = vadd.f32 0.0, %v216
  %v218 = vpop.f32.mrb[0].mxu0
  %219 = vmatprep.mubr.bf16.mxu0 0
  %220 = vmatmul.mubr.bf16.gmra.mrb[0].mxu0 %v103
  %v221 = vpop.f32.mrb[0].mxu0
  %v222 = vadd.f32 0.0, %v221
  %v223 = vpop.f32.mrb[0].mxu0
  %v224 = vpop.f32.mrb[0].mxu0
  %v225 = vadd.f32 0.0, %v224
  %v226 = vpop.f32.mrb[0].mxu0
  %227 = vmatprep.mubr.bf16.mxu0 0
  %228 = vmatmul.mubr.bf16.gmra.mrb[0].mxu0 %v104
  %v229 = vpop.f32.mrb[0].mxu0
  %v230 = vadd.f32 0.0, %v229
  %v231 = vpop.f32.mrb[0].mxu0
  %v232 = vpop.f32.mrb[0].mxu0
  %v233 = vadd.f32 0.0, %v232
  %v234 = vpop.f32.mrb[0].mxu0
  %235 = vmatprep.mubr.bf16.mxu0 0
  %236 = vmatmul.mubr.bf16.gmra.mrb[0].mxu0 %v105
  %v237 = vpop.f32.mrb[0].mxu0
  %v238 = vadd.f32 0.0, %v237
  %v239 = vpop.f32.mrb[0].mxu0
  %v240 = vpop.f32.mrb[0].mxu0
  %v241 = vadd.f32 0.0, %v240
  %v242 = vpop.f32.mrb[0].mxu0
  %243 = vmatprep.mubr.bf16.mxu0 0
  %244 = vmatmul.mubr.bf16.gmra.mrb[0].mxu0 %v106
  %v245 = vpop.f32.mrb[0].mxu0
  %v246 = vadd.f32 0.0, %v245
  %v247 = vpop.f32.mrb[0].mxu0
  %v248 = vpop.f32.mrb[0].mxu0
  %v249 = vadd.f32 0.0, %v248
  %v250 = vpop.f32.mrb[0].mxu0
  %251 = vmatprep.mubr.bf16.mxu0 0
  %252 = vmatmul.mubr.bf16.gmra.mrb[0].mxu0 %v107
  %v253 = vpop.f32.mrb[0].mxu0
  %v254 = vadd.f32 0.0, %v253
  %v255 = vpop.f32.mrb[0].mxu0
  %v256 = vpop.f32.mrb[0].mxu0
  %v257 = vadd.f32 0.0, %v256
  %v258 = vpop.f32.mrb[0].mxu0
  %259 = vmatprep.mubr.bf16.mxu0 0
  %260 = vmatmul.mubr.bf16.gmra.mrb[0].mxu0 %v108
  %v261 = vpop.f32.mrb[0].mxu0
  %v262 = vadd.f32 0.0, %v261
  %v263 = vpop.f32.mrb[0].mxu0
  %v264 = vpop.f32.mrb[0].mxu0
  %v265 = vadd.f32 0.0, %v264
  %v266 = vpop.f32.mrb[0].mxu0
  %267 = vmatprep.mubr.bf16.mxu0 0
  %268 = vmatmul.mubr.bf16.gmra.mrb[0].mxu0 %v109
  %v269 = vpop.f32.mrb[0].mxu0
  %v270 = vadd.f32 0.0, %v269
  %v271 = vpop.f32.mrb[0].mxu0
  %v272 = vpop.f32.mrb[0].mxu0
  %v273 = vadd.f32 0.0, %v272
  %v274 = vpop.f32.mrb[0].mxu0
  %275 = vmatprep.mubr.bf16.mxu0 0
  %276 = vmatmul.mubr.bf16.gmra.mrb[0].mxu0 %v110
  %v277 = vpop.f32.mrb[0].mxu0
  %v278 = vadd.f32 0.0, %v277
  %v279 = vpop.f32.mrb[0].mxu0
  %v280 = vpop.f32.mrb[0].mxu0
  %v281 = vadd.f32 0.0, %v280
  %v282 = vpop.f32.mrb[0].mxu0
  %283 = vmatprep.mubr.bf16.mxu0 0
  %284 = vmatmul.mubr.bf16.gmra.mrb[0].mxu0 %v111
  %v285 = vpop.f32.mrb[0].mxu0
  %v286 = vadd.f32 0.0, %v285
  %v287 = vpop.f32.mrb[0].mxu0
  %v288 = vpop.f32.mrb[0].mxu0
  %v289 = vadd.f32 0.0, %v288
  %v290 = vpop.f32.mrb[0].mxu0
  %291 = vmatprep.mubr.bf16.mxu0 0
  %292 = vmatmul.mubr.bf16.gmra.mrb[0].mxu0 %v112
  %v293 = vpop.f32.mrb[0].mxu0
  %v294 = vadd.f32 0.0, %v293
  %v295 = vpop.f32.mrb[0].mxu0
  %v296 = vpop.f32.mrb[0].mxu0
  %v297 = vadd.f32 0.0, %v296
  %v298 = vpop.f32.mrb[0].mxu0
  %299 = vmatprep.mubr.bf16.mxu0 0
  %300 = vmatmul.mubr.bf16.gmra.mrb[0].mxu0 %v113
  %v301 = vpop.f32.mrb[0].mxu0
  %v302 = vadd.f32 0.0, %v301
  %v303 = vpop.f32.mrb[0].mxu0
  %v304 = vpop.f32.mrb[0].mxu0
  %v305 = vadd.f32 0.0, %v304
  %v306 = vpop.f32.mrb[0].mxu0
  %307 = vmatprep.mubr.bf16.mxu0 0
  %308 = vmatmul.mubr.bf16.gmra.mrb[0].mxu0 %v114
  %v309 = vpop.f32.mrb[0].mxu0
  %v310 = vadd.f32 0.0, %v309
  %v311 = vpop.f32.mrb[0].mxu0
  %v312 = vpop.f32.mrb[0].mxu0
  %v313 = vadd.f32 0.0, %v312
  %v314 = vpop.f32.mrb[0].mxu0
  %315 = vdwg.mxu0
  %v316 = vadd.f32 %v123, %v190
  %v317 = vadd.f32 %v124, %v193
  %v318 = vadd.f32 %v125, %v198
  %v319 = vadd.f32 %v126, %v201
  %v320 = vadd.f32 %v127, %v206
  %v321 = vadd.f32 %v128, %v209
  %v322 = vadd.f32 %v129, %v214
  %v323 = vadd.f32 %v130, %v217
  %v324 = vadd.f32 %v131, %v222
  %v325 = vadd.f32 %v132, %v225
  %v326 = vadd.f32 %v133, %v230
  %v327 = vadd.f32 %v134, %v233
  %v328 = vadd.f32 %v135, %v238
  %v329 = vadd.f32 %v136, %v241
  %v330 = vadd.f32 %v137, %v246
  %v331 = vadd.f32 %v138, %v249
  %v332 = vadd.f32 %v139, %v254
  %v333 = vadd.f32 %v140, %v257
  %v334 = vadd.f32 %v141, %v262
  %v335 = vadd.f32 %v142, %v265
  %v336 = vadd.f32 %v143, %v270
  %v337 = vadd.f32 %v144, %v273
  %v338 = vadd.f32 %v145, %v278
  %v339 = vadd.f32 %v146, %v281
  %v340 = vadd.f32 %v147, %v286
  %v341 = vadd.f32 %v148, %v289
  %v342 = vadd.f32 %v149, %v294
  %v343 = vadd.f32 %v150, %v297
  %v344 = vadd.f32 %v151, %v302
  %v345 = vadd.f32 %v152, %v305
  %v346 = vadd.f32 %v153, %v310
  %v347 = vadd.f32 %v154, %v313
  %348 = vst [vmem:[#allocation2] sm:$0xff] %v316
  %349 = vst [vmem:[#allocation2 + $0x8] sm:$0xff] %v317
  %350 = vst [vmem:[#allocation2 + $0x10] sm:$0xff] %v318
  %351 = vst [vmem:[#allocation2 + $0x18] sm:$0xff] %v319
  %352 = vst [vmem:[#allocation2 + $0x20] sm:$0xff] %v320
  %353 = vst [vmem:[#allocation2 + $0x28] sm:$0xff] %v321
  %354 = vst [vmem:[#allocation2 + $0x30] sm:$0xff] %v322
  %355 = vst [vmem:[#allocation2 + $0x38] sm:$0xff] %v323
  %356 = vst [vmem:[#allocation2 + $0x40] sm:$0xff] %v324
  %357 = vst [vmem:[#allocation2 + $0x48] sm:$0xff] %v325
  %358 = vst [vmem:[#allocation2 + $0x50] sm:$0xff] %v326
  %359 = vst [vmem:[#allocation2 + $0x58] sm:$0xff] %v327
  %360 = vst [vmem:[#allocation2 + $0x60] sm:$0xff] %v328
  %361 = vst [vmem:[#allocation2 + $0x68] sm:$0xff] %v329
  %362 = vst [vmem:[#allocation2 + $0x70] sm:$0xff] %v330
  %363 = vst [vmem:[#allocation2 + $0x78] sm:$0xff] %v331
  %364 = vst [vmem:[#allocation2 + $0x80] sm:$0xff] %v332
  %365 = vst [vmem:[#allocation2 + $0x88] sm:$0xff] %v333
  %366 = vst [vmem:[#allocation2 + $0x90] sm:$0xff] %v334
  %367 = vst [vmem:[#allocation2 + $0x98] sm:$0xff] %v335
  %368 = vst [vmem:[#allocation2 + $0xa0] sm:$0xff] %v336
  %369 = vst [vmem:[#allocation2 + $0xa8] sm:$0xff] %v337
  %370 = vst [vmem:[#allocation2 + $0xb0] sm:$0xff] %v338
  %371 = vst [vmem:[#allocation2 + $0xb8] sm:$0xff] %v339
  %372 = vst [vmem:[#allocation2 + $0xc0] sm:$0xff] %v340
  %373 = vst [vmem:[#allocation2 + $0xc8] sm:$0xff] %v341
  %374 = vst [vmem:[#allocation2 + $0xd0] sm:$0xff] %v342
  %375 = vst [vmem:[#allocation2 + $0xd8] sm:$0xff] %v343
  %376 = vst [vmem:[#allocation2 + $0xe0] sm:$0xff] %v344
  %377 = vst [vmem:[#allocation2 + $0xe8] sm:$0xff] %v345
  %378 = vst [vmem:[#allocation2 + $0xf0] sm:$0xff] %v346
  %379 = vst [vmem:[#allocation2 + $0xf8] sm:$0xff] %v347
  // Predicated region
  $region18: #{sgae_forward.15} parent=0 // pred_check
    %p380 = pneg %p15
  $region19: #{sgae_forward.15} parent=0 // pred_check_branch
    %382 = sbr.rel (%p380) target = $region21
  $region20: #{sgae_forward.15} parent=0 // pred_region
    %v383 = vld [vmem:[#allocation2] sm:$0xff]
    %v384 = vld [vmem:[#allocation2 + $0x8] sm:$0xff]
    %v385 = vld [vmem:[#allocation2 + $0x10] sm:$0xff]
    %v386 = vld [vmem:[#allocation2 + $0x18] sm:$0xff]
    %v387 = vld [vmem:[#allocation2 + $0x20] sm:$0xff]
    %v388 = vld [vmem:[#allocation2 + $0x28] sm:$0xff]
    %v389 = vld [vmem:[#allocation2 + $0x30] sm:$0xff]
    %v390 = vld [vmem:[#allocation2 + $0x38] sm:$0xff]
    %v391 = vld [vmem:[#allocation2 + $0x40] sm:$0xff]
    %v392 = vld [vmem:[#allocation2 + $0x48] sm:$0xff]
    %v393 = vld [vmem:[#allocation2 + $0x50] sm:$0xff]
    %v394 = vld [vmem:[#allocation2 + $0x58] sm:$0xff]
    %v395 = vld [vmem:[#allocation2 + $0x60] sm:$0xff]
    %v396 = vld [vmem:[#allocation2 + $0x68] sm:$0xff]
    %v397 = vld [vmem:[#allocation2 + $0x70] sm:$0xff]
    %v398 = vld [vmem:[#allocation2 + $0x78] sm:$0xff]
    %v399 = vld [vmem:[#allocation2 + $0x80] sm:$0xff]
    %v400 = vld [vmem:[#allocation2 + $0x88] sm:$0xff]
    %v401 = vld [vmem:[#allocation2 + $0x90] sm:$0xff]
    %v402 = vld [vmem:[#allocation2 + $0x98] sm:$0xff]
    %v403 = vld [vmem:[#allocation2 + $0xa0] sm:$0xff]
    %v404 = vld [vmem:[#allocation2 + $0xa8] sm:$0xff]
    %v405 = vld [vmem:[#allocation2 + $0xb0] sm:$0xff]
    %v406 = vld [vmem:[#allocation2 + $0xb8] sm:$0xff]
    %v407 = vld [vmem:[#allocation2 + $0xc0] sm:$0xff]
    %v408 = vld [vmem:[#allocation2 + $0xc8] sm:$0xff]
    %v409 = vld [vmem:[#allocation2 + $0xd0] sm:$0xff]
    %v410 = vld [vmem:[#allocation2 + $0xd8] sm:$0xff]
    %v411 = vld [vmem:[#allocation2 + $0xe0] sm:$0xff]
    %v412 = vld [vmem:[#allocation2 + $0xe8] sm:$0xff]
    %v413 = vld [vmem:[#allocation2 + $0xf0] sm:$0xff]
    %v414 = vld [vmem:[#allocation2 + $0xf8] sm:$0xff]
    %v415 = vld [vmem:[%s2] sm:$0x1]
    %v417 = vlaneseq
    %v418 = vshrl.u32 %v417, 7
    %v419 = vsub.s32 0, %v418
    %v420 = vrot.slane %v415, %v419
    %v422 = vadd.f32 %v383, %v420
    %v423 = vadd.f32 %v384, %v420
    %v424 = vadd.f32 %v385, %v420
    %v425 = vadd.f32 %v386, %v420
    %v426 = vadd.f32 %v387, %v420
    %v427 = vadd.f32 %v388, %v420
    %v428 = vadd.f32 %v389, %v420
    %v429 = vadd.f32 %v390, %v420
    %v430 = vadd.f32 %v391, %v420
    %v431 = vadd.f32 %v392, %v420
    %v432 = vadd.f32 %v393, %v420
    %v433 = vadd.f32 %v394, %v420
    %v434 = vadd.f32 %v395, %v420
    %v435 = vadd.f32 %v396, %v420
    %v436 = vadd.f32 %v397, %v420
    %v437 = vadd.f32 %v398, %v420
    %v438 = vadd.f32 %v399, %v420
    %v439 = vadd.f32 %v400, %v420
    %v440 = vadd.f32 %v401, %v420
    %v441 = vadd.f32 %v402, %v420
    %v442 = vadd.f32 %v403, %v420
    %v443 = vadd.f32 %v404, %v420
    %v444 = vadd.f32 %v405, %v420
    %v445 = vadd.f32 %v406, %v420
    %v446 = vadd.f32 %v407, %v420
    %v447 = vadd.f32 %v408, %v420
    %v448 = vadd.f32 %v409, %v420
    %v449 = vadd.f32 %v410, %v420
    %v450 = vadd.f32 %v411, %v420
    %v451 = vadd.f32 %v412, %v420
    %v452 = vadd.f32 %v413, %v420
    %v453 = vadd.f32 %v414, %v420
    %454 = vst [vmem:[%s3] sm:$0xff] %v422
    %455 = vst [vmem:[%s3 + $0x8] sm:$0xff] %v423
    %456 = vst [vmem:[%s3 + $0x10] sm:$0xff] %v424
    %457 = vst [vmem:[%s3 + $0x18] sm:$0xff] %v425
    %458 = vst [vmem:[%s3 + $0x20] sm:$0xff] %v426
    %459 = vst [vmem:[%s3 + $0x28] sm:$0xff] %v427
    %460 = vst [vmem:[%s3 + $0x30] sm:$0xff] %v428
    %461 = vst [vmem:[%s3 + $0x38] sm:$0xff] %v429
    %462 = vst [vmem:[%s3 + $0x40] sm:$0xff] %v430
    %463 = vst [vmem:[%s3 + $0x48] sm:$0xff] %v431
    %464 = vst [vmem:[%s3 + $0x50] sm:$0xff] %v432
    %465 = vst [vmem:[%s3 + $0x58] sm:$0xff] %v433
    %466 = vst [vmem:[%s3 + $0x60] sm:$0xff] %v434
    %467 = vst [vmem:[%s3 + $0x68] sm:$0xff] %v435
    %468 = vst [vmem:[%s3 + $0x70] sm:$0xff] %v436
    %469 = vst [vmem:[%s3 + $0x78] sm:$0xff] %v437
    %470 = vst [vmem:[%s3 + $0x80] sm:$0xff] %v438
    %471 = vst [vmem:[%s3 + $0x88] sm:$0xff] %v439
    %472 = vst [vmem:[%s3 + $0x90] sm:$0xff] %v440
    %473 = vst [vmem:[%s3 + $0x98] sm:$0xff] %v441
    %474 = vst [vmem:[%s3 + $0xa0] sm:$0xff] %v442
    %475 = vst [vmem:[%s3 + $0xa8] sm:$0xff] %v443
    %476 = vst [vmem:[%s3 + $0xb0] sm:$0xff] %v444
    %477 = vst [vmem:[%s3 + $0xb8] sm:$0xff] %v445
    %478 = vst [vmem:[%s3 + $0xc0] sm:$0xff] %v446
    %479 = vst [vmem:[%s3 + $0xc8] sm:$0xff] %v447
    %480 = vst [vmem:[%s3 + $0xd0] sm:$0xff] %v448
    %481 = vst [vmem:[%s3 + $0xd8] sm:$0xff] %v449
    %482 = vst [vmem:[%s3 + $0xe0] sm:$0xff] %v450
    %483 = vst [vmem:[%s3 + $0xe8] sm:$0xff] %v451
    %484 = vst [vmem:[%s3 + $0xf0] sm:$0xff] %v452
    %485 = vst [vmem:[%s3 + $0xf8] sm:$0xff] %v453
  $region21: #{sgae_forward.15} parent=0 // pred_fallthru
    _
  // Predicated region
  $region22: #{sgae_forward.15} parent=0 // pred_check
    _
  $region23: #{sgae_forward.15} parent=0 // pred_check_branch
    %487 = sbr.rel (0) target = $region25
  $region24: #{sgae_forward.15} parent=0 // pred_region
    _
  $region25: #{sgae_forward.15} parent=0 // pred_fallthru
    _
  // Predicated region
  $region26: #{sgae_forward.15} parent=0 // pred_check
    _
  $region27: #{sgae_forward.15} parent=0 // pred_check_branch
    %489 = sbr.rel (0) target = $region29
  $region28: #{sgae_forward.15} parent=0 // pred_region
    _
  $region29: #{sgae_forward.15} parent=0 // pred_fallthru
    _

// kernel: sgae_forward.10
$region0: #{sgae_forward.10}
  #allocation0 [shape = 'u32[]', space=smem, size = 0x4, offset = 0x4, fixed_abs, tag = 'smem constant byte address 0x4 - core index']
  #allocation1 [shape = 'u32[144,128]{1,0:T(1,128)}', space=vmem, size = 0x12000, scoped, tag = 'internal scratch']
  #allocation2 [shape = 'f32[128,128]{1,0:T(8,128)}', space=vmem, size = 0x10000, scoped, tag = 'scratch operand']
  %s0 = inlined_call_operand.vmem [shape: bf16[384,384], index: 0, kind: input, shape index: {}]
  %s1 = inlined_call_operand.vmem [shape: f32[384,128], index: 1, kind: input, shape index: {}]
  %s2 = inlined_call_operand.vmem [shape: f32[1,128], index: 2, kind: input, shape index: {}]
  %s3 = inlined_call_operand.vmem [shape: f32[384,128], index: 3, kind: output, shape index: {}]
  %s4 = sld [smem:[#allocation0]]
  $region94: #{sgae_forward.10} parent=0
    _
  %s6 = ssub.s32 1, %s4
  %s7 = scalar_select 0, %s6, %s4
  $region1: #{sgae_forward.10} parent=0
    #allocation3 [shape = 'u8[65536]{0}', space=vmem, size = 0x10000, scoped, tag = 'input window, operand 0']
    loop: start=0, step=1, limit=11
    $region2: #{sgae_forward.10} parent=1 // loop_pre_header
      _
    $region3: #{sgae_forward.10} parent=1 // loop_header
      %s9 = sphi 0, %s13
      %p10 = scmp.ge.s32.totalorder %s9, 11
      %s16 = sphi 0, %s28
      %s17 = sphi 0, %s24
      %s18 = sphi 0, %s16
      %s19 = sphi 0, %s17
      %s20 = sphi 0, %s18
      %s21 = sphi 0, %s19
      %s33 = sphi 0, %s35
      %s36 = sphi 0, %s33
      %s37 = sphi 0, %s36
      %s53 = sphi 0, %s37
      %s59 = sphi 0, %s61
      %s62 = sphi 0, %s59
      %s63 = sphi 0, %s62
      %s79 = sphi 0, %s63
      %s83 = sphi 0, %s83
      %s85 = sphi 0, %s83
      %s86 = sphi 0, %s85
      %s100 = sphi 0, %s86
      %s106 = sphi 0, %s108
      %s109 = sphi 0, %s106
      %s110 = sphi 0, %s109
      %s126 = sphi 0, %s110
    $region4: #{sgae_forward.10} parent=1 // loop_header_branch
      %12 = sbr.rel (%p10) target = $region8
    $region5: #{sgae_forward.10} parent=1 // loop_body
      %s14 = ssub.s32 %s9, 1
      %s15 = ssub.s32 %s9, 2
      %s22 = sadd.s32 1, %s17
      %p23 = scmp.ge.s32.totalorder %s22, 3
      %s24 = scalar_select %p23, 0, %s22
      %s25 = sadd.s32 1, %s16
      %s26 = scalar_select %p23, %s25, %s16
      %p27 = scmp.ge.s32.totalorder %s26, 3
      %s28 = scalar_select %p27, 0, %s26
      %s29 = ssub.s32 %s16, %s28
      %s30 = ssub.s32 %s17, %s24
      %s31 = sor.u32 %s29, %s30
      %p32 = scmp.eq.s32.totalorder %s31, 0
      %s34 = sadd.s32 %s33, 1
      %s35 = scalar_select %p32, %s33, %s34
      %p38 = pneg %p32
      %p39 = scmp.eq.s32.totalorder %s9, 8
      %p40 = por %p38, %p39
      %p41 = scmp.ne.s32.totalorder %s33, %s36
      %p42 = scmp.eq.s32.totalorder %s9, 0
      %p43 = por %p41, %p42
      %p44 = scmp.ne.s32.totalorder %s33, %s36
      %p45 = scmp.eq.s32.totalorder %s14, 8
      %p46 = por %p44, %p45
      %p47 = scmp.ne.s32.totalorder %s36, %s37
      %p48 = scmp.eq.s32.totalorder %s14, 0
      %p49 = por %p47, %p48
      %p50 = scmp.ne.s32.totalorder %s36, %s37
      %p51 = scmp.eq.s32.totalorder %s15, 8
      %p52 = por %p50, %p51
      %p54 = scmp.ne.s32.totalorder %s37, %s53
      %p55 = scmp.eq.s32.totalorder %s15, 0
      %p56 = por %p54, %p55
      %s57 = ssub.s32 %s17, %s24
      %p58 = scmp.eq.s32.totalorder %s57, 0
      %s60 = sadd.s32 %s59, 1
      %s61 = scalar_select %p58, %s59, %s60
      %p64 = pneg %p58
      %p65 = scmp.eq.s32.totalorder %s9, 8
      %p66 = por %p64, %p65
      %p67 = scmp.ne.s32.totalorder %s59, %s62
      %p68 = scmp.eq.s32.totalorder %s9, 0
      %p69 = por %p67, %p68
      %p70 = scmp.ne.s32.totalorder %s59, %s62
      %p71 = scmp.eq.s32.totalorder %s14, 8
      %p72 = por %p70, %p71
      %p73 = scmp.ne.s32.totalorder %s62, %s63
      %p74 = scmp.eq.s32.totalorder %s14, 0
      %p75 = por %p73, %p74
      %p76 = scmp.ne.s32.totalorder %s62, %s63
      %p77 = scmp.eq.s32.totalorder %s15, 8
      %p78 = por %p76, %p77
      %p80 = scmp.ne.s32.totalorder %s63, %s79
      %p81 = scmp.eq.s32.totalorder %s15, 0
      %p82 = por %p80, %p81
      %s84 = sadd.s32 %s83, 1
      %p87 = scmp.eq.s32.totalorder %s9, 8
      %p88 = scmp.ne.s32.totalorder %s83, %s85
      %p89 = scmp.eq.s32.totalorder %s9, 0
      %p90 = por %p88, %p89
      %p91 = scmp.ne.s32.totalorder %s83, %s85
      %p92 = scmp.eq.s32.totalorder %s14, 8
      %p93 = por %p91, %p92
      %p94 = scmp.ne.s32.totalorder %s85, %s86
      %p95 = scmp.eq.s32.totalorder %s14, 0
      %p96 = por %p94, %p95
      %p97 = scmp.ne.s32.totalorder %s85, %s86
      %p98 = scmp.eq.s32.totalorder %s15, 8
      %p99 = por %p97, %p98
      %p101 = scmp.ne.s32.totalorder %s86, %s100
      %p102 = scmp.eq.s32.totalorder %s15, 0
      %p103 = por %p101, %p102
      %s104 = ssub.s32 %s16, %s28
      %p105 = scmp.eq.s32.totalorder %s104, 0
      %s107 = sadd.s32 %s106, 1
      %s108 = scalar_select %p105, %s106, %s107
      %p111 = pneg %p105
      %p112 = scmp.eq.s32.totalorder %s9, 8
      %p113 = por %p111, %p112
      %p114 = scmp.ne.s32.totalorder %s106, %s109
      %p115 = scmp.eq.s32.totalorder %s9, 0
      %p116 = por %p114, %p115
      %p117 = scmp.ne.s32.totalorder %s106, %s109
      %p118 = scmp.eq.s32.totalorder %s14, 8
      %p119 = por %p117, %p118
      %p120 = scmp.ne.s32.totalorder %s109, %s110
      %p121 = scmp.eq.s32.totalorder %s14, 0
      %p122 = por %p120, %p121
      %p123 = scmp.ne.s32.totalorder %s109, %s110
      %p124 = scmp.eq.s32.totalorder %s15, 8
      %p125 = por %p123, %p124
      %p127 = scmp.ne.s32.totalorder %s110, %s126
      %p128 = scmp.eq.s32.totalorder %s15, 0
      %p129 = por %p127, %p128
      %p130 = scmp.le.s32.totalorder 1, %s9
      %p131 = scmp.lt.s32.totalorder %s9, 10
      %p132 = pnand %p130, %p131
      %p133 = pneg %p132
      // Predicated region
      $region9: #{sgae_forward.10} parent=5 // pred_check
        _
      $region10: #{sgae_forward.10} parent=5 // pred_check_branch
        %135 = sbr.rel (%p132) target = $region12
      $region11: #{sgae_forward.10} parent=5 // pred_region
        %s136 = ssub.s32 %s9, 1
        // Predicated region
        $region13: #{sgae_forward.10} parent=11 // pred_check
          %p137 = pneg %p96
        $region14: #{sgae_forward.10} parent=11 // pred_check_branch
          %139 = sbr.rel (%p137) target = $region16
        $region15: #{sgae_forward.10} parent=11 // pred_region
          _
        $region16: #{sgae_forward.10} parent=11 // pred_fallthru
          _
      $region12: #{sgae_forward.10} parent=5 // pred_fallthru
        _
      %p140 = scmp.lt.s32.totalorder %s9, 9
      // Predicated region
      $region17: #{sgae_forward.10} parent=5 // pred_check
        %p141 = pneg %p140
      $region18: #{sgae_forward.10} parent=5 // pred_check_branch
        %143 = sbr.rel (%p141) target = $region20
      $region19: #{sgae_forward.10} parent=5 // pred_region
        // Predicated region
        $region21: #{sgae_forward.10} parent=19 // pred_check
          %p144 = pneg %p43
        $region22: #{sgae_forward.10} parent=19 // pred_check_branch
          %146 = sbr.rel (%p144) target = $region24
        $region23: #{sgae_forward.10} parent=19 // pred_region
          %s147 = sand.u32 %s33, 1
          %s148 = sand.u32 %s33, 1
          %s149 = smul.addr %s148, 64
          %s150 = scalar_lea.vmem [#allocation3], %s149
          %s151 = smul.u32 16, %s16
          %s152 = smul.addr %s151, 3
          %s153 = sadd.s32 %s17, %s152
          %s154 = smul.addr %s153, 4
          %s155 = scalar_lea.vmem %s0, %s154
          // Predicated region
          $region25: #{sgae_forward.10} parent=23 // pred_check
            _
          $region26: #{sgae_forward.10} parent=23 // pred_check_branch
            %157 = sbr.rel (0) target = $region28
          $region27: #{sgae_forward.10} parent=23 // pred_region
            // Predicated region
            $region29: #{sgae_forward.10} parent=27 // pred_check
              _
            $region30: #{sgae_forward.10} parent=27 // pred_check_branch
              %159 = sbr.rel target = $region32
            $region31: #{sgae_forward.10} parent=27 // pred_region
              // Predicated region
              $region44: #{sgae_forward.10} parent=31 // pred_check
                _
              $region45: #{sgae_forward.10} parent=31 // pred_check_branch
                %204 = sbr.rel (0) target = $region47
              $region46: #{sgae_forward.10} parent=31 // pred_region
                loop: start=0, step=1, limit=1
                $region48: #{sgae_forward.10} parent=46 // loop_pre_header
                  _
                $region49: #{sgae_forward.10} parent=46 // loop_header
                  %s206 = sphi 0, %s210
                  %p207 = scmp.ge.s32.totalorder %s206, 1
                  %s211 = sphi %s155, %s155
                  %s212 = sphi %s150, %s150
                $region50: #{sgae_forward.10} parent=46 // loop_header_branch
                  %209 = sbr.rel (%p207) target = $region54
                $region51: #{sgae_forward.10} parent=46 // loop_body
                  _
                $region52: #{sgae_forward.10} parent=46 // loop_footer
                  %s210 = sadd.s32 1, %s206
                $region53: #{sgae_forward.10} parent=46 // loop_footer_branch
                  %205 = sbr.rel target = $region49
                $region54: #{sgae_forward.10} parent=46 // loop_exit
                  _
                loop: start=0, step=1, limit=1
                $region55: #{sgae_forward.10} parent=46 // loop_pre_header
                  _
                $region56: #{sgae_forward.10} parent=46 // loop_header
                  %s215 = sphi 0, %s219
                  %p216 = scmp.ge.s32.totalorder %s215, 1
                  %s220 = sphi %s155, %s155
                  %s221 = sphi %s150, %s150
                $region57: #{sgae_forward.10} parent=46 // loop_header_branch
                  %218 = sbr.rel (%p216) target = $region61
                $region58: #{sgae_forward.10} parent=46 // loop_body
                  %v222 = vld [vmem:[%s220] sm:$0xf]
                  %223 = vst [vmem:[%s221] sm:$0xf] %v222
                  %v224 = vld [vmem:[%s220 + $0xc] sm:$0xf]
                  %225 = vst [vmem:[%s221 + $0x4] sm:$0xf] %v224
                  %v226 = vld [vmem:[%s220 + $0x18] sm:$0xf]
                  %227 = vst [vmem:[%s221 + $0x8] sm:$0xf] %v226
                  %v228 = vld [vmem:[%s220 + $0x24] sm:$0xf]
                  %229 = vst [vmem:[%s221 + $0xc] sm:$0xf] %v228
                  %v230 = vld [vmem:[%s220 + $0x30] sm:$0xf]
                  %231 = vst [vmem:[%s221 + $0x10] sm:$0xf] %v230
                  %v232 = vld [vmem:[%s220 + $0x3c] sm:$0xf]
                  %233 = vst [vmem:[%s221 + $0x14] sm:$0xf] %v232
                  %v234 = vld [vmem:[%s220 + $0x48] sm:$0xf]
                  %235 = vst [vmem:[%s221 + $0x18] sm:$0xf] %v234
                  %v236 = vld [vmem:[%s220 + $0x54] sm:$0xf]
                  %237 = vst [vmem:[%s221 + $0x1c] sm:$0xf] %v236
                  %v238 = vld [vmem:[%s220 + $0x60] sm:$0xf]
                  %239 = vst [vmem:[%s221 + $0x20] sm:$0xf] %v238
                  %v240 = vld [vmem:[%s220 + $0x6c] sm:$0xf]
                  %241 = vst [vmem:[%s221 + $0x24] sm:$0xf] %v240
                  %v242 = vld [vmem:[%s220 + $0x78] sm:$0xf]
                  %243 = vst [vmem:[%s221 + $0x28] sm:$0xf] %v242
                  %v244 = vld [vmem:[%s220 + $0x84] sm:$0xf]
                  %245 = vst [vmem:[%s221 + $0x2c] sm:$0xf] %v244
                  %v246 = vld [vmem:[%s220 + $0x90] sm:$0xf]
                  %247 = vst [vmem:[%s221 + $0x30] sm:$0xf] %v246
                  %v248 = vld [vmem:[%s220 + $0x9c] sm:$0xf]
                  %249 = vst [vmem:[%s221 + $0x34] sm:$0xf] %v248
                  %v250 = vld [vmem:[%s220 + $0xa8] sm:$0xf]
                  %251 = vst [vmem:[%s221 + $0x38] sm:$0xf] %v250
                  %v252 = vld [vmem:[%s220 + $0xb4] sm:$0xf]
                  %253 = vst [vmem:[%s221 + $0x3c] sm:$0xf] %v252
                $region59: #{sgae_forward.10} parent=46 // loop_footer
                  %s219 = sadd.s32 1, %s215
                $region60: #{sgae_forward.10} parent=46 // loop_footer_branch
                  %214 = sbr.rel target = $region56
                $region61: #{sgae_forward.10} parent=46 // loop_exit
                  _
              $region47: #{sgae_forward.10} parent=31 // pred_fallthru
                _
            $region32: #{sgae_forward.10} parent=27 // pred_fallthru
              _
            // Predicated region
            $region33: #{sgae_forward.10} parent=27 // pred_check
              _
            $region34: #{sgae_forward.10} parent=27 // pred_check_branch
              %161 = sbr.rel (0) target = $region36
            $region35: #{sgae_forward.10} parent=27 // pred_region
              loop: start=0, step=1, limit=1
              $region37: #{sgae_forward.10} parent=35 // loop_pre_header
                _
              $region38: #{sgae_forward.10} parent=35 // loop_header
                %s164 = sphi 0, %s168
                %p165 = scmp.ge.s32.totalorder %s164, 1
                %s169 = sphi %s155, %s155
                %s170 = sphi %s150, %s150
              $region39: #{sgae_forward.10} parent=35 // loop_header_branch
                %167 = sbr.rel (%p165) target = $region43
              $region40: #{sgae_forward.10} parent=35 // loop_body
                %v171 = vld [vmem:[%s169] sm:$0xf]
                %172 = vst [vmem:[%s170] sm:$0xf] %v171
                %v173 = vld [vmem:[%s169 + $0xc] sm:$0xf]
                %174 = vst [vmem:[%s170 + $0x4] sm:$0xf] %v173
                %v175 = vld [vmem:[%s169 + $0x18] sm:$0xf]
                %176 = vst [vmem:[%s170 + $0x8] sm:$0xf] %v175
                %v177 = vld [vmem:[%s169 + $0x24] sm:$0xf]
                %178 = vst [vmem:[%s170 + $0xc] sm:$0xf] %v177
                %v179 = vld [vmem:[%s169 + $0x30] sm:$0xf]
                %180 = vst [vmem:[%s170 + $0x10] sm:$0xf] %v179
                %v181 = vld [vmem:[%s169 + $0x3c] sm:$0xf]
                %182 = vst [vmem:[%s170 + $0x14] sm:$0xf] %v181
                %v183 = vld [vmem:[%s169 + $0x48] sm:$0xf]
                %184 = vst [vmem:[%s170 + $0x18] sm:$0xf] %v183
                %v185 = vld [vmem:[%s169 + $0x54] sm:$0xf]
                %186 = vst [vmem:[%s170 + $0x1c] sm:$0xf] %v185
                %v187 = vld [vmem:[%s169 + $0x60] sm:$0xf]
                %188 = vst [vmem:[%s170 + $0x20] sm:$0xf] %v187
                %v189 = vld [vmem:[%s169 + $0x6c] sm:$0xf]
                %190 = vst [vmem:[%s170 + $0x24] sm:$0xf] %v189
                %v191 = vld [vmem:[%s169 + $0x78] sm:$0xf]
                %192 = vst [vmem:[%s170 + $0x28] sm:$0xf] %v191
                %v193 = vld [vmem:[%s169 + $0x84] sm:$0xf]
                %194 = vst [vmem:[%s170 + $0x2c] sm:$0xf] %v193
                %v195 = vld [vmem:[%s169 + $0x90] sm:$0xf]
                %196 = vst [vmem:[%s170 + $0x30] sm:$0xf] %v195
                %v197 = vld [vmem:[%s169 + $0x9c] sm:$0xf]
                %198 = vst [vmem:[%s170 + $0x34] sm:$0xf] %v197
                %v199 = vld [vmem:[%s169 + $0xa8] sm:$0xf]
                %200 = vst [vmem:[%s170 + $0x38] sm:$0xf] %v199
                %v201 = vld [vmem:[%s169 + $0xb4] sm:$0xf]
                %202 = vst [vmem:[%s170 + $0x3c] sm:$0xf] %v201
              $region41: #{sgae_forward.10} parent=35 // loop_footer
                %s168 = sadd.s32 1, %s164
              $region42: #{sgae_forward.10} parent=35 // loop_footer_branch
                %163 = sbr.rel target = $region38
              $region43: #{sgae_forward.10} parent=35 // loop_exit
                _
            $region36: #{sgae_forward.10} parent=27 // pred_fallthru
              _
          $region28: #{sgae_forward.10} parent=23 // pred_fallthru
            _
          %254 = vnop
        $region24: #{sgae_forward.10} parent=19 // pred_fallthru
          _
        // Predicated region
        $region62: #{sgae_forward.10} parent=19 // pred_check
          %p255 = pneg %p69
        $region63: #{sgae_forward.10} parent=19 // pred_check_branch
          %257 = sbr.rel (%p255) target = $region65
        $region64: #{sgae_forward.10} parent=19 // pred_region
          %s258 = smul.u32 16, %s17
          %p259 = scmp.lt.s32.totalorder %s258, 47
          %s260 = scalar_select %p259, %s258, 47
          %s261 = smul.addr %s260, 8
          %s262 = scalar_lea.vmem %s1, %s261
          %s263 = smul.u32 16, %s17
        $region65: #{sgae_forward.10} parent=19 // pred_fallthru
          _
      $region20: #{sgae_forward.10} parent=5 // pred_fallthru
        _
      %p264 = scmp.le.s32.totalorder 1, %s9
      %p265 = scmp.lt.s32.totalorder %s9, 10
      %p266 = pnand %p264, %p265
      %p267 = pneg %p266
      // Predicated region
      $region66: #{sgae_forward.10} parent=5 // pred_check
        _
      $region67: #{sgae_forward.10} parent=5 // pred_check_branch
        %269 = sbr.rel (%p266) target = $region69
      $region68: #{sgae_forward.10} parent=5 // pred_region
        %s270 = ssub.s32 %s9, 1
        %s271 = sand.u32 %s36, 1
        %s272 = sand.u32 %s36, 1
        %s273 = smul.addr %s272, 64
        %s274 = scalar_lea.vmem [#allocation3], %s273
        // Predicated region
        $region70: #{sgae_forward.10} parent=68 // pred_check
          %p275 = pneg %p49
        $region71: #{sgae_forward.10} parent=68 // pred_check_branch
          %277 = sbr.rel (%p275) target = $region73
        $region72: #{sgae_forward.10} parent=68 // pred_region
          _
        $region73: #{sgae_forward.10} parent=68 // pred_fallthru
          _
        %s278 = sand.u32 %s36, 1
        %s279 = sand.u32 %s36, 1
        %s280 = smul.addr %s279, 64
        %s281 = scalar_lea.vmem [#allocation3], %s280
        %p282 = pneg %p49
        %p283 = pneg %p46
        %s284 = smul.u32 16, %s19
        %p285 = scmp.lt.s32.totalorder %s284, 47
        %s286 = scalar_select %p285, %s284, 47
        %s287 = smul.addr %s286, 8
        %s288 = scalar_lea.vmem %s1, %s287
        %p289 = pneg %p75
        %p290 = pneg %p72
        %p291 = pneg %p96
        %p292 = pneg %p93
        %p293 = pneg %p122
        %p294 = pneg %p119
        %s295 = smul.u32 16, %s18
        %p296 = scmp.lt.s32.totalorder %s295, 47
        %s297 = scalar_select %p296, %s295, 47
        %s298 = smul.addr %s297, 8
        %s299 = scalar_lea.vmem %s3, %s298
        %s300 = smul.u32 16, %s18
        %s301 = smul.u32 16, %s19
        %p302 = scmp.lt.s32.totalorder %s301, 47
        %s303 = scalar_select %p302, %s301, 47
        %s304 = smul.addr %s303, 8
        %s305 = scalar_lea.vmem %s1, %s304
        %s306 = smul.u32 16, %s19
        %s307 = smul.u32 16, %s18
        %p308 = scmp.lt.s32.totalorder %s307, 47
        %s309 = scalar_select %p308, %s307, 47
        %s310 = smul.addr %s309, 8
        %s311 = scalar_lea.vmem %s3, %s310
        %s312 = smul.u32 16, %s18
        %p314 = scmp.eq.s32.totalorder %s19, 0
        // Predicated region
        $region74: #{sgae_forward.10} parent=68 // pred_check
          %p315 = pneg %p314
        $region75: #{sgae_forward.10} parent=68 // pred_check_branch
          %317 = sbr.rel (%p315) target = $region77
        $region76: #{sgae_forward.10} parent=68 // pred_region
          %318 = vst [vmem:[#allocation2] sm:$0xff] 0.0
          %319 = vst [vmem:[#allocation2 + $0x8] sm:$0xff] 0.0
          %320 = vst [vmem:[#allocation2 + $0x10] sm:$0xff] 0.0
          %321 = vst [vmem:[#allocation2 + $0x18] sm:$0xff] 0.0
          %322 = vst [vmem:[#allocation2 + $0x20] sm:$0xff] 0.0
          %323 = vst [vmem:[#allocation2 + $0x28] sm:$0xff] 0.0
          %324 = vst [vmem:[#allocation2 + $0x30] sm:$0xff] 0.0
          %325 = vst [vmem:[#allocation2 + $0x38] sm:$0xff] 0.0
          %326 = vst [vmem:[#allocation2 + $0x40] sm:$0xff] 0.0
          %327 = vst [vmem:[#allocation2 + $0x48] sm:$0xff] 0.0
          %328 = vst [vmem:[#allocation2 + $0x50] sm:$0xff] 0.0
          %329 = vst [vmem:[#allocation2 + $0x58] sm:$0xff] 0.0
          %330 = vst [vmem:[#allocation2 + $0x60] sm:$0xff] 0.0
          %331 = vst [vmem:[#allocation2 + $0x68] sm:$0xff] 0.0
          %332 = vst [vmem:[#allocation2 + $0x70] sm:$0xff] 0.0
          %333 = vst [vmem:[#allocation2 + $0x78] sm:$0xff] 0.0
        $region77: #{sgae_forward.10} parent=68 // pred_fallthru
          _
        %v334 = vld [vmem:[%s274] sm:$0xf]
        %v335 = vld [vmem:[%s274 + $0x4] sm:$0xf]
        %v336 = vld [vmem:[%s274 + $0x8] sm:$0xf]
        %v337 = vld [vmem:[%s274 + $0xc] sm:$0xf]
        %v338 = vld [vmem:[%s274 + $0x10] sm:$0xf]
        %v339 = vld [vmem:[%s274 + $0x14] sm:$0xf]
        %v340 = vld [vmem:[%s274 + $0x18] sm:$0xf]
        %v341 = vld [vmem:[%s274 + $0x1c] sm:$0xf]
        %v342 = vld [vmem:[%s274 + $0x20] sm:$0xf]
        %v343 = vld [vmem:[%s274 + $0x24] sm:$0xf]
        %v344 = vld [vmem:[%s274 + $0x28] sm:$0xf]
        %v345 = vld [vmem:[%s274 + $0x2c] sm:$0xf]
        %v346 = vld [vmem:[%s274 + $0x30] sm:$0xf]
        %v347 = vld [vmem:[%s274 + $0x34] sm:$0xf]
        %v348 = vld [vmem:[%s274 + $0x38] sm:$0xf]
        %v349 = vld [vmem:[%s274 + $0x3c] sm:$0xf]
        %v350 = vld [vmem:[%s305] sm:$0xff]
        %v351 = vld [vmem:[%s305 + $0x8] sm:$0xff]
        %v352 = vld [vmem:[%s305 + $0x10] sm:$0xff]
        %v353 = vld [vmem:[%s305 + $0x18] sm:$0xff]
        %v354 = vld [vmem:[%s305 + $0x20] sm:$0xff]
        %v355 = vld [vmem:[%s305 + $0x28] sm:$0xff]
        %v356 = vld [vmem:[%s305 + $0x30] sm:$0xff]
        %v357 = vld [vmem:[%s305 + $0x38] sm:$0xff]
        %v358 = vld [vmem:[%s305 + $0x40] sm:$0xff]
        %v359 = vld [vmem:[%s305 + $0x48] sm:$0xff]
        %v360 = vld [vmem:[%s305 + $0x50] sm:$0xff]
        %v361 = vld [vmem:[%s305 + $0x58] sm:$0xff]
        %v362 = vld [vmem:[%s305 + $0x60] sm:$0xff]
        %v363 = vld [vmem:[%s305 + $0x68] sm:$0xff]
        %v364 = vld [vmem:[%s305 + $0x70] sm:$0xff]
        %v365 = vld [vmem:[%s305 + $0x78] sm:$0xff]
        %v366 = vpack.c.bf16 %v351, %v350
        %v367 = vpack.c.bf16 %v353, %v352
        %v368 = vpack.c.bf16 %v355, %v354
        %v369 = vpack.c.bf16 %v357, %v356
        %v370 = vpack.c.bf16 %v359, %v358
        %v371 = vpack.c.bf16 %v361, %v360
        %v372 = vpack.c.bf16 %v363, %v362
        %v373 = vpack.c.bf16 %v365, %v364
        %v374 = vld [vmem:[#allocation2] sm:$0xff]
        %v375 = vld [vmem:[#allocation2 + $0x8] sm:$0xff]
        %v376 = vld [vmem:[#allocation2 + $0x10] sm:$0xff]
        %v377 = vld [vmem:[#allocation2 + $0x18] sm:$0xff]
        %v378 = vld [vmem:[#allocation2 + $0x20] sm:$0xff]
        %v379 = vld [vmem:[#allocation2 + $0x28] sm:$0xff]
        %v380 = vld [vmem:[#allocation2 + $0x30] sm:$0xff]
        %v381 = vld [vmem:[#allocation2 + $0x38] sm:$0xff]
        %v382 = vld [vmem:[#allocation2 + $0x40] sm:$0xff]
        %v383 = vld [vmem:[#allocation2 + $0x48] sm:$0xff]
        %v384 = vld [vmem:[#allocation2 + $0x50] sm:$0xff]
        %v385 = vld [vmem:[#allocation2 + $0x58] sm:$0xff]
        %v386 = vld [vmem:[#allocation2 + $0x60] sm:$0xff]
        %v387 = vld [vmem:[#allocation2 + $0x68] sm:$0xff]
        %v388 = vld [vmem:[#allocation2 + $0x70] sm:$0xff]
        %v389 = vld [vmem:[#allocation2 + $0x78] sm:$0xff]
        %v406 = vunpack.c.l.b16 %v334
        %v407 = vunpack.c.l.b16 %v335
        %v408 = vunpack.c.l.b16 %v336
        %v409 = vunpack.c.l.b16 %v337
        %v410 = vunpack.c.l.b16 %v338
        %v411 = vunpack.c.l.b16 %v339
        %v412 = vunpack.c.l.b16 %v340
        %v413 = vunpack.c.l.b16 %v341
        %v414 = vunpack.c.l.b16 %v342
        %v415 = vunpack.c.l.b16 %v343
        %v416 = vunpack.c.l.b16 %v344
        %v417 = vunpack.c.l.b16 %v345
        %v418 = vunpack.c.l.b16 %v346
        %v419 = vunpack.c.l.b16 %v347
        %v420 = vunpack.c.l.b16 %v348
        %v421 = vunpack.c.l.b16 %v349
        %v422 = vpack.c.b16 %v407, %v406
        %v423 = vpack.c.b16 %v409, %v408
        %v424 = vpack.c.b16 %v411, %v410
        %v425 = vpack.c.b16 %v413, %v412
        %v426 = vpack.c.b16 %v415, %v414
        %v427 = vpack.c.b16 %v417, %v416
        %v428 = vpack.c.b16 %v419, %v418
        %v429 = vpack.c.b16 %v421, %v420
        %438 = vmatprep.subr.bf16.mxu0 0
        %439 = vmatpush1.bf16.msra.mxu0 %v366
        %440 = vmatprep.subr.bf16.mxu0 0
        %441 = vmatpush1.bf16.msra.mxu0 %v367
        %442 = vmatprep.subr.bf16.mxu0 0
        %443 = vmatpush1.bf16.msra.mxu0 %v368
        %444 = vmatprep.subr.bf16.mxu0 0
        %445 = vmatpush1.bf16.msra.mxu0 %v369
        %446 = vmatprep.subr.bf16.mxu0 0
        %447 = vmatpush1.bf16.msra.mxu0 %v370
        %448 = vmatprep.subr.bf16.mxu0 0
        %449 = vmatpush1.bf16.msra.mxu0 %v371
        %450 = vmatprep.subr.bf16.mxu0 0
        %451 = vmatpush1.bf16.msra.mxu0 %v372
        %452 = vmatprep.subr.bf16.mxu0 0
        %453 = vmatpush1.bf16.msra.mxu0 %v373
        %454 = vmatprep.subr.bf16.mxu0 0
        %455 = vmatpush1.bf16.msra.mxu0 0
        %456 = vmatprep.subr.bf16.mxu0 0
        %457 = vmatpush1.bf16.msra.mxu0 0
        %458 = vmatprep.subr.bf16.mxu0 0
        %459 = vmatpush1.bf16.msra.mxu0 0
        %460 = vmatprep.subr.bf16.mxu0 0
        %461 = vmatpush1.bf16.msra.mxu0 0
        %462 = vmatprep.subr.bf16.mxu0 0
        %463 = vmatpush1.bf16.msra.mxu0 0
        %464 = vmatprep.subr.bf16.mxu0 0
        %465 = vmatpush1.bf16.msra.mxu0 0
        %466 = vmatprep.subr.bf16.mxu0 0
        %467 = vmatpush1.bf16.msra.mxu0 0
        %468 = vmatprep.subr.bf16.mxu0 0
        %469 = vmatpush1.bf16.msra.mxu0 0
        %470 = vmatprep.mubr.bf16.mxu0 0
        %471 = vmatmul.mubr.bf16.gmra.mrb[0].mxu0 %v422
        %v472 = vpop.f32.mrb[0].mxu0
        %v473 = vadd.f32 0.0, %v472
        %v474 = vpop.f32.mrb[0].mxu0
        %v475 = vpop.f32.mrb[0].mxu0
        %v476 = vadd.f32 0.0, %v475
        %v477 = vpop.f32.mrb[0].mxu0
        %478 = vmatprep.mubr.bf16.mxu0 0
        %479 = vmatmul.mubr.bf16.gmra.mrb[0].mxu0 %v423
        %v480 = vpop.f32.mrb[0].mxu0
        %v481 = vadd.f32 0.0, %v480
        %v482 = vpop.f32.mrb[0].mxu0
        %v483 = vpop.f32.mrb[0].mxu0
        %v484 = vadd.f32 0.0, %v483
        %v485 = vpop.f32.mrb[0].mxu0
        %486 = vmatprep.mubr.bf16.mxu0 0
        %487 = vmatmul.mubr.bf16.gmra.mrb[0].mxu0 %v424
        %v488 = vpop.f32.mrb[0].mxu0
        %v489 = vadd.f32 0.0, %v488
        %v490 = vpop.f32.mrb[0].mxu0
        %v491 = vpop.f32.mrb[0].mxu0
        %v492 = vadd.f32 0.0, %v491
        %v493 = vpop.f32.mrb[0].mxu0
        %494 = vmatprep.mubr.bf16.mxu0 0
        %495 = vmatmul.mubr.bf16.gmra.mrb[0].mxu0 %v425
        %v496 = vpop.f32.mrb[0].mxu0
        %v497 = vadd.f32 0.0, %v496
        %v498 = vpop.f32.mrb[0].mxu0
        %v499 = vpop.f32.mrb[0].mxu0
        %v500 = vadd.f32 0.0, %v499
        %v501 = vpop.f32.mrb[0].mxu0
        %502 = vmatprep.mubr.bf16.mxu0 0
        %503 = vmatmul.mubr.bf16.gmra.mrb[0].mxu0 %v426
        %v504 = vpop.f32.mrb[0].mxu0
        %v505 = vadd.f32 0.0, %v504
        %v506 = vpop.f32.mrb[0].mxu0
        %v507 = vpop.f32.mrb[0].mxu0
        %v508 = vadd.f32 0.0, %v507
        %v509 = vpop.f32.mrb[0].mxu0
        %510 = vmatprep.mubr.bf16.mxu0 0
        %511 = vmatmul.mubr.bf16.gmra.mrb[0].mxu0 %v427
        %v512 = vpop.f32.mrb[0].mxu0
        %v513 = vadd.f32 0.0, %v512
        %v514 = vpop.f32.mrb[0].mxu0
        %v515 = vpop.f32.mrb[0].mxu0
        %v516 = vadd.f32 0.0, %v515
        %v517 = vpop.f32.mrb[0].mxu0
        %518 = vmatprep.mubr.bf16.mxu0 0
        %519 = vmatmul.mubr.bf16.gmra.mrb[0].mxu0 %v428
        %v520 = vpop.f32.mrb[0].mxu0
        %v521 = vadd.f32 0.0, %v520
        %v522 = vpop.f32.mrb[0].mxu0
        %v523 = vpop.f32.mrb[0].mxu0
        %v524 = vadd.f32 0.0, %v523
        %v525 = vpop.f32.mrb[0].mxu0
        %526 = vmatprep.mubr.bf16.mxu0 0
        %527 = vmatmul.mubr.bf16.gmra.mrb[0].mxu0 %v429
        %v528 = vpop.f32.mrb[0].mxu0
        %v529 = vadd.f32 0.0, %v528
        %v530 = vpop.f32.mrb[0].mxu0
        %v531 = vpop.f32.mrb[0].mxu0
        %v532 = vadd.f32 0.0, %v531
        %v533 = vpop.f32.mrb[0].mxu0
        %534 = vdwg.mxu0
        %v535 = vadd.f32 %v374, %v473
        %v536 = vadd.f32 %v375, %v476
        %v537 = vadd.f32 %v376, %v481
        %v538 = vadd.f32 %v377, %v484
        %v539 = vadd.f32 %v378, %v489
        %v540 = vadd.f32 %v379, %v492
        %v541 = vadd.f32 %v380, %v497
        %v542 = vadd.f32 %v381, %v500
        %v543 = vadd.f32 %v382, %v505
        %v544 = vadd.f32 %v383, %v508
        %v545 = vadd.f32 %v384, %v513
        %v546 = vadd.f32 %v385, %v516
        %v547 = vadd.f32 %v386, %v521
        %v548 = vadd.f32 %v387, %v524
        %v549 = vadd.f32 %v388, %v529
        %v550 = vadd.f32 %v389, %v532
        %551 = vst [vmem:[#allocation2] sm:$0xff] %v535
        %552 = vst [vmem:[#allocation2 + $0x8] sm:$0xff] %v536
        %553 = vst [vmem:[#allocation2 + $0x10] sm:$0xff] %v537
        %554 = vst [vmem:[#allocation2 + $0x18] sm:$0xff] %v538
        %555 = vst [vmem:[#allocation2 + $0x20] sm:$0xff] %v539
        %556 = vst [vmem:[#allocation2 + $0x28] sm:$0xff] %v540
        %557 = vst [vmem:[#allocation2 + $0x30] sm:$0xff] %v541
        %558 = vst [vmem:[#allocation2 + $0x38] sm:$0xff] %v542
        %559 = vst [vmem:[#allocation2 + $0x40] sm:$0xff] %v543
        %560 = vst [vmem:[#allocation2 + $0x48] sm:$0xff] %v544
        %561 = vst [vmem:[#allocation2 + $0x50] sm:$0xff] %v545
        %562 = vst [vmem:[#allocation2 + $0x58] sm:$0xff] %v546
        %563 = vst [vmem:[#allocation2 + $0x60] sm:$0xff] %v547
        %564 = vst [vmem:[#allocation2 + $0x68] sm:$0xff] %v548
        %565 = vst [vmem:[#allocation2 + $0x70] sm:$0xff] %v549
        %566 = vst [vmem:[#allocation2 + $0x78] sm:$0xff] %v550
        %p567 = scmp.eq.s32.totalorder %s19, 2
        // Predicated region
        $region78: #{sgae_forward.10} parent=68 // pred_check
          %p568 = pneg %p567
        $region79: #{sgae_forward.10} parent=68 // pred_check_branch
          %570 = sbr.rel (%p568) target = $region81
        $region80: #{sgae_forward.10} parent=68 // pred_region
          %v571 = vld [vmem:[#allocation2] sm:$0xff]
          %v572 = vld [vmem:[#allocation2 + $0x8] sm:$0xff]
          %v573 = vld [vmem:[#allocation2 + $0x10] sm:$0xff]
          %v574 = vld [vmem:[#allocation2 + $0x18] sm:$0xff]
          %v575 = vld [vmem:[#allocation2 + $0x20] sm:$0xff]
          %v576 = vld [vmem:[#allocation2 + $0x28] sm:$0xff]
          %v577 = vld [vmem:[#allocation2 + $0x30] sm:$0xff]
          %v578 = vld [vmem:[#allocation2 + $0x38] sm:$0xff]
          %v579 = vld [vmem:[#allocation2 + $0x40] sm:$0xff]
          %v580 = vld [vmem:[#allocation2 + $0x48] sm:$0xff]
          %v581 = vld [vmem:[#allocation2 + $0x50] sm:$0xff]
          %v582 = vld [vmem:[#allocation2 + $0x58] sm:$0xff]
          %v583 = vld [vmem:[#allocation2 + $0x60] sm:$0xff]
          %v584 = vld [vmem:[#allocation2 + $0x68] sm:$0xff]
          %v585 = vld [vmem:[#allocation2 + $0x70] sm:$0xff]
          %v586 = vld [vmem:[#allocation2 + $0x78] sm:$0xff]
          %v587 = vld [vmem:[%s2] sm:$0x1]
          %v589 = vlaneseq
          %v590 = vshrl.u32 %v589, 7
          %v591 = vsub.s32 0, %v590
          %v592 = vrot.slane %v587, %v591
          %v594 = vadd.f32 %v571, %v592
          %v595 = vadd.f32 %v572, %v592
          %v596 = vadd.f32 %v573, %v592
          %v597 = vadd.f32 %v574, %v592
          %v598 = vadd.f32 %v575, %v592
          %v599 = vadd.f32 %v576, %v592
          %v600 = vadd.f32 %v577, %v592
          %v601 = vadd.f32 %v578, %v592
          %v602 = vadd.f32 %v579, %v592
          %v603 = vadd.f32 %v580, %v592
          %v604 = vadd.f32 %v581, %v592
          %v605 = vadd.f32 %v582, %v592
          %v606 = vadd.f32 %v583, %v592
          %v607 = vadd.f32 %v584, %v592
          %v608 = vadd.f32 %v585, %v592
          %v609 = vadd.f32 %v586, %v592
          %v610 = vmax.f32 %v594, 0.0
          %v611 = vmax.f32 %v595, 0.0
          %v612 = vmax.f32 %v596, 0.0
          %v613 = vmax.f32 %v597, 0.0
          %v614 = vmax.f32 %v598, 0.0
          %v615 = vmax.f32 %v599, 0.0
          %v616 = vmax.f32 %v600, 0.0
          %v617 = vmax.f32 %v601, 0.0
          %v618 = vmax.f32 %v602, 0.0
          %v619 = vmax.f32 %v603, 0.0
          %v620 = vmax.f32 %v604, 0.0
          %v621 = vmax.f32 %v605, 0.0
          %v622 = vmax.f32 %v606, 0.0
          %v623 = vmax.f32 %v607, 0.0
          %v624 = vmax.f32 %v608, 0.0
          %v625 = vmax.f32 %v609, 0.0
          %626 = vst [vmem:[%s311] sm:$0xff] %v610
          %627 = vst [vmem:[%s311 + $0x8] sm:$0xff] %v611
          %628 = vst [vmem:[%s311 + $0x10] sm:$0xff] %v612
          %629 = vst [vmem:[%s311 + $0x18] sm:$0xff] %v613
          %630 = vst [vmem:[%s311 + $0x20] sm:$0xff] %v614
          %631 = vst [vmem:[%s311 + $0x28] sm:$0xff] %v615
          %632 = vst [vmem:[%s311 + $0x30] sm:$0xff] %v616
          %633 = vst [vmem:[%s311 + $0x38] sm:$0xff] %v617
          %634 = vst [vmem:[%s311 + $0x40] sm:$0xff] %v618
          %635 = vst [vmem:[%s311 + $0x48] sm:$0xff] %v619
          %636 = vst [vmem:[%s311 + $0x50] sm:$0xff] %v620
          %637 = vst [vmem:[%s311 + $0x58] sm:$0xff] %v621
          %638 = vst [vmem:[%s311 + $0x60] sm:$0xff] %v622
          %639 = vst [vmem:[%s311 + $0x68] sm:$0xff] %v623
          %640 = vst [vmem:[%s311 + $0x70] sm:$0xff] %v624
          %641 = vst [vmem:[%s311 + $0x78] sm:$0xff] %v625
        $region81: #{sgae_forward.10} parent=68 // pred_fallthru
          _
        %s642 = smul.u32 16, %s18
        %p643 = scmp.lt.s32.totalorder %s642, 47
        %s644 = scalar_select %p643, %s642, 47
        %s645 = smul.addr %s644, 8
        %s646 = scalar_lea.vmem %s3, %s645
        // Predicated region
        $region82: #{sgae_forward.10} parent=68 // pred_check
          %p647 = pneg %p119
        $region83: #{sgae_forward.10} parent=68 // pred_check_branch
          %649 = sbr.rel (%p647) target = $region85
        $region84: #{sgae_forward.10} parent=68 // pred_region
          %s650 = smul.u32 16, %s18
        $region85: #{sgae_forward.10} parent=68 // pred_fallthru
          _
      $region69: #{sgae_forward.10} parent=5 // pred_fallthru
        _
      %p651 = scmp.le.s32.totalorder 2, %s9
      // Predicated region
      $region86: #{sgae_forward.10} parent=5 // pred_check
        %p652 = pneg %p651
      $region87: #{sgae_forward.10} parent=5 // pred_check_branch
        %654 = sbr.rel (%p652) target = $region89
      $region88: #{sgae_forward.10} parent=5 // pred_region
        %s655 = ssub.s32 %s9, 2
        // Predicated region
        $region90: #{sgae_forward.10} parent=88 // pred_check
          %p656 = pneg %p125
        $region91: #{sgae_forward.10} parent=88 // pred_check_branch
          %658 = sbr.rel (%p656) target = $region93
        $region92: #{sgae_forward.10} parent=88 // pred_region
          %s659 = smul.u32 16, %s20
          %p660 = scmp.lt.s32.totalorder %s659, 47
          %s661 = scalar_select %p660, %s659, 47
          %s662 = smul.addr %s661, 8
          %s663 = scalar_lea.vmem %s3, %s662
        $region93: #{sgae_forward.10} parent=88 // pred_fallthru
          _
      $region89: #{sgae_forward.10} parent=5 // pred_fallthru
        _
    $region6: #{sgae_forward.10} parent=1 // loop_footer
      %s13 = sadd.s32 1, %s9
    $region7: #{sgae_forward.10} parent=1 // loop_footer_branch
      %8 = sbr.rel target = $region3
    $region8: #{sgae_forward.10} parent=1 // loop_exit
      _

// kernel: sgae_forward.16
$region0: #{sgae_forward.16}
  #allocation0 [shape = 'u32[]', space=smem, size = 0x4, offset = 0x4, fixed_abs, tag = 'smem constant byte address 0x4 - core index']
  #allocation1 [shape = 'u32[144,128]{1,0:T(1,128)}', space=vmem, size = 0x12000, scoped, tag = 'internal scratch']
  #allocation2 [shape = 'f32[256,128]{1,0:T(8,128)}', space=vmem, size = 0x20000, scoped, tag = 'scratch operand']
  %s0 = inlined_call_operand.vmem [shape: bf16[256,256], index: 0, kind: input, shape index: {}]
  %s1 = inlined_call_operand.vmem [shape: f32[256,128], index: 1, kind: input, shape index: {}]
  %s2 = inlined_call_operand.vmem [shape: f32[1,128], index: 2, kind: input, shape index: {}]
  %s3 = inlined_call_operand.vmem [shape: f32[256,128], index: 3, kind: output, shape index: {}]
  %s4 = sld [smem:[#allocation0]]
  $region30: #{sgae_forward.16} parent=0
    _
  %s6 = ssub.s32 1, %s4
  %s7 = scalar_select 0, %s6, %s4
  // Predicated region
  $region2: #{sgae_forward.16} parent=0 // pred_check
    _
  $region3: #{sgae_forward.16} parent=0 // pred_check_branch
    %9 = sbr.rel (0) target = $region5
  $region4: #{sgae_forward.16} parent=0 // pred_region
    _
  $region5: #{sgae_forward.16} parent=0 // pred_fallthru
    _
  // Predicated region
  $region6: #{sgae_forward.16} parent=0 // pred_check
    _
  $region7: #{sgae_forward.16} parent=0 // pred_check_branch
    %11 = sbr.rel (0) target = $region9
  $region8: #{sgae_forward.16} parent=0 // pred_region
    _
  $region9: #{sgae_forward.16} parent=0 // pred_fallthru
    _
  // Predicated region
  $region10: #{sgae_forward.16} parent=0 // pred_check
    _
  $region11: #{sgae_forward.16} parent=0 // pred_check_branch
    %13 = sbr.rel (0) target = $region13
  $region12: #{sgae_forward.16} parent=0 // pred_region
    _
  $region13: #{sgae_forward.16} parent=0 // pred_fallthru
    _
  %p15 = scmp.eq.s32.totalorder 0, 0
  // Predicated region
  $region14: #{sgae_forward.16} parent=0 // pred_check
    %p16 = pneg %p15
  $region15: #{sgae_forward.16} parent=0 // pred_check_branch
    %18 = sbr.rel (%p16) target = $region17
  $region16: #{sgae_forward.16} parent=0 // pred_region
    %19 = vst [vmem:[#allocation2] sm:$0xff] 0.0
    %20 = vst [vmem:[#allocation2 + $0x8] sm:$0xff] 0.0
    %21 = vst [vmem:[#allocation2 + $0x10] sm:$0xff] 0.0
    %22 = vst [vmem:[#allocation2 + $0x18] sm:$0xff] 0.0
    %23 = vst [vmem:[#allocation2 + $0x20] sm:$0xff] 0.0
    %24 = vst [vmem:[#allocation2 + $0x28] sm:$0xff] 0.0
    %25 = vst [vmem:[#allocation2 + $0x30] sm:$0xff] 0.0
    %26 = vst [vmem:[#allocation2 + $0x38] sm:$0xff] 0.0
    %27 = vst [vmem:[#allocation2 + $0x40] sm:$0xff] 0.0
    %28 = vst [vmem:[#allocation2 + $0x48] sm:$0xff] 0.0
    %29 = vst [vmem:[#allocation2 + $0x50] sm:$0xff] 0.0
    %30 = vst [vmem:[#allocation2 + $0x58] sm:$0xff] 0.0
    %31 = vst [vmem:[#allocation2 + $0x60] sm:$0xff] 0.0
    %32 = vst [vmem:[#allocation2 + $0x68] sm:$0xff] 0.0
    %33 = vst [vmem:[#allocation2 + $0x70] sm:$0xff] 0.0
    %34 = vst [vmem:[#allocation2 + $0x78] sm:$0xff] 0.0
    %35 = vst [vmem:[#allocation2 + $0x80] sm:$0xff] 0.0
    %36 = vst [vmem:[#allocation2 + $0x88] sm:$0xff] 0.0
    %37 = vst [vmem:[#allocation2 + $0x90] sm:$0xff] 0.0
    %38 = vst [vmem:[#allocation2 + $0x98] sm:$0xff] 0.0
    %39 = vst [vmem:[#allocation2 + $0xa0] sm:$0xff] 0.0
    %40 = vst [vmem:[#allocation2 + $0xa8] sm:$0xff] 0.0
    %41 = vst [vmem:[#allocation2 + $0xb0] sm:$0xff] 0.0
    %42 = vst [vmem:[#allocation2 + $0xb8] sm:$0xff] 0.0
    %43 = vst [vmem:[#allocation2 + $0xc0] sm:$0xff] 0.0
    %44 = vst [vmem:[#allocation2 + $0xc8] sm:$0xff] 0.0
    %45 = vst [vmem:[#allocation2 + $0xd0] sm:$0xff] 0.0
    %46 = vst [vmem:[#allocation2 + $0xd8] sm:$0xff] 0.0
    %47 = vst [vmem:[#allocation2 + $0xe0] sm:$0xff] 0.0
    %48 = vst [vmem:[#allocation2 + $0xe8] sm:$0xff] 0.0
    %49 = vst [vmem:[#allocation2 + $0xf0] sm:$0xff] 0.0
    %50 = vst [vmem:[#allocation2 + $0xf8] sm:$0xff] 0.0
  $region17: #{sgae_forward.16} parent=0 // pred_fallthru
    _
  %v51 = vld [vmem:[%s0] sm:$0xff]
  %v52 = vld [vmem:[%s0 + $0x8] sm:$0xff]
  %v53 = vld [vmem:[%s0 + $0x10] sm:$0xff]
  %v54 = vld [vmem:[%s0 + $0x18] sm:$0xff]
  %v55 = vld [vmem:[%s0 + $0x20] sm:$0xff]
  %v56 = vld [vmem:[%s0 + $0x28] sm:$0xff]
  %v57 = vld [vmem:[%s0 + $0x30] sm:$0xff]
  %v58 = vld [vmem:[%s0 + $0x38] sm:$0xff]
  %v59 = vld [vmem:[%s0 + $0x40] sm:$0xff]
  %v60 = vld [vmem:[%s0 + $0x48] sm:$0xff]
  %v61 = vld [vmem:[%s0 + $0x50] sm:$0xff]
  %v62 = vld [vmem:[%s0 + $0x58] sm:$0xff]
  %v63 = vld [vmem:[%s0 + $0x60] sm:$0xff]
  %v64 = vld [vmem:[%s0 + $0x68] sm:$0xff]
  %v65 = vld [vmem:[%s0 + $0x70] sm:$0xff]
  %v66 = vld [vmem:[%s0 + $0x78] sm:$0xff]
  %v67 = vld [vmem:[%s0 + $0x80] sm:$0xff]
  %v68 = vld [vmem:[%s0 + $0x88] sm:$0xff]
  %v69 = vld [vmem:[%s0 + $0x90] sm:$0xff]
  %v70 = vld [vmem:[%s0 + $0x98] sm:$0xff]
  %v71 = vld [vmem:[%s0 + $0xa0] sm:$0xff]
  %v72 = vld [vmem:[%s0 + $0xa8] sm:$0xff]
  %v73 = vld [vmem:[%s0 + $0xb0] sm:$0xff]
  %v74 = vld [vmem:[%s0 + $0xb8] sm:$0xff]
  %v75 = vld [vmem:[%s0 + $0xc0] sm:$0xff]
  %v76 = vld [vmem:[%s0 + $0xc8] sm:$0xff]
  %v77 = vld [vmem:[%s0 + $0xd0] sm:$0xff]
  %v78 = vld [vmem:[%s0 + $0xd8] sm:$0xff]
  %v79 = vld [vmem:[%s0 + $0xe0] sm:$0xff]
  %v80 = vld [vmem:[%s0 + $0xe8] sm:$0xff]
  %v81 = vld [vmem:[%s0 + $0xf0] sm:$0xff]
  %v82 = vld [vmem:[%s0 + $0xf8] sm:$0xff]
  %v83 = vld [vmem:[%s1] sm:$0xff]
  %v84 = vld [vmem:[%s1 + $0x8] sm:$0xff]
  %v85 = vld [vmem:[%s1 + $0x10] sm:$0xff]
  %v86 = vld [vmem:[%s1 + $0x18] sm:$0xff]
  %v87 = vld [vmem:[%s1 + $0x20] sm:$0xff]
  %v88 = vld [vmem:[%s1 + $0x28] sm:$0xff]
  %v89 = vld [vmem:[%s1 + $0x30] sm:$0xff]
  %v90 = vld [vmem:[%s1 + $0x38] sm:$0xff]
  %v91 = vld [vmem:[%s1 + $0x40] sm:$0xff]
  %v92 = vld [vmem:[%s1 + $0x48] sm:$0xff]
  %v93 = vld [vmem:[%s1 + $0x50] sm:$0xff]
  %v94 = vld [vmem:[%s1 + $0x58] sm:$0xff]
  %v95 = vld [vmem:[%s1 + $0x60] sm:$0xff]
  %v96 = vld [vmem:[%s1 + $0x68] sm:$0xff]
  %v97 = vld [vmem:[%s1 + $0x70] sm:$0xff]
  %v98 = vld [vmem:[%s1 + $0x78] sm:$0xff]
  %v99 = vld [vmem:[%s1 + $0x80] sm:$0xff]
  %v100 = vld [vmem:[%s1 + $0x88] sm:$0xff]
  %v101 = vld [vmem:[%s1 + $0x90] sm:$0xff]
  %v102 = vld [vmem:[%s1 + $0x98] sm:$0xff]
  %v103 = vld [vmem:[%s1 + $0xa0] sm:$0xff]
  %v104 = vld [vmem:[%s1 + $0xa8] sm:$0xff]
  %v105 = vld [vmem:[%s1 + $0xb0] sm:$0xff]
  %v106 = vld [vmem:[%s1 + $0xb8] sm:$0xff]
  %v107 = vld [vmem:[%s1 + $0xc0] sm:$0xff]
  %v108 = vld [vmem:[%s1 + $0xc8] sm:$0xff]
  %v109 = vld [vmem:[%s1 + $0xd0] sm:$0xff]
  %v110 = vld [vmem:[%s1 + $0xd8] sm:$0xff]
  %v111 = vld [vmem:[%s1 + $0xe0] sm:$0xff]
  %v112 = vld [vmem:[%s1 + $0xe8] sm:$0xff]
  %v113 = vld [vmem:[%s1 + $0xf0] sm:$0xff]
  %v114 = vld [vmem:[%s1 + $0xf8] sm:$0xff]
  %v115 = vpack.c.bf16 %v84, %v83
  %v116 = vpack.c.bf16 %v86, %v85
  %v117 = vpack.c.bf16 %v88, %v87
  %v118 = vpack.c.bf16 %v90, %v89
  %v119 = vpack.c.bf16 %v92, %v91
  %v120 = vpack.c.bf16 %v94, %v93
  %v121 = vpack.c.bf16 %v96, %v95
  %v122 = vpack.c.bf16 %v98, %v97
  %v123 = vpack.c.bf16 %v100, %v99
  %v124 = vpack.c.bf16 %v102, %v101
  %v125 = vpack.c.bf16 %v104, %v103
  %v126 = vpack.c.bf16 %v106, %v105
  %v127 = vpack.c.bf16 %v108, %v107
  %v128 = vpack.c.bf16 %v110, %v109
  %v129 = vpack.c.bf16 %v112, %v111
  %v130 = vpack.c.bf16 %v114, %v113
  %v131 = vld [vmem:[#allocation2] sm:$0xff]
  %v132 = vld [vmem:[#allocation2 + $0x8] sm:$0xff]
  %v133 = vld [vmem:[#allocation2 + $0x10] sm:$0xff]
  %v134 = vld [vmem:[#allocation2 + $0x18] sm:$0xff]
  %v135 = vld [vmem:[#allocation2 + $0x20] sm:$0xff]
  %v136 = vld [vmem:[#allocation2 + $0x28] sm:$0xff]
  %v137 = vld [vmem:[#allocation2 + $0x30] sm:$0xff]
  %v138 = vld [vmem:[#allocation2 + $0x38] sm:$0xff]
  %v139 = vld [vmem:[#allocation2 + $0x40] sm:$0xff]
  %v140 = vld [vmem:[#allocation2 + $0x48] sm:$0xff]
  %v141 = vld [vmem:[#allocation2 + $0x50] sm:$0xff]
  %v142 = vld [vmem:[#allocation2 + $0x58] sm:$0xff]
  %v143 = vld [vmem:[#allocation2 + $0x60] sm:$0xff]
  %v144 = vld [vmem:[#allocation2 + $0x68] sm:$0xff]
  %v145 = vld [vmem:[#allocation2 + $0x70] sm:$0xff]
  %v146 = vld [vmem:[#allocation2 + $0x78] sm:$0xff]
  %v147 = vld [vmem:[#allocation2 + $0x80] sm:$0xff]
  %v148 = vld [vmem:[#allocation2 + $0x88] sm:$0xff]
  %v149 = vld [vmem:[#allocation2 + $0x90] sm:$0xff]
  %v150 = vld [vmem:[#allocation2 + $0x98] sm:$0xff]
  %v151 = vld [vmem:[#allocation2 + $0xa0] sm:$0xff]
  %v152 = vld [vmem:[#allocation2 + $0xa8] sm:$0xff]
  %v153 = vld [vmem:[#allocation2 + $0xb0] sm:$0xff]
  %v154 = vld [vmem:[#allocation2 + $0xb8] sm:$0xff]
  %v155 = vld [vmem:[#allocation2 + $0xc0] sm:$0xff]
  %v156 = vld [vmem:[#allocation2 + $0xc8] sm:$0xff]
  %v157 = vld [vmem:[#allocation2 + $0xd0] sm:$0xff]
  %v158 = vld [vmem:[#allocation2 + $0xd8] sm:$0xff]
  %v159 = vld [vmem:[#allocation2 + $0xe0] sm:$0xff]
  %v160 = vld [vmem:[#allocation2 + $0xe8] sm:$0xff]
  %v161 = vld [vmem:[#allocation2 + $0xf0] sm:$0xff]
  %v162 = vld [vmem:[#allocation2 + $0xf8] sm:$0xff]
  %v195 = vunpack.c.l.b16 %v51
  %v196 = vunpack.c.h.b16 %v51
  %v197 = vunpack.c.l.b16 %v52
  %v198 = vunpack.c.h.b16 %v52
  %v199 = vunpack.c.l.b16 %v53
  %v200 = vunpack.c.h.b16 %v53
  %v201 = vunpack.c.l.b16 %v54
  %v202 = vunpack.c.h.b16 %v54
  %v203 = vunpack.c.l.b16 %v55
  %v204 = vunpack.c.h.b16 %v55
  %v205 = vunpack.c.l.b16 %v56
  %v206 = vunpack.c.h.b16 %v56
  %v207 = vunpack.c.l.b16 %v57
  %v208 = vunpack.c.h.b16 %v57
  %v209 = vunpack.c.l.b16 %v58
  %v210 = vunpack.c.h.b16 %v58
  %v211 = vunpack.c.l.b16 %v59
  %v212 = vunpack.c.h.b16 %v59
  %v213 = vunpack.c.l.b16 %v60
  %v214 = vunpack.c.h.b16 %v60
  %v215 = vunpack.c.l.b16 %v61
  %v216 = vunpack.c.h.b16 %v61
  %v217 = vunpack.c.l.b16 %v62
  %v218 = vunpack.c.h.b16 %v62
  %v219 = vunpack.c.l.b16 %v63
  %v220 = vunpack.c.h.b16 %v63
  %v221 = vunpack.c.l.b16 %v64
  %v222 = vunpack.c.h.b16 %v64
  %v223 = vunpack.c.l.b16 %v65
  %v224 = vunpack.c.h.b16 %v65
  %v225 = vunpack.c.l.b16 %v66
  %v226 = vunpack.c.h.b16 %v66
  %v227 = vunpack.c.l.b16 %v67
  %v228 = vunpack.c.h.b16 %v67
  %v229 = vunpack.c.l.b16 %v68
  %v230 = vunpack.c.h.b16 %v68
  %v231 = vunpack.c.l.b16 %v69
  %v232 = vunpack.c.h.b16 %v69
  %v233 = vunpack.c.l.b16 %v70
  %v234 = vunpack.c.h.b16 %v70
  %v235 = vunpack.c.l.b16 %v71
  %v236 = vunpack.c.h.b16 %v71
  %v237 = vunpack.c.l.b16 %v72
  %v238 = vunpack.c.h.b16 %v72
  %v239 = vunpack.c.l.b16 %v73
  %v240 = vunpack.c.h.b16 %v73
  %v241 = vunpack.c.l.b16 %v74
  %v242 = vunpack.c.h.b16 %v74
  %v243 = vunpack.c.l.b16 %v75
  %v244 = vunpack.c.h.b16 %v75
  %v245 = vunpack.c.l.b16 %v76
  %v246 = vunpack.c.h.b16 %v76
  %v247 = vunpack.c.l.b16 %v77
  %v248 = vunpack.c.h.b16 %v77
  %v249 = vunpack.c.l.b16 %v78
  %v250 = vunpack.c.h.b16 %v78
  %v251 = vunpack.c.l.b16 %v79
  %v252 = vunpack.c.h.b16 %v79
  %v253 = vunpack.c.l.b16 %v80
  %v254 = vunpack.c.h.b16 %v80
  %v255 = vunpack.c.l.b16 %v81
  %v256 = vunpack.c.h.b16 %v81
  %v257 = vunpack.c.l.b16 %v82
  %v258 = vunpack.c.h.b16 %v82
  %v259 = vpack.c.b16 %v197, %v195
  %v260 = vpack.c.b16 %v198, %v196
  %v261 = vpack.c.b16 %v201, %v199
  %v262 = vpack.c.b16 %v202, %v200
  %v263 = vpack.c.b16 %v205, %v203
  %v264 = vpack.c.b16 %v206, %v204
  %v265 = vpack.c.b16 %v209, %v207
  %v266 = vpack.c.b16 %v210, %v208
  %v267 = vpack.c.b16 %v213, %v211
  %v268 = vpack.c.b16 %v214, %v212
  %v269 = vpack.c.b16 %v217, %v215
  %v270 = vpack.c.b16 %v218, %v216
  %v271 = vpack.c.b16 %v221, %v219
  %v272 = vpack.c.b16 %v222, %v220
  %v273 = vpack.c.b16 %v225, %v223
  %v274 = vpack.c.b16 %v226, %v224
  %v275 = vpack.c.b16 %v229, %v227
  %v276 = vpack.c.b16 %v230, %v228
  %v277 = vpack.c.b16 %v233, %v231
  %v278 = vpack.c.b16 %v234, %v232
  %v279 = vpack.c.b16 %v237, %v235
  %v280 = vpack.c.b16 %v238, %v236
  %v281 = vpack.c.b16 %v241, %v239
  %v282 = vpack.c.b16 %v242, %v240
  %v283 = vpack.c.b16 %v245, %v243
  %v284 = vpack.c.b16 %v246, %v244
  %v285 = vpack.c.b16 %v249, %v247
  %v286 = vpack.c.b16 %v250, %v248
  %v287 = vpack.c.b16 %v253, %v251
  %v288 = vpack.c.b16 %v254, %v252
  %v289 = vpack.c.b16 %v257, %v255
  %v290 = vpack.c.b16 %v258, %v256
  %323 = vmatprep.subr.bf16.mxu0 0
  %324 = vmatpush1.bf16.msra.mxu0 %v115
  %325 = vmatprep.subr.bf16.mxu0 0
  %326 = vmatpush1.bf16.msra.mxu0 %v116
  %327 = vmatprep.subr.bf16.mxu0 0
  %328 = vmatpush1.bf16.msra.mxu0 %v117
  %329 = vmatprep.subr.bf16.mxu0 0
  %330 = vmatpush1.bf16.msra.mxu0 %v118
  %331 = vmatprep.subr.bf16.mxu0 0
  %332 = vmatpush1.bf16.msra.mxu0 %v119
  %333 = vmatprep.subr.bf16.mxu0 0
  %334 = vmatpush1.bf16.msra.mxu0 %v120
  %335 = vmatprep.subr.bf16.mxu0 0
  %336 = vmatpush1.bf16.msra.mxu0 %v121
  %337 = vmatprep.subr.bf16.mxu0 0
  %338 = vmatpush1.bf16.msra.mxu0 %v122
  %339 = vmatprep.subr.bf16.mxu0 0
  %340 = vmatpush1.bf16.msra.mxu0 %v123
  %341 = vmatprep.subr.bf16.mxu0 0
  %342 = vmatpush1.bf16.msra.mxu0 %v124
  %343 = vmatprep.subr.bf16.mxu0 0
  %344 = vmatpush1.bf16.msra.mxu0 %v125
  %345 = vmatprep.subr.bf16.mxu0 0
  %346 = vmatpush1.bf16.msra.mxu0 %v126
  %347 = vmatprep.subr.bf16.mxu0 0
  %348 = vmatpush1.bf16.msra.mxu0 %v127
  %349 = vmatprep.subr.bf16.mxu0 0
  %350 = vmatpush1.bf16.msra.mxu0 %v128
  %351 = vmatprep.subr.bf16.mxu0 0
  %352 = vmatpush1.bf16.msra.mxu0 %v129
  %353 = vmatprep.subr.bf16.mxu0 0
  %354 = vmatpush1.bf16.msra.mxu0 %v130
  %355 = vmatprep.mubr.bf16.mxu0 %v260
  %356 = vmatmul.mubr.bf16.gmra.mrb[0].mxu0 %v259
  %v357 = vpop.f32.mrb[0].mxu0
  %v358 = vadd.f32 0.0, %v357
  %v359 = vpop.f32.mrb[0].mxu0
  %v360 = vpop.f32.mrb[0].mxu0
  %v361 = vadd.f32 0.0, %v360
  %v362 = vpop.f32.mrb[0].mxu0
  %363 = vmatprep.mubr.bf16.mxu0 %v262
  %364 = vmatmul.mubr.bf16.gmra.mrb[0].mxu0 %v261
  %v365 = vpop.f32.mrb[0].mxu0
  %v366 = vadd.f32 0.0, %v365
  %v367 = vpop.f32.mrb[0].mxu0
  %v368 = vpop.f32.mrb[0].mxu0
  %v369 = vadd.f32 0.0, %v368
  %v370 = vpop.f32.mrb[0].mxu0
  %371 = vmatprep.mubr.bf16.mxu0 %v264
  %372 = vmatmul.mubr.bf16.gmra.mrb[0].mxu0 %v263
  %v373 = vpop.f32.mrb[0].mxu0
  %v374 = vadd.f32 0.0, %v373
  %v375 = vpop.f32.mrb[0].mxu0
  %v376 = vpop.f32.mrb[0].mxu0
  %v377 = vadd.f32 0.0, %v376
  %v378 = vpop.f32.mrb[0].mxu0
  %379 = vmatprep.mubr.bf16.mxu0 %v266
  %380 = vmatmul.mubr.bf16.gmra.mrb[0].mxu0 %v265
  %v381 = vpop.f32.mrb[0].mxu0
  %v382 = vadd.f32 0.0, %v381
  %v383 = vpop.f32.mrb[0].mxu0
  %v384 = vpop.f32.mrb[0].mxu0
  %v385 = vadd.f32 0.0, %v384
  %v386 = vpop.f32.mrb[0].mxu0
  %387 = vmatprep.mubr.bf16.mxu0 %v268
  %388 = vmatmul.mubr.bf16.gmra.mrb[0].mxu0 %v267
  %v389 = vpop.f32.mrb[0].mxu0
  %v390 = vadd.f32 0.0, %v389
  %v391 = vpop.f32.mrb[0].mxu0
  %v392 = vpop.f32.mrb[0].mxu0
  %v393 = vadd.f32 0.0, %v392
  %v394 = vpop.f32.mrb[0].mxu0
  %395 = vmatprep.mubr.bf16.mxu0 %v270
  %396 = vmatmul.mubr.bf16.gmra.mrb[0].mxu0 %v269
  %v397 = vpop.f32.mrb[0].mxu0
  %v398 = vadd.f32 0.0, %v397
  %v399 = vpop.f32.mrb[0].mxu0
  %v400 = vpop.f32.mrb[0].mxu0
  %v401 = vadd.f32 0.0, %v400
  %v402 = vpop.f32.mrb[0].mxu0
  %403 = vmatprep.mubr.bf16.mxu0 %v272
  %404 = vmatmul.mubr.bf16.gmra.mrb[0].mxu0 %v271
  %v405 = vpop.f32.mrb[0].mxu0
  %v406 = vadd.f32 0.0, %v405
  %v407 = vpop.f32.mrb[0].mxu0
  %v408 = vpop.f32.mrb[0].mxu0
  %v409 = vadd.f32 0.0, %v408
  %v410 = vpop.f32.mrb[0].mxu0
  %411 = vmatprep.mubr.bf16.mxu0 %v274
  %412 = vmatmul.mubr.bf16.gmra.mrb[0].mxu0 %v273
  %v413 = vpop.f32.mrb[0].mxu0
  %v414 = vadd.f32 0.0, %v413
  %v415 = vpop.f32.mrb[0].mxu0
  %v416 = vpop.f32.mrb[0].mxu0
  %v417 = vadd.f32 0.0, %v416
  %v418 = vpop.f32.mrb[0].mxu0
  %419 = vmatprep.mubr.bf16.mxu0 %v276
  %420 = vmatmul.mubr.bf16.gmra.mrb[0].mxu0 %v275
  %v421 = vpop.f32.mrb[0].mxu0
  %v422 = vadd.f32 0.0, %v421
  %v423 = vpop.f32.mrb[0].mxu0
  %v424 = vpop.f32.mrb[0].mxu0
  %v425 = vadd.f32 0.0, %v424
  %v426 = vpop.f32.mrb[0].mxu0
  %427 = vmatprep.mubr.bf16.mxu0 %v278
  %428 = vmatmul.mubr.bf16.gmra.mrb[0].mxu0 %v277
  %v429 = vpop.f32.mrb[0].mxu0
  %v430 = vadd.f32 0.0, %v429
  %v431 = vpop.f32.mrb[0].mxu0
  %v432 = vpop.f32.mrb[0].mxu0
  %v433 = vadd.f32 0.0, %v432
  %v434 = vpop.f32.mrb[0].mxu0
  %435 = vmatprep.mubr.bf16.mxu0 %v280
  %436 = vmatmul.mubr.bf16.gmra.mrb[0].mxu0 %v279
  %v437 = vpop.f32.mrb[0].mxu0
  %v438 = vadd.f32 0.0, %v437
  %v439 = vpop.f32.mrb[0].mxu0
  %v440 = vpop.f32.mrb[0].mxu0
  %v441 = vadd.f32 0.0, %v440
  %v442 = vpop.f32.mrb[0].mxu0
  %443 = vmatprep.mubr.bf16.mxu0 %v282
  %444 = vmatmul.mubr.bf16.gmra.mrb[0].mxu0 %v281
  %v445 = vpop.f32.mrb[0].mxu0
  %v446 = vadd.f32 0.0, %v445
  %v447 = vpop.f32.mrb[0].mxu0
  %v448 = vpop.f32.mrb[0].mxu0
  %v449 = vadd.f32 0.0, %v448
  %v450 = vpop.f32.mrb[0].mxu0
  %451 = vmatprep.mubr.bf16.mxu0 %v284
  %452 = vmatmul.mubr.bf16.gmra.mrb[0].mxu0 %v283
  %v453 = vpop.f32.mrb[0].mxu0
  %v454 = vadd.f32 0.0, %v453
  %v455 = vpop.f32.mrb[0].mxu0
  %v456 = vpop.f32.mrb[0].mxu0
  %v457 = vadd.f32 0.0, %v456
  %v458 = vpop.f32.mrb[0].mxu0
  %459 = vmatprep.mubr.bf16.mxu0 %v286
  %460 = vmatmul.mubr.bf16.gmra.mrb[0].mxu0 %v285
  %v461 = vpop.f32.mrb[0].mxu0
  %v462 = vadd.f32 0.0, %v461
  %v463 = vpop.f32.mrb[0].mxu0
  %v464 = vpop.f32.mrb[0].mxu0
  %v465 = vadd.f32 0.0, %v464
  %v466 = vpop.f32.mrb[0].mxu0
  %467 = vmatprep.mubr.bf16.mxu0 %v288
  %468 = vmatmul.mubr.bf16.gmra.mrb[0].mxu0 %v287
  %v469 = vpop.f32.mrb[0].mxu0
  %v470 = vadd.f32 0.0, %v469
  %v471 = vpop.f32.mrb[0].mxu0
  %v472 = vpop.f32.mrb[0].mxu0
  %v473 = vadd.f32 0.0, %v472
  %v474 = vpop.f32.mrb[0].mxu0
  %475 = vmatprep.mubr.bf16.mxu0 %v290
  %476 = vmatmul.mubr.bf16.gmra.mrb[0].mxu0 %v289
  %v477 = vpop.f32.mrb[0].mxu0
  %v478 = vadd.f32 0.0, %v477
  %v479 = vpop.f32.mrb[0].mxu0
  %v480 = vpop.f32.mrb[0].mxu0
  %v481 = vadd.f32 0.0, %v480
  %v482 = vpop.f32.mrb[0].mxu0
  %483 = vdwg.mxu0
  %v484 = vadd.f32 %v131, %v358
  %v485 = vadd.f32 %v132, %v361
  %v486 = vadd.f32 %v133, %v366
  %v487 = vadd.f32 %v134, %v369
  %v488 = vadd.f32 %v135, %v374
  %v489 = vadd.f32 %v136, %v377
  %v490 = vadd.f32 %v137, %v382
  %v491 = vadd.f32 %v138, %v385
  %v492 = vadd.f32 %v139, %v390
  %v493 = vadd.f32 %v140, %v393
  %v494 = vadd.f32 %v141, %v398
  %v495 = vadd.f32 %v142, %v401
  %v496 = vadd.f32 %v143, %v406
  %v497 = vadd.f32 %v144, %v409
  %v498 = vadd.f32 %v145, %v414
  %v499 = vadd.f32 %v146, %v417
  %v500 = vadd.f32 %v147, %v422
  %v501 = vadd.f32 %v148, %v425
  %v502 = vadd.f32 %v149, %v430
  %v503 = vadd.f32 %v150, %v433
  %v504 = vadd.f32 %v151, %v438
  %v505 = vadd.f32 %v152, %v441
  %v506 = vadd.f32 %v153, %v446
  %v507 = vadd.f32 %v154, %v449
  %v508 = vadd.f32 %v155, %v454
  %v509 = vadd.f32 %v156, %v457
  %v510 = vadd.f32 %v157, %v462
  %v511 = vadd.f32 %v158, %v465
  %v512 = vadd.f32 %v159, %v470
  %v513 = vadd.f32 %v160, %v473
  %v514 = vadd.f32 %v161, %v478
  %v515 = vadd.f32 %v162, %v481
  %516 = vst [vmem:[#allocation2] sm:$0xff] %v484
  %517 = vst [vmem:[#allocation2 + $0x8] sm:$0xff] %v485
  %518 = vst [vmem:[#allocation2 + $0x10] sm:$0xff] %v486
  %519 = vst [vmem:[#allocation2 + $0x18] sm:$0xff] %v487
  %520 = vst [vmem:[#allocation2 + $0x20] sm:$0xff] %v488
  %521 = vst [vmem:[#allocation2 + $0x28] sm:$0xff] %v489
  %522 = vst [vmem:[#allocation2 + $0x30] sm:$0xff] %v490
  %523 = vst [vmem:[#allocation2 + $0x38] sm:$0xff] %v491
  %524 = vst [vmem:[#allocation2 + $0x40] sm:$0xff] %v492
  %525 = vst [vmem:[#allocation2 + $0x48] sm:$0xff] %v493
  %526 = vst [vmem:[#allocation2 + $0x50] sm:$0xff] %v494
  %527 = vst [vmem:[#allocation2 + $0x58] sm:$0xff] %v495
  %528 = vst [vmem:[#allocation2 + $0x60] sm:$0xff] %v496
  %529 = vst [vmem:[#allocation2 + $0x68] sm:$0xff] %v497
  %530 = vst [vmem:[#allocation2 + $0x70] sm:$0xff] %v498
  %531 = vst [vmem:[#allocation2 + $0x78] sm:$0xff] %v499
  %532 = vst [vmem:[#allocation2 + $0x80] sm:$0xff] %v500
  %533 = vst [vmem:[#allocation2 + $0x88] sm:$0xff] %v501
  %534 = vst [vmem:[#allocation2 + $0x90] sm:$0xff] %v502
  %535 = vst [vmem:[#allocation2 + $0x98] sm:$0xff] %v503
  %536 = vst [vmem:[#allocation2 + $0xa0] sm:$0xff] %v504
  %537 = vst [vmem:[#allocation2 + $0xa8] sm:$0xff] %v505
  %538 = vst [vmem:[#allocation2 + $0xb0] sm:$0xff] %v506
  %539 = vst [vmem:[#allocation2 + $0xb8] sm:$0xff] %v507
  %540 = vst [vmem:[#allocation2 + $0xc0] sm:$0xff] %v508
  %541 = vst [vmem:[#allocation2 + $0xc8] sm:$0xff] %v509
  %542 = vst [vmem:[#allocation2 + $0xd0] sm:$0xff] %v510
  %543 = vst [vmem:[#allocation2 + $0xd8] sm:$0xff] %v511
  %544 = vst [vmem:[#allocation2 + $0xe0] sm:$0xff] %v512
  %545 = vst [vmem:[#allocation2 + $0xe8] sm:$0xff] %v513
  %546 = vst [vmem:[#allocation2 + $0xf0] sm:$0xff] %v514
  %547 = vst [vmem:[#allocation2 + $0xf8] sm:$0xff] %v515
  // Predicated region
  $region18: #{sgae_forward.16} parent=0 // pred_check
    %p548 = pneg %p15
  $region19: #{sgae_forward.16} parent=0 // pred_check_branch
    %550 = sbr.rel (%p548) target = $region21
  $region20: #{sgae_forward.16} parent=0 // pred_region
    %v551 = vld [vmem:[#allocation2] sm:$0xff]
    %v552 = vld [vmem:[#allocation2 + $0x8] sm:$0xff]
    %v553 = vld [vmem:[#allocation2 + $0x10] sm:$0xff]
    %v554 = vld [vmem:[#allocation2 + $0x18] sm:$0xff]
    %v555 = vld [vmem:[#allocation2 + $0x20] sm:$0xff]
    %v556 = vld [vmem:[#allocation2 + $0x28] sm:$0xff]
    %v557 = vld [vmem:[#allocation2 + $0x30] sm:$0xff]
    %v558 = vld [vmem:[#allocation2 + $0x38] sm:$0xff]
    %v559 = vld [vmem:[#allocation2 + $0x40] sm:$0xff]
    %v560 = vld [vmem:[#allocation2 + $0x48] sm:$0xff]
    %v561 = vld [vmem:[#allocation2 + $0x50] sm:$0xff]
    %v562 = vld [vmem:[#allocation2 + $0x58] sm:$0xff]
    %v563 = vld [vmem:[#allocation2 + $0x60] sm:$0xff]
    %v564 = vld [vmem:[#allocation2 + $0x68] sm:$0xff]
    %v565 = vld [vmem:[#allocation2 + $0x70] sm:$0xff]
    %v566 = vld [vmem:[#allocation2 + $0x78] sm:$0xff]
    %v567 = vld [vmem:[#allocation2 + $0x80] sm:$0xff]
    %v568 = vld [vmem:[#allocation2 + $0x88] sm:$0xff]
    %v569 = vld [vmem:[#allocation2 + $0x90] sm:$0xff]
    %v570 = vld [vmem:[#allocation2 + $0x98] sm:$0xff]
    %v571 = vld [vmem:[#allocation2 + $0xa0] sm:$0xff]
    %v572 = vld [vmem:[#allocation2 + $0xa8] sm:$0xff]
    %v573 = vld [vmem:[#allocation2 + $0xb0] sm:$0xff]
    %v574 = vld [vmem:[#allocation2 + $0xb8] sm:$0xff]
    %v575 = vld [vmem:[#allocation2 + $0xc0] sm:$0xff]
    %v576 = vld [vmem:[#allocation2 + $0xc8] sm:$0xff]
    %v577 = vld [vmem:[#allocation2 + $0xd0] sm:$0xff]
    %v578 = vld [vmem:[#allocation2 + $0xd8] sm:$0xff]
    %v579 = vld [vmem:[#allocation2 + $0xe0] sm:$0xff]
    %v580 = vld [vmem:[#allocation2 + $0xe8] sm:$0xff]
    %v581 = vld [vmem:[#allocation2 + $0xf0] sm:$0xff]
    %v582 = vld [vmem:[#allocation2 + $0xf8] sm:$0xff]
    %v583 = vld [vmem:[%s2] sm:$0x1]
    %v585 = vlaneseq
    %v586 = vshrl.u32 %v585, 7
    %v587 = vsub.s32 0, %v586
    %v588 = vrot.slane %v583, %v587
    %v590 = vadd.f32 %v551, %v588
    %v591 = vadd.f32 %v552, %v588
    %v592 = vadd.f32 %v553, %v588
    %v593 = vadd.f32 %v554, %v588
    %v594 = vadd.f32 %v555, %v588
    %v595 = vadd.f32 %v556, %v588
    %v596 = vadd.f32 %v557, %v588
    %v597 = vadd.f32 %v558, %v588
    %v598 = vadd.f32 %v559, %v588
    %v599 = vadd.f32 %v560, %v588
    %v600 = vadd.f32 %v561, %v588
    %v601 = vadd.f32 %v562, %v588
    %v602 = vadd.f32 %v563, %v588
    %v603 = vadd.f32 %v564, %v588
    %v604 = vadd.f32 %v565, %v588
    %v605 = vadd.f32 %v566, %v588
    %v606 = vadd.f32 %v567, %v588
    %v607 = vadd.f32 %v568, %v588
    %v608 = vadd.f32 %v569, %v588
    %v609 = vadd.f32 %v570, %v588
    %v610 = vadd.f32 %v571, %v588
    %v611 = vadd.f32 %v572, %v588
    %v612 = vadd.f32 %v573, %v588
    %v613 = vadd.f32 %v574, %v588
    %v614 = vadd.f32 %v575, %v588
    %v615 = vadd.f32 %v576, %v588
    %v616 = vadd.f32 %v577, %v588
    %v617 = vadd.f32 %v578, %v588
    %v618 = vadd.f32 %v579, %v588
    %v619 = vadd.f32 %v580, %v588
    %v620 = vadd.f32 %v581, %v588
    %v621 = vadd.f32 %v582, %v588
    %622 = vst [vmem:[%s3] sm:$0xff] %v590
    %623 = vst [vmem:[%s3 + $0x8] sm:$0xff] %v591
    %624 = vst [vmem:[%s3 + $0x10] sm:$0xff] %v592
    %625 = vst [vmem:[%s3 + $0x18] sm:$0xff] %v593
    %626 = vst [vmem:[%s3 + $0x20] sm:$0xff] %v594
    %627 = vst [vmem:[%s3 + $0x28] sm:$0xff] %v595
    %628 = vst [vmem:[%s3 + $0x30] sm:$0xff] %v596
    %629 = vst [vmem:[%s3 + $0x38] sm:$0xff] %v597
    %630 = vst [vmem:[%s3 + $0x40] sm:$0xff] %v598
    %631 = vst [vmem:[%s3 + $0x48] sm:$0xff] %v599
    %632 = vst [vmem:[%s3 + $0x50] sm:$0xff] %v600
    %633 = vst [vmem:[%s3 + $0x58] sm:$0xff] %v601
    %634 = vst [vmem:[%s3 + $0x60] sm:$0xff] %v602
    %635 = vst [vmem:[%s3 + $0x68] sm:$0xff] %v603
    %636 = vst [vmem:[%s3 + $0x70] sm:$0xff] %v604
    %637 = vst [vmem:[%s3 + $0x78] sm:$0xff] %v605
    %638 = vst [vmem:[%s3 + $0x80] sm:$0xff] %v606
    %639 = vst [vmem:[%s3 + $0x88] sm:$0xff] %v607
    %640 = vst [vmem:[%s3 + $0x90] sm:$0xff] %v608
    %641 = vst [vmem:[%s3 + $0x98] sm:$0xff] %v609
    %642 = vst [vmem:[%s3 + $0xa0] sm:$0xff] %v610
    %643 = vst [vmem:[%s3 + $0xa8] sm:$0xff] %v611
    %644 = vst [vmem:[%s3 + $0xb0] sm:$0xff] %v612
    %645 = vst [vmem:[%s3 + $0xb8] sm:$0xff] %v613
    %646 = vst [vmem:[%s3 + $0xc0] sm:$0xff] %v614
    %647 = vst [vmem:[%s3 + $0xc8] sm:$0xff] %v615
    %648 = vst [vmem:[%s3 + $0xd0] sm:$0xff] %v616
    %649 = vst [vmem:[%s3 + $0xd8] sm:$0xff] %v617
    %650 = vst [vmem:[%s3 + $0xe0] sm:$0xff] %v618
    %651 = vst [vmem:[%s3 + $0xe8] sm:$0xff] %v619
    %652 = vst [vmem:[%s3 + $0xf0] sm:$0xff] %v620
    %653 = vst [vmem:[%s3 + $0xf8] sm:$0xff] %v621
  $region21: #{sgae_forward.16} parent=0 // pred_fallthru
    _
  // Predicated region
  $region22: #{sgae_forward.16} parent=0 // pred_check
    _
  $region23: #{sgae_forward.16} parent=0 // pred_check_branch
    %655 = sbr.rel (0) target = $region25
  $region24: #{sgae_forward.16} parent=0 // pred_region
    _
  $region25: #{sgae_forward.16} parent=0 // pred_fallthru
    _
  // Predicated region
  $region26: #{sgae_forward.16} parent=0 // pred_check
    _
  $region27: #{sgae_forward.16} parent=0 // pred_check_branch
    %657 = sbr.rel (0) target = $region29
  $region28: #{sgae_forward.16} parent=0 // pred_region
    _
  $region29: #{sgae_forward.16} parent=0 // pred_fallthru
    _

// kernel: sgae_forward.14
$region0: #{sgae_forward.14}
  #allocation0 [shape = 'u32[]', space=smem, size = 0x4, offset = 0x4, fixed_abs, tag = 'smem constant byte address 0x4 - core index']
  #allocation1 [shape = 'u32[144,128]{1,0:T(1,128)}', space=vmem, size = 0x12000, scoped, tag = 'internal scratch']
  #allocation2 [shape = 'f32[256,128]{1,0:T(8,128)}', space=vmem, size = 0x20000, scoped, tag = 'scratch operand']
  %s0 = inlined_call_operand.vmem [shape: bf16[256,256], index: 0, kind: input, shape index: {}]
  %s1 = inlined_call_operand.vmem [shape: f32[256,128], index: 1, kind: input, shape index: {}]
  %s2 = inlined_call_operand.vmem [shape: f32[1,128], index: 2, kind: input, shape index: {}]
  %s3 = inlined_call_operand.vmem [shape: f32[256,128], index: 3, kind: output, shape index: {}]
  %s4 = sld [smem:[#allocation0]]
  $region30: #{sgae_forward.14} parent=0
    _
  %s6 = ssub.s32 1, %s4
  %s7 = scalar_select 0, %s6, %s4
  // Predicated region
  $region2: #{sgae_forward.14} parent=0 // pred_check
    _
  $region3: #{sgae_forward.14} parent=0 // pred_check_branch
    %9 = sbr.rel (0) target = $region5
  $region4: #{sgae_forward.14} parent=0 // pred_region
    _
  $region5: #{sgae_forward.14} parent=0 // pred_fallthru
    _
  // Predicated region
  $region6: #{sgae_forward.14} parent=0 // pred_check
    _
  $region7: #{sgae_forward.14} parent=0 // pred_check_branch
    %11 = sbr.rel (0) target = $region9
  $region8: #{sgae_forward.14} parent=0 // pred_region
    _
  $region9: #{sgae_forward.14} parent=0 // pred_fallthru
    _
  // Predicated region
  $region10: #{sgae_forward.14} parent=0 // pred_check
    _
  $region11: #{sgae_forward.14} parent=0 // pred_check_branch
    %13 = sbr.rel (0) target = $region13
  $region12: #{sgae_forward.14} parent=0 // pred_region
    _
  $region13: #{sgae_forward.14} parent=0 // pred_fallthru
    _
  %p15 = scmp.eq.s32.totalorder 0, 0
  // Predicated region
  $region14: #{sgae_forward.14} parent=0 // pred_check
    %p16 = pneg %p15
  $region15: #{sgae_forward.14} parent=0 // pred_check_branch
    %18 = sbr.rel (%p16) target = $region17
  $region16: #{sgae_forward.14} parent=0 // pred_region
    %19 = vst [vmem:[#allocation2] sm:$0xff] 0.0
    %20 = vst [vmem:[#allocation2 + $0x8] sm:$0xff] 0.0
    %21 = vst [vmem:[#allocation2 + $0x10] sm:$0xff] 0.0
    %22 = vst [vmem:[#allocation2 + $0x18] sm:$0xff] 0.0
    %23 = vst [vmem:[#allocation2 + $0x20] sm:$0xff] 0.0
    %24 = vst [vmem:[#allocation2 + $0x28] sm:$0xff] 0.0
    %25 = vst [vmem:[#allocation2 + $0x30] sm:$0xff] 0.0
    %26 = vst [vmem:[#allocation2 + $0x38] sm:$0xff] 0.0
    %27 = vst [vmem:[#allocation2 + $0x40] sm:$0xff] 0.0
    %28 = vst [vmem:[#allocation2 + $0x48] sm:$0xff] 0.0
    %29 = vst [vmem:[#allocation2 + $0x50] sm:$0xff] 0.0
    %30 = vst [vmem:[#allocation2 + $0x58] sm:$0xff] 0.0
    %31 = vst [vmem:[#allocation2 + $0x60] sm:$0xff] 0.0
    %32 = vst [vmem:[#allocation2 + $0x68] sm:$0xff] 0.0
    %33 = vst [vmem:[#allocation2 + $0x70] sm:$0xff] 0.0
    %34 = vst [vmem:[#allocation2 + $0x78] sm:$0xff] 0.0
    %35 = vst [vmem:[#allocation2 + $0x80] sm:$0xff] 0.0
    %36 = vst [vmem:[#allocation2 + $0x88] sm:$0xff] 0.0
    %37 = vst [vmem:[#allocation2 + $0x90] sm:$0xff] 0.0
    %38 = vst [vmem:[#allocation2 + $0x98] sm:$0xff] 0.0
    %39 = vst [vmem:[#allocation2 + $0xa0] sm:$0xff] 0.0
    %40 = vst [vmem:[#allocation2 + $0xa8] sm:$0xff] 0.0
    %41 = vst [vmem:[#allocation2 + $0xb0] sm:$0xff] 0.0
    %42 = vst [vmem:[#allocation2 + $0xb8] sm:$0xff] 0.0
    %43 = vst [vmem:[#allocation2 + $0xc0] sm:$0xff] 0.0
    %44 = vst [vmem:[#allocation2 + $0xc8] sm:$0xff] 0.0
    %45 = vst [vmem:[#allocation2 + $0xd0] sm:$0xff] 0.0
    %46 = vst [vmem:[#allocation2 + $0xd8] sm:$0xff] 0.0
    %47 = vst [vmem:[#allocation2 + $0xe0] sm:$0xff] 0.0
    %48 = vst [vmem:[#allocation2 + $0xe8] sm:$0xff] 0.0
    %49 = vst [vmem:[#allocation2 + $0xf0] sm:$0xff] 0.0
    %50 = vst [vmem:[#allocation2 + $0xf8] sm:$0xff] 0.0
  $region17: #{sgae_forward.14} parent=0 // pred_fallthru
    _
  %v51 = vld [vmem:[%s0] sm:$0xff]
  %v52 = vld [vmem:[%s0 + $0x8] sm:$0xff]
  %v53 = vld [vmem:[%s0 + $0x10] sm:$0xff]
  %v54 = vld [vmem:[%s0 + $0x18] sm:$0xff]
  %v55 = vld [vmem:[%s0 + $0x20] sm:$0xff]
  %v56 = vld [vmem:[%s0 + $0x28] sm:$0xff]
  %v57 = vld [vmem:[%s0 + $0x30] sm:$0xff]
  %v58 = vld [vmem:[%s0 + $0x38] sm:$0xff]
  %v59 = vld [vmem:[%s0 + $0x40] sm:$0xff]
  %v60 = vld [vmem:[%s0 + $0x48] sm:$0xff]
  %v61 = vld [vmem:[%s0 + $0x50] sm:$0xff]
  %v62 = vld [vmem:[%s0 + $0x58] sm:$0xff]
  %v63 = vld [vmem:[%s0 + $0x60] sm:$0xff]
  %v64 = vld [vmem:[%s0 + $0x68] sm:$0xff]
  %v65 = vld [vmem:[%s0 + $0x70] sm:$0xff]
  %v66 = vld [vmem:[%s0 + $0x78] sm:$0xff]
  %v67 = vld [vmem:[%s0 + $0x80] sm:$0xff]
  %v68 = vld [vmem:[%s0 + $0x88] sm:$0xff]
  %v69 = vld [vmem:[%s0 + $0x90] sm:$0xff]
  %v70 = vld [vmem:[%s0 + $0x98] sm:$0xff]
  %v71 = vld [vmem:[%s0 + $0xa0] sm:$0xff]
  %v72 = vld [vmem:[%s0 + $0xa8] sm:$0xff]
  %v73 = vld [vmem:[%s0 + $0xb0] sm:$0xff]
  %v74 = vld [vmem:[%s0 + $0xb8] sm:$0xff]
  %v75 = vld [vmem:[%s0 + $0xc0] sm:$0xff]
  %v76 = vld [vmem:[%s0 + $0xc8] sm:$0xff]
  %v77 = vld [vmem:[%s0 + $0xd0] sm:$0xff]
  %v78 = vld [vmem:[%s0 + $0xd8] sm:$0xff]
  %v79 = vld [vmem:[%s0 + $0xe0] sm:$0xff]
  %v80 = vld [vmem:[%s0 + $0xe8] sm:$0xff]
  %v81 = vld [vmem:[%s0 + $0xf0] sm:$0xff]
  %v82 = vld [vmem:[%s0 + $0xf8] sm:$0xff]
  %v83 = vld [vmem:[%s1] sm:$0xff]
  %v84 = vld [vmem:[%s1 + $0x8] sm:$0xff]
  %v85 = vld [vmem:[%s1 + $0x10] sm:$0xff]
  %v86 = vld [vmem:[%s1 + $0x18] sm:$0xff]
  %v87 = vld [vmem:[%s1 + $0x20] sm:$0xff]
  %v88 = vld [vmem:[%s1 + $0x28] sm:$0xff]
  %v89 = vld [vmem:[%s1 + $0x30] sm:$0xff]
  %v90 = vld [vmem:[%s1 + $0x38] sm:$0xff]
  %v91 = vld [vmem:[%s1 + $0x40] sm:$0xff]
  %v92 = vld [vmem:[%s1 + $0x48] sm:$0xff]
  %v93 = vld [vmem:[%s1 + $0x50] sm:$0xff]
  %v94 = vld [vmem:[%s1 + $0x58] sm:$0xff]
  %v95 = vld [vmem:[%s1 + $0x60] sm:$0xff]
  %v96 = vld [vmem:[%s1 + $0x68] sm:$0xff]
  %v97 = vld [vmem:[%s1 + $0x70] sm:$0xff]
  %v98 = vld [vmem:[%s1 + $0x78] sm:$0xff]
  %v99 = vld [vmem:[%s1 + $0x80] sm:$0xff]
  %v100 = vld [vmem:[%s1 + $0x88] sm:$0xff]
  %v101 = vld [vmem:[%s1 + $0x90] sm:$0xff]
  %v102 = vld [vmem:[%s1 + $0x98] sm:$0xff]
  %v103 = vld [vmem:[%s1 + $0xa0] sm:$0xff]
  %v104 = vld [vmem:[%s1 + $0xa8] sm:$0xff]
  %v105 = vld [vmem:[%s1 + $0xb0] sm:$0xff]
  %v106 = vld [vmem:[%s1 + $0xb8] sm:$0xff]
  %v107 = vld [vmem:[%s1 + $0xc0] sm:$0xff]
  %v108 = vld [vmem:[%s1 + $0xc8] sm:$0xff]
  %v109 = vld [vmem:[%s1 + $0xd0] sm:$0xff]
  %v110 = vld [vmem:[%s1 + $0xd8] sm:$0xff]
  %v111 = vld [vmem:[%s1 + $0xe0] sm:$0xff]
  %v112 = vld [vmem:[%s1 + $0xe8] sm:$0xff]
  %v113 = vld [vmem:[%s1 + $0xf0] sm:$0xff]
  %v114 = vld [vmem:[%s1 + $0xf8] sm:$0xff]
  %v115 = vpack.c.bf16 %v84, %v83
  %v116 = vpack.c.bf16 %v86, %v85
  %v117 = vpack.c.bf16 %v88, %v87
  %v118 = vpack.c.bf16 %v90, %v89
  %v119 = vpack.c.bf16 %v92, %v91
  %v120 = vpack.c.bf16 %v94, %v93
  %v121 = vpack.c.bf16 %v96, %v95
  %v122 = vpack.c.bf16 %v98, %v97
  %v123 = vpack.c.bf16 %v100, %v99
  %v124 = vpack.c.bf16 %v102, %v101
  %v125 = vpack.c.bf16 %v104, %v103
  %v126 = vpack.c.bf16 %v106, %v105
  %v127 = vpack.c.bf16 %v108, %v107
  %v128 = vpack.c.bf16 %v110, %v109
  %v129 = vpack.c.bf16 %v112, %v111
  %v130 = vpack.c.bf16 %v114, %v113
  %v131 = vld [vmem:[#allocation2] sm:$0xff]
  %v132 = vld [vmem:[#allocation2 + $0x8] sm:$0xff]
  %v133 = vld [vmem:[#allocation2 + $0x10] sm:$0xff]
  %v134 = vld [vmem:[#allocation2 + $0x18] sm:$0xff]
  %v135 = vld [vmem:[#allocation2 + $0x20] sm:$0xff]
  %v136 = vld [vmem:[#allocation2 + $0x28] sm:$0xff]
  %v137 = vld [vmem:[#allocation2 + $0x30] sm:$0xff]
  %v138 = vld [vmem:[#allocation2 + $0x38] sm:$0xff]
  %v139 = vld [vmem:[#allocation2 + $0x40] sm:$0xff]
  %v140 = vld [vmem:[#allocation2 + $0x48] sm:$0xff]
  %v141 = vld [vmem:[#allocation2 + $0x50] sm:$0xff]
  %v142 = vld [vmem:[#allocation2 + $0x58] sm:$0xff]
  %v143 = vld [vmem:[#allocation2 + $0x60] sm:$0xff]
  %v144 = vld [vmem:[#allocation2 + $0x68] sm:$0xff]
  %v145 = vld [vmem:[#allocation2 + $0x70] sm:$0xff]
  %v146 = vld [vmem:[#allocation2 + $0x78] sm:$0xff]
  %v147 = vld [vmem:[#allocation2 + $0x80] sm:$0xff]
  %v148 = vld [vmem:[#allocation2 + $0x88] sm:$0xff]
  %v149 = vld [vmem:[#allocation2 + $0x90] sm:$0xff]
  %v150 = vld [vmem:[#allocation2 + $0x98] sm:$0xff]
  %v151 = vld [vmem:[#allocation2 + $0xa0] sm:$0xff]
  %v152 = vld [vmem:[#allocation2 + $0xa8] sm:$0xff]
  %v153 = vld [vmem:[#allocation2 + $0xb0] sm:$0xff]
  %v154 = vld [vmem:[#allocation2 + $0xb8] sm:$0xff]
  %v155 = vld [vmem:[#allocation2 + $0xc0] sm:$0xff]
  %v156 = vld [vmem:[#allocation2 + $0xc8] sm:$0xff]
  %v157 = vld [vmem:[#allocation2 + $0xd0] sm:$0xff]
  %v158 = vld [vmem:[#allocation2 + $0xd8] sm:$0xff]
  %v159 = vld [vmem:[#allocation2 + $0xe0] sm:$0xff]
  %v160 = vld [vmem:[#allocation2 + $0xe8] sm:$0xff]
  %v161 = vld [vmem:[#allocation2 + $0xf0] sm:$0xff]
  %v162 = vld [vmem:[#allocation2 + $0xf8] sm:$0xff]
  %v195 = vunpack.c.l.b16 %v51
  %v196 = vunpack.c.h.b16 %v51
  %v197 = vunpack.c.l.b16 %v52
  %v198 = vunpack.c.h.b16 %v52
  %v199 = vunpack.c.l.b16 %v53
  %v200 = vunpack.c.h.b16 %v53
  %v201 = vunpack.c.l.b16 %v54
  %v202 = vunpack.c.h.b16 %v54
  %v203 = vunpack.c.l.b16 %v55
  %v204 = vunpack.c.h.b16 %v55
  %v205 = vunpack.c.l.b16 %v56
  %v206 = vunpack.c.h.b16 %v56
  %v207 = vunpack.c.l.b16 %v57
  %v208 = vunpack.c.h.b16 %v57
  %v209 = vunpack.c.l.b16 %v58
  %v210 = vunpack.c.h.b16 %v58
  %v211 = vunpack.c.l.b16 %v59
  %v212 = vunpack.c.h.b16 %v59
  %v213 = vunpack.c.l.b16 %v60
  %v214 = vunpack.c.h.b16 %v60
  %v215 = vunpack.c.l.b16 %v61
  %v216 = vunpack.c.h.b16 %v61
  %v217 = vunpack.c.l.b16 %v62
  %v218 = vunpack.c.h.b16 %v62
  %v219 = vunpack.c.l.b16 %v63
  %v220 = vunpack.c.h.b16 %v63
  %v221 = vunpack.c.l.b16 %v64
  %v222 = vunpack.c.h.b16 %v64
  %v223 = vunpack.c.l.b16 %v65
  %v224 = vunpack.c.h.b16 %v65
  %v225 = vunpack.c.l.b16 %v66
  %v226 = vunpack.c.h.b16 %v66
  %v227 = vunpack.c.l.b16 %v67
  %v228 = vunpack.c.h.b16 %v67
  %v229 = vunpack.c.l.b16 %v68
  %v230 = vunpack.c.h.b16 %v68
  %v231 = vunpack.c.l.b16 %v69
  %v232 = vunpack.c.h.b16 %v69
  %v233 = vunpack.c.l.b16 %v70
  %v234 = vunpack.c.h.b16 %v70
  %v235 = vunpack.c.l.b16 %v71
  %v236 = vunpack.c.h.b16 %v71
  %v237 = vunpack.c.l.b16 %v72
  %v238 = vunpack.c.h.b16 %v72
  %v239 = vunpack.c.l.b16 %v73
  %v240 = vunpack.c.h.b16 %v73
  %v241 = vunpack.c.l.b16 %v74
  %v242 = vunpack.c.h.b16 %v74
  %v243 = vunpack.c.l.b16 %v75
  %v244 = vunpack.c.h.b16 %v75
  %v245 = vunpack.c.l.b16 %v76
  %v246 = vunpack.c.h.b16 %v76
  %v247 = vunpack.c.l.b16 %v77
  %v248 = vunpack.c.h.b16 %v77
  %v249 = vunpack.c.l.b16 %v78
  %v250 = vunpack.c.h.b16 %v78
  %v251 = vunpack.c.l.b16 %v79
  %v252 = vunpack.c.h.b16 %v79
  %v253 = vunpack.c.l.b16 %v80
  %v254 = vunpack.c.h.b16 %v80
  %v255 = vunpack.c.l.b16 %v81
  %v256 = vunpack.c.h.b16 %v81
  %v257 = vunpack.c.l.b16 %v82
  %v258 = vunpack.c.h.b16 %v82
  %v259 = vpack.c.b16 %v197, %v195
  %v260 = vpack.c.b16 %v198, %v196
  %v261 = vpack.c.b16 %v201, %v199
  %v262 = vpack.c.b16 %v202, %v200
  %v263 = vpack.c.b16 %v205, %v203
  %v264 = vpack.c.b16 %v206, %v204
  %v265 = vpack.c.b16 %v209, %v207
  %v266 = vpack.c.b16 %v210, %v208
  %v267 = vpack.c.b16 %v213, %v211
  %v268 = vpack.c.b16 %v214, %v212
  %v269 = vpack.c.b16 %v217, %v215
  %v270 = vpack.c.b16 %v218, %v216
  %v271 = vpack.c.b16 %v221, %v219
  %v272 = vpack.c.b16 %v222, %v220
  %v273 = vpack.c.b16 %v225, %v223
  %v274 = vpack.c.b16 %v226, %v224
  %v275 = vpack.c.b16 %v229, %v227
  %v276 = vpack.c.b16 %v230, %v228
  %v277 = vpack.c.b16 %v233, %v231
  %v278 = vpack.c.b16 %v234, %v232
  %v279 = vpack.c.b16 %v237, %v235
  %v280 = vpack.c.b16 %v238, %v236
  %v281 = vpack.c.b16 %v241, %v239
  %v282 = vpack.c.b16 %v242, %v240
  %v283 = vpack.c.b16 %v245, %v243
  %v284 = vpack.c.b16 %v246, %v244
  %v285 = vpack.c.b16 %v249, %v247
  %v286 = vpack.c.b16 %v250, %v248
  %v287 = vpack.c.b16 %v253, %v251
  %v288 = vpack.c.b16 %v254, %v252
  %v289 = vpack.c.b16 %v257, %v255
  %v290 = vpack.c.b16 %v258, %v256
  %323 = vmatprep.subr.bf16.mxu0 0
  %324 = vmatpush1.bf16.msra.mxu0 %v115
  %325 = vmatprep.subr.bf16.mxu0 0
  %326 = vmatpush1.bf16.msra.mxu0 %v116
  %327 = vmatprep.subr.bf16.mxu0 0
  %328 = vmatpush1.bf16.msra.mxu0 %v117
  %329 = vmatprep.subr.bf16.mxu0 0
  %330 = vmatpush1.bf16.msra.mxu0 %v118
  %331 = vmatprep.subr.bf16.mxu0 0
  %332 = vmatpush1.bf16.msra.mxu0 %v119
  %333 = vmatprep.subr.bf16.mxu0 0
  %334 = vmatpush1.bf16.msra.mxu0 %v120
  %335 = vmatprep.subr.bf16.mxu0 0
  %336 = vmatpush1.bf16.msra.mxu0 %v121
  %337 = vmatprep.subr.bf16.mxu0 0
  %338 = vmatpush1.bf16.msra.mxu0 %v122
  %339 = vmatprep.subr.bf16.mxu0 0
  %340 = vmatpush1.bf16.msra.mxu0 %v123
  %341 = vmatprep.subr.bf16.mxu0 0
  %342 = vmatpush1.bf16.msra.mxu0 %v124
  %343 = vmatprep.subr.bf16.mxu0 0
  %344 = vmatpush1.bf16.msra.mxu0 %v125
  %345 = vmatprep.subr.bf16.mxu0 0
  %346 = vmatpush1.bf16.msra.mxu0 %v126
  %347 = vmatprep.subr.bf16.mxu0 0
  %348 = vmatpush1.bf16.msra.mxu0 %v127
  %349 = vmatprep.subr.bf16.mxu0 0
  %350 = vmatpush1.bf16.msra.mxu0 %v128
  %351 = vmatprep.subr.bf16.mxu0 0
  %352 = vmatpush1.bf16.msra.mxu0 %v129
  %353 = vmatprep.subr.bf16.mxu0 0
  %354 = vmatpush1.bf16.msra.mxu0 %v130
  %355 = vmatprep.mubr.bf16.mxu0 %v260
  %356 = vmatmul.mubr.bf16.gmra.mrb[0].mxu0 %v259
  %v357 = vpop.f32.mrb[0].mxu0
  %v358 = vadd.f32 0.0, %v357
  %v359 = vpop.f32.mrb[0].mxu0
  %v360 = vpop.f32.mrb[0].mxu0
  %v361 = vadd.f32 0.0, %v360
  %v362 = vpop.f32.mrb[0].mxu0
  %363 = vmatprep.mubr.bf16.mxu0 %v262
  %364 = vmatmul.mubr.bf16.gmra.mrb[0].mxu0 %v261
  %v365 = vpop.f32.mrb[0].mxu0
  %v366 = vadd.f32 0.0, %v365
  %v367 = vpop.f32.mrb[0].mxu0
  %v368 = vpop.f32.mrb[0].mxu0
  %v369 = vadd.f32 0.0, %v368
  %v370 = vpop.f32.mrb[0].mxu0
  %371 = vmatprep.mubr.bf16.mxu0 %v264
  %372 = vmatmul.mubr.bf16.gmra.mrb[0].mxu0 %v263
  %v373 = vpop.f32.mrb[0].mxu0
  %v374 = vadd.f32 0.0, %v373
  %v375 = vpop.f32.mrb[0].mxu0
  %v376 = vpop.f32.mrb[0].mxu0
  %v377 = vadd.f32 0.0, %v376
  %v378 = vpop.f32.mrb[0].mxu0
  %379 = vmatprep.mubr.bf16.mxu0 %v266
  %380 = vmatmul.mubr.bf16.gmra.mrb[0].mxu0 %v265
  %v381 = vpop.f32.mrb[0].mxu0
  %v382 = vadd.f32 0.0, %v381
  %v383 = vpop.f32.mrb[0].mxu0
  %v384 = vpop.f32.mrb[0].mxu0
  %v385 = vadd.f32 0.0, %v384
  %v386 = vpop.f32.mrb[0].mxu0
  %387 = vmatprep.mubr.bf16.mxu0 %v268
  %388 = vmatmul.mubr.bf16.gmra.mrb[0].mxu0 %v267
  %v389 = vpop.f32.mrb[0].mxu0
  %v390 = vadd.f32 0.0, %v389
  %v391 = vpop.f32.mrb[0].mxu0
  %v392 = vpop.f32.mrb[0].mxu0
  %v393 = vadd.f32 0.0, %v392
  %v394 = vpop.f32.mrb[0].mxu0
  %395 = vmatprep.mubr.bf16.mxu0 %v270
  %396 = vmatmul.mubr.bf16.gmra.mrb[0].mxu0 %v269
  %v397 = vpop.f32.mrb[0].mxu0
  %v398 = vadd.f32 0.0, %v397
  %v399 = vpop.f32.mrb[0].mxu0
  %v400 = vpop.f32.mrb[0].mxu0
  %v401 = vadd.f32 0.0, %v400
  %v402 = vpop.f32.mrb[0].mxu0
  %403 = vmatprep.mubr.bf16.mxu0 %v272
  %404 = vmatmul.mubr.bf16.gmra.mrb[0].mxu0 %v271
  %v405 = vpop.f32.mrb[0].mxu0
  %v406 = vadd.f32 0.0, %v405
  %v407 = vpop.f32.mrb[0].mxu0
  %v408 = vpop.f32.mrb[0].mxu0
  %v409 = vadd.f32 0.0, %v408
  %v410 = vpop.f32.mrb[0].mxu0
  %411 = vmatprep.mubr.bf16.mxu0 %v274
  %412 = vmatmul.mubr.bf16.gmra.mrb[0].mxu0 %v273
  %v413 = vpop.f32.mrb[0].mxu0
  %v414 = vadd.f32 0.0, %v413
  %v415 = vpop.f32.mrb[0].mxu0
  %v416 = vpop.f32.mrb[0].mxu0
  %v417 = vadd.f32 0.0, %v416
  %v418 = vpop.f32.mrb[0].mxu0
  %419 = vmatprep.mubr.bf16.mxu0 %v276
  %420 = vmatmul.mubr.bf16.gmra.mrb[0].mxu0 %v275
  %v421 = vpop.f32.mrb[0].mxu0
  %v422 = vadd.f32 0.0, %v421
  %v423 = vpop.f32.mrb[0].mxu0
  %v424 = vpop.f32.mrb[0].mxu0
  %v425 = vadd.f32 0.0, %v424
  %v426 = vpop.f32.mrb[0].mxu0
  %427 = vmatprep.mubr.bf16.mxu0 %v278
  %428 = vmatmul.mubr.bf16.gmra.mrb[0].mxu0 %v277
  %v429 = vpop.f32.mrb[0].mxu0
  %v430 = vadd.f32 0.0, %v429
  %v431 = vpop.f32.mrb[0].mxu0
  %v432 = vpop.f32.mrb[0].mxu0
  %v433 = vadd.f32 0.0, %v432
  %v434 = vpop.f32.mrb[0].mxu0
  %435 = vmatprep.mubr.bf16.mxu0 %v280
  %436 = vmatmul.mubr.bf16.gmra.mrb[0].mxu0 %v279
  %v437 = vpop.f32.mrb[0].mxu0
  %v438 = vadd.f32 0.0, %v437
  %v439 = vpop.f32.mrb[0].mxu0
  %v440 = vpop.f32.mrb[0].mxu0
  %v441 = vadd.f32 0.0, %v440
  %v442 = vpop.f32.mrb[0].mxu0
  %443 = vmatprep.mubr.bf16.mxu0 %v282
  %444 = vmatmul.mubr.bf16.gmra.mrb[0].mxu0 %v281
  %v445 = vpop.f32.mrb[0].mxu0
  %v446 = vadd.f32 0.0, %v445
  %v447 = vpop.f32.mrb[0].mxu0
  %v448 = vpop.f32.mrb[0].mxu0
  %v449 = vadd.f32 0.0, %v448
  %v450 = vpop.f32.mrb[0].mxu0
  %451 = vmatprep.mubr.bf16.mxu0 %v284
  %452 = vmatmul.mubr.bf16.gmra.mrb[0].mxu0 %v283
  %v453 = vpop.f32.mrb[0].mxu0
  %v454 = vadd.f32 0.0, %v453
  %v455 = vpop.f32.mrb[0].mxu0
  %v456 = vpop.f32.mrb[0].mxu0
  %v457 = vadd.f32 0.0, %v456
  %v458 = vpop.f32.mrb[0].mxu0
  %459 = vmatprep.mubr.bf16.mxu0 %v286
  %460 = vmatmul.mubr.bf16.gmra.mrb[0].mxu0 %v285
  %v461 = vpop.f32.mrb[0].mxu0
  %v462 = vadd.f32 0.0, %v461
  %v463 = vpop.f32.mrb[0].mxu0
  %v464 = vpop.f32.mrb[0].mxu0
  %v465 = vadd.f32 0.0, %v464
  %v466 = vpop.f32.mrb[0].mxu0
  %467 = vmatprep.mubr.bf16.mxu0 %v288
  %468 = vmatmul.mubr.bf16.gmra.mrb[0].mxu0 %v287
  %v469 = vpop.f32.mrb[0].mxu0
  %v470 = vadd.f32 0.0, %v469
  %v471 = vpop.f32.mrb[0].mxu0
  %v472 = vpop.f32.mrb[0].mxu0
  %v473 = vadd.f32 0.0, %v472
  %v474 = vpop.f32.mrb[0].mxu0
  %475 = vmatprep.mubr.bf16.mxu0 %v290
  %476 = vmatmul.mubr.bf16.gmra.mrb[0].mxu0 %v289
  %v477 = vpop.f32.mrb[0].mxu0
  %v478 = vadd.f32 0.0, %v477
  %v479 = vpop.f32.mrb[0].mxu0
  %v480 = vpop.f32.mrb[0].mxu0
  %v481 = vadd.f32 0.0, %v480
  %v482 = vpop.f32.mrb[0].mxu0
  %483 = vdwg.mxu0
  %v484 = vadd.f32 %v131, %v358
  %v485 = vadd.f32 %v132, %v361
  %v486 = vadd.f32 %v133, %v366
  %v487 = vadd.f32 %v134, %v369
  %v488 = vadd.f32 %v135, %v374
  %v489 = vadd.f32 %v136, %v377
  %v490 = vadd.f32 %v137, %v382
  %v491 = vadd.f32 %v138, %v385
  %v492 = vadd.f32 %v139, %v390
  %v493 = vadd.f32 %v140, %v393
  %v494 = vadd.f32 %v141, %v398
  %v495 = vadd.f32 %v142, %v401
  %v496 = vadd.f32 %v143, %v406
  %v497 = vadd.f32 %v144, %v409
  %v498 = vadd.f32 %v145, %v414
  %v499 = vadd.f32 %v146, %v417
  %v500 = vadd.f32 %v147, %v422
  %v501 = vadd.f32 %v148, %v425
  %v502 = vadd.f32 %v149, %v430
  %v503 = vadd.f32 %v150, %v433
  %v504 = vadd.f32 %v151, %v438
  %v505 = vadd.f32 %v152, %v441
  %v506 = vadd.f32 %v153, %v446
  %v507 = vadd.f32 %v154, %v449
  %v508 = vadd.f32 %v155, %v454
  %v509 = vadd.f32 %v156, %v457
  %v510 = vadd.f32 %v157, %v462
  %v511 = vadd.f32 %v158, %v465
  %v512 = vadd.f32 %v159, %v470
  %v513 = vadd.f32 %v160, %v473
  %v514 = vadd.f32 %v161, %v478
  %v515 = vadd.f32 %v162, %v481
  %516 = vst [vmem:[#allocation2] sm:$0xff] %v484
  %517 = vst [vmem:[#allocation2 + $0x8] sm:$0xff] %v485
  %518 = vst [vmem:[#allocation2 + $0x10] sm:$0xff] %v486
  %519 = vst [vmem:[#allocation2 + $0x18] sm:$0xff] %v487
  %520 = vst [vmem:[#allocation2 + $0x20] sm:$0xff] %v488
  %521 = vst [vmem:[#allocation2 + $0x28] sm:$0xff] %v489
  %522 = vst [vmem:[#allocation2 + $0x30] sm:$0xff] %v490
  %523 = vst [vmem:[#allocation2 + $0x38] sm:$0xff] %v491
  %524 = vst [vmem:[#allocation2 + $0x40] sm:$0xff] %v492
  %525 = vst [vmem:[#allocation2 + $0x48] sm:$0xff] %v493
  %526 = vst [vmem:[#allocation2 + $0x50] sm:$0xff] %v494
  %527 = vst [vmem:[#allocation2 + $0x58] sm:$0xff] %v495
  %528 = vst [vmem:[#allocation2 + $0x60] sm:$0xff] %v496
  %529 = vst [vmem:[#allocation2 + $0x68] sm:$0xff] %v497
  %530 = vst [vmem:[#allocation2 + $0x70] sm:$0xff] %v498
  %531 = vst [vmem:[#allocation2 + $0x78] sm:$0xff] %v499
  %532 = vst [vmem:[#allocation2 + $0x80] sm:$0xff] %v500
  %533 = vst [vmem:[#allocation2 + $0x88] sm:$0xff] %v501
  %534 = vst [vmem:[#allocation2 + $0x90] sm:$0xff] %v502
  %535 = vst [vmem:[#allocation2 + $0x98] sm:$0xff] %v503
  %536 = vst [vmem:[#allocation2 + $0xa0] sm:$0xff] %v504
  %537 = vst [vmem:[#allocation2 + $0xa8] sm:$0xff] %v505
  %538 = vst [vmem:[#allocation2 + $0xb0] sm:$0xff] %v506
  %539 = vst [vmem:[#allocation2 + $0xb8] sm:$0xff] %v507
  %540 = vst [vmem:[#allocation2 + $0xc0] sm:$0xff] %v508
  %541 = vst [vmem:[#allocation2 + $0xc8] sm:$0xff] %v509
  %542 = vst [vmem:[#allocation2 + $0xd0] sm:$0xff] %v510
  %543 = vst [vmem:[#allocation2 + $0xd8] sm:$0xff] %v511
  %544 = vst [vmem:[#allocation2 + $0xe0] sm:$0xff] %v512
  %545 = vst [vmem:[#allocation2 + $0xe8] sm:$0xff] %v513
  %546 = vst [vmem:[#allocation2 + $0xf0] sm:$0xff] %v514
  %547 = vst [vmem:[#allocation2 + $0xf8] sm:$0xff] %v515
  // Predicated region
  $region18: #{sgae_forward.14} parent=0 // pred_check
    %p548 = pneg %p15
  $region19: #{sgae_forward.14} parent=0 // pred_check_branch
    %550 = sbr.rel (%p548) target = $region21
  $region20: #{sgae_forward.14} parent=0 // pred_region
    %v551 = vld [vmem:[#allocation2] sm:$0xff]
    %v552 = vld [vmem:[#allocation2 + $0x8] sm:$0xff]
    %v553 = vld [vmem:[#allocation2 + $0x10] sm:$0xff]
    %v554 = vld [vmem:[#allocation2 + $0x18] sm:$0xff]
    %v555 = vld [vmem:[#allocation2 + $0x20] sm:$0xff]
    %v556 = vld [vmem:[#allocation2 + $0x28] sm:$0xff]
    %v557 = vld [vmem:[#allocation2 + $0x30] sm:$0xff]
    %v558 = vld [vmem:[#allocation2 + $0x38] sm:$0xff]
    %v559 = vld [vmem:[#allocation2 + $0x40] sm:$0xff]
    %v560 = vld [vmem:[#allocation2 + $0x48] sm:$0xff]
    %v561 = vld [vmem:[#allocation2 + $0x50] sm:$0xff]
    %v562 = vld [vmem:[#allocation2 + $0x58] sm:$0xff]
    %v563 = vld [vmem:[#allocation2 + $0x60] sm:$0xff]
    %v564 = vld [vmem:[#allocation2 + $0x68] sm:$0xff]
    %v565 = vld [vmem:[#allocation2 + $0x70] sm:$0xff]
    %v566 = vld [vmem:[#allocation2 + $0x78] sm:$0xff]
    %v567 = vld [vmem:[#allocation2 + $0x80] sm:$0xff]
    %v568 = vld [vmem:[#allocation2 + $0x88] sm:$0xff]
    %v569 = vld [vmem:[#allocation2 + $0x90] sm:$0xff]
    %v570 = vld [vmem:[#allocation2 + $0x98] sm:$0xff]
    %v571 = vld [vmem:[#allocation2 + $0xa0] sm:$0xff]
    %v572 = vld [vmem:[#allocation2 + $0xa8] sm:$0xff]
    %v573 = vld [vmem:[#allocation2 + $0xb0] sm:$0xff]
    %v574 = vld [vmem:[#allocation2 + $0xb8] sm:$0xff]
    %v575 = vld [vmem:[#allocation2 + $0xc0] sm:$0xff]
    %v576 = vld [vmem:[#allocation2 + $0xc8] sm:$0xff]
    %v577 = vld [vmem:[#allocation2 + $0xd0] sm:$0xff]
    %v578 = vld [vmem:[#allocation2 + $0xd8] sm:$0xff]
    %v579 = vld [vmem:[#allocation2 + $0xe0] sm:$0xff]
    %v580 = vld [vmem:[#allocation2 + $0xe8] sm:$0xff]
    %v581 = vld [vmem:[#allocation2 + $0xf0] sm:$0xff]
    %v582 = vld [vmem:[#allocation2 + $0xf8] sm:$0xff]
    %v583 = vld [vmem:[%s2] sm:$0x1]
    %v585 = vlaneseq
    %v586 = vshrl.u32 %v585, 7
    %v587 = vsub.s32 0, %v586
    %v588 = vrot.slane %v583, %v587
    %v590 = vadd.f32 %v551, %v588
    %v591 = vadd.f32 %v552, %v588
    %v592 = vadd.f32 %v553, %v588
    %v593 = vadd.f32 %v554, %v588
    %v594 = vadd.f32 %v555, %v588
    %v595 = vadd.f32 %v556, %v588
    %v596 = vadd.f32 %v557, %v588
    %v597 = vadd.f32 %v558, %v588
    %v598 = vadd.f32 %v559, %v588
    %v599 = vadd.f32 %v560, %v588
    %v600 = vadd.f32 %v561, %v588
    %v601 = vadd.f32 %v562, %v588
    %v602 = vadd.f32 %v563, %v588
    %v603 = vadd.f32 %v564, %v588
    %v604 = vadd.f32 %v565, %v588
    %v605 = vadd.f32 %v566, %v588
    %v606 = vadd.f32 %v567, %v588
    %v607 = vadd.f32 %v568, %v588
    %v608 = vadd.f32 %v569, %v588
    %v609 = vadd.f32 %v570, %v588
    %v610 = vadd.f32 %v571, %v588
    %v611 = vadd.f32 %v572, %v588
    %v612 = vadd.f32 %v573, %v588
    %v613 = vadd.f32 %v574, %v588
    %v614 = vadd.f32 %v575, %v588
    %v615 = vadd.f32 %v576, %v588
    %v616 = vadd.f32 %v577, %v588
    %v617 = vadd.f32 %v578, %v588
    %v618 = vadd.f32 %v579, %v588
    %v619 = vadd.f32 %v580, %v588
    %v620 = vadd.f32 %v581, %v588
    %v621 = vadd.f32 %v582, %v588
    %v622 = vmax.f32 %v590, 0.0
    %v623 = vmax.f32 %v591, 0.0
    %v624 = vmax.f32 %v592, 0.0
    %v625 = vmax.f32 %v593, 0.0
    %v626 = vmax.f32 %v594, 0.0
    %v627 = vmax.f32 %v595, 0.0
    %v628 = vmax.f32 %v596, 0.0
    %v629 = vmax.f32 %v597, 0.0
    %v630 = vmax.f32 %v598, 0.0
    %v631 = vmax.f32 %v599, 0.0
    %v632 = vmax.f32 %v600, 0.0
    %v633 = vmax.f32 %v601, 0.0
    %v634 = vmax.f32 %v602, 0.0
    %v635 = vmax.f32 %v603, 0.0
    %v636 = vmax.f32 %v604, 0.0
    %v637 = vmax.f32 %v605, 0.0
    %v638 = vmax.f32 %v606, 0.0
    %v639 = vmax.f32 %v607, 0.0
    %v640 = vmax.f32 %v608, 0.0
    %v641 = vmax.f32 %v609, 0.0
    %v642 = vmax.f32 %v610, 0.0
    %v643 = vmax.f32 %v611, 0.0
    %v644 = vmax.f32 %v612, 0.0
    %v645 = vmax.f32 %v613, 0.0
    %v646 = vmax.f32 %v614, 0.0
    %v647 = vmax.f32 %v615, 0.0
    %v648 = vmax.f32 %v616, 0.0
    %v649 = vmax.f32 %v617, 0.0
    %v650 = vmax.f32 %v618, 0.0
    %v651 = vmax.f32 %v619, 0.0
    %v652 = vmax.f32 %v620, 0.0
    %v653 = vmax.f32 %v621, 0.0
    %654 = vst [vmem:[%s3] sm:$0xff] %v622
    %655 = vst [vmem:[%s3 + $0x8] sm:$0xff] %v623
    %656 = vst [vmem:[%s3 + $0x10] sm:$0xff] %v624
    %657 = vst [vmem:[%s3 + $0x18] sm:$0xff] %v625
    %658 = vst [vmem:[%s3 + $0x20] sm:$0xff] %v626
    %659 = vst [vmem:[%s3 + $0x28] sm:$0xff] %v627
    %660 = vst [vmem:[%s3 + $0x30] sm:$0xff] %v628
    %661 = vst [vmem:[%s3 + $0x38] sm:$0xff] %v629
    %662 = vst [vmem:[%s3 + $0x40] sm:$0xff] %v630
    %663 = vst [vmem:[%s3 + $0x48] sm:$0xff] %v631
    %664 = vst [vmem:[%s3 + $0x50] sm:$0xff] %v632
    %665 = vst [vmem:[%s3 + $0x58] sm:$0xff] %v633
    %666 = vst [vmem:[%s3 + $0x60] sm:$0xff] %v634
    %667 = vst [vmem:[%s3 + $0x68] sm:$0xff] %v635
    %668 = vst [vmem:[%s3 + $0x70] sm:$0xff] %v636
    %669 = vst [vmem:[%s3 + $0x78] sm:$0xff] %v637
    %670 = vst [vmem:[%s3 + $0x80] sm:$0xff] %v638
    %671 = vst [vmem:[%s3 + $0x88] sm:$0xff] %v639
    %672 = vst [vmem:[%s3 + $0x90] sm:$0xff] %v640
    %673 = vst [vmem:[%s3 + $0x98] sm:$0xff] %v641
    %674 = vst [vmem:[%s3 + $0xa0] sm:$0xff] %v642
    %675 = vst [vmem:[%s3 + $0xa8] sm:$0xff] %v643
    %676 = vst [vmem:[%s3 + $0xb0] sm:$0xff] %v644
    %677 = vst [vmem:[%s3 + $0xb8] sm:$0xff] %v645
    %678 = vst [vmem:[%s3 + $0xc0] sm:$0xff] %v646
    %679 = vst [vmem:[%s3 + $0xc8] sm:$0xff] %v647
    %680 = vst [vmem:[%s3 + $0xd0] sm:$0xff] %v648
    %681 = vst [vmem:[%s3 + $0xd8] sm:$0xff] %v649
    %682 = vst [vmem:[%s3 + $0xe0] sm:$0xff] %v650
    %683 = vst [vmem:[%s3 + $0xe8] sm:$0xff] %v651
    %684 = vst [vmem:[%s3 + $0xf0] sm:$0xff] %v652
    %685 = vst [vmem:[%s3 + $0xf8] sm:$0xff] %v653
  $region21: #{sgae_forward.14} parent=0 // pred_fallthru
    _
  // Predicated region
  $region22: #{sgae_forward.14} parent=0 // pred_check
    _
  $region23: #{sgae_forward.14} parent=0 // pred_check_branch
    %687 = sbr.rel (0) target = $region25
  $region24: #{sgae_forward.14} parent=0 // pred_region
    _
  $region25: #{sgae_forward.14} parent=0 // pred_fallthru
    _
  // Predicated region
  $region26: #{sgae_forward.14} parent=0 // pred_check
    _
  $region27: #{sgae_forward.14} parent=0 // pred_check_branch
    %689 = sbr.rel (0) target = $region29
  $region28: #{sgae_forward.14} parent=0 // pred_region
    _
  $region29: #{sgae_forward.14} parent=0 // pred_fallthru
    _

// kernel: sgae_forward.12
$region0: #{sgae_forward.12}
  #allocation0 [shape = 'u32[]', space=smem, size = 0x4, offset = 0x4, fixed_abs, tag = 'smem constant byte address 0x4 - core index']
  #allocation1 [shape = 'u32[144,128]{1,0:T(1,128)}', space=vmem, size = 0x12000, scoped, tag = 'internal scratch']
  #allocation2 [shape = 'f32[128,128]{1,0:T(8,128)}', space=vmem, size = 0x10000, scoped, tag = 'scratch operand']
  %s0 = inlined_call_operand.vmem [shape: bf16[384,384], index: 0, kind: input, shape index: {}]
  %s1 = inlined_call_operand.vmem [shape: f32[384,128], index: 1, kind: input, shape index: {}]
  %s2 = inlined_call_operand.vmem [shape: f32[1,128], index: 2, kind: input, shape index: {}]
  %s3 = inlined_call_operand.vmem [shape: f32[384,128], index: 3, kind: output, shape index: {}]
  %s4 = sld [smem:[#allocation0]]
  $region94: #{sgae_forward.12} parent=0
    _
  %s6 = ssub.s32 1, %s4
  %s7 = scalar_select 0, %s6, %s4
  $region1: #{sgae_forward.12} parent=0
    #allocation3 [shape = 'u8[65536]{0}', space=vmem, size = 0x10000, scoped, tag = 'input window, operand 0']
    loop: start=0, step=1, limit=11
    $region2: #{sgae_forward.12} parent=1 // loop_pre_header
      _
    $region3: #{sgae_forward.12} parent=1 // loop_header
      %s9 = sphi 0, %s13
      %p10 = scmp.ge.s32.totalorder %s9, 11
      %s16 = sphi 0, %s28
      %s17 = sphi 0, %s24
      %s18 = sphi 0, %s16
      %s19 = sphi 0, %s17
      %s20 = sphi 0, %s18
      %s21 = sphi 0, %s19
      %s33 = sphi 0, %s35
      %s36 = sphi 0, %s33
      %s37 = sphi 0, %s36
      %s53 = sphi 0, %s37
      %s59 = sphi 0, %s61
      %s62 = sphi 0, %s59
      %s63 = sphi 0, %s62
      %s79 = sphi 0, %s63
      %s83 = sphi 0, %s83
      %s85 = sphi 0, %s83
      %s86 = sphi 0, %s85
      %s100 = sphi 0, %s86
      %s106 = sphi 0, %s108
      %s109 = sphi 0, %s106
      %s110 = sphi 0, %s109
      %s126 = sphi 0, %s110
    $region4: #{sgae_forward.12} parent=1 // loop_header_branch
      %12 = sbr.rel (%p10) target = $region8
    $region5: #{sgae_forward.12} parent=1 // loop_body
      %s14 = ssub.s32 %s9, 1
      %s15 = ssub.s32 %s9, 2
      %s22 = sadd.s32 1, %s17
      %p23 = scmp.ge.s32.totalorder %s22, 3
      %s24 = scalar_select %p23, 0, %s22
      %s25 = sadd.s32 1, %s16
      %s26 = scalar_select %p23, %s25, %s16
      %p27 = scmp.ge.s32.totalorder %s26, 3
      %s28 = scalar_select %p27, 0, %s26
      %s29 = ssub.s32 %s16, %s28
      %s30 = ssub.s32 %s17, %s24
      %s31 = sor.u32 %s29, %s30
      %p32 = scmp.eq.s32.totalorder %s31, 0
      %s34 = sadd.s32 %s33, 1
      %s35 = scalar_select %p32, %s33, %s34
      %p38 = pneg %p32
      %p39 = scmp.eq.s32.totalorder %s9, 8
      %p40 = por %p38, %p39
      %p41 = scmp.ne.s32.totalorder %s33, %s36
      %p42 = scmp.eq.s32.totalorder %s9, 0
      %p43 = por %p41, %p42
      %p44 = scmp.ne.s32.totalorder %s33, %s36
      %p45 = scmp.eq.s32.totalorder %s14, 8
      %p46 = por %p44, %p45
      %p47 = scmp.ne.s32.totalorder %s36, %s37
      %p48 = scmp.eq.s32.totalorder %s14, 0
      %p49 = por %p47, %p48
      %p50 = scmp.ne.s32.totalorder %s36, %s37
      %p51 = scmp.eq.s32.totalorder %s15, 8
      %p52 = por %p50, %p51
      %p54 = scmp.ne.s32.totalorder %s37, %s53
      %p55 = scmp.eq.s32.totalorder %s15, 0
      %p56 = por %p54, %p55
      %s57 = ssub.s32 %s17, %s24
      %p58 = scmp.eq.s32.totalorder %s57, 0
      %s60 = sadd.s32 %s59, 1
      %s61 = scalar_select %p58, %s59, %s60
      %p64 = pneg %p58
      %p65 = scmp.eq.s32.totalorder %s9, 8
      %p66 = por %p64, %p65
      %p67 = scmp.ne.s32.totalorder %s59, %s62
      %p68 = scmp.eq.s32.totalorder %s9, 0
      %p69 = por %p67, %p68
      %p70 = scmp.ne.s32.totalorder %s59, %s62
      %p71 = scmp.eq.s32.totalorder %s14, 8
      %p72 = por %p70, %p71
      %p73 = scmp.ne.s32.totalorder %s62, %s63
      %p74 = scmp.eq.s32.totalorder %s14, 0
      %p75 = por %p73, %p74
      %p76 = scmp.ne.s32.totalorder %s62, %s63
      %p77 = scmp.eq.s32.totalorder %s15, 8
      %p78 = por %p76, %p77
      %p80 = scmp.ne.s32.totalorder %s63, %s79
      %p81 = scmp.eq.s32.totalorder %s15, 0
      %p82 = por %p80, %p81
      %s84 = sadd.s32 %s83, 1
      %p87 = scmp.eq.s32.totalorder %s9, 8
      %p88 = scmp.ne.s32.totalorder %s83, %s85
      %p89 = scmp.eq.s32.totalorder %s9, 0
      %p90 = por %p88, %p89
      %p91 = scmp.ne.s32.totalorder %s83, %s85
      %p92 = scmp.eq.s32.totalorder %s14, 8
      %p93 = por %p91, %p92
      %p94 = scmp.ne.s32.totalorder %s85, %s86
      %p95 = scmp.eq.s32.totalorder %s14, 0
      %p96 = por %p94, %p95
      %p97 = scmp.ne.s32.totalorder %s85, %s86
      %p98 = scmp.eq.s32.totalorder %s15, 8
      %p99 = por %p97, %p98
      %p101 = scmp.ne.s32.totalorder %s86, %s100
      %p102 = scmp.eq.s32.totalorder %s15, 0
      %p103 = por %p101, %p102
      %s104 = ssub.s32 %s16, %s28
      %p105 = scmp.eq.s32.totalorder %s104, 0
      %s107 = sadd.s32 %s106, 1
      %s108 = scalar_select %p105, %s106, %s107
      %p111 = pneg %p105
      %p112 = scmp.eq.s32.totalorder %s9, 8
      %p113 = por %p111, %p112
      %p114 = scmp.ne.s32.totalorder %s106, %s109
      %p115 = scmp.eq.s32.totalorder %s9, 0
      %p116 = por %p114, %p115
      %p117 = scmp.ne.s32.totalorder %s106, %s109
      %p118 = scmp.eq.s32.totalorder %s14, 8
      %p119 = por %p117, %p118
      %p120 = scmp.ne.s32.totalorder %s109, %s110
      %p121 = scmp.eq.s32.totalorder %s14, 0
      %p122 = por %p120, %p121
      %p123 = scmp.ne.s32.totalorder %s109, %s110
      %p124 = scmp.eq.s32.totalorder %s15, 8
      %p125 = por %p123, %p124
      %p127 = scmp.ne.s32.totalorder %s110, %s126
      %p128 = scmp.eq.s32.totalorder %s15, 0
      %p129 = por %p127, %p128
      %p130 = scmp.le.s32.totalorder 1, %s9
      %p131 = scmp.lt.s32.totalorder %s9, 10
      %p132 = pnand %p130, %p131
      %p133 = pneg %p132
      // Predicated region
      $region9: #{sgae_forward.12} parent=5 // pred_check
        _
      $region10: #{sgae_forward.12} parent=5 // pred_check_branch
        %135 = sbr.rel (%p132) target = $region12
      $region11: #{sgae_forward.12} parent=5 // pred_region
        %s136 = ssub.s32 %s9, 1
        // Predicated region
        $region13: #{sgae_forward.12} parent=11 // pred_check
          %p137 = pneg %p96
        $region14: #{sgae_forward.12} parent=11 // pred_check_branch
          %139 = sbr.rel (%p137) target = $region16
        $region15: #{sgae_forward.12} parent=11 // pred_region
          _
        $region16: #{sgae_forward.12} parent=11 // pred_fallthru
          _
      $region12: #{sgae_forward.12} parent=5 // pred_fallthru
        _
      %p140 = scmp.lt.s32.totalorder %s9, 9
      // Predicated region
      $region17: #{sgae_forward.12} parent=5 // pred_check
        %p141 = pneg %p140
      $region18: #{sgae_forward.12} parent=5 // pred_check_branch
        %143 = sbr.rel (%p141) target = $region20
      $region19: #{sgae_forward.12} parent=5 // pred_region
        // Predicated region
        $region21: #{sgae_forward.12} parent=19 // pred_check
          %p144 = pneg %p43
        $region22: #{sgae_forward.12} parent=19 // pred_check_branch
          %146 = sbr.rel (%p144) target = $region24
        $region23: #{sgae_forward.12} parent=19 // pred_region
          %s147 = sand.u32 %s33, 1
          %s148 = sand.u32 %s33, 1
          %s149 = smul.addr %s148, 64
          %s150 = scalar_lea.vmem [#allocation3], %s149
          %s151 = smul.u32 16, %s16
          %s152 = smul.addr %s151, 3
          %s153 = sadd.s32 %s17, %s152
          %s154 = smul.addr %s153, 4
          %s155 = scalar_lea.vmem %s0, %s154
          // Predicated region
          $region25: #{sgae_forward.12} parent=23 // pred_check
            _
          $region26: #{sgae_forward.12} parent=23 // pred_check_branch
            %157 = sbr.rel (0) target = $region28
          $region27: #{sgae_forward.12} parent=23 // pred_region
            // Predicated region
            $region29: #{sgae_forward.12} parent=27 // pred_check
              _
            $region30: #{sgae_forward.12} parent=27 // pred_check_branch
              %159 = sbr.rel target = $region32
            $region31: #{sgae_forward.12} parent=27 // pred_region
              // Predicated region
              $region44: #{sgae_forward.12} parent=31 // pred_check
                _
              $region45: #{sgae_forward.12} parent=31 // pred_check_branch
                %204 = sbr.rel (0) target = $region47
              $region46: #{sgae_forward.12} parent=31 // pred_region
                loop: start=0, step=1, limit=1
                $region48: #{sgae_forward.12} parent=46 // loop_pre_header
                  _
                $region49: #{sgae_forward.12} parent=46 // loop_header
                  %s206 = sphi 0, %s210
                  %p207 = scmp.ge.s32.totalorder %s206, 1
                  %s211 = sphi %s155, %s155
                  %s212 = sphi %s150, %s150
                $region50: #{sgae_forward.12} parent=46 // loop_header_branch
                  %209 = sbr.rel (%p207) target = $region54
                $region51: #{sgae_forward.12} parent=46 // loop_body
                  _
                $region52: #{sgae_forward.12} parent=46 // loop_footer
                  %s210 = sadd.s32 1, %s206
                $region53: #{sgae_forward.12} parent=46 // loop_footer_branch
                  %205 = sbr.rel target = $region49
                $region54: #{sgae_forward.12} parent=46 // loop_exit
                  _
                loop: start=0, step=1, limit=1
                $region55: #{sgae_forward.12} parent=46 // loop_pre_header
                  _
                $region56: #{sgae_forward.12} parent=46 // loop_header
                  %s215 = sphi 0, %s219
                  %p216 = scmp.ge.s32.totalorder %s215, 1
                  %s220 = sphi %s155, %s155
                  %s221 = sphi %s150, %s150
                $region57: #{sgae_forward.12} parent=46 // loop_header_branch
                  %218 = sbr.rel (%p216) target = $region61
                $region58: #{sgae_forward.12} parent=46 // loop_body
                  %v222 = vld [vmem:[%s220] sm:$0xf]
                  %223 = vst [vmem:[%s221] sm:$0xf] %v222
                  %v224 = vld [vmem:[%s220 + $0xc] sm:$0xf]
                  %225 = vst [vmem:[%s221 + $0x4] sm:$0xf] %v224
                  %v226 = vld [vmem:[%s220 + $0x18] sm:$0xf]
                  %227 = vst [vmem:[%s221 + $0x8] sm:$0xf] %v226
                  %v228 = vld [vmem:[%s220 + $0x24] sm:$0xf]
                  %229 = vst [vmem:[%s221 + $0xc] sm:$0xf] %v228
                  %v230 = vld [vmem:[%s220 + $0x30] sm:$0xf]
                  %231 = vst [vmem:[%s221 + $0x10] sm:$0xf] %v230
                  %v232 = vld [vmem:[%s220 + $0x3c] sm:$0xf]
                  %233 = vst [vmem:[%s221 + $0x14] sm:$0xf] %v232
                  %v234 = vld [vmem:[%s220 + $0x48] sm:$0xf]
                  %235 = vst [vmem:[%s221 + $0x18] sm:$0xf] %v234
                  %v236 = vld [vmem:[%s220 + $0x54] sm:$0xf]
                  %237 = vst [vmem:[%s221 + $0x1c] sm:$0xf] %v236
                  %v238 = vld [vmem:[%s220 + $0x60] sm:$0xf]
                  %239 = vst [vmem:[%s221 + $0x20] sm:$0xf] %v238
                  %v240 = vld [vmem:[%s220 + $0x6c] sm:$0xf]
                  %241 = vst [vmem:[%s221 + $0x24] sm:$0xf] %v240
                  %v242 = vld [vmem:[%s220 + $0x78] sm:$0xf]
                  %243 = vst [vmem:[%s221 + $0x28] sm:$0xf] %v242
                  %v244 = vld [vmem:[%s220 + $0x84] sm:$0xf]
                  %245 = vst [vmem:[%s221 + $0x2c] sm:$0xf] %v244
                  %v246 = vld [vmem:[%s220 + $0x90] sm:$0xf]
                  %247 = vst [vmem:[%s221 + $0x30] sm:$0xf] %v246
                  %v248 = vld [vmem:[%s220 + $0x9c] sm:$0xf]
                  %249 = vst [vmem:[%s221 + $0x34] sm:$0xf] %v248
                  %v250 = vld [vmem:[%s220 + $0xa8] sm:$0xf]
                  %251 = vst [vmem:[%s221 + $0x38] sm:$0xf] %v250
                  %v252 = vld [vmem:[%s220 + $0xb4] sm:$0xf]
                  %253 = vst [vmem:[%s221 + $0x3c] sm:$0xf] %v252
                $region59: #{sgae_forward.12} parent=46 // loop_footer
                  %s219 = sadd.s32 1, %s215
                $region60: #{sgae_forward.12} parent=46 // loop_footer_branch
                  %214 = sbr.rel target = $region56
                $region61: #{sgae_forward.12} parent=46 // loop_exit
                  _
              $region47: #{sgae_forward.12} parent=31 // pred_fallthru
                _
            $region32: #{sgae_forward.12} parent=27 // pred_fallthru
              _
            // Predicated region
            $region33: #{sgae_forward.12} parent=27 // pred_check
              _
            $region34: #{sgae_forward.12} parent=27 // pred_check_branch
              %161 = sbr.rel (0) target = $region36
            $region35: #{sgae_forward.12} parent=27 // pred_region
              loop: start=0, step=1, limit=1
              $region37: #{sgae_forward.12} parent=35 // loop_pre_header
                _
              $region38: #{sgae_forward.12} parent=35 // loop_header
                %s164 = sphi 0, %s168
                %p165 = scmp.ge.s32.totalorder %s164, 1
                %s169 = sphi %s155, %s155
                %s170 = sphi %s150, %s150
              $region39: #{sgae_forward.12} parent=35 // loop_header_branch
                %167 = sbr.rel (%p165) target = $region43
              $region40: #{sgae_forward.12} parent=35 // loop_body
                %v171 = vld [vmem:[%s169] sm:$0xf]
                %172 = vst [vmem:[%s170] sm:$0xf] %v171
                %v173 = vld [vmem:[%s169 + $0xc] sm:$0xf]
                %174 = vst [vmem:[%s170 + $0x4] sm:$0xf] %v173
                %v175 = vld [vmem:[%s169 + $0x18] sm:$0xf]
                %176 = vst [vmem:[%s170 + $0x8] sm:$0xf] %v175
                %v177 = vld [vmem:[%s169 + $0x24] sm:$0xf]
                %178 = vst [vmem:[%s170 + $0xc] sm:$0xf] %v177
                %v179 = vld [vmem:[%s169 + $0x30] sm:$0xf]
                %180 = vst [vmem:[%s170 + $0x10] sm:$0xf] %v179
                %v181 = vld [vmem:[%s169 + $0x3c] sm:$0xf]
                %182 = vst [vmem:[%s170 + $0x14] sm:$0xf] %v181
                %v183 = vld [vmem:[%s169 + $0x48] sm:$0xf]
                %184 = vst [vmem:[%s170 + $0x18] sm:$0xf] %v183
                %v185 = vld [vmem:[%s169 + $0x54] sm:$0xf]
                %186 = vst [vmem:[%s170 + $0x1c] sm:$0xf] %v185
                %v187 = vld [vmem:[%s169 + $0x60] sm:$0xf]
                %188 = vst [vmem:[%s170 + $0x20] sm:$0xf] %v187
                %v189 = vld [vmem:[%s169 + $0x6c] sm:$0xf]
                %190 = vst [vmem:[%s170 + $0x24] sm:$0xf] %v189
                %v191 = vld [vmem:[%s169 + $0x78] sm:$0xf]
                %192 = vst [vmem:[%s170 + $0x28] sm:$0xf] %v191
                %v193 = vld [vmem:[%s169 + $0x84] sm:$0xf]
                %194 = vst [vmem:[%s170 + $0x2c] sm:$0xf] %v193
                %v195 = vld [vmem:[%s169 + $0x90] sm:$0xf]
                %196 = vst [vmem:[%s170 + $0x30] sm:$0xf] %v195
                %v197 = vld [vmem:[%s169 + $0x9c] sm:$0xf]
                %198 = vst [vmem:[%s170 + $0x34] sm:$0xf] %v197
                %v199 = vld [vmem:[%s169 + $0xa8] sm:$0xf]
                %200 = vst [vmem:[%s170 + $0x38] sm:$0xf] %v199
                %v201 = vld [vmem:[%s169 + $0xb4] sm:$0xf]
                %202 = vst [vmem:[%s170 + $0x3c] sm:$0xf] %v201
              $region41: #{sgae_forward.12} parent=35 // loop_footer
                %s168 = sadd.s32 1, %s164
              $region42: #{sgae_forward.12} parent=35 // loop_footer_branch
                %163 = sbr.rel target = $region38
              $region43: #{sgae_forward.12} parent=35 // loop_exit
                _
            $region36: #{sgae_forward.12} parent=27 // pred_fallthru
              _
          $region28: #{sgae_forward.12} parent=23 // pred_fallthru
            _
          %254 = vnop
        $region24: #{sgae_forward.12} parent=19 // pred_fallthru
          _
        // Predicated region
        $region62: #{sgae_forward.12} parent=19 // pred_check
          %p255 = pneg %p69
        $region63: #{sgae_forward.12} parent=19 // pred_check_branch
          %257 = sbr.rel (%p255) target = $region65
        $region64: #{sgae_forward.12} parent=19 // pred_region
          %s258 = smul.u32 16, %s17
          %p259 = scmp.lt.s32.totalorder %s258, 47
          %s260 = scalar_select %p259, %s258, 47
          %s261 = smul.addr %s260, 8
          %s262 = scalar_lea.vmem %s1, %s261
          %s263 = smul.u32 16, %s17
        $region65: #{sgae_forward.12} parent=19 // pred_fallthru
          _
      $region20: #{sgae_forward.12} parent=5 // pred_fallthru
        _
      %p264 = scmp.le.s32.totalorder 1, %s9
      %p265 = scmp.lt.s32.totalorder %s9, 10
      %p266 = pnand %p264, %p265
      %p267 = pneg %p266
      // Predicated region
      $region66: #{sgae_forward.12} parent=5 // pred_check
        _
      $region67: #{sgae_forward.12} parent=5 // pred_check_branch
        %269 = sbr.rel (%p266) target = $region69
      $region68: #{sgae_forward.12} parent=5 // pred_region
        %s270 = ssub.s32 %s9, 1
        %s271 = sand.u32 %s36, 1
        %s272 = sand.u32 %s36, 1
        %s273 = smul.addr %s272, 64
        %s274 = scalar_lea.vmem [#allocation3], %s273
        // Predicated region
        $region70: #{sgae_forward.12} parent=68 // pred_check
          %p275 = pneg %p49
        $region71: #{sgae_forward.12} parent=68 // pred_check_branch
          %277 = sbr.rel (%p275) target = $region73
        $region72: #{sgae_forward.12} parent=68 // pred_region
          _
        $region73: #{sgae_forward.12} parent=68 // pred_fallthru
          _
        %s278 = sand.u32 %s36, 1
        %s279 = sand.u32 %s36, 1
        %s280 = smul.addr %s279, 64
        %s281 = scalar_lea.vmem [#allocation3], %s280
        %p282 = pneg %p49
        %p283 = pneg %p46
        %s284 = smul.u32 16, %s19
        %p285 = scmp.lt.s32.totalorder %s284, 47
        %s286 = scalar_select %p285, %s284, 47
        %s287 = smul.addr %s286, 8
        %s288 = scalar_lea.vmem %s1, %s287
        %p289 = pneg %p75
        %p290 = pneg %p72
        %p291 = pneg %p96
        %p292 = pneg %p93
        %p293 = pneg %p122
        %p294 = pneg %p119
        %s295 = smul.u32 16, %s18
        %p296 = scmp.lt.s32.totalorder %s295, 47
        %s297 = scalar_select %p296, %s295, 47
        %s298 = smul.addr %s297, 8
        %s299 = scalar_lea.vmem %s3, %s298
        %s300 = smul.u32 16, %s18
        %s301 = smul.u32 16, %s19
        %p302 = scmp.lt.s32.totalorder %s301, 47
        %s303 = scalar_select %p302, %s301, 47
        %s304 = smul.addr %s303, 8
        %s305 = scalar_lea.vmem %s1, %s304
        %s306 = smul.u32 16, %s19
        %s307 = smul.u32 16, %s18
        %p308 = scmp.lt.s32.totalorder %s307, 47
        %s309 = scalar_select %p308, %s307, 47
        %s310 = smul.addr %s309, 8
        %s311 = scalar_lea.vmem %s3, %s310
        %s312 = smul.u32 16, %s18
        %p314 = scmp.eq.s32.totalorder %s19, 0
        // Predicated region
        $region74: #{sgae_forward.12} parent=68 // pred_check
          %p315 = pneg %p314
        $region75: #{sgae_forward.12} parent=68 // pred_check_branch
          %317 = sbr.rel (%p315) target = $region77
        $region76: #{sgae_forward.12} parent=68 // pred_region
          %318 = vst [vmem:[#allocation2] sm:$0xff] 0.0
          %319 = vst [vmem:[#allocation2 + $0x8] sm:$0xff] 0.0
          %320 = vst [vmem:[#allocation2 + $0x10] sm:$0xff] 0.0
          %321 = vst [vmem:[#allocation2 + $0x18] sm:$0xff] 0.0
          %322 = vst [vmem:[#allocation2 + $0x20] sm:$0xff] 0.0
          %323 = vst [vmem:[#allocation2 + $0x28] sm:$0xff] 0.0
          %324 = vst [vmem:[#allocation2 + $0x30] sm:$0xff] 0.0
          %325 = vst [vmem:[#allocation2 + $0x38] sm:$0xff] 0.0
          %326 = vst [vmem:[#allocation2 + $0x40] sm:$0xff] 0.0
          %327 = vst [vmem:[#allocation2 + $0x48] sm:$0xff] 0.0
          %328 = vst [vmem:[#allocation2 + $0x50] sm:$0xff] 0.0
          %329 = vst [vmem:[#allocation2 + $0x58] sm:$0xff] 0.0
          %330 = vst [vmem:[#allocation2 + $0x60] sm:$0xff] 0.0
          %331 = vst [vmem:[#allocation2 + $0x68] sm:$0xff] 0.0
          %332 = vst [vmem:[#allocation2 + $0x70] sm:$0xff] 0.0
          %333 = vst [vmem:[#allocation2 + $0x78] sm:$0xff] 0.0
        $region77: #{sgae_forward.12} parent=68 // pred_fallthru
          _
        %v334 = vld [vmem:[%s274] sm:$0xf]
        %v335 = vld [vmem:[%s274 + $0x4] sm:$0xf]
        %v336 = vld [vmem:[%s274 + $0x8] sm:$0xf]
        %v337 = vld [vmem:[%s274 + $0xc] sm:$0xf]
        %v338 = vld [vmem:[%s274 + $0x10] sm:$0xf]
        %v339 = vld [vmem:[%s274 + $0x14] sm:$0xf]
        %v340 = vld [vmem:[%s274 + $0x18] sm:$0xf]
        %v341 = vld [vmem:[%s274 + $0x1c] sm:$0xf]
        %v342 = vld [vmem:[%s274 + $0x20] sm:$0xf]
        %v343 = vld [vmem:[%s274 + $0x24] sm:$0xf]
        %v344 = vld [vmem:[%s274 + $0x28] sm:$0xf]
        %v345 = vld [vmem:[%s274 + $0x2c] sm:$0xf]
        %v346 = vld [vmem:[%s274 + $0x30] sm:$0xf]
        %v347 = vld [vmem:[%s274 + $0x34] sm:$0xf]
        %v348 = vld [vmem:[%s274 + $0x38] sm:$0xf]
        %v349 = vld [vmem:[%s274 + $0x3c] sm:$0xf]
        %v350 = vld [vmem:[%s305] sm:$0xff]
        %v351 = vld [vmem:[%s305 + $0x8] sm:$0xff]
        %v352 = vld [vmem:[%s305 + $0x10] sm:$0xff]
        %v353 = vld [vmem:[%s305 + $0x18] sm:$0xff]
        %v354 = vld [vmem:[%s305 + $0x20] sm:$0xff]
        %v355 = vld [vmem:[%s305 + $0x28] sm:$0xff]
        %v356 = vld [vmem:[%s305 + $0x30] sm:$0xff]
        %v357 = vld [vmem:[%s305 + $0x38] sm:$0xff]
        %v358 = vld [vmem:[%s305 + $0x40] sm:$0xff]
        %v359 = vld [vmem:[%s305 + $0x48] sm:$0xff]
        %v360 = vld [vmem:[%s305 + $0x50] sm:$0xff]
        %v361 = vld [vmem:[%s305 + $0x58] sm:$0xff]
        %v362 = vld [vmem:[%s305 + $0x60] sm:$0xff]
        %v363 = vld [vmem:[%s305 + $0x68] sm:$0xff]
        %v364 = vld [vmem:[%s305 + $0x70] sm:$0xff]
        %v365 = vld [vmem:[%s305 + $0x78] sm:$0xff]
        %v366 = vpack.c.bf16 %v351, %v350
        %v367 = vpack.c.bf16 %v353, %v352
        %v368 = vpack.c.bf16 %v355, %v354
        %v369 = vpack.c.bf16 %v357, %v356
        %v370 = vpack.c.bf16 %v359, %v358
        %v371 = vpack.c.bf16 %v361, %v360
        %v372 = vpack.c.bf16 %v363, %v362
        %v373 = vpack.c.bf16 %v365, %v364
        %v374 = vld [vmem:[#allocation2] sm:$0xff]
        %v375 = vld [vmem:[#allocation2 + $0x8] sm:$0xff]
        %v376 = vld [vmem:[#allocation2 + $0x10] sm:$0xff]
        %v377 = vld [vmem:[#allocation2 + $0x18] sm:$0xff]
        %v378 = vld [vmem:[#allocation2 + $0x20] sm:$0xff]
        %v379 = vld [vmem:[#allocation2 + $0x28] sm:$0xff]
        %v380 = vld [vmem:[#allocation2 + $0x30] sm:$0xff]
        %v381 = vld [vmem:[#allocation2 + $0x38] sm:$0xff]
        %v382 = vld [vmem:[#allocation2 + $0x40] sm:$0xff]
        %v383 = vld [vmem:[#allocation2 + $0x48] sm:$0xff]
        %v384 = vld [vmem:[#allocation2 + $0x50] sm:$0xff]
        %v385 = vld [vmem:[#allocation2 + $0x58] sm:$0xff]
        %v386 = vld [vmem:[#allocation2 + $0x60] sm:$0xff]
        %v387 = vld [vmem:[#allocation2 + $0x68] sm:$0xff]
        %v388 = vld [vmem:[#allocation2 + $0x70] sm:$0xff]
        %v389 = vld [vmem:[#allocation2 + $0x78] sm:$0xff]
        %v406 = vunpack.c.l.b16 %v334
        %v407 = vunpack.c.l.b16 %v335
        %v408 = vunpack.c.l.b16 %v336
        %v409 = vunpack.c.l.b16 %v337
        %v410 = vunpack.c.l.b16 %v338
        %v411 = vunpack.c.l.b16 %v339
        %v412 = vunpack.c.l.b16 %v340
        %v413 = vunpack.c.l.b16 %v341
        %v414 = vunpack.c.l.b16 %v342
        %v415 = vunpack.c.l.b16 %v343
        %v416 = vunpack.c.l.b16 %v344
        %v417 = vunpack.c.l.b16 %v345
        %v418 = vunpack.c.l.b16 %v346
        %v419 = vunpack.c.l.b16 %v347
        %v420 = vunpack.c.l.b16 %v348
        %v421 = vunpack.c.l.b16 %v349
        %v422 = vpack.c.b16 %v407, %v406
        %v423 = vpack.c.b16 %v409, %v408
        %v424 = vpack.c.b16 %v411, %v410
        %v425 = vpack.c.b16 %v413, %v412
        %v426 = vpack.c.b16 %v415, %v414
        %v427 = vpack.c.b16 %v417, %v416
        %v428 = vpack.c.b16 %v419, %v418
        %v429 = vpack.c.b16 %v421, %v420
        %438 = vmatprep.subr.bf16.mxu0 0
        %439 = vmatpush1.bf16.msra.mxu0 %v366
        %440 = vmatprep.subr.bf16.mxu0 0
        %441 = vmatpush1.bf16.msra.mxu0 %v367
        %442 = vmatprep.subr.bf16.mxu0 0
        %443 = vmatpush1.bf16.msra.mxu0 %v368
        %444 = vmatprep.subr.bf16.mxu0 0
        %445 = vmatpush1.bf16.msra.mxu0 %v369
        %446 = vmatprep.subr.bf16.mxu0 0
        %447 = vmatpush1.bf16.msra.mxu0 %v370
        %448 = vmatprep.subr.bf16.mxu0 0
        %449 = vmatpush1.bf16.msra.mxu0 %v371
        %450 = vmatprep.subr.bf16.mxu0 0
        %451 = vmatpush1.bf16.msra.mxu0 %v372
        %452 = vmatprep.subr.bf16.mxu0 0
        %453 = vmatpush1.bf16.msra.mxu0 %v373
        %454 = vmatprep.subr.bf16.mxu0 0
        %455 = vmatpush1.bf16.msra.mxu0 0
        %456 = vmatprep.subr.bf16.mxu0 0
        %457 = vmatpush1.bf16.msra.mxu0 0
        %458 = vmatprep.subr.bf16.mxu0 0
        %459 = vmatpush1.bf16.msra.mxu0 0
        %460 = vmatprep.subr.bf16.mxu0 0
        %461 = vmatpush1.bf16.msra.mxu0 0
        %462 = vmatprep.subr.bf16.mxu0 0
        %463 = vmatpush1.bf16.msra.mxu0 0
        %464 = vmatprep.subr.bf16.mxu0 0
        %465 = vmatpush1.bf16.msra.mxu0 0
        %466 = vmatprep.subr.bf16.mxu0 0
        %467 = vmatpush1.bf16.msra.mxu0 0
        %468 = vmatprep.subr.bf16.mxu0 0
        %469 = vmatpush1.bf16.msra.mxu0 0
        %470 = vmatprep.mubr.bf16.mxu0 0
        %471 = vmatmul.mubr.bf16.gmra.mrb[0].mxu0 %v422
        %v472 = vpop.f32.mrb[0].mxu0
        %v473 = vadd.f32 0.0, %v472
        %v474 = vpop.f32.mrb[0].mxu0
        %v475 = vpop.f32.mrb[0].mxu0
        %v476 = vadd.f32 0.0, %v475
        %v477 = vpop.f32.mrb[0].mxu0
        %478 = vmatprep.mubr.bf16.mxu0 0
        %479 = vmatmul.mubr.bf16.gmra.mrb[0].mxu0 %v423
        %v480 = vpop.f32.mrb[0].mxu0
        %v481 = vadd.f32 0.0, %v480
        %v482 = vpop.f32.mrb[0].mxu0
        %v483 = vpop.f32.mrb[0].mxu0
        %v484 = vadd.f32 0.0, %v483
        %v485 = vpop.f32.mrb[0].mxu0
        %486 = vmatprep.mubr.bf16.mxu0 0
        %487 = vmatmul.mubr.bf16.gmra.mrb[0].mxu0 %v424
        %v488 = vpop.f32.mrb[0].mxu0
        %v489 = vadd.f32 0.0, %v488
        %v490 = vpop.f32.mrb[0].mxu0
        %v491 = vpop.f32.mrb[0].mxu0
        %v492 = vadd.f32 0.0, %v491
        %v493 = vpop.f32.mrb[0].mxu0
        %494 = vmatprep.mubr.bf16.mxu0 0
        %495 = vmatmul.mubr.bf16.gmra.mrb[0].mxu0 %v425
        %v496 = vpop.f32.mrb[0].mxu0
        %v497 = vadd.f32 0.0, %v496
        %v498 = vpop.f32.mrb[0].mxu0
        %v499 = vpop.f32.mrb[0].mxu0
        %v500 = vadd.f32 0.0, %v499
        %v501 = vpop.f32.mrb[0].mxu0
        %502 = vmatprep.mubr.bf16.mxu0 0
        %503 = vmatmul.mubr.bf16.gmra.mrb[0].mxu0 %v426
        %v504 = vpop.f32.mrb[0].mxu0
        %v505 = vadd.f32 0.0, %v504
        %v506 = vpop.f32.mrb[0].mxu0
        %v507 = vpop.f32.mrb[0].mxu0
        %v508 = vadd.f32 0.0, %v507
        %v509 = vpop.f32.mrb[0].mxu0
        %510 = vmatprep.mubr.bf16.mxu0 0
        %511 = vmatmul.mubr.bf16.gmra.mrb[0].mxu0 %v427
        %v512 = vpop.f32.mrb[0].mxu0
        %v513 = vadd.f32 0.0, %v512
        %v514 = vpop.f32.mrb[0].mxu0
        %v515 = vpop.f32.mrb[0].mxu0
        %v516 = vadd.f32 0.0, %v515
        %v517 = vpop.f32.mrb[0].mxu0
        %518 = vmatprep.mubr.bf16.mxu0 0
        %519 = vmatmul.mubr.bf16.gmra.mrb[0].mxu0 %v428
        %v520 = vpop.f32.mrb[0].mxu0
        %v521 = vadd.f32 0.0, %v520
        %v522 = vpop.f32.mrb[0].mxu0
        %v523 = vpop.f32.mrb[0].mxu0
        %v524 = vadd.f32 0.0, %v523
        %v525 = vpop.f32.mrb[0].mxu0
        %526 = vmatprep.mubr.bf16.mxu0 0
        %527 = vmatmul.mubr.bf16.gmra.mrb[0].mxu0 %v429
        %v528 = vpop.f32.mrb[0].mxu0
        %v529 = vadd.f32 0.0, %v528
        %v530 = vpop.f32.mrb[0].mxu0
        %v531 = vpop.f32.mrb[0].mxu0
        %v532 = vadd.f32 0.0, %v531
        %v533 = vpop.f32.mrb[0].mxu0
        %534 = vdwg.mxu0
        %v535 = vadd.f32 %v374, %v473
        %v536 = vadd.f32 %v375, %v476
        %v537 = vadd.f32 %v376, %v481
        %v538 = vadd.f32 %v377, %v484
        %v539 = vadd.f32 %v378, %v489
        %v540 = vadd.f32 %v379, %v492
        %v541 = vadd.f32 %v380, %v497
        %v542 = vadd.f32 %v381, %v500
        %v543 = vadd.f32 %v382, %v505
        %v544 = vadd.f32 %v383, %v508
        %v545 = vadd.f32 %v384, %v513
        %v546 = vadd.f32 %v385, %v516
        %v547 = vadd.f32 %v386, %v521
        %v548 = vadd.f32 %v387, %v524
        %v549 = vadd.f32 %v388, %v529
        %v550 = vadd.f32 %v389, %v532
        %551 = vst [vmem:[#allocation2] sm:$0xff] %v535
        %552 = vst [vmem:[#allocation2 + $0x8] sm:$0xff] %v536
        %553 = vst [vmem:[#allocation2 + $0x10] sm:$0xff] %v537
        %554 = vst [vmem:[#allocation2 + $0x18] sm:$0xff] %v538
        %555 = vst [vmem:[#allocation2 + $0x20] sm:$0xff] %v539
        %556 = vst [vmem:[#allocation2 + $0x28] sm:$0xff] %v540
        %557 = vst [vmem:[#allocation2 + $0x30] sm:$0xff] %v541
        %558 = vst [vmem:[#allocation2 + $0x38] sm:$0xff] %v542
        %559 = vst [vmem:[#allocation2 + $0x40] sm:$0xff] %v543
        %560 = vst [vmem:[#allocation2 + $0x48] sm:$0xff] %v544
        %561 = vst [vmem:[#allocation2 + $0x50] sm:$0xff] %v545
        %562 = vst [vmem:[#allocation2 + $0x58] sm:$0xff] %v546
        %563 = vst [vmem:[#allocation2 + $0x60] sm:$0xff] %v547
        %564 = vst [vmem:[#allocation2 + $0x68] sm:$0xff] %v548
        %565 = vst [vmem:[#allocation2 + $0x70] sm:$0xff] %v549
        %566 = vst [vmem:[#allocation2 + $0x78] sm:$0xff] %v550
        %p567 = scmp.eq.s32.totalorder %s19, 2
        // Predicated region
        $region78: #{sgae_forward.12} parent=68 // pred_check
          %p568 = pneg %p567
        $region79: #{sgae_forward.12} parent=68 // pred_check_branch
          %570 = sbr.rel (%p568) target = $region81
        $region80: #{sgae_forward.12} parent=68 // pred_region
          %v571 = vld [vmem:[#allocation2] sm:$0xff]
          %v572 = vld [vmem:[#allocation2 + $0x8] sm:$0xff]
          %v573 = vld [vmem:[#allocation2 + $0x10] sm:$0xff]
          %v574 = vld [vmem:[#allocation2 + $0x18] sm:$0xff]
          %v575 = vld [vmem:[#allocation2 + $0x20] sm:$0xff]
          %v576 = vld [vmem:[#allocation2 + $0x28] sm:$0xff]
          %v577 = vld [vmem:[#allocation2 + $0x30] sm:$0xff]
          %v578 = vld [vmem:[#allocation2 + $0x38] sm:$0xff]
          %v579 = vld [vmem:[#allocation2 + $0x40] sm:$0xff]
          %v580 = vld [vmem:[#allocation2 + $0x48] sm:$0xff]
          %v581 = vld [vmem:[#allocation2 + $0x50] sm:$0xff]
          %v582 = vld [vmem:[#allocation2 + $0x58] sm:$0xff]
          %v583 = vld [vmem:[#allocation2 + $0x60] sm:$0xff]
          %v584 = vld [vmem:[#allocation2 + $0x68] sm:$0xff]
          %v585 = vld [vmem:[#allocation2 + $0x70] sm:$0xff]
          %v586 = vld [vmem:[#allocation2 + $0x78] sm:$0xff]
          %v587 = vld [vmem:[%s2] sm:$0x1]
          %v589 = vlaneseq
          %v590 = vshrl.u32 %v589, 7
          %v591 = vsub.s32 0, %v590
          %v592 = vrot.slane %v587, %v591
          %v594 = vadd.f32 %v571, %v592
          %v595 = vadd.f32 %v572, %v592
          %v596 = vadd.f32 %v573, %v592
          %v597 = vadd.f32 %v574, %v592
          %v598 = vadd.f32 %v575, %v592
          %v599 = vadd.f32 %v576, %v592
          %v600 = vadd.f32 %v577, %v592
          %v601 = vadd.f32 %v578, %v592
          %v602 = vadd.f32 %v579, %v592
          %v603 = vadd.f32 %v580, %v592
          %v604 = vadd.f32 %v581, %v592
          %v605 = vadd.f32 %v582, %v592
          %v606 = vadd.f32 %v583, %v592
          %v607 = vadd.f32 %v584, %v592
          %v608 = vadd.f32 %v585, %v592
          %v609 = vadd.f32 %v586, %v592
          %610 = vst [vmem:[%s311] sm:$0xff] %v594
          %611 = vst [vmem:[%s311 + $0x8] sm:$0xff] %v595
          %612 = vst [vmem:[%s311 + $0x10] sm:$0xff] %v596
          %613 = vst [vmem:[%s311 + $0x18] sm:$0xff] %v597
          %614 = vst [vmem:[%s311 + $0x20] sm:$0xff] %v598
          %615 = vst [vmem:[%s311 + $0x28] sm:$0xff] %v599
          %616 = vst [vmem:[%s311 + $0x30] sm:$0xff] %v600
          %617 = vst [vmem:[%s311 + $0x38] sm:$0xff] %v601
          %618 = vst [vmem:[%s311 + $0x40] sm:$0xff] %v602
          %619 = vst [vmem:[%s311 + $0x48] sm:$0xff] %v603
          %620 = vst [vmem:[%s311 + $0x50] sm:$0xff] %v604
          %621 = vst [vmem:[%s311 + $0x58] sm:$0xff] %v605
          %622 = vst [vmem:[%s311 + $0x60] sm:$0xff] %v606
          %623 = vst [vmem:[%s311 + $0x68] sm:$0xff] %v607
          %624 = vst [vmem:[%s311 + $0x70] sm:$0xff] %v608
          %625 = vst [vmem:[%s311 + $0x78] sm:$0xff] %v609
        $region81: #{sgae_forward.12} parent=68 // pred_fallthru
          _
        %s626 = smul.u32 16, %s18
        %p627 = scmp.lt.s32.totalorder %s626, 47
        %s628 = scalar_select %p627, %s626, 47
        %s629 = smul.addr %s628, 8
        %s630 = scalar_lea.vmem %s3, %s629
        // Predicated region
        $region82: #{sgae_forward.12} parent=68 // pred_check
          %p631 = pneg %p119
        $region83: #{sgae_forward.12} parent=68 // pred_check_branch
          %633 = sbr.rel (%p631) target = $region85
        $region84: #{sgae_forward.12} parent=68 // pred_region
          %s634 = smul.u32 16, %s18
        $region85: #{sgae_forward.12} parent=68 // pred_fallthru
          _
      $region69: #{sgae_forward.12} parent=5 // pred_fallthru
        _
      %p635 = scmp.le.s32.totalorder 2, %s9
      // Predicated region
      $region86: #{sgae_forward.12} parent=5 // pred_check
        %p636 = pneg %p635
      $region87: #{sgae_forward.12} parent=5 // pred_check_branch
        %638 = sbr.rel (%p636) target = $region89
      $region88: #{sgae_forward.12} parent=5 // pred_region
        %s639 = ssub.s32 %s9, 2
        // Predicated region
        $region90: #{sgae_forward.12} parent=88 // pred_check
          %p640 = pneg %p125
        $region91: #{sgae_forward.12} parent=88 // pred_check_branch
          %642 = sbr.rel (%p640) target = $region93
        $region92: #{sgae_forward.12} parent=88 // pred_region
          %s643 = smul.u32 16, %s20
          %p644 = scmp.lt.s32.totalorder %s643, 47
          %s645 = scalar_select %p644, %s643, 47
          %s646 = smul.addr %s645, 8
          %s647 = scalar_lea.vmem %s3, %s646
        $region93: #{sgae_forward.12} parent=88 // pred_fallthru
          _
      $region89: #{sgae_forward.12} parent=5 // pred_fallthru
        _
    $region6: #{sgae_forward.12} parent=1 // loop_footer
      %s13 = sadd.s32 1, %s9
    $region7: #{sgae_forward.12} parent=1 // loop_footer_branch
      %8 = sbr.rel target = $region3
    $region8: #{sgae_forward.12} parent=1 // loop_exit
      _

// kernel: sgae_forward.17
$region0: #{sgae_forward.17}
  #allocation0 [shape = 'u32[]', space=smem, size = 0x4, offset = 0x4, fixed_abs, tag = 'smem constant byte address 0x4 - core index']
  #allocation1 [shape = 'u32[144,128]{1,0:T(1,128)}', space=vmem, size = 0x12000, scoped, tag = 'internal scratch']
  %s0 = inlined_call_operand.vmem [shape: f32[256,128], index: 0, kind: input, shape index: {}]
  %s1 = inlined_call_operand.vmem [shape: f32[384,128], index: 1, kind: input, shape index: {}]
  %s2 = inlined_call_operand.vmem [shape: f32[256,384], index: 2, kind: input, shape index: {}]
  %s3 = inlined_call_operand.vmem [shape: f32[384,128], index: 3, kind: input, shape index: {}]
  %s4 = inlined_call_operand.vmem [shape: f32[1,128], index: 4, kind: input, shape index: {}]
  %s5 = inlined_call_operand.vmem [shape: f32[128,128], index: 5, kind: input, shape index: {}]
  %s6 = inlined_call_operand.vmem [shape: f32[1,128], index: 6, kind: input, shape index: {}]
  %s7 = inlined_call_operand.vmem [shape: f32[256,384], index: 7, kind: output, shape index: {0}]
  %s8 = inlined_call_operand.vmem [shape: f32[256,128], index: 8, kind: output, shape index: {1}]
  %9 = xla_tuple %s7, %s8
  %s10 = sld [smem:[#allocation0]]
  $region46: #{sgae_forward.17} parent=0
    _
  %s12 = ssub.s32 1, %s10
  %s13 = scalar_select 0, %s12, %s10
  // Predicated region
  $region2: #{sgae_forward.17} parent=0 // pred_check
    _
  $region3: #{sgae_forward.17} parent=0 // pred_check_branch
    %15 = sbr.rel (0) target = $region5
  $region4: #{sgae_forward.17} parent=0 // pred_region
    _
  $region5: #{sgae_forward.17} parent=0 // pred_fallthru
    _
  // Predicated region
  $region6: #{sgae_forward.17} parent=0 // pred_check
    _
  $region7: #{sgae_forward.17} parent=0 // pred_check_branch
    %17 = sbr.rel (0) target = $region9
  $region8: #{sgae_forward.17} parent=0 // pred_region
    _
  $region9: #{sgae_forward.17} parent=0 // pred_fallthru
    _
  // Predicated region
  $region10: #{sgae_forward.17} parent=0 // pred_check
    _
  $region11: #{sgae_forward.17} parent=0 // pred_check_branch
    %19 = sbr.rel (0) target = $region13
  $region12: #{sgae_forward.17} parent=0 // pred_region
    _
  $region13: #{sgae_forward.17} parent=0 // pred_fallthru
    _
  // Predicated region
  $region14: #{sgae_forward.17} parent=0 // pred_check
    _
  $region15: #{sgae_forward.17} parent=0 // pred_check_branch
    %21 = sbr.rel (0) target = $region17
  $region16: #{sgae_forward.17} parent=0 // pred_region
    _
  $region17: #{sgae_forward.17} parent=0 // pred_fallthru
    _
  // Predicated region
  $region18: #{sgae_forward.17} parent=0 // pred_check
    _
  $region19: #{sgae_forward.17} parent=0 // pred_check_branch
    %23 = sbr.rel (0) target = $region21
  $region20: #{sgae_forward.17} parent=0 // pred_region
    _
  $region21: #{sgae_forward.17} parent=0 // pred_fallthru
    _
  // Predicated region
  $region22: #{sgae_forward.17} parent=0 // pred_check
    _
  $region23: #{sgae_forward.17} parent=0 // pred_check_branch
    %25 = sbr.rel (0) target = $region25
  $region24: #{sgae_forward.17} parent=0 // pred_region
    _
  $region25: #{sgae_forward.17} parent=0 // pred_fallthru
    _
  // Predicated region
  $region26: #{sgae_forward.17} parent=0 // pred_check
    _
  $region27: #{sgae_forward.17} parent=0 // pred_check_branch
    %27 = sbr.rel (0) target = $region29
  $region28: #{sgae_forward.17} parent=0 // pred_region
    _
  $region29: #{sgae_forward.17} parent=0 // pred_fallthru
    _
  %v28 = vld [vmem:[%s0] sm:$0xff]
  %v29 = vld [vmem:[%s0 + $0x8] sm:$0xff]
  %v30 = vld [vmem:[%s0 + $0x10] sm:$0xff]
  %v31 = vld [vmem:[%s0 + $0x18] sm:$0xff]
  %v32 = vld [vmem:[%s0 + $0x20] sm:$0xff]
  %v33 = vld [vmem:[%s0 + $0x28] sm:$0xff]
  %v34 = vld [vmem:[%s0 + $0x30] sm:$0xff]
  %v35 = vld [vmem:[%s0 + $0x38] sm:$0xff]
  %v36 = vld [vmem:[%s0 + $0x40] sm:$0xff]
  %v37 = vld [vmem:[%s0 + $0x48] sm:$0xff]
  %v38 = vld [vmem:[%s0 + $0x50] sm:$0xff]
  %v39 = vld [vmem:[%s0 + $0x58] sm:$0xff]
  %v40 = vld [vmem:[%s0 + $0x60] sm:$0xff]
  %v41 = vld [vmem:[%s0 + $0x68] sm:$0xff]
  %v42 = vld [vmem:[%s0 + $0x70] sm:$0xff]
  %v43 = vld [vmem:[%s0 + $0x78] sm:$0xff]
  %v44 = vld [vmem:[%s0 + $0x80] sm:$0xff]
  %v45 = vld [vmem:[%s0 + $0x88] sm:$0xff]
  %v46 = vld [vmem:[%s0 + $0x90] sm:$0xff]
  %v47 = vld [vmem:[%s0 + $0x98] sm:$0xff]
  %v48 = vld [vmem:[%s0 + $0xa0] sm:$0xff]
  %v49 = vld [vmem:[%s0 + $0xa8] sm:$0xff]
  %v50 = vld [vmem:[%s0 + $0xb0] sm:$0xff]
  %v51 = vld [vmem:[%s0 + $0xb8] sm:$0xff]
  %v52 = vld [vmem:[%s0 + $0xc0] sm:$0xff]
  %v53 = vld [vmem:[%s0 + $0xc8] sm:$0xff]
  %v54 = vld [vmem:[%s0 + $0xd0] sm:$0xff]
  %v55 = vld [vmem:[%s0 + $0xd8] sm:$0xff]
  %v56 = vld [vmem:[%s0 + $0xe0] sm:$0xff]
  %v57 = vld [vmem:[%s0 + $0xe8] sm:$0xff]
  %v58 = vld [vmem:[%s0 + $0xf0] sm:$0xff]
  %v59 = vld [vmem:[%s0 + $0xf8] sm:$0xff]
  %v60 = vld [vmem:[%s1] sm:$0xff]
  %v61 = vld [vmem:[%s1 + $0x8] sm:$0xff]
  %v62 = vld [vmem:[%s1 + $0x10] sm:$0xff]
  %v63 = vld [vmem:[%s1 + $0x18] sm:$0xff]
  %v64 = vld [vmem:[%s1 + $0x20] sm:$0xff]
  %v65 = vld [vmem:[%s1 + $0x28] sm:$0xff]
  %v66 = vld [vmem:[%s1 + $0x30] sm:$0xff]
  %v67 = vld [vmem:[%s1 + $0x38] sm:$0xff]
  %v68 = vld [vmem:[%s1 + $0x40] sm:$0xff]
  %v69 = vld [vmem:[%s1 + $0x48] sm:$0xff]
  %v70 = vld [vmem:[%s1 + $0x50] sm:$0xff]
  %v71 = vld [vmem:[%s1 + $0x58] sm:$0xff]
  %v72 = vld [vmem:[%s1 + $0x60] sm:$0xff]
  %v73 = vld [vmem:[%s1 + $0x68] sm:$0xff]
  %v74 = vld [vmem:[%s1 + $0x70] sm:$0xff]
  %v75 = vld [vmem:[%s1 + $0x78] sm:$0xff]
  %v76 = vld [vmem:[%s1 + $0x80] sm:$0xff]
  %v77 = vld [vmem:[%s1 + $0x88] sm:$0xff]
  %v78 = vld [vmem:[%s1 + $0x90] sm:$0xff]
  %v79 = vld [vmem:[%s1 + $0x98] sm:$0xff]
  %v80 = vld [vmem:[%s1 + $0xa0] sm:$0xff]
  %v81 = vld [vmem:[%s1 + $0xa8] sm:$0xff]
  %v82 = vld [vmem:[%s1 + $0xb0] sm:$0xff]
  %v83 = vld [vmem:[%s1 + $0xb8] sm:$0xff]
  %v84 = vld [vmem:[%s1 + $0xc0] sm:$0xff]
  %v85 = vld [vmem:[%s1 + $0xc8] sm:$0xff]
  %v86 = vld [vmem:[%s1 + $0xd0] sm:$0xff]
  %v87 = vld [vmem:[%s1 + $0xd8] sm:$0xff]
  %v88 = vld [vmem:[%s1 + $0xe0] sm:$0xff]
  %v89 = vld [vmem:[%s1 + $0xe8] sm:$0xff]
  %v90 = vld [vmem:[%s1 + $0xf0] sm:$0xff]
  %v91 = vld [vmem:[%s1 + $0xf8] sm:$0xff]
  %v92 = vld [vmem:[%s1 + $0x100] sm:$0xff]
  %v93 = vld [vmem:[%s1 + $0x108] sm:$0xff]
  %v94 = vld [vmem:[%s1 + $0x110] sm:$0xff]
  %v95 = vld [vmem:[%s1 + $0x118] sm:$0xff]
  %v96 = vld [vmem:[%s1 + $0x120] sm:$0xff]
  %v97 = vld [vmem:[%s1 + $0x128] sm:$0xff]
  %v98 = vld [vmem:[%s1 + $0x130] sm:$0xff]
  %v99 = vld [vmem:[%s1 + $0x138] sm:$0xff]
  %v100 = vld [vmem:[%s1 + $0x140] sm:$0xff]
  %v101 = vld [vmem:[%s1 + $0x148] sm:$0xff]
  %v102 = vld [vmem:[%s1 + $0x150] sm:$0xff]
  %v103 = vld [vmem:[%s1 + $0x158] sm:$0xff]
  %v104 = vld [vmem:[%s1 + $0x160] sm:$0xff]
  %v105 = vld [vmem:[%s1 + $0x168] sm:$0xff]
  %v106 = vld [vmem:[%s1 + $0x170] sm:$0xff]
  %v107 = vld [vmem:[%s1 + $0x178] sm:$0xff]
  %v108 = vmul.f32 %v28, %v28
  %v109 = vmul.f32 %v29, %v29
  %v110 = vmul.f32 %v30, %v30
  %v111 = vmul.f32 %v31, %v31
  %v112 = vmul.f32 %v32, %v32
  %v113 = vmul.f32 %v33, %v33
  %v114 = vmul.f32 %v34, %v34
  %v115 = vmul.f32 %v35, %v35
  %v116 = vmul.f32 %v36, %v36
  %v117 = vmul.f32 %v37, %v37
  %v118 = vmul.f32 %v38, %v38
  %v119 = vmul.f32 %v39, %v39
  %v120 = vmul.f32 %v40, %v40
  %v121 = vmul.f32 %v41, %v41
  %v122 = vmul.f32 %v42, %v42
  %v123 = vmul.f32 %v43, %v43
  %v124 = vmul.f32 %v44, %v44
  %v125 = vmul.f32 %v45, %v45
  %v126 = vmul.f32 %v46, %v46
  %v127 = vmul.f32 %v47, %v47
  %v128 = vmul.f32 %v48, %v48
  %v129 = vmul.f32 %v49, %v49
  %v130 = vmul.f32 %v50, %v50
  %v131 = vmul.f32 %v51, %v51
  %v132 = vmul.f32 %v52, %v52
  %v133 = vmul.f32 %v53, %v53
  %v134 = vmul.f32 %v54, %v54
  %v135 = vmul.f32 %v55, %v55
  %v136 = vmul.f32 %v56, %v56
  %v137 = vmul.f32 %v57, %v57
  %v138 = vmul.f32 %v58, %v58
  %v139 = vmul.f32 %v59, %v59
  %140 = vadd.xlane.f32.xlu0 %v108
  %v141 = vpop.xlane.xlu0 %140
  %142 = vadd.xlane.f32.xlu0 %v109
  %v143 = vpop.xlane.xlu0 %142
  %144 = vadd.xlane.f32.xlu0 %v110
  %v145 = vpop.xlane.xlu0 %144
  %146 = vadd.xlane.f32.xlu0 %v111
  %v147 = vpop.xlane.xlu0 %146
  %148 = vadd.xlane.f32.xlu0 %v112
  %v149 = vpop.xlane.xlu0 %148
  %150 = vadd.xlane.f32.xlu0 %v113
  %v151 = vpop.xlane.xlu0 %150
  %152 = vadd.xlane.f32.xlu0 %v114
  %v153 = vpop.xlane.xlu0 %152
  %154 = vadd.xlane.f32.xlu0 %v115
  %v155 = vpop.xlane.xlu0 %154
  %156 = vadd.xlane.f32.xlu0 %v116
  %v157 = vpop.xlane.xlu0 %156
  %158 = vadd.xlane.f32.xlu0 %v117
  %v159 = vpop.xlane.xlu0 %158
  %160 = vadd.xlane.f32.xlu0 %v118
  %v161 = vpop.xlane.xlu0 %160
  %162 = vadd.xlane.f32.xlu0 %v119
  %v163 = vpop.xlane.xlu0 %162
  %164 = vadd.xlane.f32.xlu0 %v120
  %v165 = vpop.xlane.xlu0 %164
  %166 = vadd.xlane.f32.xlu0 %v121
  %v167 = vpop.xlane.xlu0 %166
  %168 = vadd.xlane.f32.xlu0 %v122
  %v169 = vpop.xlane.xlu0 %168
  %170 = vadd.xlane.f32.xlu0 %v123
  %v171 = vpop.xlane.xlu0 %170
  %172 = vadd.xlane.f32.xlu0 %v124
  %v173 = vpop.xlane.xlu0 %172
  %174 = vadd.xlane.f32.xlu0 %v125
  %v175 = vpop.xlane.xlu0 %174
  %176 = vadd.xlane.f32.xlu0 %v126
  %v177 = vpop.xlane.xlu0 %176
  %178 = vadd.xlane.f32.xlu0 %v127
  %v179 = vpop.xlane.xlu0 %178
  %180 = vadd.xlane.f32.xlu0 %v128
  %v181 = vpop.xlane.xlu0 %180
  %182 = vadd.xlane.f32.xlu0 %v129
  %v183 = vpop.xlane.xlu0 %182
  %184 = vadd.xlane.f32.xlu0 %v130
  %v185 = vpop.xlane.xlu0 %184
  %186 = vadd.xlane.f32.xlu0 %v131
  %v187 = vpop.xlane.xlu0 %186
  %188 = vadd.xlane.f32.xlu0 %v132
  %v189 = vpop.xlane.xlu0 %188
  %190 = vadd.xlane.f32.xlu0 %v133
  %v191 = vpop.xlane.xlu0 %190
  %192 = vadd.xlane.f32.xlu0 %v134
  %v193 = vpop.xlane.xlu0 %192
  %194 = vadd.xlane.f32.xlu0 %v135
  %v195 = vpop.xlane.xlu0 %194
  %196 = vadd.xlane.f32.xlu0 %v136
  %v197 = vpop.xlane.xlu0 %196
  %198 = vadd.xlane.f32.xlu0 %v137
  %v199 = vpop.xlane.xlu0 %198
  %200 = vadd.xlane.f32.xlu0 %v138
  %v201 = vpop.xlane.xlu0 %200
  %202 = vadd.xlane.f32.xlu0 %v139
  %v203 = vpop.xlane.xlu0 %202
  %v204 = vadd.f32 %v141, 1e-12
  %v205 = vadd.f32 %v143, 1e-12
  %v206 = vadd.f32 %v145, 1e-12
  %v207 = vadd.f32 %v147, 1e-12
  %v208 = vadd.f32 %v149, 1e-12
  %v209 = vadd.f32 %v151, 1e-12
  %v210 = vadd.f32 %v153, 1e-12
  %v211 = vadd.f32 %v155, 1e-12
  %v212 = vadd.f32 %v157, 1e-12
  %v213 = vadd.f32 %v159, 1e-12
  %v214 = vadd.f32 %v161, 1e-12
  %v215 = vadd.f32 %v163, 1e-12
  %v216 = vadd.f32 %v165, 1e-12
  %v217 = vadd.f32 %v167, 1e-12
  %v218 = vadd.f32 %v169, 1e-12
  %v219 = vadd.f32 %v171, 1e-12
  %v220 = vadd.f32 %v173, 1e-12
  %v221 = vadd.f32 %v175, 1e-12
  %v222 = vadd.f32 %v177, 1e-12
  %v223 = vadd.f32 %v179, 1e-12
  %v224 = vadd.f32 %v181, 1e-12
  %v225 = vadd.f32 %v183, 1e-12
  %v226 = vadd.f32 %v185, 1e-12
  %v227 = vadd.f32 %v187, 1e-12
  %v228 = vadd.f32 %v189, 1e-12
  %v229 = vadd.f32 %v191, 1e-12
  %v230 = vadd.f32 %v193, 1e-12
  %v231 = vadd.f32 %v195, 1e-12
  %v232 = vadd.f32 %v197, 1e-12
  %v233 = vadd.f32 %v199, 1e-12
  %v234 = vadd.f32 %v201, 1e-12
  %v235 = vadd.f32 %v203, 1e-12
  %v236 = vrsqrt.pop %v204
  %v237 = vrsqrt.pop %v205
  %v238 = vrsqrt.pop %v206
  %v239 = vrsqrt.pop %v207
  %v240 = vrsqrt.pop %v208
  %v241 = vrsqrt.pop %v209
  %v242 = vrsqrt.pop %v210
  %v243 = vrsqrt.pop %v211
  %v244 = vrsqrt.pop %v212
  %v245 = vrsqrt.pop %v213
  %v246 = vrsqrt.pop %v214
  %v247 = vrsqrt.pop %v215
  %v248 = vrsqrt.pop %v216
  %v249 = vrsqrt.pop %v217
  %v250 = vrsqrt.pop %v218
  %v251 = vrsqrt.pop %v219
  %v252 = vrsqrt.pop %v220
  %v253 = vrsqrt.pop %v221
  %v254 = vrsqrt.pop %v222
  %v255 = vrsqrt.pop %v223
  %v256 = vrsqrt.pop %v224
  %v257 = vrsqrt.pop %v225
  %v258 = vrsqrt.pop %v226
  %v259 = vrsqrt.pop %v227
  %v260 = vrsqrt.pop %v228
  %v261 = vrsqrt.pop %v229
  %v262 = vrsqrt.pop %v230
  %v263 = vrsqrt.pop %v231
  %v264 = vrsqrt.pop %v232
  %v265 = vrsqrt.pop %v233
  %v266 = vrsqrt.pop %v234
  %v267 = vrsqrt.pop %v235
  %v268 = vmul.f32 %v28, %v236
  %v269 = vmul.f32 %v29, %v237
  %v270 = vmul.f32 %v30, %v238
  %v271 = vmul.f32 %v31, %v239
  %v272 = vmul.f32 %v32, %v240
  %v273 = vmul.f32 %v33, %v241
  %v274 = vmul.f32 %v34, %v242
  %v275 = vmul.f32 %v35, %v243
  %v276 = vmul.f32 %v36, %v244
  %v277 = vmul.f32 %v37, %v245
  %v278 = vmul.f32 %v38, %v246
  %v279 = vmul.f32 %v39, %v247
  %v280 = vmul.f32 %v40, %v248
  %v281 = vmul.f32 %v41, %v249
  %v282 = vmul.f32 %v42, %v250
  %v283 = vmul.f32 %v43, %v251
  %v284 = vmul.f32 %v44, %v252
  %v285 = vmul.f32 %v45, %v253
  %v286 = vmul.f32 %v46, %v254
  %v287 = vmul.f32 %v47, %v255
  %v288 = vmul.f32 %v48, %v256
  %v289 = vmul.f32 %v49, %v257
  %v290 = vmul.f32 %v50, %v258
  %v291 = vmul.f32 %v51, %v259
  %v292 = vmul.f32 %v52, %v260
  %v293 = vmul.f32 %v53, %v261
  %v294 = vmul.f32 %v54, %v262
  %v295 = vmul.f32 %v55, %v263
  %v296 = vmul.f32 %v56, %v264
  %v297 = vmul.f32 %v57, %v265
  %v298 = vmul.f32 %v58, %v266
  %v299 = vmul.f32 %v59, %v267
  %v300 = vmul.f32 %v60, %v60
  %v301 = vmul.f32 %v61, %v61
  %v302 = vmul.f32 %v62, %v62
  %v303 = vmul.f32 %v63, %v63
  %v304 = vmul.f32 %v64, %v64
  %v305 = vmul.f32 %v65, %v65
  %v306 = vmul.f32 %v66, %v66
  %v307 = vmul.f32 %v67, %v67
  %v308 = vmul.f32 %v68, %v68
  %v309 = vmul.f32 %v69, %v69
  %v310 = vmul.f32 %v70, %v70
  %v311 = vmul.f32 %v71, %v71
  %v312 = vmul.f32 %v72, %v72
  %v313 = vmul.f32 %v73, %v73
  %v314 = vmul.f32 %v74, %v74
  %v315 = vmul.f32 %v75, %v75
  %v316 = vmul.f32 %v76, %v76
  %v317 = vmul.f32 %v77, %v77
  %v318 = vmul.f32 %v78, %v78
  %v319 = vmul.f32 %v79, %v79
  %v320 = vmul.f32 %v80, %v80
  %v321 = vmul.f32 %v81, %v81
  %v322 = vmul.f32 %v82, %v82
  %v323 = vmul.f32 %v83, %v83
  %v324 = vmul.f32 %v84, %v84
  %v325 = vmul.f32 %v85, %v85
  %v326 = vmul.f32 %v86, %v86
  %v327 = vmul.f32 %v87, %v87
  %v328 = vmul.f32 %v88, %v88
  %v329 = vmul.f32 %v89, %v89
  %v330 = vmul.f32 %v90, %v90
  %v331 = vmul.f32 %v91, %v91
  %v332 = vmul.f32 %v92, %v92
  %v333 = vmul.f32 %v93, %v93
  %v334 = vmul.f32 %v94, %v94
  %v335 = vmul.f32 %v95, %v95
  %v336 = vmul.f32 %v96, %v96
  %v337 = vmul.f32 %v97, %v97
  %v338 = vmul.f32 %v98, %v98
  %v339 = vmul.f32 %v99, %v99
  %v340 = vmul.f32 %v100, %v100
  %v341 = vmul.f32 %v101, %v101
  %v342 = vmul.f32 %v102, %v102
  %v343 = vmul.f32 %v103, %v103
  %v344 = vmul.f32 %v104, %v104
  %v345 = vmul.f32 %v105, %v105
  %v346 = vmul.f32 %v106, %v106
  %v347 = vmul.f32 %v107, %v107
  %348 = vadd.xlane.f32.xlu0 %v300
  %v349 = vpop.xlane.xlu0 %348
  %350 = vadd.xlane.f32.xlu0 %v301
  %v351 = vpop.xlane.xlu0 %350
  %352 = vadd.xlane.f32.xlu0 %v302
  %v353 = vpop.xlane.xlu0 %352
  %354 = vadd.xlane.f32.xlu0 %v303
  %v355 = vpop.xlane.xlu0 %354
  %356 = vadd.xlane.f32.xlu0 %v304
  %v357 = vpop.xlane.xlu0 %356
  %358 = vadd.xlane.f32.xlu0 %v305
  %v359 = vpop.xlane.xlu0 %358
  %360 = vadd.xlane.f32.xlu0 %v306
  %v361 = vpop.xlane.xlu0 %360
  %362 = vadd.xlane.f32.xlu0 %v307
  %v363 = vpop.xlane.xlu0 %362
  %364 = vadd.xlane.f32.xlu0 %v308
  %v365 = vpop.xlane.xlu0 %364
  %366 = vadd.xlane.f32.xlu0 %v309
  %v367 = vpop.xlane.xlu0 %366
  %368 = vadd.xlane.f32.xlu0 %v310
  %v369 = vpop.xlane.xlu0 %368
  %370 = vadd.xlane.f32.xlu0 %v311
  %v371 = vpop.xlane.xlu0 %370
  %372 = vadd.xlane.f32.xlu0 %v312
  %v373 = vpop.xlane.xlu0 %372
  %374 = vadd.xlane.f32.xlu0 %v313
  %v375 = vpop.xlane.xlu0 %374
  %376 = vadd.xlane.f32.xlu0 %v314
  %v377 = vpop.xlane.xlu0 %376
  %378 = vadd.xlane.f32.xlu0 %v315
  %v379 = vpop.xlane.xlu0 %378
  %380 = vadd.xlane.f32.xlu0 %v316
  %v381 = vpop.xlane.xlu0 %380
  %382 = vadd.xlane.f32.xlu0 %v317
  %v383 = vpop.xlane.xlu0 %382
  %384 = vadd.xlane.f32.xlu0 %v318
  %v385 = vpop.xlane.xlu0 %384
  %386 = vadd.xlane.f32.xlu0 %v319
  %v387 = vpop.xlane.xlu0 %386
  %388 = vadd.xlane.f32.xlu0 %v320
  %v389 = vpop.xlane.xlu0 %388
  %390 = vadd.xlane.f32.xlu0 %v321
  %v391 = vpop.xlane.xlu0 %390
  %392 = vadd.xlane.f32.xlu0 %v322
  %v393 = vpop.xlane.xlu0 %392
  %394 = vadd.xlane.f32.xlu0 %v323
  %v395 = vpop.xlane.xlu0 %394
  %396 = vadd.xlane.f32.xlu0 %v324
  %v397 = vpop.xlane.xlu0 %396
  %398 = vadd.xlane.f32.xlu0 %v325
  %v399 = vpop.xlane.xlu0 %398
  %400 = vadd.xlane.f32.xlu0 %v326
  %v401 = vpop.xlane.xlu0 %400
  %402 = vadd.xlane.f32.xlu0 %v327
  %v403 = vpop.xlane.xlu0 %402
  %404 = vadd.xlane.f32.xlu0 %v328
  %v405 = vpop.xlane.xlu0 %404
  %406 = vadd.xlane.f32.xlu0 %v329
  %v407 = vpop.xlane.xlu0 %406
  %408 = vadd.xlane.f32.xlu0 %v330
  %v409 = vpop.xlane.xlu0 %408
  %410 = vadd.xlane.f32.xlu0 %v331
  %v411 = vpop.xlane.xlu0 %410
  %412 = vadd.xlane.f32.xlu0 %v332
  %v413 = vpop.xlane.xlu0 %412
  %414 = vadd.xlane.f32.xlu0 %v333
  %v415 = vpop.xlane.xlu0 %414
  %416 = vadd.xlane.f32.xlu0 %v334
  %v417 = vpop.xlane.xlu0 %416
  %418 = vadd.xlane.f32.xlu0 %v335
  %v419 = vpop.xlane.xlu0 %418
  %420 = vadd.xlane.f32.xlu0 %v336
  %v421 = vpop.xlane.xlu0 %420
  %422 = vadd.xlane.f32.xlu0 %v337
  %v423 = vpop.xlane.xlu0 %422
  %424 = vadd.xlane.f32.xlu0 %v338
  %v425 = vpop.xlane.xlu0 %424
  %426 = vadd.xlane.f32.xlu0 %v339
  %v427 = vpop.xlane.xlu0 %426
  %428 = vadd.xlane.f32.xlu0 %v340
  %v429 = vpop.xlane.xlu0 %428
  %430 = vadd.xlane.f32.xlu0 %v341
  %v431 = vpop.xlane.xlu0 %430
  %432 = vadd.xlane.f32.xlu0 %v342
  %v433 = vpop.xlane.xlu0 %432
  %434 = vadd.xlane.f32.xlu0 %v343
  %v435 = vpop.xlane.xlu0 %434
  %436 = vadd.xlane.f32.xlu0 %v344
  %v437 = vpop.xlane.xlu0 %436
  %438 = vadd.xlane.f32.xlu0 %v345
  %v439 = vpop.xlane.xlu0 %438
  %440 = vadd.xlane.f32.xlu0 %v346
  %v441 = vpop.xlane.xlu0 %440
  %442 = vadd.xlane.f32.xlu0 %v347
  %v443 = vpop.xlane.xlu0 %442
  %v444 = vadd.f32 %v349, 1e-12
  %v445 = vadd.f32 %v351, 1e-12
  %v446 = vadd.f32 %v353, 1e-12
  %v447 = vadd.f32 %v355, 1e-12
  %v448 = vadd.f32 %v357, 1e-12
  %v449 = vadd.f32 %v359, 1e-12
  %v450 = vadd.f32 %v361, 1e-12
  %v451 = vadd.f32 %v363, 1e-12
  %v452 = vadd.f32 %v365, 1e-12
  %v453 = vadd.f32 %v367, 1e-12
  %v454 = vadd.f32 %v369, 1e-12
  %v455 = vadd.f32 %v371, 1e-12
  %v456 = vadd.f32 %v373, 1e-12
  %v457 = vadd.f32 %v375, 1e-12
  %v458 = vadd.f32 %v377, 1e-12
  %v459 = vadd.f32 %v379, 1e-12
  %v460 = vadd.f32 %v381, 1e-12
  %v461 = vadd.f32 %v383, 1e-12
  %v462 = vadd.f32 %v385, 1e-12
  %v463 = vadd.f32 %v387, 1e-12
  %v464 = vadd.f32 %v389, 1e-12
  %v465 = vadd.f32 %v391, 1e-12
  %v466 = vadd.f32 %v393, 1e-12
  %v467 = vadd.f32 %v395, 1e-12
  %v468 = vadd.f32 %v397, 1e-12
  %v469 = vadd.f32 %v399, 1e-12
  %v470 = vadd.f32 %v401, 1e-12
  %v471 = vadd.f32 %v403, 1e-12
  %v472 = vadd.f32 %v405, 1e-12
  %v473 = vadd.f32 %v407, 1e-12
  %v474 = vadd.f32 %v409, 1e-12
  %v475 = vadd.f32 %v411, 1e-12
  %v476 = vadd.f32 %v413, 1e-12
  %v477 = vadd.f32 %v415, 1e-12
  %v478 = vadd.f32 %v417, 1e-12
  %v479 = vadd.f32 %v419, 1e-12
  %v480 = vadd.f32 %v421, 1e-12
  %v481 = vadd.f32 %v423, 1e-12
  %v482 = vadd.f32 %v425, 1e-12
  %v483 = vadd.f32 %v427, 1e-12
  %v484 = vadd.f32 %v429, 1e-12
  %v485 = vadd.f32 %v431, 1e-12
  %v486 = vadd.f32 %v433, 1e-12
  %v487 = vadd.f32 %v435, 1e-12
  %v488 = vadd.f32 %v437, 1e-12
  %v489 = vadd.f32 %v439, 1e-12
  %v490 = vadd.f32 %v441, 1e-12
  %v491 = vadd.f32 %v443, 1e-12
  %v492 = vrsqrt.pop %v444
  %v493 = vrsqrt.pop %v445
  %v494 = vrsqrt.pop %v446
  %v495 = vrsqrt.pop %v447
  %v496 = vrsqrt.pop %v448
  %v497 = vrsqrt.pop %v449
  %v498 = vrsqrt.pop %v450
  %v499 = vrsqrt.pop %v451
  %v500 = vrsqrt.pop %v452
  %v501 = vrsqrt.pop %v453
  %v502 = vrsqrt.pop %v454
  %v503 = vrsqrt.pop %v455
  %v504 = vrsqrt.pop %v456
  %v505 = vrsqrt.pop %v457
  %v506 = vrsqrt.pop %v458
  %v507 = vrsqrt.pop %v459
  %v508 = vrsqrt.pop %v460
  %v509 = vrsqrt.pop %v461
  %v510 = vrsqrt.pop %v462
  %v511 = vrsqrt.pop %v463
  %v512 = vrsqrt.pop %v464
  %v513 = vrsqrt.pop %v465
  %v514 = vrsqrt.pop %v466
  %v515 = vrsqrt.pop %v467
  %v516 = vrsqrt.pop %v468
  %v517 = vrsqrt.pop %v469
  %v518 = vrsqrt.pop %v470
  %v519 = vrsqrt.pop %v471
  %v520 = vrsqrt.pop %v472
  %v521 = vrsqrt.pop %v473
  %v522 = vrsqrt.pop %v474
  %v523 = vrsqrt.pop %v475
  %v524 = vrsqrt.pop %v476
  %v525 = vrsqrt.pop %v477
  %v526 = vrsqrt.pop %v478
  %v527 = vrsqrt.pop %v479
  %v528 = vrsqrt.pop %v480
  %v529 = vrsqrt.pop %v481
  %v530 = vrsqrt.pop %v482
  %v531 = vrsqrt.pop %v483
  %v532 = vrsqrt.pop %v484
  %v533 = vrsqrt.pop %v485
  %v534 = vrsqrt.pop %v486
  %v535 = vrsqrt.pop %v487
  %v536 = vrsqrt.pop %v488
  %v537 = vrsqrt.pop %v489
  %v538 = vrsqrt.pop %v490
  %v539 = vrsqrt.pop %v491
  %v540 = vmul.f32 %v60, %v492
  %v541 = vmul.f32 %v61, %v493
  %v542 = vmul.f32 %v62, %v494
  %v543 = vmul.f32 %v63, %v495
  %v544 = vmul.f32 %v64, %v496
  %v545 = vmul.f32 %v65, %v497
  %v546 = vmul.f32 %v66, %v498
  %v547 = vmul.f32 %v67, %v499
  %v548 = vmul.f32 %v68, %v500
  %v549 = vmul.f32 %v69, %v501
  %v550 = vmul.f32 %v70, %v502
  %v551 = vmul.f32 %v71, %v503
  %v552 = vmul.f32 %v72, %v504
  %v553 = vmul.f32 %v73, %v505
  %v554 = vmul.f32 %v74, %v506
  %v555 = vmul.f32 %v75, %v507
  %v556 = vmul.f32 %v76, %v508
  %v557 = vmul.f32 %v77, %v509
  %v558 = vmul.f32 %v78, %v510
  %v559 = vmul.f32 %v79, %v511
  %v560 = vmul.f32 %v80, %v512
  %v561 = vmul.f32 %v81, %v513
  %v562 = vmul.f32 %v82, %v514
  %v563 = vmul.f32 %v83, %v515
  %v564 = vmul.f32 %v84, %v516
  %v565 = vmul.f32 %v85, %v517
  %v566 = vmul.f32 %v86, %v518
  %v567 = vmul.f32 %v87, %v519
  %v568 = vmul.f32 %v88, %v520
  %v569 = vmul.f32 %v89, %v521
  %v570 = vmul.f32 %v90, %v522
  %v571 = vmul.f32 %v91, %v523
  %v572 = vmul.f32 %v92, %v524
  %v573 = vmul.f32 %v93, %v525
  %v574 = vmul.f32 %v94, %v526
  %v575 = vmul.f32 %v95, %v527
  %v576 = vmul.f32 %v96, %v528
  %v577 = vmul.f32 %v97, %v529
  %v578 = vmul.f32 %v98, %v530
  %v579 = vmul.f32 %v99, %v531
  %v580 = vmul.f32 %v100, %v532
  %v581 = vmul.f32 %v101, %v533
  %v582 = vmul.f32 %v102, %v534
  %v583 = vmul.f32 %v103, %v535
  %v584 = vmul.f32 %v104, %v536
  %v585 = vmul.f32 %v105, %v537
  %v586 = vmul.f32 %v106, %v538
  %v587 = vmul.f32 %v107, %v539
  %588 = vmatprep.subr.mxu0 0.0
  %589 = vmatpush1.xpose.msra.mxu0 %v540
  %590 = vmatprep.subr.mxu0 0.0
  %591 = vmatpush1.xpose.msra.mxu0 %v541
  %592 = vmatprep.subr.mxu0 0.0
  %593 = vmatpush1.xpose.msra.mxu0 %v542
  %594 = vmatprep.subr.mxu0 0.0
  %595 = vmatpush1.xpose.msra.mxu0 %v543
  %596 = vmatprep.subr.mxu0 0.0
  %597 = vmatpush1.xpose.msra.mxu0 %v544
  %598 = vmatprep.subr.mxu0 0.0
  %599 = vmatpush1.xpose.msra.mxu0 %v545
  %600 = vmatprep.subr.mxu0 0.0
  %601 = vmatpush1.xpose.msra.mxu0 %v546
  %602 = vmatprep.subr.mxu0 0.0
  %603 = vmatpush1.xpose.msra.mxu0 %v547
  %604 = vmatprep.subr.mxu0 0.0
  %605 = vmatpush1.xpose.msra.mxu0 %v548
  %606 = vmatprep.subr.mxu0 0.0
  %607 = vmatpush1.xpose.msra.mxu0 %v549
  %608 = vmatprep.subr.mxu0 0.0
  %609 = vmatpush1.xpose.msra.mxu0 %v550
  %610 = vmatprep.subr.mxu0 0.0
  %611 = vmatpush1.xpose.msra.mxu0 %v551
  %612 = vmatprep.subr.mxu0 0.0
  %613 = vmatpush1.xpose.msra.mxu0 %v552
  %614 = vmatprep.subr.mxu0 0.0
  %615 = vmatpush1.xpose.msra.mxu0 %v553
  %616 = vmatprep.subr.mxu0 0.0
  %617 = vmatpush1.xpose.msra.mxu0 %v554
  %618 = vmatprep.subr.mxu0 0.0
  %619 = vmatpush1.xpose.msra.mxu0 %v555
  %620 = vmatprep.subr.mxu0 0.0
  %621 = vmatpush1.xpose.msra.mxu0 %v556
  %622 = vmatprep.subr.mxu0 0.0
  %623 = vmatpush1.xpose.msra.mxu0 %v557
  %624 = vmatprep.subr.mxu0 0.0
  %625 = vmatpush1.xpose.msra.mxu0 %v558
  %626 = vmatprep.subr.mxu0 0.0
  %627 = vmatpush1.xpose.msra.mxu0 %v559
  %628 = vmatprep.subr.mxu0 0.0
  %629 = vmatpush1.xpose.msra.mxu0 %v560
  %630 = vmatprep.subr.mxu0 0.0
  %631 = vmatpush1.xpose.msra.mxu0 %v561
  %632 = vmatprep.subr.mxu0 0.0
  %633 = vmatpush1.xpose.msra.mxu0 %v562
  %634 = vmatprep.subr.mxu0 0.0
  %635 = vmatpush1.xpose.msra.mxu0 %v563
  %636 = vmatprep.subr.mxu0 0.0
  %637 = vmatpush1.xpose.msra.mxu0 %v564
  %638 = vmatprep.subr.mxu0 0.0
  %639 = vmatpush1.xpose.msra.mxu0 %v565
  %640 = vmatprep.subr.mxu0 0.0
  %641 = vmatpush1.xpose.msra.mxu0 %v566
  %642 = vmatprep.subr.mxu0 0.0
  %643 = vmatpush1.xpose.msra.mxu0 %v567
  %644 = vmatprep.subr.mxu0 0.0
  %645 = vmatpush1.xpose.msra.mxu0 %v568
  %646 = vmatprep.subr.mxu0 0.0
  %647 = vmatpush1.xpose.msra.mxu0 %v569
  %648 = vmatprep.subr.mxu0 0.0
  %649 = vmatpush1.xpose.msra.mxu0 %v570
  %650 = vmatprep.subr.mxu0 0.0
  %651 = vmatpush1.xpose.msra.mxu0 %v571
  %652 = vmatprep.mubr.f32.mxu0 0.0
  %653 = vmatmul.mubr.f32.gmra.mrb[0].mxu0 %v268
  %v654 = vpop.f32.mrb[0].mxu0
  %v655 = vadd.f32 0.0, %v654
  %v656 = vpop.f32.mrb[0].mxu0
  %v657 = vadd.f32 0.0, %v656
  %658 = vmatprep.mubr.f32.mxu0 0.0
  %659 = vmatmul.mubr.f32.gmra.mrb[0].mxu0 %v269
  %v660 = vpop.f32.mrb[0].mxu0
  %v661 = vadd.f32 0.0, %v660
  %v662 = vpop.f32.mrb[0].mxu0
  %v663 = vadd.f32 0.0, %v662
  %664 = vmatprep.mubr.f32.mxu0 0.0
  %665 = vmatmul.mubr.f32.gmra.mrb[0].mxu0 %v270
  %v666 = vpop.f32.mrb[0].mxu0
  %v667 = vadd.f32 0.0, %v666
  %v668 = vpop.f32.mrb[0].mxu0
  %v669 = vadd.f32 0.0, %v668
  %670 = vmatprep.mubr.f32.mxu0 0.0
  %671 = vmatmul.mubr.f32.gmra.mrb[0].mxu0 %v271
  %v672 = vpop.f32.mrb[0].mxu0
  %v673 = vadd.f32 0.0, %v672
  %v674 = vpop.f32.mrb[0].mxu0
  %v675 = vadd.f32 0.0, %v674
  %676 = vmatprep.mubr.f32.mxu0 0.0
  %677 = vmatmul.mubr.f32.gmra.mrb[0].mxu0 %v272
  %v678 = vpop.f32.mrb[0].mxu0
  %v679 = vadd.f32 0.0, %v678
  %v680 = vpop.f32.mrb[0].mxu0
  %v681 = vadd.f32 0.0, %v680
  %682 = vmatprep.mubr.f32.mxu0 0.0
  %683 = vmatmul.mubr.f32.gmra.mrb[0].mxu0 %v273
  %v684 = vpop.f32.mrb[0].mxu0
  %v685 = vadd.f32 0.0, %v684
  %v686 = vpop.f32.mrb[0].mxu0
  %v687 = vadd.f32 0.0, %v686
  %688 = vmatprep.mubr.f32.mxu0 0.0
  %689 = vmatmul.mubr.f32.gmra.mrb[0].mxu0 %v274
  %v690 = vpop.f32.mrb[0].mxu0
  %v691 = vadd.f32 0.0, %v690
  %v692 = vpop.f32.mrb[0].mxu0
  %v693 = vadd.f32 0.0, %v692
  %694 = vmatprep.mubr.f32.mxu0 0.0
  %695 = vmatmul.mubr.f32.gmra.mrb[0].mxu0 %v275
  %v696 = vpop.f32.mrb[0].mxu0
  %v697 = vadd.f32 0.0, %v696
  %v698 = vpop.f32.mrb[0].mxu0
  %v699 = vadd.f32 0.0, %v698
  %700 = vmatprep.mubr.f32.mxu0 0.0
  %701 = vmatmul.mubr.f32.gmra.mrb[0].mxu0 %v276
  %v702 = vpop.f32.mrb[0].mxu0
  %v703 = vadd.f32 0.0, %v702
  %v704 = vpop.f32.mrb[0].mxu0
  %v705 = vadd.f32 0.0, %v704
  %706 = vmatprep.mubr.f32.mxu0 0.0
  %707 = vmatmul.mubr.f32.gmra.mrb[0].mxu0 %v277
  %v708 = vpop.f32.mrb[0].mxu0
  %v709 = vadd.f32 0.0, %v708
  %v710 = vpop.f32.mrb[0].mxu0
  %v711 = vadd.f32 0.0, %v710
  %712 = vmatprep.mubr.f32.mxu0 0.0
  %713 = vmatmul.mubr.f32.gmra.mrb[0].mxu0 %v278
  %v714 = vpop.f32.mrb[0].mxu0
  %v715 = vadd.f32 0.0, %v714
  %v716 = vpop.f32.mrb[0].mxu0
  %v717 = vadd.f32 0.0, %v716
  %718 = vmatprep.mubr.f32.mxu0 0.0
  %719 = vmatmul.mubr.f32.gmra.mrb[0].mxu0 %v279
  %v720 = vpop.f32.mrb[0].mxu0
  %v721 = vadd.f32 0.0, %v720
  %v722 = vpop.f32.mrb[0].mxu0
  %v723 = vadd.f32 0.0, %v722
  %724 = vmatprep.mubr.f32.mxu0 0.0
  %725 = vmatmul.mubr.f32.gmra.mrb[0].mxu0 %v280
  %v726 = vpop.f32.mrb[0].mxu0
  %v727 = vadd.f32 0.0, %v726
  %v728 = vpop.f32.mrb[0].mxu0
  %v729 = vadd.f32 0.0, %v728
  %730 = vmatprep.mubr.f32.mxu0 0.0
  %731 = vmatmul.mubr.f32.gmra.mrb[0].mxu0 %v281
  %v732 = vpop.f32.mrb[0].mxu0
  %v733 = vadd.f32 0.0, %v732
  %v734 = vpop.f32.mrb[0].mxu0
  %v735 = vadd.f32 0.0, %v734
  %736 = vmatprep.mubr.f32.mxu0 0.0
  %737 = vmatmul.mubr.f32.gmra.mrb[0].mxu0 %v282
  %v738 = vpop.f32.mrb[0].mxu0
  %v739 = vadd.f32 0.0, %v738
  %v740 = vpop.f32.mrb[0].mxu0
  %v741 = vadd.f32 0.0, %v740
  %742 = vmatprep.mubr.f32.mxu0 0.0
  %743 = vmatmul.mubr.f32.gmra.mrb[0].mxu0 %v283
  %v744 = vpop.f32.mrb[0].mxu0
  %v745 = vadd.f32 0.0, %v744
  %v746 = vpop.f32.mrb[0].mxu0
  %v747 = vadd.f32 0.0, %v746
  %748 = vmatprep.mubr.f32.mxu0 0.0
  %749 = vmatmul.mubr.f32.gmra.mrb[0].mxu0 %v284
  %v750 = vpop.f32.mrb[0].mxu0
  %v751 = vadd.f32 0.0, %v750
  %v752 = vpop.f32.mrb[0].mxu0
  %v753 = vadd.f32 0.0, %v752
  %754 = vmatprep.mubr.f32.mxu0 0.0
  %755 = vmatmul.mubr.f32.gmra.mrb[0].mxu0 %v285
  %v756 = vpop.f32.mrb[0].mxu0
  %v757 = vadd.f32 0.0, %v756
  %v758 = vpop.f32.mrb[0].mxu0
  %v759 = vadd.f32 0.0, %v758
  %760 = vmatprep.mubr.f32.mxu0 0.0
  %761 = vmatmul.mubr.f32.gmra.mrb[0].mxu0 %v286
  %v762 = vpop.f32.mrb[0].mxu0
  %v763 = vadd.f32 0.0, %v762
  %v764 = vpop.f32.mrb[0].mxu0
  %v765 = vadd.f32 0.0, %v764
  %766 = vmatprep.mubr.f32.mxu0 0.0
  %767 = vmatmul.mubr.f32.gmra.mrb[0].mxu0 %v287
  %v768 = vpop.f32.mrb[0].mxu0
  %v769 = vadd.f32 0.0, %v768
  %v770 = vpop.f32.mrb[0].mxu0
  %v771 = vadd.f32 0.0, %v770
  %772 = vmatprep.mubr.f32.mxu0 0.0
  %773 = vmatmul.mubr.f32.gmra.mrb[0].mxu0 %v288
  %v774 = vpop.f32.mrb[0].mxu0
  %v775 = vadd.f32 0.0, %v774
  %v776 = vpop.f32.mrb[0].mxu0
  %v777 = vadd.f32 0.0, %v776
  %778 = vmatprep.mubr.f32.mxu0 0.0
  %779 = vmatmul.mubr.f32.gmra.mrb[0].mxu0 %v289
  %v780 = vpop.f32.mrb[0].mxu0
  %v781 = vadd.f32 0.0, %v780
  %v782 = vpop.f32.mrb[0].mxu0
  %v783 = vadd.f32 0.0, %v782
  %784 = vmatprep.mubr.f32.mxu0 0.0
  %785 = vmatmul.mubr.f32.gmra.mrb[0].mxu0 %v290
  %v786 = vpop.f32.mrb[0].mxu0
  %v787 = vadd.f32 0.0, %v786
  %v788 = vpop.f32.mrb[0].mxu0
  %v789 = vadd.f32 0.0, %v788
  %790 = vmatprep.mubr.f32.mxu0 0.0
  %791 = vmatmul.mubr.f32.gmra.mrb[0].mxu0 %v291
  %v792 = vpop.f32.mrb[0].mxu0
  %v793 = vadd.f32 0.0, %v792
  %v794 = vpop.f32.mrb[0].mxu0
  %v795 = vadd.f32 0.0, %v794
  %796 = vmatprep.mubr.f32.mxu0 0.0
  %797 = vmatmul.mubr.f32.gmra.mrb[0].mxu0 %v292
  %v798 = vpop.f32.mrb[0].mxu0
  %v799 = vadd.f32 0.0, %v798
  %v800 = vpop.f32.mrb[0].mxu0
  %v801 = vadd.f32 0.0, %v800
  %802 = vmatprep.mubr.f32.mxu0 0.0
  %803 = vmatmul.mubr.f32.gmra.mrb[0].mxu0 %v293
  %v804 = vpop.f32.mrb[0].mxu0
  %v805 = vadd.f32 0.0, %v804
  %v806 = vpop.f32.mrb[0].mxu0
  %v807 = vadd.f32 0.0, %v806
  %808 = vmatprep.mubr.f32.mxu0 0.0
  %809 = vmatmul.mubr.f32.gmra.mrb[0].mxu0 %v294
  %v810 = vpop.f32.mrb[0].mxu0
  %v811 = vadd.f32 0.0, %v810
  %v812 = vpop.f32.mrb[0].mxu0
  %v813 = vadd.f32 0.0, %v812
  %814 = vmatprep.mubr.f32.mxu0 0.0
  %815 = vmatmul.mubr.f32.gmra.mrb[0].mxu0 %v295
  %v816 = vpop.f32.mrb[0].mxu0
  %v817 = vadd.f32 0.0, %v816
  %v818 = vpop.f32.mrb[0].mxu0
  %v819 = vadd.f32 0.0, %v818
  %820 = vmatprep.mubr.f32.mxu0 0.0
  %821 = vmatmul.mubr.f32.gmra.mrb[0].mxu0 %v296
  %v822 = vpop.f32.mrb[0].mxu0
  %v823 = vadd.f32 0.0, %v822
  %v824 = vpop.f32.mrb[0].mxu0
  %v825 = vadd.f32 0.0, %v824
  %826 = vmatprep.mubr.f32.mxu0 0.0
  %827 = vmatmul.mubr.f32.gmra.mrb[0].mxu0 %v297
  %v828 = vpop.f32.mrb[0].mxu0
  %v829 = vadd.f32 0.0, %v828
  %v830 = vpop.f32.mrb[0].mxu0
  %v831 = vadd.f32 0.0, %v830
  %832 = vmatprep.mubr.f32.mxu0 0.0
  %833 = vmatmul.mubr.f32.gmra.mrb[0].mxu0 %v298
  %v834 = vpop.f32.mrb[0].mxu0
  %v835 = vadd.f32 0.0, %v834
  %v836 = vpop.f32.mrb[0].mxu0
  %v837 = vadd.f32 0.0, %v836
  %838 = vmatprep.mubr.f32.mxu0 0.0
  %839 = vmatmul.mubr.f32.gmra.mrb[0].mxu0 %v299
  %v840 = vpop.f32.mrb[0].mxu0
  %v841 = vadd.f32 0.0, %v840
  %v842 = vpop.f32.mrb[0].mxu0
  %v843 = vadd.f32 0.0, %v842
  %844 = vdwg.mxu0
  %845 = vmatprep.subr.mxu0 0.0
  %846 = vmatpush1.xpose.msra.mxu0 %v572
  %847 = vmatprep.subr.mxu0 0.0
  %848 = vmatpush1.xpose.msra.mxu0 %v573
  %849 = vmatprep.subr.mxu0 0.0
  %850 = vmatpush1.xpose.msra.mxu0 %v574
  %851 = vmatprep.subr.mxu0 0.0
  %852 = vmatpush1.xpose.msra.mxu0 %v575
  %853 = vmatprep.subr.mxu0 0.0
  %854 = vmatpush1.xpose.msra.mxu0 %v576
  %855 = vmatprep.subr.mxu0 0.0
  %856 = vmatpush1.xpose.msra.mxu0 %v577
  %857 = vmatprep.subr.mxu0 0.0
  %858 = vmatpush1.xpose.msra.mxu0 %v578
  %859 = vmatprep.subr.mxu0 0.0
  %860 = vmatpush1.xpose.msra.mxu0 %v579
  %861 = vmatprep.subr.mxu0 0.0
  %862 = vmatpush1.xpose.msra.mxu0 %v580
  %863 = vmatprep.subr.mxu0 0.0
  %864 = vmatpush1.xpose.msra.mxu0 %v581
  %865 = vmatprep.subr.mxu0 0.0
  %866 = vmatpush1.xpose.msra.mxu0 %v582
  %867 = vmatprep.subr.mxu0 0.0
  %868 = vmatpush1.xpose.msra.mxu0 %v583
  %869 = vmatprep.subr.mxu0 0.0
  %870 = vmatpush1.xpose.msra.mxu0 %v584
  %871 = vmatprep.subr.mxu0 0.0
  %872 = vmatpush1.xpose.msra.mxu0 %v585
  %873 = vmatprep.subr.mxu0 0.0
  %874 = vmatpush1.xpose.msra.mxu0 %v586
  %875 = vmatprep.subr.mxu0 0.0
  %876 = vmatpush1.xpose.msra.mxu0 %v587
  %877 = vmatprep.subr.mxu0 0.0
  %878 = vmatpush1.xpose.msra.mxu0 0.0
  %879 = vmatprep.subr.mxu0 0.0
  %880 = vmatpush1.xpose.msra.mxu0 0.0
  %881 = vmatprep.subr.mxu0 0.0
  %882 = vmatpush1.xpose.msra.mxu0 0.0
  %883 = vmatprep.subr.mxu0 0.0
  %884 = vmatpush1.xpose.msra.mxu0 0.0
  %885 = vmatprep.subr.mxu0 0.0
  %886 = vmatpush1.xpose.msra.mxu0 0.0
  %887 = vmatprep.subr.mxu0 0.0
  %888 = vmatpush1.xpose.msra.mxu0 0.0
  %889 = vmatprep.subr.mxu0 0.0
  %890 = vmatpush1.xpose.msra.mxu0 0.0
  %891 = vmatprep.subr.mxu0 0.0
  %892 = vmatpush1.xpose.msra.mxu0 0.0
  %893 = vmatprep.subr.mxu0 0.0
  %894 = vmatpush1.xpose.msra.mxu0 0.0
  %895 = vmatprep.subr.mxu0 0.0
  %896 = vmatpush1.xpose.msra.mxu0 0.0
  %897 = vmatprep.subr.mxu0 0.0
  %898 = vmatpush1.xpose.msra.mxu0 0.0
  %899 = vmatprep.subr.mxu0 0.0
  %900 = vmatpush1.xpose.msra.mxu0 0.0
  %901 = vmatprep.subr.mxu0 0.0
  %902 = vmatpush1.xpose.msra.mxu0 0.0
  %903 = vmatprep.subr.mxu0 0.0
  %904 = vmatpush1.xpose.msra.mxu0 0.0
  %905 = vmatprep.subr.mxu0 0.0
  %906 = vmatpush1.xpose.msra.mxu0 0.0
  %907 = vmatprep.subr.mxu0 0.0
  %908 = vmatpush1.xpose.msra.mxu0 0.0
  %909 = vmatprep.mubr.f32.mxu0 0.0
  %910 = vmatmul.mubr.f32.gmra.mrb[0].mxu0 %v268
  %v911 = vpop.f32.mrb[0].mxu0
  %v912 = vadd.f32 0.0, %v911
  %v913 = vpop.f32.mrb[0].mxu0
  %914 = vmatprep.mubr.f32.mxu0 0.0
  %915 = vmatmul.mubr.f32.gmra.mrb[0].mxu0 %v269
  %v916 = vpop.f32.mrb[0].mxu0
  %v917 = vadd.f32 0.0, %v916
  %v918 = vpop.f32.mrb[0].mxu0
  %919 = vmatprep.mubr.f32.mxu0 0.0
  %920 = vmatmul.mubr.f32.gmra.mrb[0].mxu0 %v270
  %v921 = vpop.f32.mrb[0].mxu0
  %v922 = vadd.f32 0.0, %v921
  %v923 = vpop.f32.mrb[0].mxu0
  %924 = vmatprep.mubr.f32.mxu0 0.0
  %925 = vmatmul.mubr.f32.gmra.mrb[0].mxu0 %v271
  %v926 = vpop.f32.mrb[0].mxu0
  %v927 = vadd.f32 0.0, %v926
  %v928 = vpop.f32.mrb[0].mxu0
  %929 = vmatprep.mubr.f32.mxu0 0.0
  %930 = vmatmul.mubr.f32.gmra.mrb[0].mxu0 %v272
  %v931 = vpop.f32.mrb[0].mxu0
  %v932 = vadd.f32 0.0, %v931
  %v933 = vpop.f32.mrb[0].mxu0
  %934 = vmatprep.mubr.f32.mxu0 0.0
  %935 = vmatmul.mubr.f32.gmra.mrb[0].mxu0 %v273
  %v936 = vpop.f32.mrb[0].mxu0
  %v937 = vadd.f32 0.0, %v936
  %v938 = vpop.f32.mrb[0].mxu0
  %939 = vmatprep.mubr.f32.mxu0 0.0
  %940 = vmatmul.mubr.f32.gmra.mrb[0].mxu0 %v274
  %v941 = vpop.f32.mrb[0].mxu0
  %v942 = vadd.f32 0.0, %v941
  %v943 = vpop.f32.mrb[0].mxu0
  %944 = vmatprep.mubr.f32.mxu0 0.0
  %945 = vmatmul.mubr.f32.gmra.mrb[0].mxu0 %v275
  %v946 = vpop.f32.mrb[0].mxu0
  %v947 = vadd.f32 0.0, %v946
  %v948 = vpop.f32.mrb[0].mxu0
  %949 = vmatprep.mubr.f32.mxu0 0.0
  %950 = vmatmul.mubr.f32.gmra.mrb[0].mxu0 %v276
  %v951 = vpop.f32.mrb[0].mxu0
  %v952 = vadd.f32 0.0, %v951
  %v953 = vpop.f32.mrb[0].mxu0
  %954 = vmatprep.mubr.f32.mxu0 0.0
  %955 = vmatmul.mubr.f32.gmra.mrb[0].mxu0 %v277
  %v956 = vpop.f32.mrb[0].mxu0
  %v957 = vadd.f32 0.0, %v956
  %v958 = vpop.f32.mrb[0].mxu0
  %959 = vmatprep.mubr.f32.mxu0 0.0
  %960 = vmatmul.mubr.f32.gmra.mrb[0].mxu0 %v278
  %v961 = vpop.f32.mrb[0].mxu0
  %v962 = vadd.f32 0.0, %v961
  %v963 = vpop.f32.mrb[0].mxu0
  %964 = vmatprep.mubr.f32.mxu0 0.0
  %965 = vmatmul.mubr.f32.gmra.mrb[0].mxu0 %v279
  %v966 = vpop.f32.mrb[0].mxu0
  %v967 = vadd.f32 0.0, %v966
  %v968 = vpop.f32.mrb[0].mxu0
  %969 = vmatprep.mubr.f32.mxu0 0.0
  %970 = vmatmul.mubr.f32.gmra.mrb[0].mxu0 %v280
  %v971 = vpop.f32.mrb[0].mxu0
  %v972 = vadd.f32 0.0, %v971
  %v973 = vpop.f32.mrb[0].mxu0
  %974 = vmatprep.mubr.f32.mxu0 0.0
  %975 = vmatmul.mubr.f32.gmra.mrb[0].mxu0 %v281
  %v976 = vpop.f32.mrb[0].mxu0
  %v977 = vadd.f32 0.0, %v976
  %v978 = vpop.f32.mrb[0].mxu0
  %979 = vmatprep.mubr.f32.mxu0 0.0
  %980 = vmatmul.mubr.f32.gmra.mrb[0].mxu0 %v282
  %v981 = vpop.f32.mrb[0].mxu0
  %v982 = vadd.f32 0.0, %v981
  %v983 = vpop.f32.mrb[0].mxu0
  %984 = vmatprep.mubr.f32.mxu0 0.0
  %985 = vmatmul.mubr.f32.gmra.mrb[0].mxu0 %v283
  %v986 = vpop.f32.mrb[0].mxu0
  %v987 = vadd.f32 0.0, %v986
  %v988 = vpop.f32.mrb[0].mxu0
  %989 = vmatprep.mubr.f32.mxu0 0.0
  %990 = vmatmul.mubr.f32.gmra.mrb[0].mxu0 %v284
  %v991 = vpop.f32.mrb[0].mxu0
  %v992 = vadd.f32 0.0, %v991
  %v993 = vpop.f32.mrb[0].mxu0
  %994 = vmatprep.mubr.f32.mxu0 0.0
  %995 = vmatmul.mubr.f32.gmra.mrb[0].mxu0 %v285
  %v996 = vpop.f32.mrb[0].mxu0
  %v997 = vadd.f32 0.0, %v996
  %v998 = vpop.f32.mrb[0].mxu0
  %999 = vmatprep.mubr.f32.mxu0 0.0
  %1000 = vmatmul.mubr.f32.gmra.mrb[0].mxu0 %v286
  %v1001 = vpop.f32.mrb[0].mxu0
  %v1002 = vadd.f32 0.0, %v1001
  %v1003 = vpop.f32.mrb[0].mxu0
  %1004 = vmatprep.mubr.f32.mxu0 0.0
  %1005 = vmatmul.mubr.f32.gmra.mrb[0].mxu0 %v287
  %v1006 = vpop.f32.mrb[0].mxu0
  %v1007 = vadd.f32 0.0, %v1006
  %v1008 = vpop.f32.mrb[0].mxu0
  %1009 = vmatprep.mubr.f32.mxu0 0.0
  %1010 = vmatmul.mubr.f32.gmra.mrb[0].mxu0 %v288
  %v1011 = vpop.f32.mrb[0].mxu0
  %v1012 = vadd.f32 0.0, %v1011
  %v1013 = vpop.f32.mrb[0].mxu0
  %1014 = vmatprep.mubr.f32.mxu0 0.0
  %1015 = vmatmul.mubr.f32.gmra.mrb[0].mxu0 %v289
  %v1016 = vpop.f32.mrb[0].mxu0
  %v1017 = vadd.f32 0.0, %v1016
  %v1018 = vpop.f32.mrb[0].mxu0
  %1019 = vmatprep.mubr.f32.mxu0 0.0
  %1020 = vmatmul.mubr.f32.gmra.mrb[0].mxu0 %v290
  %v1021 = vpop.f32.mrb[0].mxu0
  %v1022 = vadd.f32 0.0, %v1021
  %v1023 = vpop.f32.mrb[0].mxu0
  %1024 = vmatprep.mubr.f32.mxu0 0.0
  %1025 = vmatmul.mubr.f32.gmra.mrb[0].mxu0 %v291
  %v1026 = vpop.f32.mrb[0].mxu0
  %v1027 = vadd.f32 0.0, %v1026
  %v1028 = vpop.f32.mrb[0].mxu0
  %1029 = vmatprep.mubr.f32.mxu0 0.0
  %1030 = vmatmul.mubr.f32.gmra.mrb[0].mxu0 %v292
  %v1031 = vpop.f32.mrb[0].mxu0
  %v1032 = vadd.f32 0.0, %v1031
  %v1033 = vpop.f32.mrb[0].mxu0
  %1034 = vmatprep.mubr.f32.mxu0 0.0
  %1035 = vmatmul.mubr.f32.gmra.mrb[0].mxu0 %v293
  %v1036 = vpop.f32.mrb[0].mxu0
  %v1037 = vadd.f32 0.0, %v1036
  %v1038 = vpop.f32.mrb[0].mxu0
  %1039 = vmatprep.mubr.f32.mxu0 0.0
  %1040 = vmatmul.mubr.f32.gmra.mrb[0].mxu0 %v294
  %v1041 = vpop.f32.mrb[0].mxu0
  %v1042 = vadd.f32 0.0, %v1041
  %v1043 = vpop.f32.mrb[0].mxu0
  %1044 = vmatprep.mubr.f32.mxu0 0.0
  %1045 = vmatmul.mubr.f32.gmra.mrb[0].mxu0 %v295
  %v1046 = vpop.f32.mrb[0].mxu0
  %v1047 = vadd.f32 0.0, %v1046
  %v1048 = vpop.f32.mrb[0].mxu0
  %1049 = vmatprep.mubr.f32.mxu0 0.0
  %1050 = vmatmul.mubr.f32.gmra.mrb[0].mxu0 %v296
  %v1051 = vpop.f32.mrb[0].mxu0
  %v1052 = vadd.f32 0.0, %v1051
  %v1053 = vpop.f32.mrb[0].mxu0
  %1054 = vmatprep.mubr.f32.mxu0 0.0
  %1055 = vmatmul.mubr.f32.gmra.mrb[0].mxu0 %v297
  %v1056 = vpop.f32.mrb[0].mxu0
  %v1057 = vadd.f32 0.0, %v1056
  %v1058 = vpop.f32.mrb[0].mxu0
  %1059 = vmatprep.mubr.f32.mxu0 0.0
  %1060 = vmatmul.mubr.f32.gmra.mrb[0].mxu0 %v298
  %v1061 = vpop.f32.mrb[0].mxu0
  %v1062 = vadd.f32 0.0, %v1061
  %v1063 = vpop.f32.mrb[0].mxu0
  %1064 = vmatprep.mubr.f32.mxu0 0.0
  %1065 = vmatmul.mubr.f32.gmra.mrb[0].mxu0 %v299
  %v1066 = vpop.f32.mrb[0].mxu0
  %v1067 = vadd.f32 0.0, %v1066
  %v1068 = vpop.f32.mrb[0].mxu0
  %1069 = vdwg.mxu0
  %v1070 = vlaneseq
  %v1071 = vand.u32 %v1070, 127
  %v1072 = vadd.s32 %v1071, 128
  %v1073 = vadd.s32 %v1071, 256
  %vm1074 = vcmp.lt.s32.totalorder %v1071, 272
  %vm1075 = vcmp.lt.s32.totalorder %v1072, 272
  %vm1076 = vcmp.lt.s32.totalorder %v1073, 272
  %v1077 = vsel %vm1074, %v655, -inf
  %v1078 = vsel %vm1075, %v657, -inf
  %v1079 = vsel %vm1076, %v912, -inf
  %v1080 = vsel %vm1074, %v661, -inf
  %v1081 = vsel %vm1075, %v663, -inf
  %v1082 = vsel %vm1076, %v917, -inf
  %v1083 = vsel %vm1074, %v667, -inf
  %v1084 = vsel %vm1075, %v669, -inf
  %v1085 = vsel %vm1076, %v922, -inf
  %v1086 = vsel %vm1074, %v673, -inf
  %v1087 = vsel %vm1075, %v675, -inf
  %v1088 = vsel %vm1076, %v927, -inf
  %v1089 = vsel %vm1074, %v679, -inf
  %v1090 = vsel %vm1075, %v681, -inf
  %v1091 = vsel %vm1076, %v932, -inf
  %v1092 = vsel %vm1074, %v685, -inf
  %v1093 = vsel %vm1075, %v687, -inf
  %v1094 = vsel %vm1076, %v937, -inf
  %v1095 = vsel %vm1074, %v691, -inf
  %v1096 = vsel %vm1075, %v693, -inf
  %v1097 = vsel %vm1076, %v942, -inf
  %v1098 = vsel %vm1074, %v697, -inf
  %v1099 = vsel %vm1075, %v699, -inf
  %v1100 = vsel %vm1076, %v947, -inf
  %v1101 = vsel %vm1074, %v703, -inf
  %v1102 = vsel %vm1075, %v705, -inf
  %v1103 = vsel %vm1076, %v952, -inf
  %v1104 = vsel %vm1074, %v709, -inf
  %v1105 = vsel %vm1075, %v711, -inf
  %v1106 = vsel %vm1076, %v957, -inf
  %v1107 = vsel %vm1074, %v715, -inf
  %v1108 = vsel %vm1075, %v717, -inf
  %v1109 = vsel %vm1076, %v962, -inf
  %v1110 = vsel %vm1074, %v721, -inf
  %v1111 = vsel %vm1075, %v723, -inf
  %v1112 = vsel %vm1076, %v967, -inf
  %v1113 = vsel %vm1074, %v727, -inf
  %v1114 = vsel %vm1075, %v729, -inf
  %v1115 = vsel %vm1076, %v972, -inf
  %v1116 = vsel %vm1074, %v733, -inf
  %v1117 = vsel %vm1075, %v735, -inf
  %v1118 = vsel %vm1076, %v977, -inf
  %v1119 = vsel %vm1074, %v739, -inf
  %v1120 = vsel %vm1075, %v741, -inf
  %v1121 = vsel %vm1076, %v982, -inf
  %v1122 = vsel %vm1074, %v745, -inf
  %v1123 = vsel %vm1075, %v747, -inf
  %v1124 = vsel %vm1076, %v987, -inf
  %v1125 = vsel %vm1074, %v751, -inf
  %v1126 = vsel %vm1075, %v753, -inf
  %v1127 = vsel %vm1076, %v992, -inf
  %v1128 = vsel %vm1074, %v757, -inf
  %v1129 = vsel %vm1075, %v759, -inf
  %v1130 = vsel %vm1076, %v997, -inf
  %v1131 = vsel %vm1074, %v763, -inf
  %v1132 = vsel %vm1075, %v765, -inf
  %v1133 = vsel %vm1076, %v1002, -inf
  %v1134 = vsel %vm1074, %v769, -inf
  %v1135 = vsel %vm1075, %v771, -inf
  %v1136 = vsel %vm1076, %v1007, -inf
  %v1137 = vsel %vm1074, %v775, -inf
  %v1138 = vsel %vm1075, %v777, -inf
  %v1139 = vsel %vm1076, %v1012, -inf
  %v1140 = vsel %vm1074, %v781, -inf
  %v1141 = vsel %vm1075, %v783, -inf
  %v1142 = vsel %vm1076, %v1017, -inf
  %v1143 = vsel %vm1074, %v787, -inf
  %v1144 = vsel %vm1075, %v789, -inf
  %v1145 = vsel %vm1076, %v1022, -inf
  %v1146 = vsel %vm1074, %v793, -inf
  %v1147 = vsel %vm1075, %v795, -inf
  %v1148 = vsel %vm1076, %v1027, -inf
  %v1149 = vsel %vm1074, %v799, -inf
  %v1150 = vsel %vm1075, %v801, -inf
  %v1151 = vsel %vm1076, %v1032, -inf
  %v1152 = vsel %vm1074, %v805, -inf
  %v1153 = vsel %vm1075, %v807, -inf
  %v1154 = vsel %vm1076, %v1037, -inf
  %v1155 = vsel %vm1074, %v811, -inf
  %v1156 = vsel %vm1075, %v813, -inf
  %v1157 = vsel %vm1076, %v1042, -inf
  %v1158 = vsel %vm1074, %v817, -inf
  %v1159 = vsel %vm1075, %v819, -inf
  %v1160 = vsel %vm1076, %v1047, -inf
  %v1161 = vsel %vm1074, %v823, -inf
  %v1162 = vsel %vm1075, %v825, -inf
  %v1163 = vsel %vm1076, %v1052, -inf
  %v1164 = vsel %vm1074, %v829, -inf
  %v1165 = vsel %vm1075, %v831, -inf
  %v1166 = vsel %vm1076, %v1057, -inf
  %v1167 = vsel %vm1074, %v835, -inf
  %v1168 = vsel %vm1075, %v837, -inf
  %v1169 = vsel %vm1076, %v1062, -inf
  %v1170 = vsel %vm1074, %v841, -inf
  %v1171 = vsel %vm1075, %v843, -inf
  %v1172 = vsel %vm1076, %v1067, -inf
  %v1173 = vmax.f32 %v1077, %v1078
  %v1174 = vmax.f32 %v1173, %v1079
  %1175 = vmax.xlane.f32.xlu0 %v1174
  %v1176 = vpop.xlane.xlu0 %1175
  %v1177 = vmax.f32 %v1080, %v1081
  %v1178 = vmax.f32 %v1177, %v1082
  %1179 = vmax.xlane.f32.xlu0 %v1178
  %v1180 = vpop.xlane.xlu0 %1179
  %v1181 = vmax.f32 %v1083, %v1084
  %v1182 = vmax.f32 %v1181, %v1085
  %1183 = vmax.xlane.f32.xlu0 %v1182
  %v1184 = vpop.xlane.xlu0 %1183
  %v1185 = vmax.f32 %v1086, %v1087
  %v1186 = vmax.f32 %v1185, %v1088
  %1187 = vmax.xlane.f32.xlu0 %v1186
  %v1188 = vpop.xlane.xlu0 %1187
  %v1189 = vmax.f32 %v1089, %v1090
  %v1190 = vmax.f32 %v1189, %v1091
  %1191 = vmax.xlane.f32.xlu0 %v1190
  %v1192 = vpop.xlane.xlu0 %1191
  %v1193 = vmax.f32 %v1092, %v1093
  %v1194 = vmax.f32 %v1193, %v1094
  %1195 = vmax.xlane.f32.xlu0 %v1194
  %v1196 = vpop.xlane.xlu0 %1195
  %v1197 = vmax.f32 %v1095, %v1096
  %v1198 = vmax.f32 %v1197, %v1097
  %1199 = vmax.xlane.f32.xlu0 %v1198
  %v1200 = vpop.xlane.xlu0 %1199
  %v1201 = vmax.f32 %v1098, %v1099
  %v1202 = vmax.f32 %v1201, %v1100
  %1203 = vmax.xlane.f32.xlu0 %v1202
  %v1204 = vpop.xlane.xlu0 %1203
  %v1205 = vmax.f32 %v1101, %v1102
  %v1206 = vmax.f32 %v1205, %v1103
  %1207 = vmax.xlane.f32.xlu0 %v1206
  %v1208 = vpop.xlane.xlu0 %1207
  %v1209 = vmax.f32 %v1104, %v1105
  %v1210 = vmax.f32 %v1209, %v1106
  %1211 = vmax.xlane.f32.xlu0 %v1210
  %v1212 = vpop.xlane.xlu0 %1211
  %v1213 = vmax.f32 %v1107, %v1108
  %v1214 = vmax.f32 %v1213, %v1109
  %1215 = vmax.xlane.f32.xlu0 %v1214
  %v1216 = vpop.xlane.xlu0 %1215
  %v1217 = vmax.f32 %v1110, %v1111
  %v1218 = vmax.f32 %v1217, %v1112
  %1219 = vmax.xlane.f32.xlu0 %v1218
  %v1220 = vpop.xlane.xlu0 %1219
  %v1221 = vmax.f32 %v1113, %v1114
  %v1222 = vmax.f32 %v1221, %v1115
  %1223 = vmax.xlane.f32.xlu0 %v1222
  %v1224 = vpop.xlane.xlu0 %1223
  %v1225 = vmax.f32 %v1116, %v1117
  %v1226 = vmax.f32 %v1225, %v1118
  %1227 = vmax.xlane.f32.xlu0 %v1226
  %v1228 = vpop.xlane.xlu0 %1227
  %v1229 = vmax.f32 %v1119, %v1120
  %v1230 = vmax.f32 %v1229, %v1121
  %1231 = vmax.xlane.f32.xlu0 %v1230
  %v1232 = vpop.xlane.xlu0 %1231
  %v1233 = vmax.f32 %v1122, %v1123
  %v1234 = vmax.f32 %v1233, %v1124
  %1235 = vmax.xlane.f32.xlu0 %v1234
  %v1236 = vpop.xlane.xlu0 %1235
  %v1237 = vmax.f32 %v1125, %v1126
  %v1238 = vmax.f32 %v1237, %v1127
  %1239 = vmax.xlane.f32.xlu0 %v1238
  %v1240 = vpop.xlane.xlu0 %1239
  %v1241 = vmax.f32 %v1128, %v1129
  %v1242 = vmax.f32 %v1241, %v1130
  %1243 = vmax.xlane.f32.xlu0 %v1242
  %v1244 = vpop.xlane.xlu0 %1243
  %v1245 = vmax.f32 %v1131, %v1132
  %v1246 = vmax.f32 %v1245, %v1133
  %1247 = vmax.xlane.f32.xlu0 %v1246
  %v1248 = vpop.xlane.xlu0 %1247
  %v1249 = vmax.f32 %v1134, %v1135
  %v1250 = vmax.f32 %v1249, %v1136
  %1251 = vmax.xlane.f32.xlu0 %v1250
  %v1252 = vpop.xlane.xlu0 %1251
  %v1253 = vmax.f32 %v1137, %v1138
  %v1254 = vmax.f32 %v1253, %v1139
  %1255 = vmax.xlane.f32.xlu0 %v1254
  %v1256 = vpop.xlane.xlu0 %1255
  %v1257 = vmax.f32 %v1140, %v1141
  %v1258 = vmax.f32 %v1257, %v1142
  %1259 = vmax.xlane.f32.xlu0 %v1258
  %v1260 = vpop.xlane.xlu0 %1259
  %v1261 = vmax.f32 %v1143, %v1144
  %v1262 = vmax.f32 %v1261, %v1145
  %1263 = vmax.xlane.f32.xlu0 %v1262
  %v1264 = vpop.xlane.xlu0 %1263
  %v1265 = vmax.f32 %v1146, %v1147
  %v1266 = vmax.f32 %v1265, %v1148
  %1267 = vmax.xlane.f32.xlu0 %v1266
  %v1268 = vpop.xlane.xlu0 %1267
  %v1269 = vmax.f32 %v1149, %v1150
  %v1270 = vmax.f32 %v1269, %v1151
  %1271 = vmax.xlane.f32.xlu0 %v1270
  %v1272 = vpop.xlane.xlu0 %1271
  %v1273 = vmax.f32 %v1152, %v1153
  %v1274 = vmax.f32 %v1273, %v1154
  %1275 = vmax.xlane.f32.xlu0 %v1274
  %v1276 = vpop.xlane.xlu0 %1275
  %v1277 = vmax.f32 %v1155, %v1156
  %v1278 = vmax.f32 %v1277, %v1157
  %1279 = vmax.xlane.f32.xlu0 %v1278
  %v1280 = vpop.xlane.xlu0 %1279
  %v1281 = vmax.f32 %v1158, %v1159
  %v1282 = vmax.f32 %v1281, %v1160
  %1283 = vmax.xlane.f32.xlu0 %v1282
  %v1284 = vpop.xlane.xlu0 %1283
  %v1285 = vmax.f32 %v1161, %v1162
  %v1286 = vmax.f32 %v1285, %v1163
  %1287 = vmax.xlane.f32.xlu0 %v1286
  %v1288 = vpop.xlane.xlu0 %1287
  %v1289 = vmax.f32 %v1164, %v1165
  %v1290 = vmax.f32 %v1289, %v1166
  %1291 = vmax.xlane.f32.xlu0 %v1290
  %v1292 = vpop.xlane.xlu0 %1291
  %v1293 = vmax.f32 %v1167, %v1168
  %v1294 = vmax.f32 %v1293, %v1169
  %1295 = vmax.xlane.f32.xlu0 %v1294
  %v1296 = vpop.xlane.xlu0 %1295
  %v1297 = vmax.f32 %v1170, %v1171
  %v1298 = vmax.f32 %v1297, %v1172
  %1299 = vmax.xlane.f32.xlu0 %v1298
  %v1300 = vpop.xlane.xlu0 %1299
  %v1301 = vsub.f32 %v1077, %v1176
  %v1302 = vsub.f32 %v1078, %v1176
  %v1303 = vsub.f32 %v1079, %v1176
  %v1304 = vsub.f32 %v1080, %v1180
  %v1305 = vsub.f32 %v1081, %v1180
  %v1306 = vsub.f32 %v1082, %v1180
  %v1307 = vsub.f32 %v1083, %v1184
  %v1308 = vsub.f32 %v1084, %v1184
  %v1309 = vsub.f32 %v1085, %v1184
  %v1310 = vsub.f32 %v1086, %v1188
  %v1311 = vsub.f32 %v1087, %v1188
  %v1312 = vsub.f32 %v1088, %v1188
  %v1313 = vsub.f32 %v1089, %v1192
  %v1314 = vsub.f32 %v1090, %v1192
  %v1315 = vsub.f32 %v1091, %v1192
  %v1316 = vsub.f32 %v1092, %v1196
  %v1317 = vsub.f32 %v1093, %v1196
  %v1318 = vsub.f32 %v1094, %v1196
  %v1319 = vsub.f32 %v1095, %v1200
  %v1320 = vsub.f32 %v1096, %v1200
  %v1321 = vsub.f32 %v1097, %v1200
  %v1322 = vsub.f32 %v1098, %v1204
  %v1323 = vsub.f32 %v1099, %v1204
  %v1324 = vsub.f32 %v1100, %v1204
  %v1325 = vsub.f32 %v1101, %v1208
  %v1326 = vsub.f32 %v1102, %v1208
  %v1327 = vsub.f32 %v1103, %v1208
  %v1328 = vsub.f32 %v1104, %v1212
  %v1329 = vsub.f32 %v1105, %v1212
  %v1330 = vsub.f32 %v1106, %v1212
  %v1331 = vsub.f32 %v1107, %v1216
  %v1332 = vsub.f32 %v1108, %v1216
  %v1333 = vsub.f32 %v1109, %v1216
  %v1334 = vsub.f32 %v1110, %v1220
  %v1335 = vsub.f32 %v1111, %v1220
  %v1336 = vsub.f32 %v1112, %v1220
  %v1337 = vsub.f32 %v1113, %v1224
  %v1338 = vsub.f32 %v1114, %v1224
  %v1339 = vsub.f32 %v1115, %v1224
  %v1340 = vsub.f32 %v1116, %v1228
  %v1341 = vsub.f32 %v1117, %v1228
  %v1342 = vsub.f32 %v1118, %v1228
  %v1343 = vsub.f32 %v1119, %v1232
  %v1344 = vsub.f32 %v1120, %v1232
  %v1345 = vsub.f32 %v1121, %v1232
  %v1346 = vsub.f32 %v1122, %v1236
  %v1347 = vsub.f32 %v1123, %v1236
  %v1348 = vsub.f32 %v1124, %v1236
  %v1349 = vsub.f32 %v1125, %v1240
  %v1350 = vsub.f32 %v1126, %v1240
  %v1351 = vsub.f32 %v1127, %v1240
  %v1352 = vsub.f32 %v1128, %v1244
  %v1353 = vsub.f32 %v1129, %v1244
  %v1354 = vsub.f32 %v1130, %v1244
  %v1355 = vsub.f32 %v1131, %v1248
  %v1356 = vsub.f32 %v1132, %v1248
  %v1357 = vsub.f32 %v1133, %v1248
  %v1358 = vsub.f32 %v1134, %v1252
  %v1359 = vsub.f32 %v1135, %v1252
  %v1360 = vsub.f32 %v1136, %v1252
  %v1361 = vsub.f32 %v1137, %v1256
  %v1362 = vsub.f32 %v1138, %v1256
  %v1363 = vsub.f32 %v1139, %v1256
  %v1364 = vsub.f32 %v1140, %v1260
  %v1365 = vsub.f32 %v1141, %v1260
  %v1366 = vsub.f32 %v1142, %v1260
  %v1367 = vsub.f32 %v1143, %v1264
  %v1368 = vsub.f32 %v1144, %v1264
  %v1369 = vsub.f32 %v1145, %v1264
  %v1370 = vsub.f32 %v1146, %v1268
  %v1371 = vsub.f32 %v1147, %v1268
  %v1372 = vsub.f32 %v1148, %v1268
  %v1373 = vsub.f32 %v1149, %v1272
  %v1374 = vsub.f32 %v1150, %v1272
  %v1375 = vsub.f32 %v1151, %v1272
  %v1376 = vsub.f32 %v1152, %v1276
  %v1377 = vsub.f32 %v1153, %v1276
  %v1378 = vsub.f32 %v1154, %v1276
  %v1379 = vsub.f32 %v1155, %v1280
  %v1380 = vsub.f32 %v1156, %v1280
  %v1381 = vsub.f32 %v1157, %v1280
  %v1382 = vsub.f32 %v1158, %v1284
  %v1383 = vsub.f32 %v1159, %v1284
  %v1384 = vsub.f32 %v1160, %v1284
  %v1385 = vsub.f32 %v1161, %v1288
  %v1386 = vsub.f32 %v1162, %v1288
  %v1387 = vsub.f32 %v1163, %v1288
  %v1388 = vsub.f32 %v1164, %v1292
  %v1389 = vsub.f32 %v1165, %v1292
  %v1390 = vsub.f32 %v1166, %v1292
  %v1391 = vsub.f32 %v1167, %v1296
  %v1392 = vsub.f32 %v1168, %v1296
  %v1393 = vsub.f32 %v1169, %v1296
  %v1394 = vsub.f32 %v1170, %v1300
  %v1395 = vsub.f32 %v1171, %v1300
  %v1396 = vsub.f32 %v1172, %v1300
  %v1397 = vmul.f32 %v1301, 1.442695
  %v1398 = vpow.pop %v1397
  %v1399 = vmul.f32 %v1302, 1.442695
  %v1400 = vpow.pop %v1399
  %v1401 = vmul.f32 %v1303, 1.442695
  %v1402 = vpow.pop %v1401
  %v1403 = vmul.f32 %v1304, 1.442695
  %v1404 = vpow.pop %v1403
  %v1405 = vmul.f32 %v1305, 1.442695
  %v1406 = vpow.pop %v1405
  %v1407 = vmul.f32 %v1306, 1.442695
  %v1408 = vpow.pop %v1407
  %v1409 = vmul.f32 %v1307, 1.442695
  %v1410 = vpow.pop %v1409
  %v1411 = vmul.f32 %v1308, 1.442695
  %v1412 = vpow.pop %v1411
  %v1413 = vmul.f32 %v1309, 1.442695
  %v1414 = vpow.pop %v1413
  %v1415 = vmul.f32 %v1310, 1.442695
  %v1416 = vpow.pop %v1415
  %v1417 = vmul.f32 %v1311, 1.442695
  %v1418 = vpow.pop %v1417
  %v1419 = vmul.f32 %v1312, 1.442695
  %v1420 = vpow.pop %v1419
  %v1421 = vmul.f32 %v1313, 1.442695
  %v1422 = vpow.pop %v1421
  %v1423 = vmul.f32 %v1314, 1.442695
  %v1424 = vpow.pop %v1423
  %v1425 = vmul.f32 %v1315, 1.442695
  %v1426 = vpow.pop %v1425
  %v1427 = vmul.f32 %v1316, 1.442695
  %v1428 = vpow.pop %v1427
  %v1429 = vmul.f32 %v1317, 1.442695
  %v1430 = vpow.pop %v1429
  %v1431 = vmul.f32 %v1318, 1.442695
  %v1432 = vpow.pop %v1431
  %v1433 = vmul.f32 %v1319, 1.442695
  %v1434 = vpow.pop %v1433
  %v1435 = vmul.f32 %v1320, 1.442695
  %v1436 = vpow.pop %v1435
  %v1437 = vmul.f32 %v1321, 1.442695
  %v1438 = vpow.pop %v1437
  %v1439 = vmul.f32 %v1322, 1.442695
  %v1440 = vpow.pop %v1439
  %v1441 = vmul.f32 %v1323, 1.442695
  %v1442 = vpow.pop %v1441
  %v1443 = vmul.f32 %v1324, 1.442695
  %v1444 = vpow.pop %v1443
  %v1445 = vmul.f32 %v1325, 1.442695
  %v1446 = vpow.pop %v1445
  %v1447 = vmul.f32 %v1326, 1.442695
  %v1448 = vpow.pop %v1447
  %v1449 = vmul.f32 %v1327, 1.442695
  %v1450 = vpow.pop %v1449
  %v1451 = vmul.f32 %v1328, 1.442695
  %v1452 = vpow.pop %v1451
  %v1453 = vmul.f32 %v1329, 1.442695
  %v1454 = vpow.pop %v1453
  %v1455 = vmul.f32 %v1330, 1.442695
  %v1456 = vpow.pop %v1455
  %v1457 = vmul.f32 %v1331, 1.442695
  %v1458 = vpow.pop %v1457
  %v1459 = vmul.f32 %v1332, 1.442695
  %v1460 = vpow.pop %v1459
  %v1461 = vmul.f32 %v1333, 1.442695
  %v1462 = vpow.pop %v1461
  %v1463 = vmul.f32 %v1334, 1.442695
  %v1464 = vpow.pop %v1463
  %v1465 = vmul.f32 %v1335, 1.442695
  %v1466 = vpow.pop %v1465
  %v1467 = vmul.f32 %v1336, 1.442695
  %v1468 = vpow.pop %v1467
  %v1469 = vmul.f32 %v1337, 1.442695
  %v1470 = vpow.pop %v1469
  %v1471 = vmul.f32 %v1338, 1.442695
  %v1472 = vpow.pop %v1471
  %v1473 = vmul.f32 %v1339, 1.442695
  %v1474 = vpow.pop %v1473
  %v1475 = vmul.f32 %v1340, 1.442695
  %v1476 = vpow.pop %v1475
  %v1477 = vmul.f32 %v1341, 1.442695
  %v1478 = vpow.pop %v1477
  %v1479 = vmul.f32 %v1342, 1.442695
  %v1480 = vpow.pop %v1479
  %v1481 = vmul.f32 %v1343, 1.442695
  %v1482 = vpow.pop %v1481
  %v1483 = vmul.f32 %v1344, 1.442695
  %v1484 = vpow.pop %v1483
  %v1485 = vmul.f32 %v1345, 1.442695
  %v1486 = vpow.pop %v1485
  %v1487 = vmul.f32 %v1346, 1.442695
  %v1488 = vpow.pop %v1487
  %v1489 = vmul.f32 %v1347, 1.442695
  %v1490 = vpow.pop %v1489
  %v1491 = vmul.f32 %v1348, 1.442695
  %v1492 = vpow.pop %v1491
  %v1493 = vmul.f32 %v1349, 1.442695
  %v1494 = vpow.pop %v1493
  %v1495 = vmul.f32 %v1350, 1.442695
  %v1496 = vpow.pop %v1495
  %v1497 = vmul.f32 %v1351, 1.442695
  %v1498 = vpow.pop %v1497
  %v1499 = vmul.f32 %v1352, 1.442695
  %v1500 = vpow.pop %v1499
  %v1501 = vmul.f32 %v1353, 1.442695
  %v1502 = vpow.pop %v1501
  %v1503 = vmul.f32 %v1354, 1.442695
  %v1504 = vpow.pop %v1503
  %v1505 = vmul.f32 %v1355, 1.442695
  %v1506 = vpow.pop %v1505
  %v1507 = vmul.f32 %v1356, 1.442695
  %v1508 = vpow.pop %v1507
  %v1509 = vmul.f32 %v1357, 1.442695
  %v1510 = vpow.pop %v1509
  %v1511 = vmul.f32 %v1358, 1.442695
  %v1512 = vpow.pop %v1511
  %v1513 = vmul.f32 %v1359, 1.442695
  %v1514 = vpow.pop %v1513
  %v1515 = vmul.f32 %v1360, 1.442695
  %v1516 = vpow.pop %v1515
  %v1517 = vmul.f32 %v1361, 1.442695
  %v1518 = vpow.pop %v1517
  %v1519 = vmul.f32 %v1362, 1.442695
  %v1520 = vpow.pop %v1519
  %v1521 = vmul.f32 %v1363, 1.442695
  %v1522 = vpow.pop %v1521
  %v1523 = vmul.f32 %v1364, 1.442695
  %v1524 = vpow.pop %v1523
  %v1525 = vmul.f32 %v1365, 1.442695
  %v1526 = vpow.pop %v1525
  %v1527 = vmul.f32 %v1366, 1.442695
  %v1528 = vpow.pop %v1527
  %v1529 = vmul.f32 %v1367, 1.442695
  %v1530 = vpow.pop %v1529
  %v1531 = vmul.f32 %v1368, 1.442695
  %v1532 = vpow.pop %v1531
  %v1533 = vmul.f32 %v1369, 1.442695
  %v1534 = vpow.pop %v1533
  %v1535 = vmul.f32 %v1370, 1.442695
  %v1536 = vpow.pop %v1535
  %v1537 = vmul.f32 %v1371, 1.442695
  %v1538 = vpow.pop %v1537
  %v1539 = vmul.f32 %v1372, 1.442695
  %v1540 = vpow.pop %v1539
  %v1541 = vmul.f32 %v1373, 1.442695
  %v1542 = vpow.pop %v1541
  %v1543 = vmul.f32 %v1374, 1.442695
  %v1544 = vpow.pop %v1543
  %v1545 = vmul.f32 %v1375, 1.442695
  %v1546 = vpow.pop %v1545
  %v1547 = vmul.f32 %v1376, 1.442695
  %v1548 = vpow.pop %v1547
  %v1549 = vmul.f32 %v1377, 1.442695
  %v1550 = vpow.pop %v1549
  %v1551 = vmul.f32 %v1378, 1.442695
  %v1552 = vpow.pop %v1551
  %v1553 = vmul.f32 %v1379, 1.442695
  %v1554 = vpow.pop %v1553
  %v1555 = vmul.f32 %v1380, 1.442695
  %v1556 = vpow.pop %v1555
  %v1557 = vmul.f32 %v1381, 1.442695
  %v1558 = vpow.pop %v1557
  %v1559 = vmul.f32 %v1382, 1.442695
  %v1560 = vpow.pop %v1559
  %v1561 = vmul.f32 %v1383, 1.442695
  %v1562 = vpow.pop %v1561
  %v1563 = vmul.f32 %v1384, 1.442695
  %v1564 = vpow.pop %v1563
  %v1565 = vmul.f32 %v1385, 1.442695
  %v1566 = vpow.pop %v1565
  %v1567 = vmul.f32 %v1386, 1.442695
  %v1568 = vpow.pop %v1567
  %v1569 = vmul.f32 %v1387, 1.442695
  %v1570 = vpow.pop %v1569
  %v1571 = vmul.f32 %v1388, 1.442695
  %v1572 = vpow.pop %v1571
  %v1573 = vmul.f32 %v1389, 1.442695
  %v1574 = vpow.pop %v1573
  %v1575 = vmul.f32 %v1390, 1.442695
  %v1576 = vpow.pop %v1575
  %v1577 = vmul.f32 %v1391, 1.442695
  %v1578 = vpow.pop %v1577
  %v1579 = vmul.f32 %v1392, 1.442695
  %v1580 = vpow.pop %v1579
  %v1581 = vmul.f32 %v1393, 1.442695
  %v1582 = vpow.pop %v1581
  %v1583 = vmul.f32 %v1394, 1.442695
  %v1584 = vpow.pop %v1583
  %v1585 = vmul.f32 %v1395, 1.442695
  %v1586 = vpow.pop %v1585
  %v1587 = vmul.f32 %v1396, 1.442695
  %v1588 = vpow.pop %v1587
  %v1589 = vadd.f32 %v1398, %v1400
  %v1590 = vadd.f32 %v1589, %v1402
  %1591 = vadd.xlane.f32.xlu0 %v1590
  %v1592 = vpop.xlane.xlu0 %1591
  %v1593 = vadd.f32 %v1404, %v1406
  %v1594 = vadd.f32 %v1593, %v1408
  %1595 = vadd.xlane.f32.xlu0 %v1594
  %v1596 = vpop.xlane.xlu0 %1595
  %v1597 = vadd.f32 %v1410, %v1412
  %v1598 = vadd.f32 %v1597, %v1414
  %1599 = vadd.xlane.f32.xlu0 %v1598
  %v1600 = vpop.xlane.xlu0 %1599
  %v1601 = vadd.f32 %v1416, %v1418
  %v1602 = vadd.f32 %v1601, %v1420
  %1603 = vadd.xlane.f32.xlu0 %v1602
  %v1604 = vpop.xlane.xlu0 %1603
  %v1605 = vadd.f32 %v1422, %v1424
  %v1606 = vadd.f32 %v1605, %v1426
  %1607 = vadd.xlane.f32.xlu0 %v1606
  %v1608 = vpop.xlane.xlu0 %1607
  %v1609 = vadd.f32 %v1428, %v1430
  %v1610 = vadd.f32 %v1609, %v1432
  %1611 = vadd.xlane.f32.xlu0 %v1610
  %v1612 = vpop.xlane.xlu0 %1611
  %v1613 = vadd.f32 %v1434, %v1436
  %v1614 = vadd.f32 %v1613, %v1438
  %1615 = vadd.xlane.f32.xlu0 %v1614
  %v1616 = vpop.xlane.xlu0 %1615
  %v1617 = vadd.f32 %v1440, %v1442
  %v1618 = vadd.f32 %v1617, %v1444
  %1619 = vadd.xlane.f32.xlu0 %v1618
  %v1620 = vpop.xlane.xlu0 %1619
  %v1621 = vadd.f32 %v1446, %v1448
  %v1622 = vadd.f32 %v1621, %v1450
  %1623 = vadd.xlane.f32.xlu0 %v1622
  %v1624 = vpop.xlane.xlu0 %1623
  %v1625 = vadd.f32 %v1452, %v1454
  %v1626 = vadd.f32 %v1625, %v1456
  %1627 = vadd.xlane.f32.xlu0 %v1626
  %v1628 = vpop.xlane.xlu0 %1627
  %v1629 = vadd.f32 %v1458, %v1460
  %v1630 = vadd.f32 %v1629, %v1462
  %1631 = vadd.xlane.f32.xlu0 %v1630
  %v1632 = vpop.xlane.xlu0 %1631
  %v1633 = vadd.f32 %v1464, %v1466
  %v1634 = vadd.f32 %v1633, %v1468
  %1635 = vadd.xlane.f32.xlu0 %v1634
  %v1636 = vpop.xlane.xlu0 %1635
  %v1637 = vadd.f32 %v1470, %v1472
  %v1638 = vadd.f32 %v1637, %v1474
  %1639 = vadd.xlane.f32.xlu0 %v1638
  %v1640 = vpop.xlane.xlu0 %1639
  %v1641 = vadd.f32 %v1476, %v1478
  %v1642 = vadd.f32 %v1641, %v1480
  %1643 = vadd.xlane.f32.xlu0 %v1642
  %v1644 = vpop.xlane.xlu0 %1643
  %v1645 = vadd.f32 %v1482, %v1484
  %v1646 = vadd.f32 %v1645, %v1486
  %1647 = vadd.xlane.f32.xlu0 %v1646
  %v1648 = vpop.xlane.xlu0 %1647
  %v1649 = vadd.f32 %v1488, %v1490
  %v1650 = vadd.f32 %v1649, %v1492
  %1651 = vadd.xlane.f32.xlu0 %v1650
  %v1652 = vpop.xlane.xlu0 %1651
  %v1653 = vadd.f32 %v1494, %v1496
  %v1654 = vadd.f32 %v1653, %v1498
  %1655 = vadd.xlane.f32.xlu0 %v1654
  %v1656 = vpop.xlane.xlu0 %1655
  %v1657 = vadd.f32 %v1500, %v1502
  %v1658 = vadd.f32 %v1657, %v1504
  %1659 = vadd.xlane.f32.xlu0 %v1658
  %v1660 = vpop.xlane.xlu0 %1659
  %v1661 = vadd.f32 %v1506, %v1508
  %v1662 = vadd.f32 %v1661, %v1510
  %1663 = vadd.xlane.f32.xlu0 %v1662
  %v1664 = vpop.xlane.xlu0 %1663
  %v1665 = vadd.f32 %v1512, %v1514
  %v1666 = vadd.f32 %v1665, %v1516
  %1667 = vadd.xlane.f32.xlu0 %v1666
  %v1668 = vpop.xlane.xlu0 %1667
  %v1669 = vadd.f32 %v1518, %v1520
  %v1670 = vadd.f32 %v1669, %v1522
  %1671 = vadd.xlane.f32.xlu0 %v1670
  %v1672 = vpop.xlane.xlu0 %1671
  %v1673 = vadd.f32 %v1524, %v1526
  %v1674 = vadd.f32 %v1673, %v1528
  %1675 = vadd.xlane.f32.xlu0 %v1674
  %v1676 = vpop.xlane.xlu0 %1675
  %v1677 = vadd.f32 %v1530, %v1532
  %v1678 = vadd.f32 %v1677, %v1534
  %1679 = vadd.xlane.f32.xlu0 %v1678
  %v1680 = vpop.xlane.xlu0 %1679
  %v1681 = vadd.f32 %v1536, %v1538
  %v1682 = vadd.f32 %v1681, %v1540
  %1683 = vadd.xlane.f32.xlu0 %v1682
  %v1684 = vpop.xlane.xlu0 %1683
  %v1685 = vadd.f32 %v1542, %v1544
  %v1686 = vadd.f32 %v1685, %v1546
  %1687 = vadd.xlane.f32.xlu0 %v1686
  %v1688 = vpop.xlane.xlu0 %1687
  %v1689 = vadd.f32 %v1548, %v1550
  %v1690 = vadd.f32 %v1689, %v1552
  %1691 = vadd.xlane.f32.xlu0 %v1690
  %v1692 = vpop.xlane.xlu0 %1691
  %v1693 = vadd.f32 %v1554, %v1556
  %v1694 = vadd.f32 %v1693, %v1558
  %1695 = vadd.xlane.f32.xlu0 %v1694
  %v1696 = vpop.xlane.xlu0 %1695
  %v1697 = vadd.f32 %v1560, %v1562
  %v1698 = vadd.f32 %v1697, %v1564
  %1699 = vadd.xlane.f32.xlu0 %v1698
  %v1700 = vpop.xlane.xlu0 %1699
  %v1701 = vadd.f32 %v1566, %v1568
  %v1702 = vadd.f32 %v1701, %v1570
  %1703 = vadd.xlane.f32.xlu0 %v1702
  %v1704 = vpop.xlane.xlu0 %1703
  %v1705 = vadd.f32 %v1572, %v1574
  %v1706 = vadd.f32 %v1705, %v1576
  %1707 = vadd.xlane.f32.xlu0 %v1706
  %v1708 = vpop.xlane.xlu0 %1707
  %v1709 = vadd.f32 %v1578, %v1580
  %v1710 = vadd.f32 %v1709, %v1582
  %1711 = vadd.xlane.f32.xlu0 %v1710
  %v1712 = vpop.xlane.xlu0 %1711
  %v1713 = vadd.f32 %v1584, %v1586
  %v1714 = vadd.f32 %v1713, %v1588
  %1715 = vadd.xlane.f32.xlu0 %v1714
  %v1716 = vpop.xlane.xlu0 %1715
  %v1717 = vrcp.pop %v1592
  %v1718 = vrcp.pop %v1596
  %v1719 = vrcp.pop %v1600
  %v1720 = vrcp.pop %v1604
  %v1721 = vrcp.pop %v1608
  %v1722 = vrcp.pop %v1612
  %v1723 = vrcp.pop %v1616
  %v1724 = vrcp.pop %v1620
  %v1725 = vrcp.pop %v1624
  %v1726 = vrcp.pop %v1628
  %v1727 = vrcp.pop %v1632
  %v1728 = vrcp.pop %v1636
  %v1729 = vrcp.pop %v1640
  %v1730 = vrcp.pop %v1644
  %v1731 = vrcp.pop %v1648
  %v1732 = vrcp.pop %v1652
  %v1733 = vrcp.pop %v1656
  %v1734 = vrcp.pop %v1660
  %v1735 = vrcp.pop %v1664
  %v1736 = vrcp.pop %v1668
  %v1737 = vrcp.pop %v1672
  %v1738 = vrcp.pop %v1676
  %v1739 = vrcp.pop %v1680
  %v1740 = vrcp.pop %v1684
  %v1741 = vrcp.pop %v1688
  %v1742 = vrcp.pop %v1692
  %v1743 = vrcp.pop %v1696
  %v1744 = vrcp.pop %v1700
  %v1745 = vrcp.pop %v1704
  %v1746 = vrcp.pop %v1708
  %v1747 = vrcp.pop %v1712
  %v1748 = vrcp.pop %v1716
  %v1749 = vmul.f32 %v1398, %v1717
  %v1750 = vmul.f32 %v1400, %v1717
  %v1751 = vmul.f32 %v1402, %v1717
  %v1752 = vmul.f32 %v1404, %v1718
  %v1753 = vmul.f32 %v1406, %v1718
  %v1754 = vmul.f32 %v1408, %v1718
  %v1755 = vmul.f32 %v1410, %v1719
  %v1756 = vmul.f32 %v1412, %v1719
  %v1757 = vmul.f32 %v1414, %v1719
  %v1758 = vmul.f32 %v1416, %v1720
  %v1759 = vmul.f32 %v1418, %v1720
  %v1760 = vmul.f32 %v1420, %v1720
  %v1761 = vmul.f32 %v1422, %v1721
  %v1762 = vmul.f32 %v1424, %v1721
  %v1763 = vmul.f32 %v1426, %v1721
  %v1764 = vmul.f32 %v1428, %v1722
  %v1765 = vmul.f32 %v1430, %v1722
  %v1766 = vmul.f32 %v1432, %v1722
  %v1767 = vmul.f32 %v1434, %v1723
  %v1768 = vmul.f32 %v1436, %v1723
  %v1769 = vmul.f32 %v1438, %v1723
  %v1770 = vmul.f32 %v1440, %v1724
  %v1771 = vmul.f32 %v1442, %v1724
  %v1772 = vmul.f32 %v1444, %v1724
  %v1773 = vmul.f32 %v1446, %v1725
  %v1774 = vmul.f32 %v1448, %v1725
  %v1775 = vmul.f32 %v1450, %v1725
  %v1776 = vmul.f32 %v1452, %v1726
  %v1777 = vmul.f32 %v1454, %v1726
  %v1778 = vmul.f32 %v1456, %v1726
  %v1779 = vmul.f32 %v1458, %v1727
  %v1780 = vmul.f32 %v1460, %v1727
  %v1781 = vmul.f32 %v1462, %v1727
  %v1782 = vmul.f32 %v1464, %v1728
  %v1783 = vmul.f32 %v1466, %v1728
  %v1784 = vmul.f32 %v1468, %v1728
  %v1785 = vmul.f32 %v1470, %v1729
  %v1786 = vmul.f32 %v1472, %v1729
  %v1787 = vmul.f32 %v1474, %v1729
  %v1788 = vmul.f32 %v1476, %v1730
  %v1789 = vmul.f32 %v1478, %v1730
  %v1790 = vmul.f32 %v1480, %v1730
  %v1791 = vmul.f32 %v1482, %v1731
  %v1792 = vmul.f32 %v1484, %v1731
  %v1793 = vmul.f32 %v1486, %v1731
  %v1794 = vmul.f32 %v1488, %v1732
  %v1795 = vmul.f32 %v1490, %v1732
  %v1796 = vmul.f32 %v1492, %v1732
  %v1797 = vmul.f32 %v1494, %v1733
  %v1798 = vmul.f32 %v1496, %v1733
  %v1799 = vmul.f32 %v1498, %v1733
  %v1800 = vmul.f32 %v1500, %v1734
  %v1801 = vmul.f32 %v1502, %v1734
  %v1802 = vmul.f32 %v1504, %v1734
  %v1803 = vmul.f32 %v1506, %v1735
  %v1804 = vmul.f32 %v1508, %v1735
  %v1805 = vmul.f32 %v1510, %v1735
  %v1806 = vmul.f32 %v1512, %v1736
  %v1807 = vmul.f32 %v1514, %v1736
  %v1808 = vmul.f32 %v1516, %v1736
  %v1809 = vmul.f32 %v1518, %v1737
  %v1810 = vmul.f32 %v1520, %v1737
  %v1811 = vmul.f32 %v1522, %v1737
  %v1812 = vmul.f32 %v1524, %v1738
  %v1813 = vmul.f32 %v1526, %v1738
  %v1814 = vmul.f32 %v1528, %v1738
  %v1815 = vmul.f32 %v1530, %v1739
  %v1816 = vmul.f32 %v1532, %v1739
  %v1817 = vmul.f32 %v1534, %v1739
  %v1818 = vmul.f32 %v1536, %v1740
  %v1819 = vmul.f32 %v1538, %v1740
  %v1820 = vmul.f32 %v1540, %v1740
  %v1821 = vmul.f32 %v1542, %v1741
  %v1822 = vmul.f32 %v1544, %v1741
  %v1823 = vmul.f32 %v1546, %v1741
  %v1824 = vmul.f32 %v1548, %v1742
  %v1825 = vmul.f32 %v1550, %v1742
  %v1826 = vmul.f32 %v1552, %v1742
  %v1827 = vmul.f32 %v1554, %v1743
  %v1828 = vmul.f32 %v1556, %v1743
  %v1829 = vmul.f32 %v1558, %v1743
  %v1830 = vmul.f32 %v1560, %v1744
  %v1831 = vmul.f32 %v1562, %v1744
  %v1832 = vmul.f32 %v1564, %v1744
  %v1833 = vmul.f32 %v1566, %v1745
  %v1834 = vmul.f32 %v1568, %v1745
  %v1835 = vmul.f32 %v1570, %v1745
  %v1836 = vmul.f32 %v1572, %v1746
  %v1837 = vmul.f32 %v1574, %v1746
  %v1838 = vmul.f32 %v1576, %v1746
  %v1839 = vmul.f32 %v1578, %v1747
  %v1840 = vmul.f32 %v1580, %v1747
  %v1841 = vmul.f32 %v1582, %v1747
  %v1842 = vmul.f32 %v1584, %v1748
  %v1843 = vmul.f32 %v1586, %v1748
  %v1844 = vmul.f32 %v1588, %v1748
  %v1845 = vld [vmem:[%s2] sm:$0xff]
  %v1846 = vld [vmem:[%s2 + $0x8] sm:$0xff]
  %v1847 = vld [vmem:[%s2 + $0x10] sm:$0xff]
  %v1848 = vld [vmem:[%s2 + $0x18] sm:$0xff]
  %v1849 = vld [vmem:[%s2 + $0x20] sm:$0xff]
  %v1850 = vld [vmem:[%s2 + $0x28] sm:$0xff]
  %v1851 = vld [vmem:[%s2 + $0x30] sm:$0xff]
  %v1852 = vld [vmem:[%s2 + $0x38] sm:$0xff]
  %v1853 = vld [vmem:[%s2 + $0x40] sm:$0xff]
  %v1854 = vld [vmem:[%s2 + $0x48] sm:$0xff]
  %v1855 = vld [vmem:[%s2 + $0x50] sm:$0xff]
  %v1856 = vld [vmem:[%s2 + $0x58] sm:$0xff]
  %v1857 = vld [vmem:[%s2 + $0x60] sm:$0xff]
  %v1858 = vld [vmem:[%s2 + $0x68] sm:$0xff]
  %v1859 = vld [vmem:[%s2 + $0x70] sm:$0xff]
  %v1860 = vld [vmem:[%s2 + $0x78] sm:$0xff]
  %v1861 = vld [vmem:[%s2 + $0x80] sm:$0xff]
  %v1862 = vld [vmem:[%s2 + $0x88] sm:$0xff]
  %v1863 = vld [vmem:[%s2 + $0x90] sm:$0xff]
  %v1864 = vld [vmem:[%s2 + $0x98] sm:$0xff]
  %v1865 = vld [vmem:[%s2 + $0xa0] sm:$0xff]
  %v1866 = vld [vmem:[%s2 + $0xa8] sm:$0xff]
  %v1867 = vld [vmem:[%s2 + $0xb0] sm:$0xff]
  %v1868 = vld [vmem:[%s2 + $0xb8] sm:$0xff]
  %v1869 = vld [vmem:[%s2 + $0xc0] sm:$0xff]
  %v1870 = vld [vmem:[%s2 + $0xc8] sm:$0xff]
  %v1871 = vld [vmem:[%s2 + $0xd0] sm:$0xff]
  %v1872 = vld [vmem:[%s2 + $0xd8] sm:$0xff]
  %v1873 = vld [vmem:[%s2 + $0xe0] sm:$0xff]
  %v1874 = vld [vmem:[%s2 + $0xe8] sm:$0xff]
  %v1875 = vld [vmem:[%s2 + $0xf0] sm:$0xff]
  %v1876 = vld [vmem:[%s2 + $0xf8] sm:$0xff]
  %v1877 = vld [vmem:[%s2 + $0x100] sm:$0xff]
  %v1878 = vld [vmem:[%s2 + $0x108] sm:$0xff]
  %v1879 = vld [vmem:[%s2 + $0x110] sm:$0xff]
  %v1880 = vld [vmem:[%s2 + $0x118] sm:$0xff]
  %v1881 = vld [vmem:[%s2 + $0x120] sm:$0xff]
  %v1882 = vld [vmem:[%s2 + $0x128] sm:$0xff]
  %v1883 = vld [vmem:[%s2 + $0x130] sm:$0xff]
  %v1884 = vld [vmem:[%s2 + $0x138] sm:$0xff]
  %v1885 = vld [vmem:[%s2 + $0x140] sm:$0xff]
  %v1886 = vld [vmem:[%s2 + $0x148] sm:$0xff]
  %v1887 = vld [vmem:[%s2 + $0x150] sm:$0xff]
  %v1888 = vld [vmem:[%s2 + $0x158] sm:$0xff]
  %v1889 = vld [vmem:[%s2 + $0x160] sm:$0xff]
  %v1890 = vld [vmem:[%s2 + $0x168] sm:$0xff]
  %v1891 = vld [vmem:[%s2 + $0x170] sm:$0xff]
  %v1892 = vld [vmem:[%s2 + $0x178] sm:$0xff]
  %v1893 = vld [vmem:[%s2 + $0x180] sm:$0xff]
  %v1894 = vld [vmem:[%s2 + $0x188] sm:$0xff]
  %v1895 = vld [vmem:[%s2 + $0x190] sm:$0xff]
  %v1896 = vld [vmem:[%s2 + $0x198] sm:$0xff]
  %v1897 = vld [vmem:[%s2 + $0x1a0] sm:$0xff]
  %v1898 = vld [vmem:[%s2 + $0x1a8] sm:$0xff]
  %v1899 = vld [vmem:[%s2 + $0x1b0] sm:$0xff]
  %v1900 = vld [vmem:[%s2 + $0x1b8] sm:$0xff]
  %v1901 = vld [vmem:[%s2 + $0x1c0] sm:$0xff]
  %v1902 = vld [vmem:[%s2 + $0x1c8] sm:$0xff]
  %v1903 = vld [vmem:[%s2 + $0x1d0] sm:$0xff]
  %v1904 = vld [vmem:[%s2 + $0x1d8] sm:$0xff]
  %v1905 = vld [vmem:[%s2 + $0x1e0] sm:$0xff]
  %v1906 = vld [vmem:[%s2 + $0x1e8] sm:$0xff]
  %v1907 = vld [vmem:[%s2 + $0x1f0] sm:$0xff]
  %v1908 = vld [vmem:[%s2 + $0x1f8] sm:$0xff]
  %v1909 = vld [vmem:[%s2 + $0x200] sm:$0xff]
  %v1910 = vld [vmem:[%s2 + $0x208] sm:$0xff]
  %v1911 = vld [vmem:[%s2 + $0x210] sm:$0xff]
  %v1912 = vld [vmem:[%s2 + $0x218] sm:$0xff]
  %v1913 = vld [vmem:[%s2 + $0x220] sm:$0xff]
  %v1914 = vld [vmem:[%s2 + $0x228] sm:$0xff]
  %v1915 = vld [vmem:[%s2 + $0x230] sm:$0xff]
  %v1916 = vld [vmem:[%s2 + $0x238] sm:$0xff]
  %v1917 = vld [vmem:[%s2 + $0x240] sm:$0xff]
  %v1918 = vld [vmem:[%s2 + $0x248] sm:$0xff]
  %v1919 = vld [vmem:[%s2 + $0x250] sm:$0xff]
  %v1920 = vld [vmem:[%s2 + $0x258] sm:$0xff]
  %v1921 = vld [vmem:[%s2 + $0x260] sm:$0xff]
  %v1922 = vld [vmem:[%s2 + $0x268] sm:$0xff]
  %v1923 = vld [vmem:[%s2 + $0x270] sm:$0xff]
  %v1924 = vld [vmem:[%s2 + $0x278] sm:$0xff]
  %v1925 = vld [vmem:[%s2 + $0x280] sm:$0xff]
  %v1926 = vld [vmem:[%s2 + $0x288] sm:$0xff]
  %v1927 = vld [vmem:[%s2 + $0x290] sm:$0xff]
  %v1928 = vld [vmem:[%s2 + $0x298] sm:$0xff]
  %v1929 = vld [vmem:[%s2 + $0x2a0] sm:$0xff]
  %v1930 = vld [vmem:[%s2 + $0x2a8] sm:$0xff]
  %v1931 = vld [vmem:[%s2 + $0x2b0] sm:$0xff]
  %v1932 = vld [vmem:[%s2 + $0x2b8] sm:$0xff]
  %v1933 = vld [vmem:[%s2 + $0x2c0] sm:$0xff]
  %v1934 = vld [vmem:[%s2 + $0x2c8] sm:$0xff]
  %v1935 = vld [vmem:[%s2 + $0x2d0] sm:$0xff]
  %v1936 = vld [vmem:[%s2 + $0x2d8] sm:$0xff]
  %v1937 = vld [vmem:[%s2 + $0x2e0] sm:$0xff]
  %v1938 = vld [vmem:[%s2 + $0x2e8] sm:$0xff]
  %v1939 = vld [vmem:[%s2 + $0x2f0] sm:$0xff]
  %v1940 = vld [vmem:[%s2 + $0x2f8] sm:$0xff]
  %v1941 = vmul.f32 %v1749, %v1845
  %v1942 = vmul.f32 %v1750, %v1846
  %v1943 = vmul.f32 %v1751, %v1847
  %v1944 = vmul.f32 %v1752, %v1848
  %v1945 = vmul.f32 %v1753, %v1849
  %v1946 = vmul.f32 %v1754, %v1850
  %v1947 = vmul.f32 %v1755, %v1851
  %v1948 = vmul.f32 %v1756, %v1852
  %v1949 = vmul.f32 %v1757, %v1853
  %v1950 = vmul.f32 %v1758, %v1854
  %v1951 = vmul.f32 %v1759, %v1855
  %v1952 = vmul.f32 %v1760, %v1856
  %v1953 = vmul.f32 %v1761, %v1857
  %v1954 = vmul.f32 %v1762, %v1858
  %v1955 = vmul.f32 %v1763, %v1859
  %v1956 = vmul.f32 %v1764, %v1860
  %v1957 = vmul.f32 %v1765, %v1861
  %v1958 = vmul.f32 %v1766, %v1862
  %v1959 = vmul.f32 %v1767, %v1863
  %v1960 = vmul.f32 %v1768, %v1864
  %v1961 = vmul.f32 %v1769, %v1865
  %v1962 = vmul.f32 %v1770, %v1866
  %v1963 = vmul.f32 %v1771, %v1867
  %v1964 = vmul.f32 %v1772, %v1868
  %v1965 = vmul.f32 %v1773, %v1869
  %v1966 = vmul.f32 %v1774, %v1870
  %v1967 = vmul.f32 %v1775, %v1871
  %v1968 = vmul.f32 %v1776, %v1872
  %v1969 = vmul.f32 %v1777, %v1873
  %v1970 = vmul.f32 %v1778, %v1874
  %v1971 = vmul.f32 %v1779, %v1875
  %v1972 = vmul.f32 %v1780, %v1876
  %v1973 = vmul.f32 %v1781, %v1877
  %v1974 = vmul.f32 %v1782, %v1878
  %v1975 = vmul.f32 %v1783, %v1879
  %v1976 = vmul.f32 %v1784, %v1880
  %v1977 = vmul.f32 %v1785, %v1881
  %v1978 = vmul.f32 %v1786, %v1882
  %v1979 = vmul.f32 %v1787, %v1883
  %v1980 = vmul.f32 %v1788, %v1884
  %v1981 = vmul.f32 %v1789, %v1885
  %v1982 = vmul.f32 %v1790, %v1886
  %v1983 = vmul.f32 %v1791, %v1887
  %v1984 = vmul.f32 %v1792, %v1888
  %v1985 = vmul.f32 %v1793, %v1889
  %v1986 = vmul.f32 %v1794, %v1890
  %v1987 = vmul.f32 %v1795, %v1891
  %v1988 = vmul.f32 %v1796, %v1892
  %v1989 = vmul.f32 %v1797, %v1893
  %v1990 = vmul.f32 %v1798, %v1894
  %v1991 = vmul.f32 %v1799, %v1895
  %v1992 = vmul.f32 %v1800, %v1896
  %v1993 = vmul.f32 %v1801, %v1897
  %v1994 = vmul.f32 %v1802, %v1898
  %v1995 = vmul.f32 %v1803, %v1899
  %v1996 = vmul.f32 %v1804, %v1900
  %v1997 = vmul.f32 %v1805, %v1901
  %v1998 = vmul.f32 %v1806, %v1902
  %v1999 = vmul.f32 %v1807, %v1903
  %v2000 = vmul.f32 %v1808, %v1904
  %v2001 = vmul.f32 %v1809, %v1905
  %v2002 = vmul.f32 %v1810, %v1906
  %v2003 = vmul.f32 %v1811, %v1907
  %v2004 = vmul.f32 %v1812, %v1908
  %v2005 = vmul.f32 %v1813, %v1909
  %v2006 = vmul.f32 %v1814, %v1910
  %v2007 = vmul.f32 %v1815, %v1911
  %v2008 = vmul.f32 %v1816, %v1912
  %v2009 = vmul.f32 %v1817, %v1913
  %v2010 = vmul.f32 %v1818, %v1914
  %v2011 = vmul.f32 %v1819, %v1915
  %v2012 = vmul.f32 %v1820, %v1916
  %v2013 = vmul.f32 %v1821, %v1917
  %v2014 = vmul.f32 %v1822, %v1918
  %v2015 = vmul.f32 %v1823, %v1919
  %v2016 = vmul.f32 %v1824, %v1920
  %v2017 = vmul.f32 %v1825, %v1921
  %v2018 = vmul.f32 %v1826, %v1922
  %v2019 = vmul.f32 %v1827, %v1923
  %v2020 = vmul.f32 %v1828, %v1924
  %v2021 = vmul.f32 %v1829, %v1925
  %v2022 = vmul.f32 %v1830, %v1926
  %v2023 = vmul.f32 %v1831, %v1927
  %v2024 = vmul.f32 %v1832, %v1928
  %v2025 = vmul.f32 %v1833, %v1929
  %v2026 = vmul.f32 %v1834, %v1930
  %v2027 = vmul.f32 %v1835, %v1931
  %v2028 = vmul.f32 %v1836, %v1932
  %v2029 = vmul.f32 %v1837, %v1933
  %v2030 = vmul.f32 %v1838, %v1934
  %v2031 = vmul.f32 %v1839, %v1935
  %v2032 = vmul.f32 %v1840, %v1936
  %v2033 = vmul.f32 %v1841, %v1937
  %v2034 = vmul.f32 %v1842, %v1938
  %v2035 = vmul.f32 %v1843, %v1939
  %v2036 = vmul.f32 %v1844, %v1940
  %2037 = vst [vmem:[%s7] sm:$0xff] %v1941
  %2038 = vst [vmem:[%s7 + $0x8] sm:$0xff] %v1942
  %2039 = vst [vmem:[%s7 + $0x10] sm:$0xff] %v1943
  %2040 = vst [vmem:[%s7 + $0x18] sm:$0xff] %v1944
  %2041 = vst [vmem:[%s7 + $0x20] sm:$0xff] %v1945
  %2042 = vst [vmem:[%s7 + $0x28] sm:$0xff] %v1946
  %2043 = vst [vmem:[%s7 + $0x30] sm:$0xff] %v1947
  %2044 = vst [vmem:[%s7 + $0x38] sm:$0xff] %v1948
  %2045 = vst [vmem:[%s7 + $0x40] sm:$0xff] %v1949
  %2046 = vst [vmem:[%s7 + $0x48] sm:$0xff] %v1950
  %2047 = vst [vmem:[%s7 + $0x50] sm:$0xff] %v1951
  %2048 = vst [vmem:[%s7 + $0x58] sm:$0xff] %v1952
  %2049 = vst [vmem:[%s7 + $0x60] sm:$0xff] %v1953
  %2050 = vst [vmem:[%s7 + $0x68] sm:$0xff] %v1954
  %2051 = vst [vmem:[%s7 + $0x70] sm:$0xff] %v1955
  %2052 = vst [vmem:[%s7 + $0x78] sm:$0xff] %v1956
  %2053 = vst [vmem:[%s7 + $0x80] sm:$0xff] %v1957
  %2054 = vst [vmem:[%s7 + $0x88] sm:$0xff] %v1958
  %2055 = vst [vmem:[%s7 + $0x90] sm:$0xff] %v1959
  %2056 = vst [vmem:[%s7 + $0x98] sm:$0xff] %v1960
  %2057 = vst [vmem:[%s7 + $0xa0] sm:$0xff] %v1961
  %2058 = vst [vmem:[%s7 + $0xa8] sm:$0xff] %v1962
  %2059 = vst [vmem:[%s7 + $0xb0] sm:$0xff] %v1963
  %2060 = vst [vmem:[%s7 + $0xb8] sm:$0xff] %v1964
  %2061 = vst [vmem:[%s7 + $0xc0] sm:$0xff] %v1965
  %2062 = vst [vmem:[%s7 + $0xc8] sm:$0xff] %v1966
  %2063 = vst [vmem:[%s7 + $0xd0] sm:$0xff] %v1967
  %2064 = vst [vmem:[%s7 + $0xd8] sm:$0xff] %v1968
  %2065 = vst [vmem:[%s7 + $0xe0] sm:$0xff] %v1969
  %2066 = vst [vmem:[%s7 + $0xe8] sm:$0xff] %v1970
  %2067 = vst [vmem:[%s7 + $0xf0] sm:$0xff] %v1971
  %2068 = vst [vmem:[%s7 + $0xf8] sm:$0xff] %v1972
  %2069 = vst [vmem:[%s7 + $0x100] sm:$0xff] %v1973
  %2070 = vst [vmem:[%s7 + $0x108] sm:$0xff] %v1974
  %2071 = vst [vmem:[%s7 + $0x110] sm:$0xff] %v1975
  %2072 = vst [vmem:[%s7 + $0x118] sm:$0xff] %v1976
  %2073 = vst [vmem:[%s7 + $0x120] sm:$0xff] %v1977
  %2074 = vst [vmem:[%s7 + $0x128] sm:$0xff] %v1978
  %2075 = vst [vmem:[%s7 + $0x130] sm:$0xff] %v1979
  %2076 = vst [vmem:[%s7 + $0x138] sm:$0xff] %v1980
  %2077 = vst [vmem:[%s7 + $0x140] sm:$0xff] %v1981
  %2078 = vst [vmem:[%s7 + $0x148] sm:$0xff] %v1982
  %2079 = vst [vmem:[%s7 + $0x150] sm:$0xff] %v1983
  %2080 = vst [vmem:[%s7 + $0x158] sm:$0xff] %v1984
  %2081 = vst [vmem:[%s7 + $0x160] sm:$0xff] %v1985
  %2082 = vst [vmem:[%s7 + $0x168] sm:$0xff] %v1986
  %2083 = vst [vmem:[%s7 + $0x170] sm:$0xff] %v1987
  %2084 = vst [vmem:[%s7 + $0x178] sm:$0xff] %v1988
  %2085 = vst [vmem:[%s7 + $0x180] sm:$0xff] %v1989
  %2086 = vst [vmem:[%s7 + $0x188] sm:$0xff] %v1990
  %2087 = vst [vmem:[%s7 + $0x190] sm:$0xff] %v1991
  %2088 = vst [vmem:[%s7 + $0x198] sm:$0xff] %v1992
  %2089 = vst [vmem:[%s7 + $0x1a0] sm:$0xff] %v1993
  %2090 = vst [vmem:[%s7 + $0x1a8] sm:$0xff] %v1994
  %2091 = vst [vmem:[%s7 + $0x1b0] sm:$0xff] %v1995
  %2092 = vst [vmem:[%s7 + $0x1b8] sm:$0xff] %v1996
  %2093 = vst [vmem:[%s7 + $0x1c0] sm:$0xff] %v1997
  %2094 = vst [vmem:[%s7 + $0x1c8] sm:$0xff] %v1998
  %2095 = vst [vmem:[%s7 + $0x1d0] sm:$0xff] %v1999
  %2096 = vst [vmem:[%s7 + $0x1d8] sm:$0xff] %v2000
  %2097 = vst [vmem:[%s7 + $0x1e0] sm:$0xff] %v2001
  %2098 = vst [vmem:[%s7 + $0x1e8] sm:$0xff] %v2002
  %2099 = vst [vmem:[%s7 + $0x1f0] sm:$0xff] %v2003
  %2100 = vst [vmem:[%s7 + $0x1f8] sm:$0xff] %v2004
  %2101 = vst [vmem:[%s7 + $0x200] sm:$0xff] %v2005
  %2102 = vst [vmem:[%s7 + $0x208] sm:$0xff] %v2006
  %2103 = vst [vmem:[%s7 + $0x210] sm:$0xff] %v2007
  %2104 = vst [vmem:[%s7 + $0x218] sm:$0xff] %v2008
  %2105 = vst [vmem:[%s7 + $0x220] sm:$0xff] %v2009
  %2106 = vst [vmem:[%s7 + $0x228] sm:$0xff] %v2010
  %2107 = vst [vmem:[%s7 + $0x230] sm:$0xff] %v2011
  %2108 = vst [vmem:[%s7 + $0x238] sm:$0xff] %v2012
  %2109 = vst [vmem:[%s7 + $0x240] sm:$0xff] %v2013
  %2110 = vst [vmem:[%s7 + $0x248] sm:$0xff] %v2014
  %2111 = vst [vmem:[%s7 + $0x250] sm:$0xff] %v2015
  %2112 = vst [vmem:[%s7 + $0x258] sm:$0xff] %v2016
  %2113 = vst [vmem:[%s7 + $0x260] sm:$0xff] %v2017
  %2114 = vst [vmem:[%s7 + $0x268] sm:$0xff] %v2018
  %2115 = vst [vmem:[%s7 + $0x270] sm:$0xff] %v2019
  %2116 = vst [vmem:[%s7 + $0x278] sm:$0xff] %v2020
  %2117 = vst [vmem:[%s7 + $0x280] sm:$0xff] %v2021
  %2118 = vst [vmem:[%s7 + $0x288] sm:$0xff] %v2022
  %2119 = vst [vmem:[%s7 + $0x290] sm:$0xff] %v2023
  %2120 = vst [vmem:[%s7 + $0x298] sm:$0xff] %v2024
  %2121 = vst [vmem:[%s7 + $0x2a0] sm:$0xff] %v2025
  %2122 = vst [vmem:[%s7 + $0x2a8] sm:$0xff] %v2026
  %2123 = vst [vmem:[%s7 + $0x2b0] sm:$0xff] %v2027
  %2124 = vst [vmem:[%s7 + $0x2b8] sm:$0xff] %v2028
  %2125 = vst [vmem:[%s7 + $0x2c0] sm:$0xff] %v2029
  %2126 = vst [vmem:[%s7 + $0x2c8] sm:$0xff] %v2030
  %2127 = vst [vmem:[%s7 + $0x2d0] sm:$0xff] %v2031
  %2128 = vst [vmem:[%s7 + $0x2d8] sm:$0xff] %v2032
  %2129 = vst [vmem:[%s7 + $0x2e0] sm:$0xff] %v2033
  %2130 = vst [vmem:[%s7 + $0x2e8] sm:$0xff] %v2034
  %2131 = vst [vmem:[%s7 + $0x2f0] sm:$0xff] %v2035
  %2132 = vst [vmem:[%s7 + $0x2f8] sm:$0xff] %v2036
  %v2133 = vld [vmem:[%s3] sm:$0xff]
  %v2134 = vld [vmem:[%s3 + $0x8] sm:$0xff]
  %v2135 = vld [vmem:[%s3 + $0x10] sm:$0xff]
  %v2136 = vld [vmem:[%s3 + $0x18] sm:$0xff]
  %v2137 = vld [vmem:[%s3 + $0x20] sm:$0xff]
  %v2138 = vld [vmem:[%s3 + $0x28] sm:$0xff]
  %v2139 = vld [vmem:[%s3 + $0x30] sm:$0xff]
  %v2140 = vld [vmem:[%s3 + $0x38] sm:$0xff]
  %v2141 = vld [vmem:[%s3 + $0x40] sm:$0xff]
  %v2142 = vld [vmem:[%s3 + $0x48] sm:$0xff]
  %v2143 = vld [vmem:[%s3 + $0x50] sm:$0xff]
  %v2144 = vld [vmem:[%s3 + $0x58] sm:$0xff]
  %v2145 = vld [vmem:[%s3 + $0x60] sm:$0xff]
  %v2146 = vld [vmem:[%s3 + $0x68] sm:$0xff]
  %v2147 = vld [vmem:[%s3 + $0x70] sm:$0xff]
  %v2148 = vld [vmem:[%s3 + $0x78] sm:$0xff]
  %v2149 = vld [vmem:[%s3 + $0x80] sm:$0xff]
  %v2150 = vld [vmem:[%s3 + $0x88] sm:$0xff]
  %v2151 = vld [vmem:[%s3 + $0x90] sm:$0xff]
  %v2152 = vld [vmem:[%s3 + $0x98] sm:$0xff]
  %v2153 = vld [vmem:[%s3 + $0xa0] sm:$0xff]
  %v2154 = vld [vmem:[%s3 + $0xa8] sm:$0xff]
  %v2155 = vld [vmem:[%s3 + $0xb0] sm:$0xff]
  %v2156 = vld [vmem:[%s3 + $0xb8] sm:$0xff]
  %v2157 = vld [vmem:[%s3 + $0xc0] sm:$0xff]
  %v2158 = vld [vmem:[%s3 + $0xc8] sm:$0xff]
  %v2159 = vld [vmem:[%s3 + $0xd0] sm:$0xff]
  %v2160 = vld [vmem:[%s3 + $0xd8] sm:$0xff]
  %v2161 = vld [vmem:[%s3 + $0xe0] sm:$0xff]
  %v2162 = vld [vmem:[%s3 + $0xe8] sm:$0xff]
  %v2163 = vld [vmem:[%s3 + $0xf0] sm:$0xff]
  %v2164 = vld [vmem:[%s3 + $0xf8] sm:$0xff]
  %v2165 = vld [vmem:[%s3 + $0x100] sm:$0xff]
  %v2166 = vld [vmem:[%s3 + $0x108] sm:$0xff]
  %v2167 = vld [vmem:[%s3 + $0x110] sm:$0xff]
  %v2168 = vld [vmem:[%s3 + $0x118] sm:$0xff]
  %v2169 = vld [vmem:[%s3 + $0x120] sm:$0xff]
  %v2170 = vld [vmem:[%s3 + $0x128] sm:$0xff]
  %v2171 = vld [vmem:[%s3 + $0x130] sm:$0xff]
  %v2172 = vld [vmem:[%s3 + $0x138] sm:$0xff]
  %v2173 = vld [vmem:[%s3 + $0x140] sm:$0xff]
  %v2174 = vld [vmem:[%s3 + $0x148] sm:$0xff]
  %v2175 = vld [vmem:[%s3 + $0x150] sm:$0xff]
  %v2176 = vld [vmem:[%s3 + $0x158] sm:$0xff]
  %v2177 = vld [vmem:[%s3 + $0x160] sm:$0xff]
  %v2178 = vld [vmem:[%s3 + $0x168] sm:$0xff]
  %v2179 = vld [vmem:[%s3 + $0x170] sm:$0xff]
  %v2180 = vld [vmem:[%s3 + $0x178] sm:$0xff]
  %v2181 = vld [vmem:[%s4] sm:$0x1]
  %v2183 = vlaneseq
  %v2184 = vshrl.u32 %v2183, 7
  %v2185 = vsub.s32 0, %v2184
  %v2186 = vrot.slane %v2181, %v2185
  %2188 = vmatprep.subr.mxu0 0.0
  %2189 = vmatpush1.msra.mxu0 %v2133
  %2190 = vmatprep.subr.mxu0 0.0
  %2191 = vmatpush1.msra.mxu0 %v2134
  %2192 = vmatprep.subr.mxu0 0.0
  %2193 = vmatpush1.msra.mxu0 %v2135
  %2194 = vmatprep.subr.mxu0 0.0
  %2195 = vmatpush1.msra.mxu0 %v2136
  %2196 = vmatprep.subr.mxu0 0.0
  %2197 = vmatpush1.msra.mxu0 %v2137
  %2198 = vmatprep.subr.mxu0 0.0
  %2199 = vmatpush1.msra.mxu0 %v2138
  %2200 = vmatprep.subr.mxu0 0.0
  %2201 = vmatpush1.msra.mxu0 %v2139
  %2202 = vmatprep.subr.mxu0 0.0
  %2203 = vmatpush1.msra.mxu0 %v2140
  %2204 = vmatprep.subr.mxu0 0.0
  %2205 = vmatpush1.msra.mxu0 %v2141
  %2206 = vmatprep.subr.mxu0 0.0
  %2207 = vmatpush1.msra.mxu0 %v2142
  %2208 = vmatprep.subr.mxu0 0.0
  %2209 = vmatpush1.msra.mxu0 %v2143
  %2210 = vmatprep.subr.mxu0 0.0
  %2211 = vmatpush1.msra.mxu0 %v2144
  %2212 = vmatprep.subr.mxu0 0.0
  %2213 = vmatpush1.msra.mxu0 %v2145
  %2214 = vmatprep.subr.mxu0 0.0
  %2215 = vmatpush1.msra.mxu0 %v2146
  %2216 = vmatprep.subr.mxu0 0.0
  %2217 = vmatpush1.msra.mxu0 %v2147
  %2218 = vmatprep.subr.mxu0 0.0
  %2219 = vmatpush1.msra.mxu0 %v2148
  %2220 = vmatprep.subr.mxu0 0.0
  %2221 = vmatpush1.msra.mxu0 %v2149
  %2222 = vmatprep.subr.mxu0 0.0
  %2223 = vmatpush1.msra.mxu0 %v2150
  %2224 = vmatprep.subr.mxu0 0.0
  %2225 = vmatpush1.msra.mxu0 %v2151
  %2226 = vmatprep.subr.mxu0 0.0
  %2227 = vmatpush1.msra.mxu0 %v2152
  %2228 = vmatprep.subr.mxu0 0.0
  %2229 = vmatpush1.msra.mxu0 %v2153
  %2230 = vmatprep.subr.mxu0 0.0
  %2231 = vmatpush1.msra.mxu0 %v2154
  %2232 = vmatprep.subr.mxu0 0.0
  %2233 = vmatpush1.msra.mxu0 %v2155
  %2234 = vmatprep.subr.mxu0 0.0
  %2235 = vmatpush1.msra.mxu0 %v2156
  %2236 = vmatprep.subr.mxu0 0.0
  %2237 = vmatpush1.msra.mxu0 %v2157
  %2238 = vmatprep.subr.mxu0 0.0
  %2239 = vmatpush1.msra.mxu0 %v2158
  %2240 = vmatprep.subr.mxu0 0.0
  %2241 = vmatpush1.msra.mxu0 %v2159
  %2242 = vmatprep.subr.mxu0 0.0
  %2243 = vmatpush1.msra.mxu0 %v2160
  %2244 = vmatprep.subr.mxu0 0.0
  %2245 = vmatpush1.msra.mxu0 %v2161
  %2246 = vmatprep.subr.mxu0 0.0
  %2247 = vmatpush1.msra.mxu0 %v2162
  %2248 = vmatprep.subr.mxu0 0.0
  %2249 = vmatpush1.msra.mxu0 %v2163
  %2250 = vmatprep.subr.mxu0 0.0
  %2251 = vmatpush1.msra.mxu0 %v2164
  %2252 = vmatprep.mubr.f32.mxu0 %v1942
  %2253 = vmatmul.mubr.f32.gmra.mrb[0].mxu0 %v1941
  %v2254 = vpop.f32.mrb[0].mxu0
  %v2255 = vadd.f32 %v2186, %v2254
  %v2256 = vpop.f32.mrb[0].mxu0
  %2257 = vmatprep.mubr.f32.mxu0 %v1945
  %2258 = vmatmul.mubr.f32.gmra.mrb[0].mxu0 %v1944
  %v2259 = vpop.f32.mrb[0].mxu0
  %v2260 = vadd.f32 %v2186, %v2259
  %v2261 = vpop.f32.mrb[0].mxu0
  %2262 = vmatprep.mubr.f32.mxu0 %v1948
  %2263 = vmatmul.mubr.f32.gmra.mrb[0].mxu0 %v1947
  %v2264 = vpop.f32.mrb[0].mxu0
  %v2265 = vadd.f32 %v2186, %v2264
  %v2266 = vpop.f32.mrb[0].mxu0
  %2267 = vmatprep.mubr.f32.mxu0 %v1951
  %2268 = vmatmul.mubr.f32.gmra.mrb[0].mxu0 %v1950
  %v2269 = vpop.f32.mrb[0].mxu0
  %v2270 = vadd.f32 %v2186, %v2269
  %v2271 = vpop.f32.mrb[0].mxu0
  %2272 = vmatprep.mubr.f32.mxu0 %v1954
  %2273 = vmatmul.mubr.f32.gmra.mrb[0].mxu0 %v1953
  %v2274 = vpop.f32.mrb[0].mxu0
  %v2275 = vadd.f32 %v2186, %v2274
  %v2276 = vpop.f32.mrb[0].mxu0
  %2277 = vmatprep.mubr.f32.mxu0 %v1957
  %2278 = vmatmul.mubr.f32.gmra.mrb[0].mxu0 %v1956
  %v2279 = vpop.f32.mrb[0].mxu0
  %v2280 = vadd.f32 %v2186, %v2279
  %v2281 = vpop.f32.mrb[0].mxu0
  %2282 = vmatprep.mubr.f32.mxu0 %v1960
  %2283 = vmatmul.mubr.f32.gmra.mrb[0].mxu0 %v1959
  %v2284 = vpop.f32.mrb[0].mxu0
  %v2285 = vadd.f32 %v2186, %v2284
  %v2286 = vpop.f32.mrb[0].mxu0
  %2287 = vmatprep.mubr.f32.mxu0 %v1963
  %2288 = vmatmul.mubr.f32.gmra.mrb[0].mxu0 %v1962
  %v2289 = vpop.f32.mrb[0].mxu0
  %v2290 = vadd.f32 %v2186, %v2289
  %v2291 = vpop.f32.mrb[0].mxu0
  %2292 = vmatprep.mubr.f32.mxu0 %v1966
  %2293 = vmatmul.mubr.f32.gmra.mrb[0].mxu0 %v1965
  %v2294 = vpop.f32.mrb[0].mxu0
  %v2295 = vadd.f32 %v2186, %v2294
  %v2296 = vpop.f32.mrb[0].mxu0
  %2297 = vmatprep.mubr.f32.mxu0 %v1969
  %2298 = vmatmul.mubr.f32.gmra.mrb[0].mxu0 %v1968
  %v2299 = vpop.f32.mrb[0].mxu0
  %v2300 = vadd.f32 %v2186, %v2299
  %v2301 = vpop.f32.mrb[0].mxu0
  %2302 = vmatprep.mubr.f32.mxu0 %v1972
  %2303 = vmatmul.mubr.f32.gmra.mrb[0].mxu0 %v1971
  %v2304 = vpop.f32.mrb[0].mxu0
  %v2305 = vadd.f32 %v2186, %v2304
  %v2306 = vpop.f32.mrb[0].mxu0
  %2307 = vmatprep.mubr.f32.mxu0 %v1975
  %2308 = vmatmul.mubr.f32.gmra.mrb[0].mxu0 %v1974
  %v2309 = vpop.f32.mrb[0].mxu0
  %v2310 = vadd.f32 %v2186, %v2309
  %v2311 = vpop.f32.mrb[0].mxu0
  %2312 = vmatprep.mubr.f32.mxu0 %v1978
  %2313 = vmatmul.mubr.f32.gmra.mrb[0].mxu0 %v1977
  %v2314 = vpop.f32.mrb[0].mxu0
  %v2315 = vadd.f32 %v2186, %v2314
  %v2316 = vpop.f32.mrb[0].mxu0
  %2317 = vmatprep.mubr.f32.mxu0 %v1981
  %2318 = vmatmul.mubr.f32.gmra.mrb[0].mxu0 %v1980
  %v2319 = vpop.f32.mrb[0].mxu0
  %v2320 = vadd.f32 %v2186, %v2319
  %v2321 = vpop.f32.mrb[0].mxu0
  %2322 = vmatprep.mubr.f32.mxu0 %v1984
  %2323 = vmatmul.mubr.f32.gmra.mrb[0].mxu0 %v1983
  %v2324 = vpop.f32.mrb[0].mxu0
  %v2325 = vadd.f32 %v2186, %v2324
  %v2326 = vpop.f32.mrb[0].mxu0
  %2327 = vmatprep.mubr.f32.mxu0 %v1987
  %2328 = vmatmul.mubr.f32.gmra.mrb[0].mxu0 %v1986
  %v2329 = vpop.f32.mrb[0].mxu0
  %v2330 = vadd.f32 %v2186, %v2329
  %v2331 = vpop.f32.mrb[0].mxu0
  %2332 = vmatprep.mubr.f32.mxu0 %v1990
  %2333 = vmatmul.mubr.f32.gmra.mrb[0].mxu0 %v1989
  %v2334 = vpop.f32.mrb[0].mxu0
  %v2335 = vadd.f32 %v2186, %v2334
  %v2336 = vpop.f32.mrb[0].mxu0
  %2337 = vmatprep.mubr.f32.mxu0 %v1993
  %2338 = vmatmul.mubr.f32.gmra.mrb[0].mxu0 %v1992
  %v2339 = vpop.f32.mrb[0].mxu0
  %v2340 = vadd.f32 %v2186, %v2339
  %v2341 = vpop.f32.mrb[0].mxu0
  %2342 = vmatprep.mubr.f32.mxu0 %v1996
  %2343 = vmatmul.mubr.f32.gmra.mrb[0].mxu0 %v1995
  %v2344 = vpop.f32.mrb[0].mxu0
  %v2345 = vadd.f32 %v2186, %v2344
  %v2346 = vpop.f32.mrb[0].mxu0
  %2347 = vmatprep.mubr.f32.mxu0 %v1999
  %2348 = vmatmul.mubr.f32.gmra.mrb[0].mxu0 %v1998
  %v2349 = vpop.f32.mrb[0].mxu0
  %v2350 = vadd.f32 %v2186, %v2349
  %v2351 = vpop.f32.mrb[0].mxu0
  %2352 = vmatprep.mubr.f32.mxu0 %v2002
  %2353 = vmatmul.mubr.f32.gmra.mrb[0].mxu0 %v2001
  %v2354 = vpop.f32.mrb[0].mxu0
  %v2355 = vadd.f32 %v2186, %v2354
  %v2356 = vpop.f32.mrb[0].mxu0
  %2357 = vmatprep.mubr.f32.mxu0 %v2005
  %2358 = vmatmul.mubr.f32.gmra.mrb[0].mxu0 %v2004
  %v2359 = vpop.f32.mrb[0].mxu0
  %v2360 = vadd.f32 %v2186, %v2359
  %v2361 = vpop.f32.mrb[0].mxu0
  %2362 = vmatprep.mubr.f32.mxu0 %v2008
  %2363 = vmatmul.mubr.f32.gmra.mrb[0].mxu0 %v2007
  %v2364 = vpop.f32.mrb[0].mxu0
  %v2365 = vadd.f32 %v2186, %v2364
  %v2366 = vpop.f32.mrb[0].mxu0
  %2367 = vmatprep.mubr.f32.mxu0 %v2011
  %2368 = vmatmul.mubr.f32.gmra.mrb[0].mxu0 %v2010
  %v2369 = vpop.f32.mrb[0].mxu0
  %v2370 = vadd.f32 %v2186, %v2369
  %v2371 = vpop.f32.mrb[0].mxu0
  %2372 = vmatprep.mubr.f32.mxu0 %v2014
  %2373 = vmatmul.mubr.f32.gmra.mrb[0].mxu0 %v2013
  %v2374 = vpop.f32.mrb[0].mxu0
  %v2375 = vadd.f32 %v2186, %v2374
  %v2376 = vpop.f32.mrb[0].mxu0
  %2377 = vmatprep.mubr.f32.mxu0 %v2017
  %2378 = vmatmul.mubr.f32.gmra.mrb[0].mxu0 %v2016
  %v2379 = vpop.f32.mrb[0].mxu0
  %v2380 = vadd.f32 %v2186, %v2379
  %v2381 = vpop.f32.mrb[0].mxu0
  %2382 = vmatprep.mubr.f32.mxu0 %v2020
  %2383 = vmatmul.mubr.f32.gmra.mrb[0].mxu0 %v2019
  %v2384 = vpop.f32.mrb[0].mxu0
  %v2385 = vadd.f32 %v2186, %v2384
  %v2386 = vpop.f32.mrb[0].mxu0
  %2387 = vmatprep.mubr.f32.mxu0 %v2023
  %2388 = vmatmul.mubr.f32.gmra.mrb[0].mxu0 %v2022
  %v2389 = vpop.f32.mrb[0].mxu0
  %v2390 = vadd.f32 %v2186, %v2389
  %v2391 = vpop.f32.mrb[0].mxu0
  %2392 = vmatprep.mubr.f32.mxu0 %v2026
  %2393 = vmatmul.mubr.f32.gmra.mrb[0].mxu0 %v2025
  %v2394 = vpop.f32.mrb[0].mxu0
  %v2395 = vadd.f32 %v2186, %v2394
  %v2396 = vpop.f32.mrb[0].mxu0
  %2397 = vmatprep.mubr.f32.mxu0 %v2029
  %2398 = vmatmul.mubr.f32.gmra.mrb[0].mxu0 %v2028
  %v2399 = vpop.f32.mrb[0].mxu0
  %v2400 = vadd.f32 %v2186, %v2399
  %v2401 = vpop.f32.mrb[0].mxu0
  %2402 = vmatprep.mubr.f32.mxu0 %v2032
  %2403 = vmatmul.mubr.f32.gmra.mrb[0].mxu0 %v2031
  %v2404 = vpop.f32.mrb[0].mxu0
  %v2405 = vadd.f32 %v2186, %v2404
  %v2406 = vpop.f32.mrb[0].mxu0
  %2407 = vmatprep.mubr.f32.mxu0 %v2035
  %2408 = vmatmul.mubr.f32.gmra.mrb[0].mxu0 %v2034
  %v2409 = vpop.f32.mrb[0].mxu0
  %v2410 = vadd.f32 %v2186, %v2409
  %v2411 = vpop.f32.mrb[0].mxu0
  %2412 = vdwg.mxu0
  %2413 = vmatprep.subr.mxu0 0.0
  %2414 = vmatpush1.msra.mxu0 %v2165
  %2415 = vmatprep.subr.mxu0 0.0
  %2416 = vmatpush1.msra.mxu0 %v2166
  %2417 = vmatprep.subr.mxu0 0.0
  %2418 = vmatpush1.msra.mxu0 %v2167
  %2419 = vmatprep.subr.mxu0 0.0
  %2420 = vmatpush1.msra.mxu0 %v2168
  %2421 = vmatprep.subr.mxu0 0.0
  %2422 = vmatpush1.msra.mxu0 %v2169
  %2423 = vmatprep.subr.mxu0 0.0
  %2424 = vmatpush1.msra.mxu0 %v2170
  %2425 = vmatprep.subr.mxu0 0.0
  %2426 = vmatpush1.msra.mxu0 %v2171
  %2427 = vmatprep.subr.mxu0 0.0
  %2428 = vmatpush1.msra.mxu0 %v2172
  %2429 = vmatprep.subr.mxu0 0.0
  %2430 = vmatpush1.msra.mxu0 %v2173
  %2431 = vmatprep.subr.mxu0 0.0
  %2432 = vmatpush1.msra.mxu0 %v2174
  %2433 = vmatprep.subr.mxu0 0.0
  %2434 = vmatpush1.msra.mxu0 %v2175
  %2435 = vmatprep.subr.mxu0 0.0
  %2436 = vmatpush1.msra.mxu0 %v2176
  %2437 = vmatprep.subr.mxu0 0.0
  %2438 = vmatpush1.msra.mxu0 %v2177
  %2439 = vmatprep.subr.mxu0 0.0
  %2440 = vmatpush1.msra.mxu0 %v2178
  %2441 = vmatprep.subr.mxu0 0.0
  %2442 = vmatpush1.msra.mxu0 %v2179
  %2443 = vmatprep.subr.mxu0 0.0
  %2444 = vmatpush1.msra.mxu0 %v2180
  %2445 = vmatprep.subr.mxu0 0.0
  %2446 = vmatpush1.msra.mxu0 0.0
  %2447 = vmatprep.subr.mxu0 0.0
  %2448 = vmatpush1.msra.mxu0 0.0
  %2449 = vmatprep.subr.mxu0 0.0
  %2450 = vmatpush1.msra.mxu0 0.0
  %2451 = vmatprep.subr.mxu0 0.0
  %2452 = vmatpush1.msra.mxu0 0.0
  %2453 = vmatprep.subr.mxu0 0.0
  %2454 = vmatpush1.msra.mxu0 0.0
  %2455 = vmatprep.subr.mxu0 0.0
  %2456 = vmatpush1.msra.mxu0 0.0
  %2457 = vmatprep.subr.mxu0 0.0
  %2458 = vmatpush1.msra.mxu0 0.0
  %2459 = vmatprep.subr.mxu0 0.0
  %2460 = vmatpush1.msra.mxu0 0.0
  %2461 = vmatprep.subr.mxu0 0.0
  %2462 = vmatpush1.msra.mxu0 0.0
  %2463 = vmatprep.subr.mxu0 0.0
  %2464 = vmatpush1.msra.mxu0 0.0
  %2465 = vmatprep.subr.mxu0 0.0
  %2466 = vmatpush1.msra.mxu0 0.0
  %2467 = vmatprep.subr.mxu0 0.0
  %2468 = vmatpush1.msra.mxu0 0.0
  %2469 = vmatprep.subr.mxu0 0.0
  %2470 = vmatpush1.msra.mxu0 0.0
  %2471 = vmatprep.subr.mxu0 0.0
  %2472 = vmatpush1.msra.mxu0 0.0
  %2473 = vmatprep.subr.mxu0 0.0
  %2474 = vmatpush1.msra.mxu0 0.0
  %2475 = vmatprep.subr.mxu0 0.0
  %2476 = vmatpush1.msra.mxu0 0.0
  %2477 = vmatprep.mubr.f32.mxu0 0.0
  %2478 = vmatmul.mubr.f32.gmra.mrb[0].mxu0 %v1943
  %v2479 = vpop.f32.mrb[0].mxu0
  %v2480 = vadd.f32 %v2255, %v2479
  %v2481 = vpop.f32.mrb[0].mxu0
  %2482 = vmatprep.mubr.f32.mxu0 0.0
  %2483 = vmatmul.mubr.f32.gmra.mrb[0].mxu0 %v1946
  %v2484 = vpop.f32.mrb[0].mxu0
  %v2485 = vadd.f32 %v2260, %v2484
  %v2486 = vpop.f32.mrb[0].mxu0
  %2487 = vmatprep.mubr.f32.mxu0 0.0
  %2488 = vmatmul.mubr.f32.gmra.mrb[0].mxu0 %v1949
  %v2489 = vpop.f32.mrb[0].mxu0
  %v2490 = vadd.f32 %v2265, %v2489
  %v2491 = vpop.f32.mrb[0].mxu0
  %2492 = vmatprep.mubr.f32.mxu0 0.0
  %2493 = vmatmul.mubr.f32.gmra.mrb[0].mxu0 %v1952
  %v2494 = vpop.f32.mrb[0].mxu0
  %v2495 = vadd.f32 %v2270, %v2494
  %v2496 = vpop.f32.mrb[0].mxu0
  %2497 = vmatprep.mubr.f32.mxu0 0.0
  %2498 = vmatmul.mubr.f32.gmra.mrb[0].mxu0 %v1955
  %v2499 = vpop.f32.mrb[0].mxu0
  %v2500 = vadd.f32 %v2275, %v2499
  %v2501 = vpop.f32.mrb[0].mxu0
  %2502 = vmatprep.mubr.f32.mxu0 0.0
  %2503 = vmatmul.mubr.f32.gmra.mrb[0].mxu0 %v1958
  %v2504 = vpop.f32.mrb[0].mxu0
  %v2505 = vadd.f32 %v2280, %v2504
  %v2506 = vpop.f32.mrb[0].mxu0
  %2507 = vmatprep.mubr.f32.mxu0 0.0
  %2508 = vmatmul.mubr.f32.gmra.mrb[0].mxu0 %v1961
  %v2509 = vpop.f32.mrb[0].mxu0
  %v2510 = vadd.f32 %v2285, %v2509
  %v2511 = vpop.f32.mrb[0].mxu0
  %2512 = vmatprep.mubr.f32.mxu0 0.0
  %2513 = vmatmul.mubr.f32.gmra.mrb[0].mxu0 %v1964
  %v2514 = vpop.f32.mrb[0].mxu0
  %v2515 = vadd.f32 %v2290, %v2514
  %v2516 = vpop.f32.mrb[0].mxu0
  %2517 = vmatprep.mubr.f32.mxu0 0.0
  %2518 = vmatmul.mubr.f32.gmra.mrb[0].mxu0 %v1967
  %v2519 = vpop.f32.mrb[0].mxu0
  %v2520 = vadd.f32 %v2295, %v2519
  %v2521 = vpop.f32.mrb[0].mxu0
  %2522 = vmatprep.mubr.f32.mxu0 0.0
  %2523 = vmatmul.mubr.f32.gmra.mrb[0].mxu0 %v1970
  %v2524 = vpop.f32.mrb[0].mxu0
  %v2525 = vadd.f32 %v2300, %v2524
  %v2526 = vpop.f32.mrb[0].mxu0
  %2527 = vmatprep.mubr.f32.mxu0 0.0
  %2528 = vmatmul.mubr.f32.gmra.mrb[0].mxu0 %v1973
  %v2529 = vpop.f32.mrb[0].mxu0
  %v2530 = vadd.f32 %v2305, %v2529
  %v2531 = vpop.f32.mrb[0].mxu0
  %2532 = vmatprep.mubr.f32.mxu0 0.0
  %2533 = vmatmul.mubr.f32.gmra.mrb[0].mxu0 %v1976
  %v2534 = vpop.f32.mrb[0].mxu0
  %v2535 = vadd.f32 %v2310, %v2534
  %v2536 = vpop.f32.mrb[0].mxu0
  %2537 = vmatprep.mubr.f32.mxu0 0.0
  %2538 = vmatmul.mubr.f32.gmra.mrb[0].mxu0 %v1979
  %v2539 = vpop.f32.mrb[0].mxu0
  %v2540 = vadd.f32 %v2315, %v2539
  %v2541 = vpop.f32.mrb[0].mxu0
  %2542 = vmatprep.mubr.f32.mxu0 0.0
  %2543 = vmatmul.mubr.f32.gmra.mrb[0].mxu0 %v1982
  %v2544 = vpop.f32.mrb[0].mxu0
  %v2545 = vadd.f32 %v2320, %v2544
  %v2546 = vpop.f32.mrb[0].mxu0
  %2547 = vmatprep.mubr.f32.mxu0 0.0
  %2548 = vmatmul.mubr.f32.gmra.mrb[0].mxu0 %v1985
  %v2549 = vpop.f32.mrb[0].mxu0
  %v2550 = vadd.f32 %v2325, %v2549
  %v2551 = vpop.f32.mrb[0].mxu0
  %2552 = vmatprep.mubr.f32.mxu0 0.0
  %2553 = vmatmul.mubr.f32.gmra.mrb[0].mxu0 %v1988
  %v2554 = vpop.f32.mrb[0].mxu0
  %v2555 = vadd.f32 %v2330, %v2554
  %v2556 = vpop.f32.mrb[0].mxu0
  %2557 = vmatprep.mubr.f32.mxu0 0.0
  %2558 = vmatmul.mubr.f32.gmra.mrb[0].mxu0 %v1991
  %v2559 = vpop.f32.mrb[0].mxu0
  %v2560 = vadd.f32 %v2335, %v2559
  %v2561 = vpop.f32.mrb[0].mxu0
  %2562 = vmatprep.mubr.f32.mxu0 0.0
  %2563 = vmatmul.mubr.f32.gmra.mrb[0].mxu0 %v1994
  %v2564 = vpop.f32.mrb[0].mxu0
  %v2565 = vadd.f32 %v2340, %v2564
  %v2566 = vpop.f32.mrb[0].mxu0
  %2567 = vmatprep.mubr.f32.mxu0 0.0
  %2568 = vmatmul.mubr.f32.gmra.mrb[0].mxu0 %v1997
  %v2569 = vpop.f32.mrb[0].mxu0
  %v2570 = vadd.f32 %v2345, %v2569
  %v2571 = vpop.f32.mrb[0].mxu0
  %2572 = vmatprep.mubr.f32.mxu0 0.0
  %2573 = vmatmul.mubr.f32.gmra.mrb[0].mxu0 %v2000
  %v2574 = vpop.f32.mrb[0].mxu0
  %v2575 = vadd.f32 %v2350, %v2574
  %v2576 = vpop.f32.mrb[0].mxu0
  %2577 = vmatprep.mubr.f32.mxu0 0.0
  %2578 = vmatmul.mubr.f32.gmra.mrb[0].mxu0 %v2003
  %v2579 = vpop.f32.mrb[0].mxu0
  %v2580 = vadd.f32 %v2355, %v2579
  %v2581 = vpop.f32.mrb[0].mxu0
  %2582 = vmatprep.mubr.f32.mxu0 0.0
  %2583 = vmatmul.mubr.f32.gmra.mrb[0].mxu0 %v2006
  %v2584 = vpop.f32.mrb[0].mxu0
  %v2585 = vadd.f32 %v2360, %v2584
  %v2586 = vpop.f32.mrb[0].mxu0
  %2587 = vmatprep.mubr.f32.mxu0 0.0
  %2588 = vmatmul.mubr.f32.gmra.mrb[0].mxu0 %v2009
  %v2589 = vpop.f32.mrb[0].mxu0
  %v2590 = vadd.f32 %v2365, %v2589
  %v2591 = vpop.f32.mrb[0].mxu0
  %2592 = vmatprep.mubr.f32.mxu0 0.0
  %2593 = vmatmul.mubr.f32.gmra.mrb[0].mxu0 %v2012
  %v2594 = vpop.f32.mrb[0].mxu0
  %v2595 = vadd.f32 %v2370, %v2594
  %v2596 = vpop.f32.mrb[0].mxu0
  %2597 = vmatprep.mubr.f32.mxu0 0.0
  %2598 = vmatmul.mubr.f32.gmra.mrb[0].mxu0 %v2015
  %v2599 = vpop.f32.mrb[0].mxu0
  %v2600 = vadd.f32 %v2375, %v2599
  %v2601 = vpop.f32.mrb[0].mxu0
  %2602 = vmatprep.mubr.f32.mxu0 0.0
  %2603 = vmatmul.mubr.f32.gmra.mrb[0].mxu0 %v2018
  %v2604 = vpop.f32.mrb[0].mxu0
  %v2605 = vadd.f32 %v2380, %v2604
  %v2606 = vpop.f32.mrb[0].mxu0
  %2607 = vmatprep.mubr.f32.mxu0 0.0
  %2608 = vmatmul.mubr.f32.gmra.mrb[0].mxu0 %v2021
  %v2609 = vpop.f32.mrb[0].mxu0
  %v2610 = vadd.f32 %v2385, %v2609
  %v2611 = vpop.f32.mrb[0].mxu0
  %2612 = vmatprep.mubr.f32.mxu0 0.0
  %2613 = vmatmul.mubr.f32.gmra.mrb[0].mxu0 %v2024
  %v2614 = vpop.f32.mrb[0].mxu0
  %v2615 = vadd.f32 %v2390, %v2614
  %v2616 = vpop.f32.mrb[0].mxu0
  %2617 = vmatprep.mubr.f32.mxu0 0.0
  %2618 = vmatmul.mubr.f32.gmra.mrb[0].mxu0 %v2027
  %v2619 = vpop.f32.mrb[0].mxu0
  %v2620 = vadd.f32 %v2395, %v2619
  %v2621 = vpop.f32.mrb[0].mxu0
  %2622 = vmatprep.mubr.f32.mxu0 0.0
  %2623 = vmatmul.mubr.f32.gmra.mrb[0].mxu0 %v2030
  %v2624 = vpop.f32.mrb[0].mxu0
  %v2625 = vadd.f32 %v2400, %v2624
  %v2626 = vpop.f32.mrb[0].mxu0
  %2627 = vmatprep.mubr.f32.mxu0 0.0
  %2628 = vmatmul.mubr.f32.gmra.mrb[0].mxu0 %v2033
  %v2629 = vpop.f32.mrb[0].mxu0
  %v2630 = vadd.f32 %v2405, %v2629
  %v2631 = vpop.f32.mrb[0].mxu0
  %2632 = vmatprep.mubr.f32.mxu0 0.0
  %2633 = vmatmul.mubr.f32.gmra.mrb[0].mxu0 %v2036
  %v2634 = vpop.f32.mrb[0].mxu0
  %v2635 = vadd.f32 %v2410, %v2634
  %v2636 = vpop.f32.mrb[0].mxu0
  %2637 = vdwg.mxu0
  %v2638 = vmax.f32 %v2480, 0.0
  %v2639 = vmax.f32 %v2485, 0.0
  %v2640 = vmax.f32 %v2490, 0.0
  %v2641 = vmax.f32 %v2495, 0.0
  %v2642 = vmax.f32 %v2500, 0.0
  %v2643 = vmax.f32 %v2505, 0.0
  %v2644 = vmax.f32 %v2510, 0.0
  %v2645 = vmax.f32 %v2515, 0.0
  %v2646 = vmax.f32 %v2520, 0.0
  %v2647 = vmax.f32 %v2525, 0.0
  %v2648 = vmax.f32 %v2530, 0.0
  %v2649 = vmax.f32 %v2535, 0.0
  %v2650 = vmax.f32 %v2540, 0.0
  %v2651 = vmax.f32 %v2545, 0.0
  %v2652 = vmax.f32 %v2550, 0.0
  %v2653 = vmax.f32 %v2555, 0.0
  %v2654 = vmax.f32 %v2560, 0.0
  %v2655 = vmax.f32 %v2565, 0.0
  %v2656 = vmax.f32 %v2570, 0.0
  %v2657 = vmax.f32 %v2575, 0.0
  %v2658 = vmax.f32 %v2580, 0.0
  %v2659 = vmax.f32 %v2585, 0.0
  %v2660 = vmax.f32 %v2590, 0.0
  %v2661 = vmax.f32 %v2595, 0.0
  %v2662 = vmax.f32 %v2600, 0.0
  %v2663 = vmax.f32 %v2605, 0.0
  %v2664 = vmax.f32 %v2610, 0.0
  %v2665 = vmax.f32 %v2615, 0.0
  %v2666 = vmax.f32 %v2620, 0.0
  %v2667 = vmax.f32 %v2625, 0.0
  %v2668 = vmax.f32 %v2630, 0.0
  %v2669 = vmax.f32 %v2635, 0.0
  %v2670 = vld [vmem:[%s5] sm:$0xff]
  %v2671 = vld [vmem:[%s5 + $0x8] sm:$0xff]
  %v2672 = vld [vmem:[%s5 + $0x10] sm:$0xff]
  %v2673 = vld [vmem:[%s5 + $0x18] sm:$0xff]
  %v2674 = vld [vmem:[%s5 + $0x20] sm:$0xff]
  %v2675 = vld [vmem:[%s5 + $0x28] sm:$0xff]
  %v2676 = vld [vmem:[%s5 + $0x30] sm:$0xff]
  %v2677 = vld [vmem:[%s5 + $0x38] sm:$0xff]
  %v2678 = vld [vmem:[%s5 + $0x40] sm:$0xff]
  %v2679 = vld [vmem:[%s5 + $0x48] sm:$0xff]
  %v2680 = vld [vmem:[%s5 + $0x50] sm:$0xff]
  %v2681 = vld [vmem:[%s5 + $0x58] sm:$0xff]
  %v2682 = vld [vmem:[%s5 + $0x60] sm:$0xff]
  %v2683 = vld [vmem:[%s5 + $0x68] sm:$0xff]
  %v2684 = vld [vmem:[%s5 + $0x70] sm:$0xff]
  %v2685 = vld [vmem:[%s5 + $0x78] sm:$0xff]
  %v2686 = vld [vmem:[%s6] sm:$0x1]
  %v2688 = vlaneseq
  %v2689 = vshrl.u32 %v2688, 7
  %v2690 = vsub.s32 0, %v2689
  %v2691 = vrot.slane %v2686, %v2690
  %2693 = vmatprep.subr.mxu0 0.0
  %2694 = vmatpush1.msra.mxu0 %v2670
  %2695 = vmatprep.subr.mxu0 0.0
  %2696 = vmatpush1.msra.mxu0 %v2671
  %2697 = vmatprep.subr.mxu0 0.0
  %2698 = vmatpush1.msra.mxu0 %v2672
  %2699 = vmatprep.subr.mxu0 0.0
  %2700 = vmatpush1.msra.mxu0 %v2673
  %2701 = vmatprep.subr.mxu0 0.0
  %2702 = vmatpush1.msra.mxu0 %v2674
  %2703 = vmatprep.subr.mxu0 0.0
  %2704 = vmatpush1.msra.mxu0 %v2675
  %2705 = vmatprep.subr.mxu0 0.0
  %2706 = vmatpush1.msra.mxu0 %v2676
  %2707 = vmatprep.subr.mxu0 0.0
  %2708 = vmatpush1.msra.mxu0 %v2677
  %2709 = vmatprep.subr.mxu0 0.0
  %2710 = vmatpush1.msra.mxu0 %v2678
  %2711 = vmatprep.subr.mxu0 0.0
  %2712 = vmatpush1.msra.mxu0 %v2679
  %2713 = vmatprep.subr.mxu0 0.0
  %2714 = vmatpush1.msra.mxu0 %v2680
  %2715 = vmatprep.subr.mxu0 0.0
  %2716 = vmatpush1.msra.mxu0 %v2681
  %2717 = vmatprep.subr.mxu0 0.0
  %2718 = vmatpush1.msra.mxu0 %v2682
  %2719 = vmatprep.subr.mxu0 0.0
  %2720 = vmatpush1.msra.mxu0 %v2683
  %2721 = vmatprep.subr.mxu0 0.0
  %2722 = vmatpush1.msra.mxu0 %v2684
  %2723 = vmatprep.subr.mxu0 0.0
  %2724 = vmatpush1.msra.mxu0 %v2685
  %2725 = vmatprep.subr.mxu0 0.0
  %2726 = vmatpush1.msra.mxu0 0.0
  %2727 = vmatprep.subr.mxu0 0.0
  %2728 = vmatpush1.msra.mxu0 0.0
  %2729 = vmatprep.subr.mxu0 0.0
  %2730 = vmatpush1.msra.mxu0 0.0
  %2731 = vmatprep.subr.mxu0 0.0
  %2732 = vmatpush1.msra.mxu0 0.0
  %2733 = vmatprep.subr.mxu0 0.0
  %2734 = vmatpush1.msra.mxu0 0.0
  %2735 = vmatprep.subr.mxu0 0.0
  %2736 = vmatpush1.msra.mxu0 0.0
  %2737 = vmatprep.subr.mxu0 0.0
  %2738 = vmatpush1.msra.mxu0 0.0
  %2739 = vmatprep.subr.mxu0 0.0
  %2740 = vmatpush1.msra.mxu0 0.0
  %2741 = vmatprep.subr.mxu0 0.0
  %2742 = vmatpush1.msra.mxu0 0.0
  %2743 = vmatprep.subr.mxu0 0.0
  %2744 = vmatpush1.msra.mxu0 0.0
  %2745 = vmatprep.subr.mxu0 0.0
  %2746 = vmatpush1.msra.mxu0 0.0
  %2747 = vmatprep.subr.mxu0 0.0
  %2748 = vmatpush1.msra.mxu0 0.0
  %2749 = vmatprep.subr.mxu0 0.0
  %2750 = vmatpush1.msra.mxu0 0.0
  %2751 = vmatprep.subr.mxu0 0.0
  %2752 = vmatpush1.msra.mxu0 0.0
  %2753 = vmatprep.subr.mxu0 0.0
  %2754 = vmatpush1.msra.mxu0 0.0
  %2755 = vmatprep.subr.mxu0 0.0
  %2756 = vmatpush1.msra.mxu0 0.0
  %2757 = vmatprep.mubr.f32.mxu0 0.0
  %2758 = vmatmul.mubr.f32.gmra.mrb[0].mxu0 %v2638
  %v2759 = vpop.f32.mrb[0].mxu0
  %v2760 = vadd.f32 %v2691, %v2759
  %v2761 = vpop.f32.mrb[0].mxu0
  %2762 = vmatprep.mubr.f32.mxu0 0.0
  %2763 = vmatmul.mubr.f32.gmra.mrb[0].mxu0 %v2639
  %v2764 = vpop.f32.mrb[0].mxu0
  %v2765 = vadd.f32 %v2691, %v2764
  %v2766 = vpop.f32.mrb[0].mxu0
  %2767 = vmatprep.mubr.f32.mxu0 0.0
  %2768 = vmatmul.mubr.f32.gmra.mrb[0].mxu0 %v2640
  %v2769 = vpop.f32.mrb[0].mxu0
  %v2770 = vadd.f32 %v2691, %v2769
  %v2771 = vpop.f32.mrb[0].mxu0
  %2772 = vmatprep.mubr.f32.mxu0 0.0
  %2773 = vmatmul.mubr.f32.gmra.mrb[0].mxu0 %v2641
  %v2774 = vpop.f32.mrb[0].mxu0
  %v2775 = vadd.f32 %v2691, %v2774
  %v2776 = vpop.f32.mrb[0].mxu0
  %2777 = vmatprep.mubr.f32.mxu0 0.0
  %2778 = vmatmul.mubr.f32.gmra.mrb[0].mxu0 %v2642
  %v2779 = vpop.f32.mrb[0].mxu0
  %v2780 = vadd.f32 %v2691, %v2779
  %v2781 = vpop.f32.mrb[0].mxu0
  %2782 = vmatprep.mubr.f32.mxu0 0.0
  %2783 = vmatmul.mubr.f32.gmra.mrb[0].mxu0 %v2643
  %v2784 = vpop.f32.mrb[0].mxu0
  %v2785 = vadd.f32 %v2691, %v2784
  %v2786 = vpop.f32.mrb[0].mxu0
  %2787 = vmatprep.mubr.f32.mxu0 0.0
  %2788 = vmatmul.mubr.f32.gmra.mrb[0].mxu0 %v2644
  %v2789 = vpop.f32.mrb[0].mxu0
  %v2790 = vadd.f32 %v2691, %v2789
  %v2791 = vpop.f32.mrb[0].mxu0
  %2792 = vmatprep.mubr.f32.mxu0 0.0
  %2793 = vmatmul.mubr.f32.gmra.mrb[0].mxu0 %v2645
  %v2794 = vpop.f32.mrb[0].mxu0
  %v2795 = vadd.f32 %v2691, %v2794
  %v2796 = vpop.f32.mrb[0].mxu0
  %2797 = vmatprep.mubr.f32.mxu0 0.0
  %2798 = vmatmul.mubr.f32.gmra.mrb[0].mxu0 %v2646
  %v2799 = vpop.f32.mrb[0].mxu0
  %v2800 = vadd.f32 %v2691, %v2799
  %v2801 = vpop.f32.mrb[0].mxu0
  %2802 = vmatprep.mubr.f32.mxu0 0.0
  %2803 = vmatmul.mubr.f32.gmra.mrb[0].mxu0 %v2647
  %v2804 = vpop.f32.mrb[0].mxu0
  %v2805 = vadd.f32 %v2691, %v2804
  %v2806 = vpop.f32.mrb[0].mxu0
  %2807 = vmatprep.mubr.f32.mxu0 0.0
  %2808 = vmatmul.mubr.f32.gmra.mrb[0].mxu0 %v2648
  %v2809 = vpop.f32.mrb[0].mxu0
  %v2810 = vadd.f32 %v2691, %v2809
  %v2811 = vpop.f32.mrb[0].mxu0
  %2812 = vmatprep.mubr.f32.mxu0 0.0
  %2813 = vmatmul.mubr.f32.gmra.mrb[0].mxu0 %v2649
  %v2814 = vpop.f32.mrb[0].mxu0
  %v2815 = vadd.f32 %v2691, %v2814
  %v2816 = vpop.f32.mrb[0].mxu0
  %2817 = vmatprep.mubr.f32.mxu0 0.0
  %2818 = vmatmul.mubr.f32.gmra.mrb[0].mxu0 %v2650
  %v2819 = vpop.f32.mrb[0].mxu0
  %v2820 = vadd.f32 %v2691, %v2819
  %v2821 = vpop.f32.mrb[0].mxu0
  %2822 = vmatprep.mubr.f32.mxu0 0.0
  %2823 = vmatmul.mubr.f32.gmra.mrb[0].mxu0 %v2651
  %v2824 = vpop.f32.mrb[0].mxu0
  %v2825 = vadd.f32 %v2691, %v2824
  %v2826 = vpop.f32.mrb[0].mxu0
  %2827 = vmatprep.mubr.f32.mxu0 0.0
  %2828 = vmatmul.mubr.f32.gmra.mrb[0].mxu0 %v2652
  %v2829 = vpop.f32.mrb[0].mxu0
  %v2830 = vadd.f32 %v2691, %v2829
  %v2831 = vpop.f32.mrb[0].mxu0
  %2832 = vmatprep.mubr.f32.mxu0 0.0
  %2833 = vmatmul.mubr.f32.gmra.mrb[0].mxu0 %v2653
  %v2834 = vpop.f32.mrb[0].mxu0
  %v2835 = vadd.f32 %v2691, %v2834
  %v2836 = vpop.f32.mrb[0].mxu0
  %2837 = vmatprep.mubr.f32.mxu0 0.0
  %2838 = vmatmul.mubr.f32.gmra.mrb[0].mxu0 %v2654
  %v2839 = vpop.f32.mrb[0].mxu0
  %v2840 = vadd.f32 %v2691, %v2839
  %v2841 = vpop.f32.mrb[0].mxu0
  %2842 = vmatprep.mubr.f32.mxu0 0.0
  %2843 = vmatmul.mubr.f32.gmra.mrb[0].mxu0 %v2655
  %v2844 = vpop.f32.mrb[0].mxu0
  %v2845 = vadd.f32 %v2691, %v2844
  %v2846 = vpop.f32.mrb[0].mxu0
  %2847 = vmatprep.mubr.f32.mxu0 0.0
  %2848 = vmatmul.mubr.f32.gmra.mrb[0].mxu0 %v2656
  %v2849 = vpop.f32.mrb[0].mxu0
  %v2850 = vadd.f32 %v2691, %v2849
  %v2851 = vpop.f32.mrb[0].mxu0
  %2852 = vmatprep.mubr.f32.mxu0 0.0
  %2853 = vmatmul.mubr.f32.gmra.mrb[0].mxu0 %v2657
  %v2854 = vpop.f32.mrb[0].mxu0
  %v2855 = vadd.f32 %v2691, %v2854
  %v2856 = vpop.f32.mrb[0].mxu0
  %2857 = vmatprep.mubr.f32.mxu0 0.0
  %2858 = vmatmul.mubr.f32.gmra.mrb[0].mxu0 %v2658
  %v2859 = vpop.f32.mrb[0].mxu0
  %v2860 = vadd.f32 %v2691, %v2859
  %v2861 = vpop.f32.mrb[0].mxu0
  %2862 = vmatprep.mubr.f32.mxu0 0.0
  %2863 = vmatmul.mubr.f32.gmra.mrb[0].mxu0 %v2659
  %v2864 = vpop.f32.mrb[0].mxu0
  %v2865 = vadd.f32 %v2691, %v2864
  %v2866 = vpop.f32.mrb[0].mxu0
  %2867 = vmatprep.mubr.f32.mxu0 0.0
  %2868 = vmatmul.mubr.f32.gmra.mrb[0].mxu0 %v2660
  %v2869 = vpop.f32.mrb[0].mxu0
  %v2870 = vadd.f32 %v2691, %v2869
  %v2871 = vpop.f32.mrb[0].mxu0
  %2872 = vmatprep.mubr.f32.mxu0 0.0
  %2873 = vmatmul.mubr.f32.gmra.mrb[0].mxu0 %v2661
  %v2874 = vpop.f32.mrb[0].mxu0
  %v2875 = vadd.f32 %v2691, %v2874
  %v2876 = vpop.f32.mrb[0].mxu0
  %2877 = vmatprep.mubr.f32.mxu0 0.0
  %2878 = vmatmul.mubr.f32.gmra.mrb[0].mxu0 %v2662
  %v2879 = vpop.f32.mrb[0].mxu0
  %v2880 = vadd.f32 %v2691, %v2879
  %v2881 = vpop.f32.mrb[0].mxu0
  %2882 = vmatprep.mubr.f32.mxu0 0.0
  %2883 = vmatmul.mubr.f32.gmra.mrb[0].mxu0 %v2663
  %v2884 = vpop.f32.mrb[0].mxu0
  %v2885 = vadd.f32 %v2691, %v2884
  %v2886 = vpop.f32.mrb[0].mxu0
  %2887 = vmatprep.mubr.f32.mxu0 0.0
  %2888 = vmatmul.mubr.f32.gmra.mrb[0].mxu0 %v2664
  %v2889 = vpop.f32.mrb[0].mxu0
  %v2890 = vadd.f32 %v2691, %v2889
  %v2891 = vpop.f32.mrb[0].mxu0
  %2892 = vmatprep.mubr.f32.mxu0 0.0
  %2893 = vmatmul.mubr.f32.gmra.mrb[0].mxu0 %v2665
  %v2894 = vpop.f32.mrb[0].mxu0
  %v2895 = vadd.f32 %v2691, %v2894
  %v2896 = vpop.f32.mrb[0].mxu0
  %2897 = vmatprep.mubr.f32.mxu0 0.0
  %2898 = vmatmul.mubr.f32.gmra.mrb[0].mxu0 %v2666
  %v2899 = vpop.f32.mrb[0].mxu0
  %v2900 = vadd.f32 %v2691, %v2899
  %v2901 = vpop.f32.mrb[0].mxu0
  %2902 = vmatprep.mubr.f32.mxu0 0.0
  %2903 = vmatmul.mubr.f32.gmra.mrb[0].mxu0 %v2667
  %v2904 = vpop.f32.mrb[0].mxu0
  %v2905 = vadd.f32 %v2691, %v2904
  %v2906 = vpop.f32.mrb[0].mxu0
  %2907 = vmatprep.mubr.f32.mxu0 0.0
  %2908 = vmatmul.mubr.f32.gmra.mrb[0].mxu0 %v2668
  %v2909 = vpop.f32.mrb[0].mxu0
  %v2910 = vadd.f32 %v2691, %v2909
  %v2911 = vpop.f32.mrb[0].mxu0
  %2912 = vmatprep.mubr.f32.mxu0 0.0
  %2913 = vmatmul.mubr.f32.gmra.mrb[0].mxu0 %v2669
  %v2914 = vpop.f32.mrb[0].mxu0
  %v2915 = vadd.f32 %v2691, %v2914
  %v2916 = vpop.f32.mrb[0].mxu0
  %2917 = vdwg.mxu0
  %2918 = vst [vmem:[%s8] sm:$0xff] %v2760
  %2919 = vst [vmem:[%s8 + $0x8] sm:$0xff] %v2765
  %2920 = vst [vmem:[%s8 + $0x10] sm:$0xff] %v2770
  %2921 = vst [vmem:[%s8 + $0x18] sm:$0xff] %v2775
  %2922 = vst [vmem:[%s8 + $0x20] sm:$0xff] %v2780
  %2923 = vst [vmem:[%s8 + $0x28] sm:$0xff] %v2785
  %2924 = vst [vmem:[%s8 + $0x30] sm:$0xff] %v2790
  %2925 = vst [vmem:[%s8 + $0x38] sm:$0xff] %v2795
  %2926 = vst [vmem:[%s8 + $0x40] sm:$0xff] %v2800
  %2927 = vst [vmem:[%s8 + $0x48] sm:$0xff] %v2805
  %2928 = vst [vmem:[%s8 + $0x50] sm:$0xff] %v2810
  %2929 = vst [vmem:[%s8 + $0x58] sm:$0xff] %v2815
  %2930 = vst [vmem:[%s8 + $0x60] sm:$0xff] %v2820
  %2931 = vst [vmem:[%s8 + $0x68] sm:$0xff] %v2825
  %2932 = vst [vmem:[%s8 + $0x70] sm:$0xff] %v2830
  %2933 = vst [vmem:[%s8 + $0x78] sm:$0xff] %v2835
  %2934 = vst [vmem:[%s8 + $0x80] sm:$0xff] %v2840
  %2935 = vst [vmem:[%s8 + $0x88] sm:$0xff] %v2845
  %2936 = vst [vmem:[%s8 + $0x90] sm:$0xff] %v2850
  %2937 = vst [vmem:[%s8 + $0x98] sm:$0xff] %v2855
  %2938 = vst [vmem:[%s8 + $0xa0] sm:$0xff] %v2860
  %2939 = vst [vmem:[%s8 + $0xa8] sm:$0xff] %v2865
  %2940 = vst [vmem:[%s8 + $0xb0] sm:$0xff] %v2870
  %2941 = vst [vmem:[%s8 + $0xb8] sm:$0xff] %v2875
  %2942 = vst [vmem:[%s8 + $0xc0] sm:$0xff] %v2880
  %2943 = vst [vmem:[%s8 + $0xc8] sm:$0xff] %v2885
  %2944 = vst [vmem:[%s8 + $0xd0] sm:$0xff] %v2890
  %2945 = vst [vmem:[%s8 + $0xd8] sm:$0xff] %v2895
  %2946 = vst [vmem:[%s8 + $0xe0] sm:$0xff] %v2900
  %2947 = vst [vmem:[%s8 + $0xe8] sm:$0xff] %v2905
  %2948 = vst [vmem:[%s8 + $0xf0] sm:$0xff] %v2910
  %2949 = vst [vmem:[%s8 + $0xf8] sm:$0xff] %v2915
  // Predicated region
  $region30: #{sgae_forward.17} parent=0 // pred_check
    _
  $region31: #{sgae_forward.17} parent=0 // pred_check_branch
    %2951 = sbr.rel (0) target = $region33
  $region32: #{sgae_forward.17} parent=0 // pred_region
    _
  $region33: #{sgae_forward.17} parent=0 // pred_fallthru
    _
  // Predicated region
  $region34: #{sgae_forward.17} parent=0 // pred_check
    _
  $region35: #{sgae_forward.17} parent=0 // pred_check_branch
    %2953 = sbr.rel (0) target = $region37
  $region36: #{sgae_forward.17} parent=0 // pred_region
    _
  $region37: #{sgae_forward.17} parent=0 // pred_fallthru
    _
  // Predicated region
  $region38: #{sgae_forward.17} parent=0 // pred_check
    _
  $region39: #{sgae_forward.17} parent=0 // pred_check_branch
    %2955 = sbr.rel (0) target = $region41
  $region40: #{sgae_forward.17} parent=0 // pred_region
    _
  $region41: #{sgae_forward.17} parent=0 // pred_fallthru
    _
  // Predicated region
  $region42: #{sgae_forward.17} parent=0 // pred_check
    _
  $region43: #{sgae_forward.17} parent=0 // pred_check_branch
    %2957 = sbr.rel (0) target = $region45
  $region44: #{sgae_forward.17} parent=0 // pred_region
    _
  $region45: #{sgae_forward.17} parent=0 // pred_fallthru
    _

</llo_original>
